<compile_context>
chip_gen: v7x
topology: tpu7x:2x2x1
jax: 0.10.0
libtpu: 0.0.40
codegen_flags: <defaults>
</compile_context>

<pallas_src>
import functools

import jax
import jax.numpy as jnp
from jax import lax
from jax.experimental import pallas as pl
from jax.experimental.pallas import tpu as pltpu


# ----------------------------------------------------------------------------
# Model dims — small but lane-dense (last dims are multiples of 128).
# ----------------------------------------------------------------------------
VOCAB = 512
D_MODEL = 128
N_HEADS = 4
D_HEAD = D_MODEL // N_HEADS
D_FF = 256
EPS = 1e-6
NEG_INF = -1e9


def _vmem_spec():
    return pl.BlockSpec(memory_space=pltpu.MemorySpace.VMEM)


# ----------------------------------------------------------------------------
# In-kernel helpers (f32 elementwise math; MXU ops take bf16 operands).
# ----------------------------------------------------------------------------

def _rmsnorm(x, w):
    # x: [N, D] f32, w: [1, D] f32
    var = jnp.mean(x * x, axis=-1, keepdims=True)
    return x * lax.rsqrt(var + EPS) * w


def _softmax_last(s):
    # NOTE: approx reciprocal -> probs don't sum to exactly 1 (fine for loss).
    s = s - jnp.max(s, axis=-1, keepdims=True)
    p = jnp.exp(s)
    return p * pl.reciprocal(jnp.sum(p, axis=-1, keepdims=True), approx=True)


# ----------------------------------------------------------------------------
# The single fused kernel: embeddings -> encoder -> decoder -> masked CE loss.
# ----------------------------------------------------------------------------

def _seq2seq_loss_kernel(in_ids_ref, dec_ids_ref, labels_ref,
                         in_mask_ref, tgt_mask_ref, tgt_maskf_ref,
                         embed_ref, lm_head_ref, ln_ref,
                         enc_wqkv_ref, enc_wo_ref, enc_wi_ref, enc_wf_ref,
                         dec_swqkv_ref, dec_swo_ref,
                         dec_cwq_ref, dec_cwkv_ref, dec_cwo_ref,
                         dec_wi_ref, dec_wf_ref,
                         loss_ref):
    B, S = in_mask_ref.shape
    _, T = tgt_mask_ref.shape
    V, D = embed_ref.shape
    H = N_HEADS
    dh = D // H
    Ns, Nt = B * S, B * T

    E = embed_ref[...]                                   # [V, D] bf16

    def embed(ids_col, n):
        # In-kernel embedding gather: one-hot(ids) @ E runs on the MXU.
        col = lax.broadcasted_iota(jnp.int32, (n, V), 1)
        oh = (col == ids_col).astype(jnp.bfloat16)       # [n, V]
        return jnp.dot(oh, E, preferred_element_type=jnp.float32)   # [n, D] f32

    def mha(q_all, k_all, v_all, bias, tq, tk, wo):
        # q_all: [B*tq, D] f32, k_all/v_all: [B*tk, D] f32, bias: [B, tq, tk] f32.
        parts = []
        for hidx in range(H):
            sl = slice(hidx * dh, (hidx + 1) * dh)
            q = q_all[:, sl].astype(jnp.bfloat16).reshape(B, tq, dh)
            k = k_all[:, sl].astype(jnp.bfloat16).reshape(B, tk, dh)
            v = v_all[:, sl].astype(jnp.bfloat16).reshape(B, tk, dh)
            s = jnp.einsum('bqd,bkd->bqk', q, k,
                           preferred_element_type=jnp.float32) + bias  # T5: no 1/sqrt(dh)
            p = _softmax_last(s)                                       # f32 softmax
            a = jnp.einsum('bqk,bkd->bqd', p.astype(jnp.bfloat16), v,
                           preferred_element_type=jnp.float32)         # [B, tq, dh]
            parts.append(a.reshape(B * tq, dh))
        # Single full-K (K=D) output projection on the lane-concat of heads.
        ctx = jnp.concatenate(parts, axis=-1).astype(jnp.bfloat16)     # [B*tq, D]
        return jnp.dot(ctx, wo, preferred_element_type=jnp.float32)    # [B*tq, D]

    # ---------------------------- encoder -----------------------------------
    in_mask = in_mask_ref[...]                           # [B, S] f32
    enc_bias = jnp.broadcast_to((1.0 - in_mask)[:, None, :] * NEG_INF,
                                (B, S, S))               # built once, reused by all heads

    h = embed(in_ids_ref[...], Ns)                       # [Ns, D] f32

    ln = _rmsnorm(h, ln_ref[0:1, :]).astype(jnp.bfloat16)
    qkv = jnp.dot(ln, enc_wqkv_ref[...], preferred_element_type=jnp.float32)  # [Ns, 3D]
    h = h + mha(qkv[:, 0:D], qkv[:, D:2 * D], qkv[:, 2 * D:3 * D],
                enc_bias, S, S, enc_wo_ref[...])

    ln = _rmsnorm(h, ln_ref[1:2, :]).astype(jnp.bfloat16)
    ff = jnp.maximum(jnp.dot(ln, enc_wi_ref[...],
                             preferred_element_type=jnp.float32), 0.0)
    h = h + jnp.dot(ff.astype(jnp.bfloat16), enc_wf_ref[...],
                    preferred_element_type=jnp.float32)
    enc_out = _rmsnorm(h, ln_ref[2:3, :])                # [Ns, D] f32 (final enc norm)

    # ---------------------------- decoder -----------------------------------
    tgt_mask = tgt_mask_ref[...]                         # [B, T] f32
    rows = lax.broadcasted_iota(jnp.int32, (T, T), 0)
    cols = lax.broadcasted_iota(jnp.int32, (T, T), 1)
    causal = jnp.where(cols <= rows, 0.0, NEG_INF)       # [T, T] f32
    dec_bias = (1.0 - tgt_mask)[:, None, :] * NEG_INF + causal[None, :, :]   # [B, T, T]
    cross_bias = jnp.broadcast_to((1.0 - in_mask)[:, None, :] * NEG_INF,
                                  (B, T, S))

    y = embed(dec_ids_ref[...], Nt)                      # [Nt, D] f32

    # decoder self-attention block (causal)
    ln = _rmsnorm(y, ln_ref[3:4, :]).astype(jnp.bfloat16)
    qkv = jnp.dot(ln, dec_swqkv_ref[...], preferred_element_type=jnp.float32)
    y = y + mha(qkv[:, 0:D], qkv[:, D:2 * D], qkv[:, 2 * D:3 * D],
                dec_bias, T, T, dec_swo_ref[...])

    # cross-attention block
    ln = _rmsnorm(y, ln_ref[4:5, :]).astype(jnp.bfloat16)
    q_all = jnp.dot(ln, dec_cwq_ref[...], preferred_element_type=jnp.float32)   # [Nt, D]
    kv = jnp.dot(enc_out.astype(jnp.bfloat16), dec_cwkv_ref[...],
                 preferred_element_type=jnp.float32)                            # [Ns, 2D]
    y = y + mha(q_all, kv[:, 0:D], kv[:, D:2 * D],
                cross_bias, T, S, dec_cwo_ref[...])

    # decoder FFN block + final norm
    ln = _rmsnorm(y, ln_ref[5:6, :]).astype(jnp.bfloat16)
    ff = jnp.maximum(jnp.dot(ln, dec_wi_ref[...],
                             preferred_element_type=jnp.float32), 0.0)
    y = y + jnp.dot(ff.astype(jnp.bfloat16), dec_wf_ref[...],
                    preferred_element_type=jnp.float32)
    x = _rmsnorm(y, ln_ref[6:7, :]).astype(jnp.bfloat16)  # [Nt, D]

    # ------------- tied LM head + masked mean CE (logits stay in VMEM) ------
    logits = jnp.dot(x, lm_head_ref[...],
                     preferred_element_type=jnp.float32)  # [Nt, V] f32
    mx = jnp.max(logits, axis=-1, keepdims=True)
    lse = jnp.log(jnp.sum(jnp.exp(logits - mx), axis=-1, keepdims=True)) + mx
    vcol = lax.broadcasted_iota(jnp.int32, (Nt, V), 1)
    tgt_logit = jnp.sum(jnp.where(vcol == labels_ref[...], logits, 0.0),
                        axis=-1, keepdims=True)
    m = tgt_maskf_ref[...]                                # [Nt, 1] f32
    nll = (lse - tgt_logit) * m
    loss_ref[0, 0] = jnp.sum(nll) / jnp.maximum(jnp.sum(m), 1.0)


# ----------------------------------------------------------------------------
# Equivalent of SeqSupervisedNetwork.arg_forward with labels: one fused kernel.
# ----------------------------------------------------------------------------

def seq_supervised_arg_forward(params, input_ids, input_mask,
                               target_ids, target_mask):
    B, S = input_ids.shape
    _, T = target_ids.shape

    # Teacher forcing: shift labels right (pad id 0 = decoder start token).
    dec_ids = jnp.concatenate(
        [jnp.zeros((B, 1), target_ids.dtype), target_ids[:, :-1]], axis=1)

    loss = pl.pallas_call(
        _seq2seq_loss_kernel,
        out_shape=jax.ShapeDtypeStruct((1, 1), jnp.float32),
        in_specs=[_vmem_spec()] * 20,
        out_specs=pl.BlockSpec(memory_space=pltpu.MemorySpace.SMEM),
    )(
        input_ids.reshape(B * S, 1).astype(jnp.int32),
        dec_ids.reshape(B * T, 1).astype(jnp.int32),
        target_ids.reshape(B * T, 1).astype(jnp.int32),
        input_mask.astype(jnp.float32),
        target_mask.astype(jnp.float32),
        target_mask.reshape(B * T, 1).astype(jnp.float32),
        params['embed'], params['lm_head'], params['ln'],
        params['enc_wqkv'], params['enc_wo'], params['enc_wi'], params['enc_wf'],
        params['dec_swqkv'], params['dec_swo'],
        params['dec_cwq'], params['dec_cwkv'], params['dec_cwo'],
        params['dec_wi'], params['dec_wf'],
    )
    return loss[0, 0]


# ----------------------------------------------------------------------------
# Parameters (synthetic, deterministic). Projection weights stored in bf16,
# QKV / KV fused at init, LM head pre-scaled + pre-transposed, RMSNorm weights
# packed into a single [8, D] table.
# ----------------------------------------------------------------------------

def _init_params(key):
    keys = jax.random.split(key, 24)
    it = iter(keys)

    def nrm(shape, scale=0.05):
        return scale * jax.random.normal(next(it), shape, dtype=jnp.float32)

    def proj(n_out=D_MODEL):
        return nrm((D_MODEL, n_out))

    E = nrm((VOCAB, D_MODEL), 1.0)
    p = {
        'embed': E.astype(jnp.bfloat16),                               # [V, D]
        'lm_head': (E * (D_MODEL ** -0.5)).T.astype(jnp.bfloat16),     # [D, V] pre-scaled
        # RMSNorm weights (rows: enc_ln1, enc_ln2, enc_lnf, dec_ln1, dec_ln2,
        # dec_ln3, dec_lnf, pad)
        'ln': jnp.ones((8, D_MODEL), jnp.float32),
        # encoder layer
        'enc_wqkv': jnp.concatenate([proj(), proj(), proj()], axis=1).astype(jnp.bfloat16),
        'enc_wo': proj().astype(jnp.bfloat16),
        'enc_wi': nrm((D_MODEL, D_FF)).astype(jnp.bfloat16),
        'enc_wf': nrm((D_FF, D_MODEL)).astype(jnp.bfloat16),
        # decoder layer
        'dec_swqkv': jnp.concatenate([proj(), proj(), proj()], axis=1).astype(jnp.bfloat16),
        'dec_swo': proj().astype(jnp.bfloat16),
        'dec_cwq': proj().astype(jnp.bfloat16),
        'dec_cwkv': jnp.concatenate([proj(), proj()], axis=1).astype(jnp.bfloat16),
        'dec_cwo': proj().astype(jnp.bfloat16),
        'dec_wi': nrm((D_MODEL, D_FF)).astype(jnp.bfloat16),
        'dec_wf': nrm((D_FF, D_MODEL)).astype(jnp.bfloat16),
    }
    return p


# ----------------------------------------------------------------------------
# Driver
# ----------------------------------------------------------------------------

if __name__ == "__main__":
    key = jax.random.PRNGKey(0)
    kp, ki, kt = jax.random.split(key, 3)

    params = _init_params(kp)

    B, S, T = 2, 8, 8
    input_ids = jax.random.randint(ki, (B, S), 1, VOCAB, dtype=jnp.int32)
    target_ids = jax.random.randint(kt, (B, T), 1, VOCAB, dtype=jnp.int32)

    input_mask = jnp.ones((B, S), jnp.int32).at[1, S - 2:].set(0)
    target_mask = jnp.ones((B, T), jnp.int32).at[1, T - 3:].set(0)

    fwd = jax.jit(functools.partial(seq_supervised_arg_forward, params))
    loss = fwd(input_ids, input_mask, target_ids, target_mask)
    loss = jax.block_until_ready(loss)

    assert loss.shape == () and jnp.isfinite(loss)
    print("KERNEL_OK")
</pallas_src>

<mosaic_0001>
module attributes {stable_mosaic.version = 11 : i64} {
  func.func @_seq2seq_loss_kernel(%arg0: memref<16x1xi32, #tpu.memory_space<vmem>>, %arg1: memref<16x1xi32, #tpu.memory_space<vmem>>, %arg2: memref<16x1xi32, #tpu.memory_space<vmem>>, %arg3: memref<2x8xf32, #tpu.memory_space<vmem>>, %arg4: memref<2x8xf32, #tpu.memory_space<vmem>>, %arg5: memref<16x1xf32, #tpu.memory_space<vmem>>, %arg6: memref<512x128xbf16, #tpu.memory_space<vmem>>, %arg7: memref<128x512xbf16, #tpu.memory_space<vmem>>, %arg8: memref<8x128xf32, #tpu.memory_space<vmem>>, %arg9: memref<128x384xbf16, #tpu.memory_space<vmem>>, %arg10: memref<128x128xbf16, #tpu.memory_space<vmem>>, %arg11: memref<128x256xbf16, #tpu.memory_space<vmem>>, %arg12: memref<256x128xbf16, #tpu.memory_space<vmem>>, %arg13: memref<128x384xbf16, #tpu.memory_space<vmem>>, %arg14: memref<128x128xbf16, #tpu.memory_space<vmem>>, %arg15: memref<128x128xbf16, #tpu.memory_space<vmem>>, %arg16: memref<128x256xbf16, #tpu.memory_space<vmem>>, %arg17: memref<128x128xbf16, #tpu.memory_space<vmem>>, %arg18: memref<128x256xbf16, #tpu.memory_space<vmem>>, %arg19: memref<256x128xbf16, #tpu.memory_space<vmem>>, %arg20: memref<1x1xf32, #tpu.memory_space<smem>>) attributes {dimension_semantics = [], scalar_prefetch = 0 : i64, scratch_operands = 0 : i64, tpu.core_type = #tpu.core_type<tc>} {
    %c0 = arith.constant 0 : index
    %c0_0 = arith.constant 0 : index
    %0 = vector.load %arg6[%c0, %c0_0] : memref<512x128xbf16, #tpu.memory_space<vmem>>, vector<512x128xbf16>
    %c0_1 = arith.constant 0 : index
    %c0_2 = arith.constant 0 : index
    %1 = vector.load %arg3[%c0_1, %c0_2] : memref<2x8xf32, #tpu.memory_space<vmem>>, vector<2x8xf32>
    %cst = arith.constant 1.000000e+00 : f32
    %2 = vector.broadcast %cst : f32 to vector<2x8xf32>
    %3 = arith.subf %2, %1 : vector<2x8xf32>
    %4 = vector.shape_cast %3 : vector<2x8xf32> to vector<2x1x8xf32>
    %cst_3 = arith.constant -1.000000e+09 : f32
    %5 = vector.broadcast %cst_3 : f32 to vector<2x1x8xf32>
    %6 = arith.mulf %4, %5 : vector<2x1x8xf32>
    %7 = vector.shape_cast %6 : vector<2x1x8xf32> to vector<2x1x8xf32>
    %8 = vector.broadcast %7 : vector<2x1x8xf32> to vector<2x8x8xf32>
    %c0_4 = arith.constant 0 : index
    %c0_5 = arith.constant 0 : index
    %9 = vector.load %arg0[%c0_4, %c0_5] : memref<16x1xi32, #tpu.memory_space<vmem>>, vector<16x1xi32>
    %10 = tpu.iota {dimensions = array<i32: 1>} : vector<16x512xi32>
    %11 = vector.broadcast %9 : vector<16x1xi32> to vector<16x512xi32>
    %12 = arith.cmpi eq, %10, %11 : vector<16x512xi32>
    %13 = arith.extui %12 : vector<16x512xi1> to vector<16x512xi32>
    %14 = arith.sitofp %13 : vector<16x512xi32> to vector<16x512xf32>
    %15 = arith.truncf %14 : vector<16x512xf32> to vector<16x512xbf16>
    %cst_6 = arith.constant dense<0.000000e+00> : vector<16x128xf32>
    %16 = tpu.matmul %15, %0, %cst_6 {dimension_numbers = #tpu.dot_dimension_numbers<[1], [0], [0], [1], [0, 0, 1, 1], [], []>} : vector<16x512xbf16>, vector<512x128xbf16>, vector<16x128xf32> -> vector<16x128xf32>
    %c0_7 = arith.constant 0 : index
    %c0_8 = arith.constant 0 : index
    %17 = vector.load %arg8[%c0_7, %c0_8] : memref<8x128xf32, #tpu.memory_space<vmem>>, vector<1x128xf32>
    %18 = arith.mulf %16, %16 : vector<16x128xf32>
    %cst_9 = arith.constant dense<0.000000e+00> : vector<16xf32>
    %19 = vector.multi_reduction <add>, %18, %cst_9 [1] : vector<16x128xf32> to vector<16xf32>
    %20 = vector.shape_cast %19 : vector<16xf32> to vector<16x1xf32>
    %cst_10 = arith.constant 1.280000e+02 : f32
    %21 = vector.broadcast %cst_10 : f32 to vector<16x1xf32>
    %22 = arith.divf %20, %21 : vector<16x1xf32>
    %cst_11 = arith.constant 9.99999997E-7 : f32
    %23 = vector.broadcast %cst_11 : f32 to vector<16x1xf32>
    %24 = arith.addf %22, %23 : vector<16x1xf32>
    %25 = math.rsqrt %24 : vector<16x1xf32>
    %26 = vector.broadcast %25 : vector<16x1xf32> to vector<16x128xf32>
    %27 = arith.mulf %16, %26 : vector<16x128xf32>
    %28 = vector.broadcast %17 : vector<1x128xf32> to vector<16x128xf32>
    %29 = arith.mulf %27, %28 : vector<16x128xf32>
    %30 = arith.truncf %29 : vector<16x128xf32> to vector<16x128xbf16>
    %c0_12 = arith.constant 0 : index
    %c0_13 = arith.constant 0 : index
    %31 = vector.load %arg9[%c0_12, %c0_13] : memref<128x384xbf16, #tpu.memory_space<vmem>>, vector<128x384xbf16>
    %cst_14 = arith.constant dense<0.000000e+00> : vector<16x384xf32>
    %32 = tpu.matmul %30, %31, %cst_14 {dimension_numbers = #tpu.dot_dimension_numbers<[1], [0], [0], [1], [0, 0, 1, 1], [], []>} : vector<16x128xbf16>, vector<128x384xbf16>, vector<16x384xf32> -> vector<16x384xf32>
    %33 = vector.extract_strided_slice %32 {offsets = [0, 0], sizes = [16, 128], strides = [1, 1]} : vector<16x384xf32> to vector<16x128xf32>
    %34 = vector.extract_strided_slice %32 {offsets = [0, 128], sizes = [16, 128], strides = [1, 1]} : vector<16x384xf32> to vector<16x128xf32>
    %35 = vector.extract_strided_slice %32 {offsets = [0, 256], sizes = [16, 128], strides = [1, 1]} : vector<16x384xf32> to vector<16x128xf32>
    %c0_15 = arith.constant 0 : index
    %c0_16 = arith.constant 0 : index
    %36 = vector.load %arg10[%c0_15, %c0_16] : memref<128x128xbf16, #tpu.memory_space<vmem>>, vector<128x128xbf16>
    %37 = vector.extract_strided_slice %33 {offsets = [0, 0], sizes = [16, 32], strides = [1, 1]} : vector<16x128xf32> to vector<16x32xf32>
    %38 = arith.truncf %37 : vector<16x32xf32> to vector<16x32xbf16>
    %39 = vector.shape_cast %38 : vector<16x32xbf16> to vector<2x8x32xbf16>
    %40 = vector.extract_strided_slice %34 {offsets = [0, 0], sizes = [16, 32], strides = [1, 1]} : vector<16x128xf32> to vector<16x32xf32>
    %41 = arith.truncf %40 : vector<16x32xf32> to vector<16x32xbf16>
    %42 = vector.shape_cast %41 : vector<16x32xbf16> to vector<2x8x32xbf16>
    %43 = vector.extract_strided_slice %35 {offsets = [0, 0], sizes = [16, 32], strides = [1, 1]} : vector<16x128xf32> to vector<16x32xf32>
    %44 = arith.truncf %43 : vector<16x32xf32> to vector<16x32xbf16>
    %45 = vector.shape_cast %44 : vector<16x32xbf16> to vector<2x8x32xbf16>
    "tpu.trace_start"() <{level = 10 : i32, message = "bqd,bkd->bqk"}> : () -> ()
    %cst_17 = arith.constant dense<0.000000e+00> : vector<2x8x8xf32>
    %46 = tpu.matmul %39, %42, %cst_17 {dimension_numbers = #tpu.dot_dimension_numbers<[2], [2], [1], [1], [0, 0, 0, 1, 1, 1], [0], [0]>} : vector<2x8x32xbf16>, vector<2x8x32xbf16>, vector<2x8x8xf32> -> vector<2x8x8xf32>
    "tpu.trace_stop"() : () -> ()
    %47 = arith.addf %46, %8 : vector<2x8x8xf32>
    %cst_18 = arith.constant dense<0xFF800000> : vector<2x8xf32>
    %48 = vector.multi_reduction <maximumf>, %47, %cst_18 [2] : vector<2x8x8xf32> to vector<2x8xf32>
    %49 = vector.shape_cast %48 : vector<2x8xf32> to vector<2x8x1xf32>
    %50 = vector.broadcast %49 : vector<2x8x1xf32> to vector<2x8x8xf32>
    %51 = arith.subf %47, %50 : vector<2x8x8xf32>
    %52 = math.exp %51 : vector<2x8x8xf32>
    %cst_19 = arith.constant dense<0.000000e+00> : vector<2x8xf32>
    %53 = vector.multi_reduction <add>, %52, %cst_19 [2] : vector<2x8x8xf32> to vector<2x8xf32>
    %54 = vector.shape_cast %53 : vector<2x8xf32> to vector<2x8x1xf32>
    %55 = tpu.reciprocal %54 {approx = true} : vector<2x8x1xf32> -> vector<2x8x1xf32>
    %56 = vector.broadcast %55 : vector<2x8x1xf32> to vector<2x8x8xf32>
    %57 = arith.mulf %52, %56 : vector<2x8x8xf32>
    %58 = arith.truncf %57 : vector<2x8x8xf32> to vector<2x8x8xbf16>
    "tpu.trace_start"() <{level = 10 : i32, message = "bqk,bkd->bqd"}> : () -> ()
    %cst_20 = arith.constant dense<0.000000e+00> : vector<2x8x32xf32>
    %59 = tpu.matmul %58, %45, %cst_20 {dimension_numbers = #tpu.dot_dimension_numbers<[2], [1], [1], [2], [0, 0, 0, 1, 1, 2], [0], [0]>} : vector<2x8x8xbf16>, vector<2x8x32xbf16>, vector<2x8x32xf32> -> vector<2x8x32xf32>
    "tpu.trace_stop"() : () -> ()
    %60 = vector.shape_cast %59 : vector<2x8x32xf32> to vector<16x32xf32>
    %61 = vector.extract_strided_slice %33 {offsets = [0, 32], sizes = [16, 32], strides = [1, 1]} : vector<16x128xf32> to vector<16x32xf32>
    %62 = arith.truncf %61 : vector<16x32xf32> to vector<16x32xbf16>
    %63 = vector.shape_cast %62 : vector<16x32xbf16> to vector<2x8x32xbf16>
    %64 = vector.extract_strided_slice %34 {offsets = [0, 32], sizes = [16, 32], strides = [1, 1]} : vector<16x128xf32> to vector<16x32xf32>
    %65 = arith.truncf %64 : vector<16x32xf32> to vector<16x32xbf16>
    %66 = vector.shape_cast %65 : vector<16x32xbf16> to vector<2x8x32xbf16>
    %67 = vector.extract_strided_slice %35 {offsets = [0, 32], sizes = [16, 32], strides = [1, 1]} : vector<16x128xf32> to vector<16x32xf32>
    %68 = arith.truncf %67 : vector<16x32xf32> to vector<16x32xbf16>
    %69 = vector.shape_cast %68 : vector<16x32xbf16> to vector<2x8x32xbf16>
    "tpu.trace_start"() <{level = 10 : i32, message = "bqd,bkd->bqk"}> : () -> ()
    %cst_21 = arith.constant dense<0.000000e+00> : vector<2x8x8xf32>
    %70 = tpu.matmul %63, %66, %cst_21 {dimension_numbers = #tpu.dot_dimension_numbers<[2], [2], [1], [1], [0, 0, 0, 1, 1, 1], [0], [0]>} : vector<2x8x32xbf16>, vector<2x8x32xbf16>, vector<2x8x8xf32> -> vector<2x8x8xf32>
    "tpu.trace_stop"() : () -> ()
    %71 = arith.addf %70, %8 : vector<2x8x8xf32>
    %cst_22 = arith.constant dense<0xFF800000> : vector<2x8xf32>
    %72 = vector.multi_reduction <maximumf>, %71, %cst_22 [2] : vector<2x8x8xf32> to vector<2x8xf32>
    %73 = vector.shape_cast %72 : vector<2x8xf32> to vector<2x8x1xf32>
    %74 = vector.broadcast %73 : vector<2x8x1xf32> to vector<2x8x8xf32>
    %75 = arith.subf %71, %74 : vector<2x8x8xf32>
    %76 = math.exp %75 : vector<2x8x8xf32>
    %cst_23 = arith.constant dense<0.000000e+00> : vector<2x8xf32>
    %77 = vector.multi_reduction <add>, %76, %cst_23 [2] : vector<2x8x8xf32> to vector<2x8xf32>
    %78 = vector.shape_cast %77 : vector<2x8xf32> to vector<2x8x1xf32>
    %79 = tpu.reciprocal %78 {approx = true} : vector<2x8x1xf32> -> vector<2x8x1xf32>
    %80 = vector.broadcast %79 : vector<2x8x1xf32> to vector<2x8x8xf32>
    %81 = arith.mulf %76, %80 : vector<2x8x8xf32>
    %82 = arith.truncf %81 : vector<2x8x8xf32> to vector<2x8x8xbf16>
    "tpu.trace_start"() <{level = 10 : i32, message = "bqk,bkd->bqd"}> : () -> ()
    %cst_24 = arith.constant dense<0.000000e+00> : vector<2x8x32xf32>
    %83 = tpu.matmul %82, %69, %cst_24 {dimension_numbers = #tpu.dot_dimension_numbers<[2], [1], [1], [2], [0, 0, 0, 1, 1, 2], [0], [0]>} : vector<2x8x8xbf16>, vector<2x8x32xbf16>, vector<2x8x32xf32> -> vector<2x8x32xf32>
    "tpu.trace_stop"() : () -> ()
    %84 = vector.shape_cast %83 : vector<2x8x32xf32> to vector<16x32xf32>
    %85 = vector.extract_strided_slice %33 {offsets = [0, 64], sizes = [16, 32], strides = [1, 1]} : vector<16x128xf32> to vector<16x32xf32>
    %86 = arith.truncf %85 : vector<16x32xf32> to vector<16x32xbf16>
    %87 = vector.shape_cast %86 : vector<16x32xbf16> to vector<2x8x32xbf16>
    %88 = vector.extract_strided_slice %34 {offsets = [0, 64], sizes = [16, 32], strides = [1, 1]} : vector<16x128xf32> to vector<16x32xf32>
    %89 = arith.truncf %88 : vector<16x32xf32> to vector<16x32xbf16>
    %90 = vector.shape_cast %89 : vector<16x32xbf16> to vector<2x8x32xbf16>
    %91 = vector.extract_strided_slice %35 {offsets = [0, 64], sizes = [16, 32], strides = [1, 1]} : vector<16x128xf32> to vector<16x32xf32>
    %92 = arith.truncf %91 : vector<16x32xf32> to vector<16x32xbf16>
    %93 = vector.shape_cast %92 : vector<16x32xbf16> to vector<2x8x32xbf16>
    "tpu.trace_start"() <{level = 10 : i32, message = "bqd,bkd->bqk"}> : () -> ()
    %cst_25 = arith.constant dense<0.000000e+00> : vector<2x8x8xf32>
    %94 = tpu.matmul %87, %90, %cst_25 {dimension_numbers = #tpu.dot_dimension_numbers<[2], [2], [1], [1], [0, 0, 0, 1, 1, 1], [0], [0]>} : vector<2x8x32xbf16>, vector<2x8x32xbf16>, vector<2x8x8xf32> -> vector<2x8x8xf32>
    "tpu.trace_stop"() : () -> ()
    %95 = arith.addf %94, %8 : vector<2x8x8xf32>
    %cst_26 = arith.constant dense<0xFF800000> : vector<2x8xf32>
    %96 = vector.multi_reduction <maximumf>, %95, %cst_26 [2] : vector<2x8x8xf32> to vector<2x8xf32>
    %97 = vector.shape_cast %96 : vector<2x8xf32> to vector<2x8x1xf32>
    %98 = vector.broadcast %97 : vector<2x8x1xf32> to vector<2x8x8xf32>
    %99 = arith.subf %95, %98 : vector<2x8x8xf32>
    %100 = math.exp %99 : vector<2x8x8xf32>
    %cst_27 = arith.constant dense<0.000000e+00> : vector<2x8xf32>
    %101 = vector.multi_reduction <add>, %100, %cst_27 [2] : vector<2x8x8xf32> to vector<2x8xf32>
    %102 = vector.shape_cast %101 : vector<2x8xf32> to vector<2x8x1xf32>
    %103 = tpu.reciprocal %102 {approx = true} : vector<2x8x1xf32> -> vector<2x8x1xf32>
    %104 = vector.broadcast %103 : vector<2x8x1xf32> to vector<2x8x8xf32>
    %105 = arith.mulf %100, %104 : vector<2x8x8xf32>
    %106 = arith.truncf %105 : vector<2x8x8xf32> to vector<2x8x8xbf16>
    "tpu.trace_start"() <{level = 10 : i32, message = "bqk,bkd->bqd"}> : () -> ()
    %cst_28 = arith.constant dense<0.000000e+00> : vector<2x8x32xf32>
    %107 = tpu.matmul %106, %93, %cst_28 {dimension_numbers = #tpu.dot_dimension_numbers<[2], [1], [1], [2], [0, 0, 0, 1, 1, 2], [0], [0]>} : vector<2x8x8xbf16>, vector<2x8x32xbf16>, vector<2x8x32xf32> -> vector<2x8x32xf32>
    "tpu.trace_stop"() : () -> ()
    %108 = vector.shape_cast %107 : vector<2x8x32xf32> to vector<16x32xf32>
    %109 = vector.extract_strided_slice %33 {offsets = [0, 96], sizes = [16, 32], strides = [1, 1]} : vector<16x128xf32> to vector<16x32xf32>
    %110 = arith.truncf %109 : vector<16x32xf32> to vector<16x32xbf16>
    %111 = vector.shape_cast %110 : vector<16x32xbf16> to vector<2x8x32xbf16>
    %112 = vector.extract_strided_slice %34 {offsets = [0, 96], sizes = [16, 32], strides = [1, 1]} : vector<16x128xf32> to vector<16x32xf32>
    %113 = arith.truncf %112 : vector<16x32xf32> to vector<16x32xbf16>
    %114 = vector.shape_cast %113 : vector<16x32xbf16> to vector<2x8x32xbf16>
    %115 = vector.extract_strided_slice %35 {offsets = [0, 96], sizes = [16, 32], strides = [1, 1]} : vector<16x128xf32> to vector<16x32xf32>
    %116 = arith.truncf %115 : vector<16x32xf32> to vector<16x32xbf16>
    %117 = vector.shape_cast %116 : vector<16x32xbf16> to vector<2x8x32xbf16>
    "tpu.trace_start"() <{level = 10 : i32, message = "bqd,bkd->bqk"}> : () -> ()
    %cst_29 = arith.constant dense<0.000000e+00> : vector<2x8x8xf32>
    %118 = tpu.matmul %111, %114, %cst_29 {dimension_numbers = #tpu.dot_dimension_numbers<[2], [2], [1], [1], [0, 0, 0, 1, 1, 1], [0], [0]>} : vector<2x8x32xbf16>, vector<2x8x32xbf16>, vector<2x8x8xf32> -> vector<2x8x8xf32>
    "tpu.trace_stop"() : () -> ()
    %119 = arith.addf %118, %8 : vector<2x8x8xf32>
    %cst_30 = arith.constant dense<0xFF800000> : vector<2x8xf32>
    %120 = vector.multi_reduction <maximumf>, %119, %cst_30 [2] : vector<2x8x8xf32> to vector<2x8xf32>
    %121 = vector.shape_cast %120 : vector<2x8xf32> to vector<2x8x1xf32>
    %122 = vector.broadcast %121 : vector<2x8x1xf32> to vector<2x8x8xf32>
    %123 = arith.subf %119, %122 : vector<2x8x8xf32>
    %124 = math.exp %123 : vector<2x8x8xf32>
    %cst_31 = arith.constant dense<0.000000e+00> : vector<2x8xf32>
    %125 = vector.multi_reduction <add>, %124, %cst_31 [2] : vector<2x8x8xf32> to vector<2x8xf32>
    %126 = vector.shape_cast %125 : vector<2x8xf32> to vector<2x8x1xf32>
    %127 = tpu.reciprocal %126 {approx = true} : vector<2x8x1xf32> -> vector<2x8x1xf32>
    %128 = vector.broadcast %127 : vector<2x8x1xf32> to vector<2x8x8xf32>
    %129 = arith.mulf %124, %128 : vector<2x8x8xf32>
    %130 = arith.truncf %129 : vector<2x8x8xf32> to vector<2x8x8xbf16>
    "tpu.trace_start"() <{level = 10 : i32, message = "bqk,bkd->bqd"}> : () -> ()
    %cst_32 = arith.constant dense<0.000000e+00> : vector<2x8x32xf32>
    %131 = tpu.matmul %130, %117, %cst_32 {dimension_numbers = #tpu.dot_dimension_numbers<[2], [1], [1], [2], [0, 0, 0, 1, 1, 2], [0], [0]>} : vector<2x8x8xbf16>, vector<2x8x32xbf16>, vector<2x8x32xf32> -> vector<2x8x32xf32>
    "tpu.trace_stop"() : () -> ()
    %132 = vector.shape_cast %131 : vector<2x8x32xf32> to vector<16x32xf32>
    %133 = tpu.concatenate %60, %84, %108, %132 in 1 : vector<16x32xf32>, vector<16x32xf32>, vector<16x32xf32>, vector<16x32xf32> -> vector<16x128xf32>
    %134 = arith.truncf %133 : vector<16x128xf32> to vector<16x128xbf16>
    %cst_33 = arith.constant dense<0.000000e+00> : vector<16x128xf32>
    %135 = tpu.matmul %134, %36, %cst_33 {dimension_numbers = #tpu.dot_dimension_numbers<[1], [0], [0], [1], [0, 0, 1, 1], [], []>} : vector<16x128xbf16>, vector<128x128xbf16>, vector<16x128xf32> -> vector<16x128xf32>
    %136 = arith.addf %16, %135 : vector<16x128xf32>
    %c1 = arith.constant 1 : index
    %c0_34 = arith.constant 0 : index
    %137 = vector.load %arg8[%c1, %c0_34] : memref<8x128xf32, #tpu.memory_space<vmem>>, vector<1x128xf32>
    %138 = arith.mulf %136, %136 : vector<16x128xf32>
    %cst_35 = arith.constant dense<0.000000e+00> : vector<16xf32>
    %139 = vector.multi_reduction <add>, %138, %cst_35 [1] : vector<16x128xf32> to vector<16xf32>
    %140 = vector.shape_cast %139 : vector<16xf32> to vector<16x1xf32>
    %cst_36 = arith.constant 1.280000e+02 : f32
    %141 = vector.broadcast %cst_36 : f32 to vector<16x1xf32>
    %142 = arith.divf %140, %141 : vector<16x1xf32>
    %cst_37 = arith.constant 9.99999997E-7 : f32
    %143 = vector.broadcast %cst_37 : f32 to vector<16x1xf32>
    %144 = arith.addf %142, %143 : vector<16x1xf32>
    %145 = math.rsqrt %144 : vector<16x1xf32>
    %146 = vector.broadcast %145 : vector<16x1xf32> to vector<16x128xf32>
    %147 = arith.mulf %136, %146 : vector<16x128xf32>
    %148 = vector.broadcast %137 : vector<1x128xf32> to vector<16x128xf32>
    %149 = arith.mulf %147, %148 : vector<16x128xf32>
    %150 = arith.truncf %149 : vector<16x128xf32> to vector<16x128xbf16>
    %c0_38 = arith.constant 0 : index
    %c0_39 = arith.constant 0 : index
    %151 = vector.load %arg11[%c0_38, %c0_39] : memref<128x256xbf16, #tpu.memory_space<vmem>>, vector<128x256xbf16>
    %cst_40 = arith.constant dense<0.000000e+00> : vector<16x256xf32>
    %152 = tpu.matmul %150, %151, %cst_40 {dimension_numbers = #tpu.dot_dimension_numbers<[1], [0], [0], [1], [0, 0, 1, 1], [], []>} : vector<16x128xbf16>, vector<128x256xbf16>, vector<16x256xf32> -> vector<16x256xf32>
    %cst_41 = arith.constant 0.000000e+00 : f32
    %153 = vector.broadcast %cst_41 : f32 to vector<16x256xf32>
    %154 = arith.maximumf %152, %153 : vector<16x256xf32>
    %155 = arith.truncf %154 : vector<16x256xf32> to vector<16x256xbf16>
    %c0_42 = arith.constant 0 : index
    %c0_43 = arith.constant 0 : index
    %156 = vector.load %arg12[%c0_42, %c0_43] : memref<256x128xbf16, #tpu.memory_space<vmem>>, vector<256x128xbf16>
    %cst_44 = arith.constant dense<0.000000e+00> : vector<16x128xf32>
    %157 = tpu.matmul %155, %156, %cst_44 {dimension_numbers = #tpu.dot_dimension_numbers<[1], [0], [0], [1], [0, 0, 1, 1], [], []>} : vector<16x256xbf16>, vector<256x128xbf16>, vector<16x128xf32> -> vector<16x128xf32>
    %158 = arith.addf %136, %157 : vector<16x128xf32>
    %c2 = arith.constant 2 : index
    %c0_45 = arith.constant 0 : index
    %159 = vector.load %arg8[%c2, %c0_45] : memref<8x128xf32, #tpu.memory_space<vmem>>, vector<1x128xf32>
    %160 = arith.mulf %158, %158 : vector<16x128xf32>
    %cst_46 = arith.constant dense<0.000000e+00> : vector<16xf32>
    %161 = vector.multi_reduction <add>, %160, %cst_46 [1] : vector<16x128xf32> to vector<16xf32>
    %162 = vector.shape_cast %161 : vector<16xf32> to vector<16x1xf32>
    %cst_47 = arith.constant 1.280000e+02 : f32
    %163 = vector.broadcast %cst_47 : f32 to vector<16x1xf32>
    %164 = arith.divf %162, %163 : vector<16x1xf32>
    %cst_48 = arith.constant 9.99999997E-7 : f32
    %165 = vector.broadcast %cst_48 : f32 to vector<16x1xf32>
    %166 = arith.addf %164, %165 : vector<16x1xf32>
    %167 = math.rsqrt %166 : vector<16x1xf32>
    %168 = vector.broadcast %167 : vector<16x1xf32> to vector<16x128xf32>
    %169 = arith.mulf %158, %168 : vector<16x128xf32>
    %170 = vector.broadcast %159 : vector<1x128xf32> to vector<16x128xf32>
    %171 = arith.mulf %169, %170 : vector<16x128xf32>
    %c0_49 = arith.constant 0 : index
    %c0_50 = arith.constant 0 : index
    %172 = vector.load %arg4[%c0_49, %c0_50] : memref<2x8xf32, #tpu.memory_space<vmem>>, vector<2x8xf32>
    %173 = tpu.iota {dimensions = array<i32: 0>} : vector<8x8xi32>
    %174 = tpu.iota {dimensions = array<i32: 1>} : vector<8x8xi32>
    %175 = arith.cmpi sle, %174, %173 : vector<8x8xi32>
    %cst_51 = arith.constant 0.000000e+00 : f32
    %cst_52 = arith.constant -1.000000e+09 : f32
    %176 = vector.broadcast %cst_51 : f32 to vector<8x8xf32>
    %177 = vector.broadcast %cst_52 : f32 to vector<8x8xf32>
    %178 = arith.select %175, %176, %177 : vector<8x8xi1>, vector<8x8xf32>
    %cst_53 = arith.constant 1.000000e+00 : f32
    %179 = vector.broadcast %cst_53 : f32 to vector<2x8xf32>
    %180 = arith.subf %179, %172 : vector<2x8xf32>
    %181 = vector.shape_cast %180 : vector<2x8xf32> to vector<2x1x8xf32>
    %cst_54 = arith.constant -1.000000e+09 : f32
    %182 = vector.broadcast %cst_54 : f32 to vector<2x1x8xf32>
    %183 = arith.mulf %181, %182 : vector<2x1x8xf32>
    %184 = vector.shape_cast %178 : vector<8x8xf32> to vector<1x8x8xf32>
    %185 = vector.broadcast %183 : vector<2x1x8xf32> to vector<2x8x8xf32>
    %186 = vector.broadcast %184 : vector<1x8x8xf32> to vector<2x8x8xf32>
    %187 = arith.addf %185, %186 : vector<2x8x8xf32>
    %cst_55 = arith.constant 1.000000e+00 : f32
    %188 = vector.broadcast %cst_55 : f32 to vector<2x8xf32>
    %189 = arith.subf %188, %1 : vector<2x8xf32>
    %190 = vector.shape_cast %189 : vector<2x8xf32> to vector<2x1x8xf32>
    %cst_56 = arith.constant -1.000000e+09 : f32
    %191 = vector.broadcast %cst_56 : f32 to vector<2x1x8xf32>
    %192 = arith.mulf %190, %191 : vector<2x1x8xf32>
    %193 = vector.shape_cast %192 : vector<2x1x8xf32> to vector<2x1x8xf32>
    %194 = vector.broadcast %193 : vector<2x1x8xf32> to vector<2x8x8xf32>
    %c0_57 = arith.constant 0 : index
    %c0_58 = arith.constant 0 : index
    %195 = vector.load %arg1[%c0_57, %c0_58] : memref<16x1xi32, #tpu.memory_space<vmem>>, vector<16x1xi32>
    %196 = tpu.iota {dimensions = array<i32: 1>} : vector<16x512xi32>
    %197 = vector.broadcast %195 : vector<16x1xi32> to vector<16x512xi32>
    %198 = arith.cmpi eq, %196, %197 : vector<16x512xi32>
    %199 = arith.extui %198 : vector<16x512xi1> to vector<16x512xi32>
    %200 = arith.sitofp %199 : vector<16x512xi32> to vector<16x512xf32>
    %201 = arith.truncf %200 : vector<16x512xf32> to vector<16x512xbf16>
    %cst_59 = arith.constant dense<0.000000e+00> : vector<16x128xf32>
    %202 = tpu.matmul %201, %0, %cst_59 {dimension_numbers = #tpu.dot_dimension_numbers<[1], [0], [0], [1], [0, 0, 1, 1], [], []>} : vector<16x512xbf16>, vector<512x128xbf16>, vector<16x128xf32> -> vector<16x128xf32>
    %c3 = arith.constant 3 : index
    %c0_60 = arith.constant 0 : index
    %203 = vector.load %arg8[%c3, %c0_60] : memref<8x128xf32, #tpu.memory_space<vmem>>, vector<1x128xf32>
    %204 = arith.mulf %202, %202 : vector<16x128xf32>
    %cst_61 = arith.constant dense<0.000000e+00> : vector<16xf32>
    %205 = vector.multi_reduction <add>, %204, %cst_61 [1] : vector<16x128xf32> to vector<16xf32>
    %206 = vector.shape_cast %205 : vector<16xf32> to vector<16x1xf32>
    %cst_62 = arith.constant 1.280000e+02 : f32
    %207 = vector.broadcast %cst_62 : f32 to vector<16x1xf32>
    %208 = arith.divf %206, %207 : vector<16x1xf32>
    %cst_63 = arith.constant 9.99999997E-7 : f32
    %209 = vector.broadcast %cst_63 : f32 to vector<16x1xf32>
    %210 = arith.addf %208, %209 : vector<16x1xf32>
    %211 = math.rsqrt %210 : vector<16x1xf32>
    %212 = vector.broadcast %211 : vector<16x1xf32> to vector<16x128xf32>
    %213 = arith.mulf %202, %212 : vector<16x128xf32>
    %214 = vector.broadcast %203 : vector<1x128xf32> to vector<16x128xf32>
    %215 = arith.mulf %213, %214 : vector<16x128xf32>
    %216 = arith.truncf %215 : vector<16x128xf32> to vector<16x128xbf16>
    %c0_64 = arith.constant 0 : index
    %c0_65 = arith.constant 0 : index
    %217 = vector.load %arg13[%c0_64, %c0_65] : memref<128x384xbf16, #tpu.memory_space<vmem>>, vector<128x384xbf16>
    %cst_66 = arith.constant dense<0.000000e+00> : vector<16x384xf32>
    %218 = tpu.matmul %216, %217, %cst_66 {dimension_numbers = #tpu.dot_dimension_numbers<[1], [0], [0], [1], [0, 0, 1, 1], [], []>} : vector<16x128xbf16>, vector<128x384xbf16>, vector<16x384xf32> -> vector<16x384xf32>
    %219 = vector.extract_strided_slice %218 {offsets = [0, 0], sizes = [16, 128], strides = [1, 1]} : vector<16x384xf32> to vector<16x128xf32>
    %220 = vector.extract_strided_slice %218 {offsets = [0, 128], sizes = [16, 128], strides = [1, 1]} : vector<16x384xf32> to vector<16x128xf32>
    %221 = vector.extract_strided_slice %218 {offsets = [0, 256], sizes = [16, 128], strides = [1, 1]} : vector<16x384xf32> to vector<16x128xf32>
    %c0_67 = arith.constant 0 : index
    %c0_68 = arith.constant 0 : index
    %222 = vector.load %arg14[%c0_67, %c0_68] : memref<128x128xbf16, #tpu.memory_space<vmem>>, vector<128x128xbf16>
    %223 = vector.extract_strided_slice %219 {offsets = [0, 0], sizes = [16, 32], strides = [1, 1]} : vector<16x128xf32> to vector<16x32xf32>
    %224 = arith.truncf %223 : vector<16x32xf32> to vector<16x32xbf16>
    %225 = vector.shape_cast %224 : vector<16x32xbf16> to vector<2x8x32xbf16>
    %226 = vector.extract_strided_slice %220 {offsets = [0, 0], sizes = [16, 32], strides = [1, 1]} : vector<16x128xf32> to vector<16x32xf32>
    %227 = arith.truncf %226 : vector<16x32xf32> to vector<16x32xbf16>
    %228 = vector.shape_cast %227 : vector<16x32xbf16> to vector<2x8x32xbf16>
    %229 = vector.extract_strided_slice %221 {offsets = [0, 0], sizes = [16, 32], strides = [1, 1]} : vector<16x128xf32> to vector<16x32xf32>
    %230 = arith.truncf %229 : vector<16x32xf32> to vector<16x32xbf16>
    %231 = vector.shape_cast %230 : vector<16x32xbf16> to vector<2x8x32xbf16>
    "tpu.trace_start"() <{level = 10 : i32, message = "bqd,bkd->bqk"}> : () -> ()
    %cst_69 = arith.constant dense<0.000000e+00> : vector<2x8x8xf32>
    %232 = tpu.matmul %225, %228, %cst_69 {dimension_numbers = #tpu.dot_dimension_numbers<[2], [2], [1], [1], [0, 0, 0, 1, 1, 1], [0], [0]>} : vector<2x8x32xbf16>, vector<2x8x32xbf16>, vector<2x8x8xf32> -> vector<2x8x8xf32>
    "tpu.trace_stop"() : () -> ()
    %233 = arith.addf %232, %187 : vector<2x8x8xf32>
    %cst_70 = arith.constant dense<0xFF800000> : vector<2x8xf32>
    %234 = vector.multi_reduction <maximumf>, %233, %cst_70 [2] : vector<2x8x8xf32> to vector<2x8xf32>
    %235 = vector.shape_cast %234 : vector<2x8xf32> to vector<2x8x1xf32>
    %236 = vector.broadcast %235 : vector<2x8x1xf32> to vector<2x8x8xf32>
    %237 = arith.subf %233, %236 : vector<2x8x8xf32>
    %238 = math.exp %237 : vector<2x8x8xf32>
    %cst_71 = arith.constant dense<0.000000e+00> : vector<2x8xf32>
    %239 = vector.multi_reduction <add>, %238, %cst_71 [2] : vector<2x8x8xf32> to vector<2x8xf32>
    %240 = vector.shape_cast %239 : vector<2x8xf32> to vector<2x8x1xf32>
    %241 = tpu.reciprocal %240 {approx = true} : vector<2x8x1xf32> -> vector<2x8x1xf32>
    %242 = vector.broadcast %241 : vector<2x8x1xf32> to vector<2x8x8xf32>
    %243 = arith.mulf %238, %242 : vector<2x8x8xf32>
    %244 = arith.truncf %243 : vector<2x8x8xf32> to vector<2x8x8xbf16>
    "tpu.trace_start"() <{level = 10 : i32, message = "bqk,bkd->bqd"}> : () -> ()
    %cst_72 = arith.constant dense<0.000000e+00> : vector<2x8x32xf32>
    %245 = tpu.matmul %244, %231, %cst_72 {dimension_numbers = #tpu.dot_dimension_numbers<[2], [1], [1], [2], [0, 0, 0, 1, 1, 2], [0], [0]>} : vector<2x8x8xbf16>, vector<2x8x32xbf16>, vector<2x8x32xf32> -> vector<2x8x32xf32>
    "tpu.trace_stop"() : () -> ()
    %246 = vector.shape_cast %245 : vector<2x8x32xf32> to vector<16x32xf32>
    %247 = vector.extract_strided_slice %219 {offsets = [0, 32], sizes = [16, 32], strides = [1, 1]} : vector<16x128xf32> to vector<16x32xf32>
    %248 = arith.truncf %247 : vector<16x32xf32> to vector<16x32xbf16>
    %249 = vector.shape_cast %248 : vector<16x32xbf16> to vector<2x8x32xbf16>
    %250 = vector.extract_strided_slice %220 {offsets = [0, 32], sizes = [16, 32], strides = [1, 1]} : vector<16x128xf32> to vector<16x32xf32>
    %251 = arith.truncf %250 : vector<16x32xf32> to vector<16x32xbf16>
    %252 = vector.shape_cast %251 : vector<16x32xbf16> to vector<2x8x32xbf16>
    %253 = vector.extract_strided_slice %221 {offsets = [0, 32], sizes = [16, 32], strides = [1, 1]} : vector<16x128xf32> to vector<16x32xf32>
    %254 = arith.truncf %253 : vector<16x32xf32> to vector<16x32xbf16>
    %255 = vector.shape_cast %254 : vector<16x32xbf16> to vector<2x8x32xbf16>
    "tpu.trace_start"() <{level = 10 : i32, message = "bqd,bkd->bqk"}> : () -> ()
    %cst_73 = arith.constant dense<0.000000e+00> : vector<2x8x8xf32>
    %256 = tpu.matmul %249, %252, %cst_73 {dimension_numbers = #tpu.dot_dimension_numbers<[2], [2], [1], [1], [0, 0, 0, 1, 1, 1], [0], [0]>} : vector<2x8x32xbf16>, vector<2x8x32xbf16>, vector<2x8x8xf32> -> vector<2x8x8xf32>
    "tpu.trace_stop"() : () -> ()
    %257 = arith.addf %256, %187 : vector<2x8x8xf32>
    %cst_74 = arith.constant dense<0xFF800000> : vector<2x8xf32>
    %258 = vector.multi_reduction <maximumf>, %257, %cst_74 [2] : vector<2x8x8xf32> to vector<2x8xf32>
    %259 = vector.shape_cast %258 : vector<2x8xf32> to vector<2x8x1xf32>
    %260 = vector.broadcast %259 : vector<2x8x1xf32> to vector<2x8x8xf32>
    %261 = arith.subf %257, %260 : vector<2x8x8xf32>
    %262 = math.exp %261 : vector<2x8x8xf32>
    %cst_75 = arith.constant dense<0.000000e+00> : vector<2x8xf32>
    %263 = vector.multi_reduction <add>, %262, %cst_75 [2] : vector<2x8x8xf32> to vector<2x8xf32>
    %264 = vector.shape_cast %263 : vector<2x8xf32> to vector<2x8x1xf32>
    %265 = tpu.reciprocal %264 {approx = true} : vector<2x8x1xf32> -> vector<2x8x1xf32>
    %266 = vector.broadcast %265 : vector<2x8x1xf32> to vector<2x8x8xf32>
    %267 = arith.mulf %262, %266 : vector<2x8x8xf32>
    %268 = arith.truncf %267 : vector<2x8x8xf32> to vector<2x8x8xbf16>
    "tpu.trace_start"() <{level = 10 : i32, message = "bqk,bkd->bqd"}> : () -> ()
    %cst_76 = arith.constant dense<0.000000e+00> : vector<2x8x32xf32>
    %269 = tpu.matmul %268, %255, %cst_76 {dimension_numbers = #tpu.dot_dimension_numbers<[2], [1], [1], [2], [0, 0, 0, 1, 1, 2], [0], [0]>} : vector<2x8x8xbf16>, vector<2x8x32xbf16>, vector<2x8x32xf32> -> vector<2x8x32xf32>
    "tpu.trace_stop"() : () -> ()
    %270 = vector.shape_cast %269 : vector<2x8x32xf32> to vector<16x32xf32>
    %271 = vector.extract_strided_slice %219 {offsets = [0, 64], sizes = [16, 32], strides = [1, 1]} : vector<16x128xf32> to vector<16x32xf32>
    %272 = arith.truncf %271 : vector<16x32xf32> to vector<16x32xbf16>
    %273 = vector.shape_cast %272 : vector<16x32xbf16> to vector<2x8x32xbf16>
    %274 = vector.extract_strided_slice %220 {offsets = [0, 64], sizes = [16, 32], strides = [1, 1]} : vector<16x128xf32> to vector<16x32xf32>
    %275 = arith.truncf %274 : vector<16x32xf32> to vector<16x32xbf16>
    %276 = vector.shape_cast %275 : vector<16x32xbf16> to vector<2x8x32xbf16>
    %277 = vector.extract_strided_slice %221 {offsets = [0, 64], sizes = [16, 32], strides = [1, 1]} : vector<16x128xf32> to vector<16x32xf32>
    %278 = arith.truncf %277 : vector<16x32xf32> to vector<16x32xbf16>
    %279 = vector.shape_cast %278 : vector<16x32xbf16> to vector<2x8x32xbf16>
    "tpu.trace_start"() <{level = 10 : i32, message = "bqd,bkd->bqk"}> : () -> ()
    %cst_77 = arith.constant dense<0.000000e+00> : vector<2x8x8xf32>
    %280 = tpu.matmul %273, %276, %cst_77 {dimension_numbers = #tpu.dot_dimension_numbers<[2], [2], [1], [1], [0, 0, 0, 1, 1, 1], [0], [0]>} : vector<2x8x32xbf16>, vector<2x8x32xbf16>, vector<2x8x8xf32> -> vector<2x8x8xf32>
    "tpu.trace_stop"() : () -> ()
    %281 = arith.addf %280, %187 : vector<2x8x8xf32>
    %cst_78 = arith.constant dense<0xFF800000> : vector<2x8xf32>
    %282 = vector.multi_reduction <maximumf>, %281, %cst_78 [2] : vector<2x8x8xf32> to vector<2x8xf32>
    %283 = vector.shape_cast %282 : vector<2x8xf32> to vector<2x8x1xf32>
    %284 = vector.broadcast %283 : vector<2x8x1xf32> to vector<2x8x8xf32>
    %285 = arith.subf %281, %284 : vector<2x8x8xf32>
    %286 = math.exp %285 : vector<2x8x8xf32>
    %cst_79 = arith.constant dense<0.000000e+00> : vector<2x8xf32>
    %287 = vector.multi_reduction <add>, %286, %cst_79 [2] : vector<2x8x8xf32> to vector<2x8xf32>
    %288 = vector.shape_cast %287 : vector<2x8xf32> to vector<2x8x1xf32>
    %289 = tpu.reciprocal %288 {approx = true} : vector<2x8x1xf32> -> vector<2x8x1xf32>
    %290 = vector.broadcast %289 : vector<2x8x1xf32> to vector<2x8x8xf32>
    %291 = arith.mulf %286, %290 : vector<2x8x8xf32>
    %292 = arith.truncf %291 : vector<2x8x8xf32> to vector<2x8x8xbf16>
    "tpu.trace_start"() <{level = 10 : i32, message = "bqk,bkd->bqd"}> : () -> ()
    %cst_80 = arith.constant dense<0.000000e+00> : vector<2x8x32xf32>
    %293 = tpu.matmul %292, %279, %cst_80 {dimension_numbers = #tpu.dot_dimension_numbers<[2], [1], [1], [2], [0, 0, 0, 1, 1, 2], [0], [0]>} : vector<2x8x8xbf16>, vector<2x8x32xbf16>, vector<2x8x32xf32> -> vector<2x8x32xf32>
    "tpu.trace_stop"() : () -> ()
    %294 = vector.shape_cast %293 : vector<2x8x32xf32> to vector<16x32xf32>
    %295 = vector.extract_strided_slice %219 {offsets = [0, 96], sizes = [16, 32], strides = [1, 1]} : vector<16x128xf32> to vector<16x32xf32>
    %296 = arith.truncf %295 : vector<16x32xf32> to vector<16x32xbf16>
    %297 = vector.shape_cast %296 : vector<16x32xbf16> to vector<2x8x32xbf16>
    %298 = vector.extract_strided_slice %220 {offsets = [0, 96], sizes = [16, 32], strides = [1, 1]} : vector<16x128xf32> to vector<16x32xf32>
    %299 = arith.truncf %298 : vector<16x32xf32> to vector<16x32xbf16>
    %300 = vector.shape_cast %299 : vector<16x32xbf16> to vector<2x8x32xbf16>
    %301 = vector.extract_strided_slice %221 {offsets = [0, 96], sizes = [16, 32], strides = [1, 1]} : vector<16x128xf32> to vector<16x32xf32>
    %302 = arith.truncf %301 : vector<16x32xf32> to vector<16x32xbf16>
    %303 = vector.shape_cast %302 : vector<16x32xbf16> to vector<2x8x32xbf16>
    "tpu.trace_start"() <{level = 10 : i32, message = "bqd,bkd->bqk"}> : () -> ()
    %cst_81 = arith.constant dense<0.000000e+00> : vector<2x8x8xf32>
    %304 = tpu.matmul %297, %300, %cst_81 {dimension_numbers = #tpu.dot_dimension_numbers<[2], [2], [1], [1], [0, 0, 0, 1, 1, 1], [0], [0]>} : vector<2x8x32xbf16>, vector<2x8x32xbf16>, vector<2x8x8xf32> -> vector<2x8x8xf32>
    "tpu.trace_stop"() : () -> ()
    %305 = arith.addf %304, %187 : vector<2x8x8xf32>
    %cst_82 = arith.constant dense<0xFF800000> : vector<2x8xf32>
    %306 = vector.multi_reduction <maximumf>, %305, %cst_82 [2] : vector<2x8x8xf32> to vector<2x8xf32>
    %307 = vector.shape_cast %306 : vector<2x8xf32> to vector<2x8x1xf32>
    %308 = vector.broadcast %307 : vector<2x8x1xf32> to vector<2x8x8xf32>
    %309 = arith.subf %305, %308 : vector<2x8x8xf32>
    %310 = math.exp %309 : vector<2x8x8xf32>
    %cst_83 = arith.constant dense<0.000000e+00> : vector<2x8xf32>
    %311 = vector.multi_reduction <add>, %310, %cst_83 [2] : vector<2x8x8xf32> to vector<2x8xf32>
    %312 = vector.shape_cast %311 : vector<2x8xf32> to vector<2x8x1xf32>
    %313 = tpu.reciprocal %312 {approx = true} : vector<2x8x1xf32> -> vector<2x8x1xf32>
    %314 = vector.broadcast %313 : vector<2x8x1xf32> to vector<2x8x8xf32>
    %315 = arith.mulf %310, %314 : vector<2x8x8xf32>
    %316 = arith.truncf %315 : vector<2x8x8xf32> to vector<2x8x8xbf16>
    "tpu.trace_start"() <{level = 10 : i32, message = "bqk,bkd->bqd"}> : () -> ()
    %cst_84 = arith.constant dense<0.000000e+00> : vector<2x8x32xf32>
    %317 = tpu.matmul %316, %303, %cst_84 {dimension_numbers = #tpu.dot_dimension_numbers<[2], [1], [1], [2], [0, 0, 0, 1, 1, 2], [0], [0]>} : vector<2x8x8xbf16>, vector<2x8x32xbf16>, vector<2x8x32xf32> -> vector<2x8x32xf32>
    "tpu.trace_stop"() : () -> ()
    %318 = vector.shape_cast %317 : vector<2x8x32xf32> to vector<16x32xf32>
    %319 = tpu.concatenate %246, %270, %294, %318 in 1 : vector<16x32xf32>, vector<16x32xf32>, vector<16x32xf32>, vector<16x32xf32> -> vector<16x128xf32>
    %320 = arith.truncf %319 : vector<16x128xf32> to vector<16x128xbf16>
    %cst_85 = arith.constant dense<0.000000e+00> : vector<16x128xf32>
    %321 = tpu.matmul %320, %222, %cst_85 {dimension_numbers = #tpu.dot_dimension_numbers<[1], [0], [0], [1], [0, 0, 1, 1], [], []>} : vector<16x128xbf16>, vector<128x128xbf16>, vector<16x128xf32> -> vector<16x128xf32>
    %322 = arith.addf %202, %321 : vector<16x128xf32>
    %c4 = arith.constant 4 : index
    %c0_86 = arith.constant 0 : index
    %323 = vector.load %arg8[%c4, %c0_86] : memref<8x128xf32, #tpu.memory_space<vmem>>, vector<1x128xf32>
    %324 = arith.mulf %322, %322 : vector<16x128xf32>
    %cst_87 = arith.constant dense<0.000000e+00> : vector<16xf32>
    %325 = vector.multi_reduction <add>, %324, %cst_87 [1] : vector<16x128xf32> to vector<16xf32>
    %326 = vector.shape_cast %325 : vector<16xf32> to vector<16x1xf32>
    %cst_88 = arith.constant 1.280000e+02 : f32
    %327 = vector.broadcast %cst_88 : f32 to vector<16x1xf32>
    %328 = arith.divf %326, %327 : vector<16x1xf32>
    %cst_89 = arith.constant 9.99999997E-7 : f32
    %329 = vector.broadcast %cst_89 : f32 to vector<16x1xf32>
    %330 = arith.addf %328, %329 : vector<16x1xf32>
    %331 = math.rsqrt %330 : vector<16x1xf32>
    %332 = vector.broadcast %331 : vector<16x1xf32> to vector<16x128xf32>
    %333 = arith.mulf %322, %332 : vector<16x128xf32>
    %334 = vector.broadcast %323 : vector<1x128xf32> to vector<16x128xf32>
    %335 = arith.mulf %333, %334 : vector<16x128xf32>
    %336 = arith.truncf %335 : vector<16x128xf32> to vector<16x128xbf16>
    %c0_90 = arith.constant 0 : index
    %c0_91 = arith.constant 0 : index
    %337 = vector.load %arg15[%c0_90, %c0_91] : memref<128x128xbf16, #tpu.memory_space<vmem>>, vector<128x128xbf16>
    %cst_92 = arith.constant dense<0.000000e+00> : vector<16x128xf32>
    %338 = tpu.matmul %336, %337, %cst_92 {dimension_numbers = #tpu.dot_dimension_numbers<[1], [0], [0], [1], [0, 0, 1, 1], [], []>} : vector<16x128xbf16>, vector<128x128xbf16>, vector<16x128xf32> -> vector<16x128xf32>
    %339 = arith.truncf %171 : vector<16x128xf32> to vector<16x128xbf16>
    %c0_93 = arith.constant 0 : index
    %c0_94 = arith.constant 0 : index
    %340 = vector.load %arg16[%c0_93, %c0_94] : memref<128x256xbf16, #tpu.memory_space<vmem>>, vector<128x256xbf16>
    %cst_95 = arith.constant dense<0.000000e+00> : vector<16x256xf32>
    %341 = tpu.matmul %339, %340, %cst_95 {dimension_numbers = #tpu.dot_dimension_numbers<[1], [0], [0], [1], [0, 0, 1, 1], [], []>} : vector<16x128xbf16>, vector<128x256xbf16>, vector<16x256xf32> -> vector<16x256xf32>
    %342 = vector.extract_strided_slice %341 {offsets = [0, 0], sizes = [16, 128], strides = [1, 1]} : vector<16x256xf32> to vector<16x128xf32>
    %343 = vector.extract_strided_slice %341 {offsets = [0, 128], sizes = [16, 128], strides = [1, 1]} : vector<16x256xf32> to vector<16x128xf32>
    %c0_96 = arith.constant 0 : index
    %c0_97 = arith.constant 0 : index
    %344 = vector.load %arg17[%c0_96, %c0_97] : memref<128x128xbf16, #tpu.memory_space<vmem>>, vector<128x128xbf16>
    %345 = vector.extract_strided_slice %338 {offsets = [0, 0], sizes = [16, 32], strides = [1, 1]} : vector<16x128xf32> to vector<16x32xf32>
    %346 = arith.truncf %345 : vector<16x32xf32> to vector<16x32xbf16>
    %347 = vector.shape_cast %346 : vector<16x32xbf16> to vector<2x8x32xbf16>
    %348 = vector.extract_strided_slice %342 {offsets = [0, 0], sizes = [16, 32], strides = [1, 1]} : vector<16x128xf32> to vector<16x32xf32>
    %349 = arith.truncf %348 : vector<16x32xf32> to vector<16x32xbf16>
    %350 = vector.shape_cast %349 : vector<16x32xbf16> to vector<2x8x32xbf16>
    %351 = vector.extract_strided_slice %343 {offsets = [0, 0], sizes = [16, 32], strides = [1, 1]} : vector<16x128xf32> to vector<16x32xf32>
    %352 = arith.truncf %351 : vector<16x32xf32> to vector<16x32xbf16>
    %353 = vector.shape_cast %352 : vector<16x32xbf16> to vector<2x8x32xbf16>
    "tpu.trace_start"() <{level = 10 : i32, message = "bqd,bkd->bqk"}> : () -> ()
    %cst_98 = arith.constant dense<0.000000e+00> : vector<2x8x8xf32>
    %354 = tpu.matmul %347, %350, %cst_98 {dimension_numbers = #tpu.dot_dimension_numbers<[2], [2], [1], [1], [0, 0, 0, 1, 1, 1], [0], [0]>} : vector<2x8x32xbf16>, vector<2x8x32xbf16>, vector<2x8x8xf32> -> vector<2x8x8xf32>
    "tpu.trace_stop"() : () -> ()
    %355 = arith.addf %354, %194 : vector<2x8x8xf32>
    %cst_99 = arith.constant dense<0xFF800000> : vector<2x8xf32>
    %356 = vector.multi_reduction <maximumf>, %355, %cst_99 [2] : vector<2x8x8xf32> to vector<2x8xf32>
    %357 = vector.shape_cast %356 : vector<2x8xf32> to vector<2x8x1xf32>
    %358 = vector.broadcast %357 : vector<2x8x1xf32> to vector<2x8x8xf32>
    %359 = arith.subf %355, %358 : vector<2x8x8xf32>
    %360 = math.exp %359 : vector<2x8x8xf32>
    %cst_100 = arith.constant dense<0.000000e+00> : vector<2x8xf32>
    %361 = vector.multi_reduction <add>, %360, %cst_100 [2] : vector<2x8x8xf32> to vector<2x8xf32>
    %362 = vector.shape_cast %361 : vector<2x8xf32> to vector<2x8x1xf32>
    %363 = tpu.reciprocal %362 {approx = true} : vector<2x8x1xf32> -> vector<2x8x1xf32>
    %364 = vector.broadcast %363 : vector<2x8x1xf32> to vector<2x8x8xf32>
    %365 = arith.mulf %360, %364 : vector<2x8x8xf32>
    %366 = arith.truncf %365 : vector<2x8x8xf32> to vector<2x8x8xbf16>
    "tpu.trace_start"() <{level = 10 : i32, message = "bqk,bkd->bqd"}> : () -> ()
    %cst_101 = arith.constant dense<0.000000e+00> : vector<2x8x32xf32>
    %367 = tpu.matmul %366, %353, %cst_101 {dimension_numbers = #tpu.dot_dimension_numbers<[2], [1], [1], [2], [0, 0, 0, 1, 1, 2], [0], [0]>} : vector<2x8x8xbf16>, vector<2x8x32xbf16>, vector<2x8x32xf32> -> vector<2x8x32xf32>
    "tpu.trace_stop"() : () -> ()
    %368 = vector.shape_cast %367 : vector<2x8x32xf32> to vector<16x32xf32>
    %369 = vector.extract_strided_slice %338 {offsets = [0, 32], sizes = [16, 32], strides = [1, 1]} : vector<16x128xf32> to vector<16x32xf32>
    %370 = arith.truncf %369 : vector<16x32xf32> to vector<16x32xbf16>
    %371 = vector.shape_cast %370 : vector<16x32xbf16> to vector<2x8x32xbf16>
    %372 = vector.extract_strided_slice %342 {offsets = [0, 32], sizes = [16, 32], strides = [1, 1]} : vector<16x128xf32> to vector<16x32xf32>
    %373 = arith.truncf %372 : vector<16x32xf32> to vector<16x32xbf16>
    %374 = vector.shape_cast %373 : vector<16x32xbf16> to vector<2x8x32xbf16>
    %375 = vector.extract_strided_slice %343 {offsets = [0, 32], sizes = [16, 32], strides = [1, 1]} : vector<16x128xf32> to vector<16x32xf32>
    %376 = arith.truncf %375 : vector<16x32xf32> to vector<16x32xbf16>
    %377 = vector.shape_cast %376 : vector<16x32xbf16> to vector<2x8x32xbf16>
    "tpu.trace_start"() <{level = 10 : i32, message = "bqd,bkd->bqk"}> : () -> ()
    %cst_102 = arith.constant dense<0.000000e+00> : vector<2x8x8xf32>
    %378 = tpu.matmul %371, %374, %cst_102 {dimension_numbers = #tpu.dot_dimension_numbers<[2], [2], [1], [1], [0, 0, 0, 1, 1, 1], [0], [0]>} : vector<2x8x32xbf16>, vector<2x8x32xbf16>, vector<2x8x8xf32> -> vector<2x8x8xf32>
    "tpu.trace_stop"() : () -> ()
    %379 = arith.addf %378, %194 : vector<2x8x8xf32>
    %cst_103 = arith.constant dense<0xFF800000> : vector<2x8xf32>
    %380 = vector.multi_reduction <maximumf>, %379, %cst_103 [2] : vector<2x8x8xf32> to vector<2x8xf32>
    %381 = vector.shape_cast %380 : vector<2x8xf32> to vector<2x8x1xf32>
    %382 = vector.broadcast %381 : vector<2x8x1xf32> to vector<2x8x8xf32>
    %383 = arith.subf %379, %382 : vector<2x8x8xf32>
    %384 = math.exp %383 : vector<2x8x8xf32>
    %cst_104 = arith.constant dense<0.000000e+00> : vector<2x8xf32>
    %385 = vector.multi_reduction <add>, %384, %cst_104 [2] : vector<2x8x8xf32> to vector<2x8xf32>
    %386 = vector.shape_cast %385 : vector<2x8xf32> to vector<2x8x1xf32>
    %387 = tpu.reciprocal %386 {approx = true} : vector<2x8x1xf32> -> vector<2x8x1xf32>
    %388 = vector.broadcast %387 : vector<2x8x1xf32> to vector<2x8x8xf32>
    %389 = arith.mulf %384, %388 : vector<2x8x8xf32>
    %390 = arith.truncf %389 : vector<2x8x8xf32> to vector<2x8x8xbf16>
    "tpu.trace_start"() <{level = 10 : i32, message = "bqk,bkd->bqd"}> : () -> ()
    %cst_105 = arith.constant dense<0.000000e+00> : vector<2x8x32xf32>
    %391 = tpu.matmul %390, %377, %cst_105 {dimension_numbers = #tpu.dot_dimension_numbers<[2], [1], [1], [2], [0, 0, 0, 1, 1, 2], [0], [0]>} : vector<2x8x8xbf16>, vector<2x8x32xbf16>, vector<2x8x32xf32> -> vector<2x8x32xf32>
    "tpu.trace_stop"() : () -> ()
    %392 = vector.shape_cast %391 : vector<2x8x32xf32> to vector<16x32xf32>
    %393 = vector.extract_strided_slice %338 {offsets = [0, 64], sizes = [16, 32], strides = [1, 1]} : vector<16x128xf32> to vector<16x32xf32>
    %394 = arith.truncf %393 : vector<16x32xf32> to vector<16x32xbf16>
    %395 = vector.shape_cast %394 : vector<16x32xbf16> to vector<2x8x32xbf16>
    %396 = vector.extract_strided_slice %342 {offsets = [0, 64], sizes = [16, 32], strides = [1, 1]} : vector<16x128xf32> to vector<16x32xf32>
    %397 = arith.truncf %396 : vector<16x32xf32> to vector<16x32xbf16>
    %398 = vector.shape_cast %397 : vector<16x32xbf16> to vector<2x8x32xbf16>
    %399 = vector.extract_strided_slice %343 {offsets = [0, 64], sizes = [16, 32], strides = [1, 1]} : vector<16x128xf32> to vector<16x32xf32>
    %400 = arith.truncf %399 : vector<16x32xf32> to vector<16x32xbf16>
    %401 = vector.shape_cast %400 : vector<16x32xbf16> to vector<2x8x32xbf16>
    "tpu.trace_start"() <{level = 10 : i32, message = "bqd,bkd->bqk"}> : () -> ()
    %cst_106 = arith.constant dense<0.000000e+00> : vector<2x8x8xf32>
    %402 = tpu.matmul %395, %398, %cst_106 {dimension_numbers = #tpu.dot_dimension_numbers<[2], [2], [1], [1], [0, 0, 0, 1, 1, 1], [0], [0]>} : vector<2x8x32xbf16>, vector<2x8x32xbf16>, vector<2x8x8xf32> -> vector<2x8x8xf32>
    "tpu.trace_stop"() : () -> ()
    %403 = arith.addf %402, %194 : vector<2x8x8xf32>
    %cst_107 = arith.constant dense<0xFF800000> : vector<2x8xf32>
    %404 = vector.multi_reduction <maximumf>, %403, %cst_107 [2] : vector<2x8x8xf32> to vector<2x8xf32>
    %405 = vector.shape_cast %404 : vector<2x8xf32> to vector<2x8x1xf32>
    %406 = vector.broadcast %405 : vector<2x8x1xf32> to vector<2x8x8xf32>
    %407 = arith.subf %403, %406 : vector<2x8x8xf32>
    %408 = math.exp %407 : vector<2x8x8xf32>
    %cst_108 = arith.constant dense<0.000000e+00> : vector<2x8xf32>
    %409 = vector.multi_reduction <add>, %408, %cst_108 [2] : vector<2x8x8xf32> to vector<2x8xf32>
    %410 = vector.shape_cast %409 : vector<2x8xf32> to vector<2x8x1xf32>
    %411 = tpu.reciprocal %410 {approx = true} : vector<2x8x1xf32> -> vector<2x8x1xf32>
    %412 = vector.broadcast %411 : vector<2x8x1xf32> to vector<2x8x8xf32>
    %413 = arith.mulf %408, %412 : vector<2x8x8xf32>
    %414 = arith.truncf %413 : vector<2x8x8xf32> to vector<2x8x8xbf16>
    "tpu.trace_start"() <{level = 10 : i32, message = "bqk,bkd->bqd"}> : () -> ()
    %cst_109 = arith.constant dense<0.000000e+00> : vector<2x8x32xf32>
    %415 = tpu.matmul %414, %401, %cst_109 {dimension_numbers = #tpu.dot_dimension_numbers<[2], [1], [1], [2], [0, 0, 0, 1, 1, 2], [0], [0]>} : vector<2x8x8xbf16>, vector<2x8x32xbf16>, vector<2x8x32xf32> -> vector<2x8x32xf32>
    "tpu.trace_stop"() : () -> ()
    %416 = vector.shape_cast %415 : vector<2x8x32xf32> to vector<16x32xf32>
    %417 = vector.extract_strided_slice %338 {offsets = [0, 96], sizes = [16, 32], strides = [1, 1]} : vector<16x128xf32> to vector<16x32xf32>
    %418 = arith.truncf %417 : vector<16x32xf32> to vector<16x32xbf16>
    %419 = vector.shape_cast %418 : vector<16x32xbf16> to vector<2x8x32xbf16>
    %420 = vector.extract_strided_slice %342 {offsets = [0, 96], sizes = [16, 32], strides = [1, 1]} : vector<16x128xf32> to vector<16x32xf32>
    %421 = arith.truncf %420 : vector<16x32xf32> to vector<16x32xbf16>
    %422 = vector.shape_cast %421 : vector<16x32xbf16> to vector<2x8x32xbf16>
    %423 = vector.extract_strided_slice %343 {offsets = [0, 96], sizes = [16, 32], strides = [1, 1]} : vector<16x128xf32> to vector<16x32xf32>
    %424 = arith.truncf %423 : vector<16x32xf32> to vector<16x32xbf16>
    %425 = vector.shape_cast %424 : vector<16x32xbf16> to vector<2x8x32xbf16>
    "tpu.trace_start"() <{level = 10 : i32, message = "bqd,bkd->bqk"}> : () -> ()
    %cst_110 = arith.constant dense<0.000000e+00> : vector<2x8x8xf32>
    %426 = tpu.matmul %419, %422, %cst_110 {dimension_numbers = #tpu.dot_dimension_numbers<[2], [2], [1], [1], [0, 0, 0, 1, 1, 1], [0], [0]>} : vector<2x8x32xbf16>, vector<2x8x32xbf16>, vector<2x8x8xf32> -> vector<2x8x8xf32>
    "tpu.trace_stop"() : () -> ()
    %427 = arith.addf %426, %194 : vector<2x8x8xf32>
    %cst_111 = arith.constant dense<0xFF800000> : vector<2x8xf32>
    %428 = vector.multi_reduction <maximumf>, %427, %cst_111 [2] : vector<2x8x8xf32> to vector<2x8xf32>
    %429 = vector.shape_cast %428 : vector<2x8xf32> to vector<2x8x1xf32>
    %430 = vector.broadcast %429 : vector<2x8x1xf32> to vector<2x8x8xf32>
    %431 = arith.subf %427, %430 : vector<2x8x8xf32>
    %432 = math.exp %431 : vector<2x8x8xf32>
    %cst_112 = arith.constant dense<0.000000e+00> : vector<2x8xf32>
    %433 = vector.multi_reduction <add>, %432, %cst_112 [2] : vector<2x8x8xf32> to vector<2x8xf32>
    %434 = vector.shape_cast %433 : vector<2x8xf32> to vector<2x8x1xf32>
    %435 = tpu.reciprocal %434 {approx = true} : vector<2x8x1xf32> -> vector<2x8x1xf32>
    %436 = vector.broadcast %435 : vector<2x8x1xf32> to vector<2x8x8xf32>
    %437 = arith.mulf %432, %436 : vector<2x8x8xf32>
    %438 = arith.truncf %437 : vector<2x8x8xf32> to vector<2x8x8xbf16>
    "tpu.trace_start"() <{level = 10 : i32, message = "bqk,bkd->bqd"}> : () -> ()
    %cst_113 = arith.constant dense<0.000000e+00> : vector<2x8x32xf32>
    %439 = tpu.matmul %438, %425, %cst_113 {dimension_numbers = #tpu.dot_dimension_numbers<[2], [1], [1], [2], [0, 0, 0, 1, 1, 2], [0], [0]>} : vector<2x8x8xbf16>, vector<2x8x32xbf16>, vector<2x8x32xf32> -> vector<2x8x32xf32>
    "tpu.trace_stop"() : () -> ()
    %440 = vector.shape_cast %439 : vector<2x8x32xf32> to vector<16x32xf32>
    %441 = tpu.concatenate %368, %392, %416, %440 in 1 : vector<16x32xf32>, vector<16x32xf32>, vector<16x32xf32>, vector<16x32xf32> -> vector<16x128xf32>
    %442 = arith.truncf %441 : vector<16x128xf32> to vector<16x128xbf16>
    %cst_114 = arith.constant dense<0.000000e+00> : vector<16x128xf32>
    %443 = tpu.matmul %442, %344, %cst_114 {dimension_numbers = #tpu.dot_dimension_numbers<[1], [0], [0], [1], [0, 0, 1, 1], [], []>} : vector<16x128xbf16>, vector<128x128xbf16>, vector<16x128xf32> -> vector<16x128xf32>
    %444 = arith.addf %322, %443 : vector<16x128xf32>
    %c5 = arith.constant 5 : index
    %c0_115 = arith.constant 0 : index
    %445 = vector.load %arg8[%c5, %c0_115] : memref<8x128xf32, #tpu.memory_space<vmem>>, vector<1x128xf32>
    %446 = arith.mulf %444, %444 : vector<16x128xf32>
    %cst_116 = arith.constant dense<0.000000e+00> : vector<16xf32>
    %447 = vector.multi_reduction <add>, %446, %cst_116 [1] : vector<16x128xf32> to vector<16xf32>
    %448 = vector.shape_cast %447 : vector<16xf32> to vector<16x1xf32>
    %cst_117 = arith.constant 1.280000e+02 : f32
    %449 = vector.broadcast %cst_117 : f32 to vector<16x1xf32>
    %450 = arith.divf %448, %449 : vector<16x1xf32>
    %cst_118 = arith.constant 9.99999997E-7 : f32
    %451 = vector.broadcast %cst_118 : f32 to vector<16x1xf32>
    %452 = arith.addf %450, %451 : vector<16x1xf32>
    %453 = math.rsqrt %452 : vector<16x1xf32>
    %454 = vector.broadcast %453 : vector<16x1xf32> to vector<16x128xf32>
    %455 = arith.mulf %444, %454 : vector<16x128xf32>
    %456 = vector.broadcast %445 : vector<1x128xf32> to vector<16x128xf32>
    %457 = arith.mulf %455, %456 : vector<16x128xf32>
    %458 = arith.truncf %457 : vector<16x128xf32> to vector<16x128xbf16>
    %c0_119 = arith.constant 0 : index
    %c0_120 = arith.constant 0 : index
    %459 = vector.load %arg18[%c0_119, %c0_120] : memref<128x256xbf16, #tpu.memory_space<vmem>>, vector<128x256xbf16>
    %cst_121 = arith.constant dense<0.000000e+00> : vector<16x256xf32>
    %460 = tpu.matmul %458, %459, %cst_121 {dimension_numbers = #tpu.dot_dimension_numbers<[1], [0], [0], [1], [0, 0, 1, 1], [], []>} : vector<16x128xbf16>, vector<128x256xbf16>, vector<16x256xf32> -> vector<16x256xf32>
    %cst_122 = arith.constant 0.000000e+00 : f32
    %461 = vector.broadcast %cst_122 : f32 to vector<16x256xf32>
    %462 = arith.maximumf %460, %461 : vector<16x256xf32>
    %463 = arith.truncf %462 : vector<16x256xf32> to vector<16x256xbf16>
    %c0_123 = arith.constant 0 : index
    %c0_124 = arith.constant 0 : index
    %464 = vector.load %arg19[%c0_123, %c0_124] : memref<256x128xbf16, #tpu.memory_space<vmem>>, vector<256x128xbf16>
    %cst_125 = arith.constant dense<0.000000e+00> : vector<16x128xf32>
    %465 = tpu.matmul %463, %464, %cst_125 {dimension_numbers = #tpu.dot_dimension_numbers<[1], [0], [0], [1], [0, 0, 1, 1], [], []>} : vector<16x256xbf16>, vector<256x128xbf16>, vector<16x128xf32> -> vector<16x128xf32>
    %466 = arith.addf %444, %465 : vector<16x128xf32>
    %c6 = arith.constant 6 : index
    %c0_126 = arith.constant 0 : index
    %467 = vector.load %arg8[%c6, %c0_126] : memref<8x128xf32, #tpu.memory_space<vmem>>, vector<1x128xf32>
    %468 = arith.mulf %466, %466 : vector<16x128xf32>
    %cst_127 = arith.constant dense<0.000000e+00> : vector<16xf32>
    %469 = vector.multi_reduction <add>, %468, %cst_127 [1] : vector<16x128xf32> to vector<16xf32>
    %470 = vector.shape_cast %469 : vector<16xf32> to vector<16x1xf32>
    %cst_128 = arith.constant 1.280000e+02 : f32
    %471 = vector.broadcast %cst_128 : f32 to vector<16x1xf32>
    %472 = arith.divf %470, %471 : vector<16x1xf32>
    %cst_129 = arith.constant 9.99999997E-7 : f32
    %473 = vector.broadcast %cst_129 : f32 to vector<16x1xf32>
    %474 = arith.addf %472, %473 : vector<16x1xf32>
    %475 = math.rsqrt %474 : vector<16x1xf32>
    %476 = vector.broadcast %475 : vector<16x1xf32> to vector<16x128xf32>
    %477 = arith.mulf %466, %476 : vector<16x128xf32>
    %478 = vector.broadcast %467 : vector<1x128xf32> to vector<16x128xf32>
    %479 = arith.mulf %477, %478 : vector<16x128xf32>
    %480 = arith.truncf %479 : vector<16x128xf32> to vector<16x128xbf16>
    %c0_130 = arith.constant 0 : index
    %c0_131 = arith.constant 0 : index
    %481 = vector.load %arg7[%c0_130, %c0_131] : memref<128x512xbf16, #tpu.memory_space<vmem>>, vector<128x512xbf16>
    %cst_132 = arith.constant dense<0.000000e+00> : vector<16x512xf32>
    %482 = tpu.matmul %480, %481, %cst_132 {dimension_numbers = #tpu.dot_dimension_numbers<[1], [0], [0], [1], [0, 0, 1, 1], [], []>} : vector<16x128xbf16>, vector<128x512xbf16>, vector<16x512xf32> -> vector<16x512xf32>
    %cst_133 = arith.constant dense<0xFF800000> : vector<16xf32>
    %483 = vector.multi_reduction <maximumf>, %482, %cst_133 [1] : vector<16x512xf32> to vector<16xf32>
    %484 = vector.shape_cast %483 : vector<16xf32> to vector<16x1xf32>
    %485 = vector.broadcast %484 : vector<16x1xf32> to vector<16x512xf32>
    %486 = arith.subf %482, %485 : vector<16x512xf32>
    %487 = math.exp %486 : vector<16x512xf32>
    %cst_134 = arith.constant dense<0.000000e+00> : vector<16xf32>
    %488 = vector.multi_reduction <add>, %487, %cst_134 [1] : vector<16x512xf32> to vector<16xf32>
    %489 = vector.shape_cast %488 : vector<16xf32> to vector<16x1xf32>
    %490 = math.log %489 : vector<16x1xf32>
    %491 = arith.addf %490, %484 : vector<16x1xf32>
    %492 = tpu.iota {dimensions = array<i32: 1>} : vector<16x512xi32>
    %c0_135 = arith.constant 0 : index
    %c0_136 = arith.constant 0 : index
    %493 = vector.load %arg2[%c0_135, %c0_136] : memref<16x1xi32, #tpu.memory_space<vmem>>, vector<16x1xi32>
    %494 = vector.broadcast %493 : vector<16x1xi32> to vector<16x512xi32>
    %495 = arith.cmpi eq, %492, %494 : vector<16x512xi32>
    %cst_137 = arith.constant 0.000000e+00 : f32
    %496 = vector.broadcast %cst_137 : f32 to vector<16x512xf32>
    %497 = arith.select %495, %482, %496 : vector<16x512xi1>, vector<16x512xf32>
    %cst_138 = arith.constant dense<0.000000e+00> : vector<16xf32>
    %498 = vector.multi_reduction <add>, %497, %cst_138 [1] : vector<16x512xf32> to vector<16xf32>
    %499 = vector.shape_cast %498 : vector<16xf32> to vector<16x1xf32>
    %c0_139 = arith.constant 0 : index
    %c0_140 = arith.constant 0 : index
    %500 = vector.load %arg5[%c0_139, %c0_140] : memref<16x1xf32, #tpu.memory_space<vmem>>, vector<16x1xf32>
    %501 = arith.subf %491, %499 : vector<16x1xf32>
    %502 = arith.mulf %501, %500 : vector<16x1xf32>
    %503 = vector.shape_cast %502 : vector<16x1xf32> to vector<1x16x1xf32>
    %cst_141 = arith.constant dense<0.000000e+00> : vector<1xf32>
    %504 = vector.multi_reduction <add>, %503, %cst_141 [1, 2] : vector<1x16x1xf32> to vector<1xf32>
    %505 = vector.shape_cast %504 : vector<1xf32> to vector<1x1x1xf32>
    %506 = vector.extract %505[0, 0, 0] : f32 from vector<1x1x1xf32>
    %507 = vector.shape_cast %500 : vector<16x1xf32> to vector<1x16x1xf32>
    %cst_142 = arith.constant dense<0.000000e+00> : vector<1xf32>
    %508 = vector.multi_reduction <add>, %507, %cst_142 [1, 2] : vector<1x16x1xf32> to vector<1xf32>
    %509 = vector.shape_cast %508 : vector<1xf32> to vector<1x1x1xf32>
    %510 = vector.extract %509[0, 0, 0] : f32 from vector<1x1x1xf32>
    %cst_143 = arith.constant 1.000000e+00 : f32
    %511 = arith.maximumf %510, %cst_143 : f32
    %512 = arith.divf %506, %511 : f32
    %c0_144 = arith.constant 0 : index
    %c0_145 = arith.constant 0 : index
    %513 = memref.load %arg20[%c0_144, %c0_145] : memref<1x1xf32, #tpu.memory_space<smem>>
    memref.store %512, %arg20[%c0_144, %c0_145] : memref<1x1xf32, #tpu.memory_space<smem>>
    return
  }
}

</mosaic_0001>

<llo_original>
// kernel: seq_supervised_arg_forward.1
$region0: #{seq_supervised_arg_forward.1}
  #allocation0 [shape = 'u32[]', space=smem, size = 0x4, offset = 0x4, fixed_abs, tag = 'smem constant byte address 0x4 - core index']
  #allocation1 [shape = 'u32[144,128]{1,0:T(1,128)}', space=vmem, size = 0x12000, scoped, tag = 'internal scratch']
  %s0 = inlined_call_operand.vmem [shape: s32[16,1], index: 0, kind: input, shape index: {}]
  %s1 = inlined_call_operand.vmem [shape: s32[16,1], index: 1, kind: input, shape index: {}]
  %s2 = inlined_call_operand.vmem [shape: s32[16,1], index: 2, kind: input, shape index: {}]
  %s3 = inlined_call_operand.vmem [shape: f32[2,8], index: 3, kind: input, shape index: {}]
  %s4 = inlined_call_operand.vmem [shape: f32[2,8], index: 4, kind: input, shape index: {}]
  %s5 = inlined_call_operand.vmem [shape: f32[16,1], index: 5, kind: input, shape index: {}]
  %s6 = inlined_call_operand.vmem [shape: bf16[512,128], index: 6, kind: input, shape index: {}]
  %s7 = inlined_call_operand.vmem [shape: bf16[128,512], index: 7, kind: input, shape index: {}]
  %s8 = inlined_call_operand.vmem [shape: f32[8,128], index: 8, kind: input, shape index: {}]
  %s9 = inlined_call_operand.vmem [shape: bf16[128,384], index: 9, kind: input, shape index: {}]
  %s10 = inlined_call_operand.vmem [shape: bf16[128,128], index: 10, kind: input, shape index: {}]
  %s11 = inlined_call_operand.vmem [shape: bf16[128,256], index: 11, kind: input, shape index: {}]
  %s12 = inlined_call_operand.vmem [shape: bf16[256,128], index: 12, kind: input, shape index: {}]
  %s13 = inlined_call_operand.vmem [shape: bf16[128,384], index: 13, kind: input, shape index: {}]
  %s14 = inlined_call_operand.vmem [shape: bf16[128,128], index: 14, kind: input, shape index: {}]
  %s15 = inlined_call_operand.vmem [shape: bf16[128,128], index: 15, kind: input, shape index: {}]
  %s16 = inlined_call_operand.vmem [shape: bf16[128,256], index: 16, kind: input, shape index: {}]
  %s17 = inlined_call_operand.vmem [shape: bf16[128,128], index: 17, kind: input, shape index: {}]
  %s18 = inlined_call_operand.vmem [shape: bf16[128,256], index: 18, kind: input, shape index: {}]
  %s19 = inlined_call_operand.vmem [shape: bf16[256,128], index: 19, kind: input, shape index: {}]
  %s20 = inlined_call_operand.hbm [shape: f32[1,1], index: 20, kind: output, shape index: {}]
  %s21 = sld [smem:[#allocation0]]
  $region90: #{seq_supervised_arg_forward.1} parent=0
    _
  %s23 = ssub.s32 1, %s21
  %s24 = scalar_select 0, %s23, %s21
  $region1: #{seq_supervised_arg_forward.1} parent=0
    #allocation2 [shape = 'u8[512]{0}', space=smem, size = 0x200, scoped, tag = 'output window, operand 0, single buffered']
    #allocation3 [shape = 's32[1]{0}', space=sflag, size = 0x4, scoped, tag = 'scoped memory for seq_supervised_arg_forward.1']
    %25 = vsyncpa [#allocation3], 0
    // Predicated region
    $region2: #{seq_supervised_arg_forward.1} parent=1 // pred_check
      _
    $region3: #{seq_supervised_arg_forward.1} parent=1 // pred_check_branch
      %27 = sbr.rel (0) target = $region5
    $region4: #{seq_supervised_arg_forward.1} parent=1 // pred_region
      _
    $region5: #{seq_supervised_arg_forward.1} parent=1 // pred_fallthru
      _
    // Predicated region
    $region6: #{seq_supervised_arg_forward.1} parent=1 // pred_check
      _
    $region7: #{seq_supervised_arg_forward.1} parent=1 // pred_check_branch
      %29 = sbr.rel (0) target = $region9
    $region8: #{seq_supervised_arg_forward.1} parent=1 // pred_region
      _
    $region9: #{seq_supervised_arg_forward.1} parent=1 // pred_fallthru
      _
    // Predicated region
    $region10: #{seq_supervised_arg_forward.1} parent=1 // pred_check
      _
    $region11: #{seq_supervised_arg_forward.1} parent=1 // pred_check_branch
      %31 = sbr.rel (0) target = $region13
    $region12: #{seq_supervised_arg_forward.1} parent=1 // pred_region
      _
    $region13: #{seq_supervised_arg_forward.1} parent=1 // pred_fallthru
      _
    // Predicated region
    $region14: #{seq_supervised_arg_forward.1} parent=1 // pred_check
      _
    $region15: #{seq_supervised_arg_forward.1} parent=1 // pred_check_branch
      %33 = sbr.rel (0) target = $region17
    $region16: #{seq_supervised_arg_forward.1} parent=1 // pred_region
      _
    $region17: #{seq_supervised_arg_forward.1} parent=1 // pred_fallthru
      _
    // Predicated region
    $region18: #{seq_supervised_arg_forward.1} parent=1 // pred_check
      _
    $region19: #{seq_supervised_arg_forward.1} parent=1 // pred_check_branch
      %35 = sbr.rel (0) target = $region21
    $region20: #{seq_supervised_arg_forward.1} parent=1 // pred_region
      _
    $region21: #{seq_supervised_arg_forward.1} parent=1 // pred_fallthru
      _
    // Predicated region
    $region22: #{seq_supervised_arg_forward.1} parent=1 // pred_check
      _
    $region23: #{seq_supervised_arg_forward.1} parent=1 // pred_check_branch
      %37 = sbr.rel (0) target = $region25
    $region24: #{seq_supervised_arg_forward.1} parent=1 // pred_region
      _
    $region25: #{seq_supervised_arg_forward.1} parent=1 // pred_fallthru
      _
    // Predicated region
    $region26: #{seq_supervised_arg_forward.1} parent=1 // pred_check
      _
    $region27: #{seq_supervised_arg_forward.1} parent=1 // pred_check_branch
      %39 = sbr.rel (0) target = $region29
    $region28: #{seq_supervised_arg_forward.1} parent=1 // pred_region
      _
    $region29: #{seq_supervised_arg_forward.1} parent=1 // pred_fallthru
      _
    // Predicated region
    $region30: #{seq_supervised_arg_forward.1} parent=1 // pred_check
      _
    $region31: #{seq_supervised_arg_forward.1} parent=1 // pred_check_branch
      %41 = sbr.rel (0) target = $region33
    $region32: #{seq_supervised_arg_forward.1} parent=1 // pred_region
      _
    $region33: #{seq_supervised_arg_forward.1} parent=1 // pred_fallthru
      _
    // Predicated region
    $region34: #{seq_supervised_arg_forward.1} parent=1 // pred_check
      _
    $region35: #{seq_supervised_arg_forward.1} parent=1 // pred_check_branch
      %43 = sbr.rel (0) target = $region37
    $region36: #{seq_supervised_arg_forward.1} parent=1 // pred_region
      _
    $region37: #{seq_supervised_arg_forward.1} parent=1 // pred_fallthru
      _
    // Predicated region
    $region38: #{seq_supervised_arg_forward.1} parent=1 // pred_check
      _
    $region39: #{seq_supervised_arg_forward.1} parent=1 // pred_check_branch
      %45 = sbr.rel (0) target = $region41
    $region40: #{seq_supervised_arg_forward.1} parent=1 // pred_region
      _
    $region41: #{seq_supervised_arg_forward.1} parent=1 // pred_fallthru
      _
    // Predicated region
    $region42: #{seq_supervised_arg_forward.1} parent=1 // pred_check
      _
    $region43: #{seq_supervised_arg_forward.1} parent=1 // pred_check_branch
      %47 = sbr.rel (0) target = $region45
    $region44: #{seq_supervised_arg_forward.1} parent=1 // pred_region
      _
    $region45: #{seq_supervised_arg_forward.1} parent=1 // pred_fallthru
      _
    // Predicated region
    $region46: #{seq_supervised_arg_forward.1} parent=1 // pred_check
      _
    $region47: #{seq_supervised_arg_forward.1} parent=1 // pred_check_branch
      %49 = sbr.rel (0) target = $region49
    $region48: #{seq_supervised_arg_forward.1} parent=1 // pred_region
      _
    $region49: #{seq_supervised_arg_forward.1} parent=1 // pred_fallthru
      _
    // Predicated region
    $region50: #{seq_supervised_arg_forward.1} parent=1 // pred_check
      _
    $region51: #{seq_supervised_arg_forward.1} parent=1 // pred_check_branch
      %51 = sbr.rel (0) target = $region53
    $region52: #{seq_supervised_arg_forward.1} parent=1 // pred_region
      _
    $region53: #{seq_supervised_arg_forward.1} parent=1 // pred_fallthru
      _
    // Predicated region
    $region54: #{seq_supervised_arg_forward.1} parent=1 // pred_check
      _
    $region55: #{seq_supervised_arg_forward.1} parent=1 // pred_check_branch
      %53 = sbr.rel (0) target = $region57
    $region56: #{seq_supervised_arg_forward.1} parent=1 // pred_region
      _
    $region57: #{seq_supervised_arg_forward.1} parent=1 // pred_fallthru
      _
    // Predicated region
    $region58: #{seq_supervised_arg_forward.1} parent=1 // pred_check
      _
    $region59: #{seq_supervised_arg_forward.1} parent=1 // pred_check_branch
      %55 = sbr.rel (0) target = $region61
    $region60: #{seq_supervised_arg_forward.1} parent=1 // pred_region
      _
    $region61: #{seq_supervised_arg_forward.1} parent=1 // pred_fallthru
      _
    // Predicated region
    $region62: #{seq_supervised_arg_forward.1} parent=1 // pred_check
      _
    $region63: #{seq_supervised_arg_forward.1} parent=1 // pred_check_branch
      %57 = sbr.rel (0) target = $region65
    $region64: #{seq_supervised_arg_forward.1} parent=1 // pred_region
      _
    $region65: #{seq_supervised_arg_forward.1} parent=1 // pred_fallthru
      _
    // Predicated region
    $region66: #{seq_supervised_arg_forward.1} parent=1 // pred_check
      _
    $region67: #{seq_supervised_arg_forward.1} parent=1 // pred_check_branch
      %59 = sbr.rel (0) target = $region69
    $region68: #{seq_supervised_arg_forward.1} parent=1 // pred_region
      _
    $region69: #{seq_supervised_arg_forward.1} parent=1 // pred_fallthru
      _
    // Predicated region
    $region70: #{seq_supervised_arg_forward.1} parent=1 // pred_check
      _
    $region71: #{seq_supervised_arg_forward.1} parent=1 // pred_check_branch
      %61 = sbr.rel (0) target = $region73
    $region72: #{seq_supervised_arg_forward.1} parent=1 // pred_region
      _
    $region73: #{seq_supervised_arg_forward.1} parent=1 // pred_fallthru
      _
    // Predicated region
    $region74: #{seq_supervised_arg_forward.1} parent=1 // pred_check
      _
    $region75: #{seq_supervised_arg_forward.1} parent=1 // pred_check_branch
      %63 = sbr.rel (0) target = $region77
    $region76: #{seq_supervised_arg_forward.1} parent=1 // pred_region
      _
    $region77: #{seq_supervised_arg_forward.1} parent=1 // pred_fallthru
      _
    // Predicated region
    $region78: #{seq_supervised_arg_forward.1} parent=1 // pred_check
      _
    $region79: #{seq_supervised_arg_forward.1} parent=1 // pred_check_branch
      %65 = sbr.rel (0) target = $region81
    $region80: #{seq_supervised_arg_forward.1} parent=1 // pred_region
      _
    $region81: #{seq_supervised_arg_forward.1} parent=1 // pred_fallthru
      _
    %v67 = vld [vmem:[%s6] sm:$0xf]
    %v68 = vld [vmem:[%s6 + $0x4] sm:$0xf]
    %v69 = vld [vmem:[%s6 + $0x8] sm:$0xf]
    %v70 = vld [vmem:[%s6 + $0xc] sm:$0xf]
    %v71 = vld [vmem:[%s6 + $0x10] sm:$0xf]
    %v72 = vld [vmem:[%s6 + $0x14] sm:$0xf]
    %v73 = vld [vmem:[%s6 + $0x18] sm:$0xf]
    %v74 = vld [vmem:[%s6 + $0x1c] sm:$0xf]
    %v75 = vld [vmem:[%s6 + $0x20] sm:$0xf]
    %v76 = vld [vmem:[%s6 + $0x24] sm:$0xf]
    %v77 = vld [vmem:[%s6 + $0x28] sm:$0xf]
    %v78 = vld [vmem:[%s6 + $0x2c] sm:$0xf]
    %v79 = vld [vmem:[%s6 + $0x30] sm:$0xf]
    %v80 = vld [vmem:[%s6 + $0x34] sm:$0xf]
    %v81 = vld [vmem:[%s6 + $0x38] sm:$0xf]
    %v82 = vld [vmem:[%s6 + $0x3c] sm:$0xf]
    %v83 = vld [vmem:[%s6 + $0x40] sm:$0xf]
    %v84 = vld [vmem:[%s6 + $0x44] sm:$0xf]
    %v85 = vld [vmem:[%s6 + $0x48] sm:$0xf]
    %v86 = vld [vmem:[%s6 + $0x4c] sm:$0xf]
    %v87 = vld [vmem:[%s6 + $0x50] sm:$0xf]
    %v88 = vld [vmem:[%s6 + $0x54] sm:$0xf]
    %v89 = vld [vmem:[%s6 + $0x58] sm:$0xf]
    %v90 = vld [vmem:[%s6 + $0x5c] sm:$0xf]
    %v91 = vld [vmem:[%s6 + $0x60] sm:$0xf]
    %v92 = vld [vmem:[%s6 + $0x64] sm:$0xf]
    %v93 = vld [vmem:[%s6 + $0x68] sm:$0xf]
    %v94 = vld [vmem:[%s6 + $0x6c] sm:$0xf]
    %v95 = vld [vmem:[%s6 + $0x70] sm:$0xf]
    %v96 = vld [vmem:[%s6 + $0x74] sm:$0xf]
    %v97 = vld [vmem:[%s6 + $0x78] sm:$0xf]
    %v98 = vld [vmem:[%s6 + $0x7c] sm:$0xf]
    %v99 = vld [vmem:[%s6 + $0x80] sm:$0xf]
    %v100 = vld [vmem:[%s6 + $0x84] sm:$0xf]
    %v101 = vld [vmem:[%s6 + $0x88] sm:$0xf]
    %v102 = vld [vmem:[%s6 + $0x8c] sm:$0xf]
    %v103 = vld [vmem:[%s6 + $0x90] sm:$0xf]
    %v104 = vld [vmem:[%s6 + $0x94] sm:$0xf]
    %v105 = vld [vmem:[%s6 + $0x98] sm:$0xf]
    %v106 = vld [vmem:[%s6 + $0x9c] sm:$0xf]
    %v107 = vld [vmem:[%s6 + $0xa0] sm:$0xf]
    %v108 = vld [vmem:[%s6 + $0xa4] sm:$0xf]
    %v109 = vld [vmem:[%s6 + $0xa8] sm:$0xf]
    %v110 = vld [vmem:[%s6 + $0xac] sm:$0xf]
    %v111 = vld [vmem:[%s6 + $0xb0] sm:$0xf]
    %v112 = vld [vmem:[%s6 + $0xb4] sm:$0xf]
    %v113 = vld [vmem:[%s6 + $0xb8] sm:$0xf]
    %v114 = vld [vmem:[%s6 + $0xbc] sm:$0xf]
    %v115 = vld [vmem:[%s6 + $0xc0] sm:$0xf]
    %v116 = vld [vmem:[%s6 + $0xc4] sm:$0xf]
    %v117 = vld [vmem:[%s6 + $0xc8] sm:$0xf]
    %v118 = vld [vmem:[%s6 + $0xcc] sm:$0xf]
    %v119 = vld [vmem:[%s6 + $0xd0] sm:$0xf]
    %v120 = vld [vmem:[%s6 + $0xd4] sm:$0xf]
    %v121 = vld [vmem:[%s6 + $0xd8] sm:$0xf]
    %v122 = vld [vmem:[%s6 + $0xdc] sm:$0xf]
    %v123 = vld [vmem:[%s6 + $0xe0] sm:$0xf]
    %v124 = vld [vmem:[%s6 + $0xe4] sm:$0xf]
    %v125 = vld [vmem:[%s6 + $0xe8] sm:$0xf]
    %v126 = vld [vmem:[%s6 + $0xec] sm:$0xf]
    %v127 = vld [vmem:[%s6 + $0xf0] sm:$0xf]
    %v128 = vld [vmem:[%s6 + $0xf4] sm:$0xf]
    %v129 = vld [vmem:[%s6 + $0xf8] sm:$0xf]
    %v130 = vld [vmem:[%s6 + $0xfc] sm:$0xf]
    %v131 = vld [vmem:[%s3] sm:$0x3]
    %v132 = vsub.f32 1.0, %v131
    %v135 = vunpack.c.l.s4 1966171168
    %v136 = vunpack.c.0.s8 %v135
    %v137 = vlaneseq
    %v138 = vshrl.u32 %v137, 7
    %v139 = vsub.s32 %v136, %v138
    %v140 = vrot.slane %v132, %v139
    %v141 = vcombine.high %v140, %v140
    %v143 = vunpack.c.l.s4 1966171168
    %v144 = vunpack.c.0.s8 %v143
    %v145 = vlaneseq
    %v146 = vshrl.u32 %v145, 7
    %v147 = vsub.s32 %v144, %v146
    %v148 = vrot.slane %v140, %v147
    %v150 = vunpack.c.l.s4 1966171168
    %v151 = vunpack.c.0.s8 %v150
    %v152 = vlaneseq
    %v153 = vshrl.u32 %v152, 7
    %v154 = vsub.s32 %v151, %v153
    %v155 = vrot.slane %v141, %v154
    %v158 = vmul.f32 %v148, -1e+09
    %v159 = vmul.f32 %v155, -1e+09
    %v162 = vlaneseq
    %v163 = vshrl.u32 %v162, 7
    %v164 = vsub.s32 0, %v163
    %v165 = vrot.slane %v158, %v164
    %v166 = vlaneseq
    %v167 = vshrl.u32 %v166, 7
    %v168 = vsub.s32 0, %v167
    %v169 = vrot.slane %v159, %v168
    %v172 = vld [vmem:[%s0] sm:$0xff]
    %v173 = vld [vmem:[%s0 + $0x8] sm:$0xff]
    %v174 = vlaneseq
    %v175 = vand.u32 %v174, 127
    %v176 = vadd.s32 %v175, 128
    %v177 = vadd.s32 %v175, 256
    %v178 = vadd.s32 %v175, 384
    %179 = vset.pattern.permute.xlu0 0
    %180 = vperm.xlu0 %179, %v172
    %v181 = vpop.permute.xlu0 %180
    %182 = vset.pattern.permute.xlu0 0
    %183 = vperm.xlu0 %182, %v173
    %v184 = vpop.permute.xlu0 %183
    %vm185 = vcmp.eq.s32.totalorder %v175, %v181
    %vm186 = vcmp.eq.s32.totalorder %v176, %v181
    %vm187 = vcmp.eq.s32.totalorder %v177, %v181
    %vm188 = vcmp.eq.s32.totalorder %v178, %v181
    %vm189 = vcmp.eq.s32.totalorder %v175, %v184
    %vm190 = vcmp.eq.s32.totalorder %v176, %v184
    %vm191 = vcmp.eq.s32.totalorder %v177, %v184
    %vm192 = vcmp.eq.s32.totalorder %v178, %v184
    %v193 = vsel %vm185, 1, 0
    %v194 = vsel %vm186, 1, 0
    %v195 = vsel %vm187, 1, 0
    %v196 = vsel %vm188, 1, 0
    %v197 = vsel %vm189, 1, 0
    %v198 = vsel %vm190, 1, 0
    %v199 = vsel %vm191, 1, 0
    %v200 = vsel %vm192, 1, 0
    %v201 = vcvt.s32.f32 %v193
    %v202 = vcvt.s32.f32 %v194
    %v203 = vcvt.s32.f32 %v195
    %v204 = vcvt.s32.f32 %v196
    %v205 = vcvt.s32.f32 %v197
    %v206 = vcvt.s32.f32 %v198
    %v207 = vcvt.s32.f32 %v199
    %v208 = vcvt.s32.f32 %v200
    %v209 = vpack.c.bf16 %v205, %v201
    %v210 = vpack.c.bf16 %v206, %v202
    %v211 = vpack.c.bf16 %v207, %v203
    %v212 = vpack.c.bf16 %v208, %v204
    %v277 = vunpack.c.l.b16 %v67
    %v278 = vunpack.c.l.b16 %v68
    %v279 = vunpack.c.l.b16 %v69
    %v280 = vunpack.c.l.b16 %v70
    %v281 = vunpack.c.l.b16 %v71
    %v282 = vunpack.c.l.b16 %v72
    %v283 = vunpack.c.l.b16 %v73
    %v284 = vunpack.c.l.b16 %v74
    %v285 = vunpack.c.l.b16 %v75
    %v286 = vunpack.c.l.b16 %v76
    %v287 = vunpack.c.l.b16 %v77
    %v288 = vunpack.c.l.b16 %v78
    %v289 = vunpack.c.l.b16 %v79
    %v290 = vunpack.c.l.b16 %v80
    %v291 = vunpack.c.l.b16 %v81
    %v292 = vunpack.c.l.b16 %v82
    %v293 = vunpack.c.l.b16 %v83
    %v294 = vunpack.c.l.b16 %v84
    %v295 = vunpack.c.l.b16 %v85
    %v296 = vunpack.c.l.b16 %v86
    %v297 = vunpack.c.l.b16 %v87
    %v298 = vunpack.c.l.b16 %v88
    %v299 = vunpack.c.l.b16 %v89
    %v300 = vunpack.c.l.b16 %v90
    %v301 = vunpack.c.l.b16 %v91
    %v302 = vunpack.c.l.b16 %v92
    %v303 = vunpack.c.l.b16 %v93
    %v304 = vunpack.c.l.b16 %v94
    %v305 = vunpack.c.l.b16 %v95
    %v306 = vunpack.c.l.b16 %v96
    %v307 = vunpack.c.l.b16 %v97
    %v308 = vunpack.c.l.b16 %v98
    %v309 = vunpack.c.l.b16 %v99
    %v310 = vunpack.c.l.b16 %v100
    %v311 = vunpack.c.l.b16 %v101
    %v312 = vunpack.c.l.b16 %v102
    %v313 = vunpack.c.l.b16 %v103
    %v314 = vunpack.c.l.b16 %v104
    %v315 = vunpack.c.l.b16 %v105
    %v316 = vunpack.c.l.b16 %v106
    %v317 = vunpack.c.l.b16 %v107
    %v318 = vunpack.c.l.b16 %v108
    %v319 = vunpack.c.l.b16 %v109
    %v320 = vunpack.c.l.b16 %v110
    %v321 = vunpack.c.l.b16 %v111
    %v322 = vunpack.c.l.b16 %v112
    %v323 = vunpack.c.l.b16 %v113
    %v324 = vunpack.c.l.b16 %v114
    %v325 = vunpack.c.l.b16 %v115
    %v326 = vunpack.c.l.b16 %v116
    %v327 = vunpack.c.l.b16 %v117
    %v328 = vunpack.c.l.b16 %v118
    %v329 = vunpack.c.l.b16 %v119
    %v330 = vunpack.c.l.b16 %v120
    %v331 = vunpack.c.l.b16 %v121
    %v332 = vunpack.c.l.b16 %v122
    %v333 = vunpack.c.l.b16 %v123
    %v334 = vunpack.c.l.b16 %v124
    %v335 = vunpack.c.l.b16 %v125
    %v336 = vunpack.c.l.b16 %v126
    %v337 = vunpack.c.l.b16 %v127
    %v338 = vunpack.c.l.b16 %v128
    %v339 = vunpack.c.l.b16 %v129
    %v340 = vunpack.c.l.b16 %v130
    %v341 = vpack.c.b16 %v278, %v277
    %v342 = vpack.c.b16 %v280, %v279
    %v343 = vpack.c.b16 %v282, %v281
    %v344 = vpack.c.b16 %v284, %v283
    %v345 = vpack.c.b16 %v286, %v285
    %v346 = vpack.c.b16 %v288, %v287
    %v347 = vpack.c.b16 %v290, %v289
    %v348 = vpack.c.b16 %v292, %v291
    %v349 = vpack.c.b16 %v294, %v293
    %v350 = vpack.c.b16 %v296, %v295
    %v351 = vpack.c.b16 %v298, %v297
    %v352 = vpack.c.b16 %v300, %v299
    %v353 = vpack.c.b16 %v302, %v301
    %v354 = vpack.c.b16 %v304, %v303
    %v355 = vpack.c.b16 %v306, %v305
    %v356 = vpack.c.b16 %v308, %v307
    %v357 = vpack.c.b16 %v310, %v309
    %v358 = vpack.c.b16 %v312, %v311
    %v359 = vpack.c.b16 %v314, %v313
    %v360 = vpack.c.b16 %v316, %v315
    %v361 = vpack.c.b16 %v318, %v317
    %v362 = vpack.c.b16 %v320, %v319
    %v363 = vpack.c.b16 %v322, %v321
    %v364 = vpack.c.b16 %v324, %v323
    %v365 = vpack.c.b16 %v326, %v325
    %v366 = vpack.c.b16 %v328, %v327
    %v367 = vpack.c.b16 %v330, %v329
    %v368 = vpack.c.b16 %v332, %v331
    %v369 = vpack.c.b16 %v334, %v333
    %v370 = vpack.c.b16 %v336, %v335
    %v371 = vpack.c.b16 %v338, %v337
    %v372 = vpack.c.b16 %v340, %v339
    %405 = vmatprep.subr.bf16.mxu0 0
    %406 = vmatpush1.bf16.msra.mxu0 %v341
    %407 = vmatprep.subr.bf16.mxu0 0
    %408 = vmatpush1.bf16.msra.mxu0 %v342
    %409 = vmatprep.subr.bf16.mxu0 0
    %410 = vmatpush1.bf16.msra.mxu0 %v343
    %411 = vmatprep.subr.bf16.mxu0 0
    %412 = vmatpush1.bf16.msra.mxu0 %v344
    %413 = vmatprep.subr.bf16.mxu0 0
    %414 = vmatpush1.bf16.msra.mxu0 %v345
    %415 = vmatprep.subr.bf16.mxu0 0
    %416 = vmatpush1.bf16.msra.mxu0 %v346
    %417 = vmatprep.subr.bf16.mxu0 0
    %418 = vmatpush1.bf16.msra.mxu0 %v347
    %419 = vmatprep.subr.bf16.mxu0 0
    %420 = vmatpush1.bf16.msra.mxu0 %v348
    %421 = vmatprep.subr.bf16.mxu0 0
    %422 = vmatpush1.bf16.msra.mxu0 %v349
    %423 = vmatprep.subr.bf16.mxu0 0
    %424 = vmatpush1.bf16.msra.mxu0 %v350
    %425 = vmatprep.subr.bf16.mxu0 0
    %426 = vmatpush1.bf16.msra.mxu0 %v351
    %427 = vmatprep.subr.bf16.mxu0 0
    %428 = vmatpush1.bf16.msra.mxu0 %v352
    %429 = vmatprep.subr.bf16.mxu0 0
    %430 = vmatpush1.bf16.msra.mxu0 %v353
    %431 = vmatprep.subr.bf16.mxu0 0
    %432 = vmatpush1.bf16.msra.mxu0 %v354
    %433 = vmatprep.subr.bf16.mxu0 0
    %434 = vmatpush1.bf16.msra.mxu0 %v355
    %435 = vmatprep.subr.bf16.mxu0 0
    %436 = vmatpush1.bf16.msra.mxu0 %v356
    %437 = vmatprep.mubr.bf16.mxu0 %v210
    %438 = vmatmul.mubr.bf16.gmra.mrb[0].mxu0 %v209
    %v439 = vpop.f32.mrb[0].mxu0
    %v440 = vadd.f32 0.0, %v439
    %v441 = vpop.f32.mrb[0].mxu0
    %v442 = vpop.f32.mrb[0].mxu0
    %v443 = vadd.f32 0.0, %v442
    %v444 = vpop.f32.mrb[0].mxu0
    %445 = vdwg.mxu0
    %446 = vmatprep.subr.bf16.mxu0 0
    %447 = vmatpush1.bf16.msra.mxu0 %v357
    %448 = vmatprep.subr.bf16.mxu0 0
    %449 = vmatpush1.bf16.msra.mxu0 %v358
    %450 = vmatprep.subr.bf16.mxu0 0
    %451 = vmatpush1.bf16.msra.mxu0 %v359
    %452 = vmatprep.subr.bf16.mxu0 0
    %453 = vmatpush1.bf16.msra.mxu0 %v360
    %454 = vmatprep.subr.bf16.mxu0 0
    %455 = vmatpush1.bf16.msra.mxu0 %v361
    %456 = vmatprep.subr.bf16.mxu0 0
    %457 = vmatpush1.bf16.msra.mxu0 %v362
    %458 = vmatprep.subr.bf16.mxu0 0
    %459 = vmatpush1.bf16.msra.mxu0 %v363
    %460 = vmatprep.subr.bf16.mxu0 0
    %461 = vmatpush1.bf16.msra.mxu0 %v364
    %462 = vmatprep.subr.bf16.mxu0 0
    %463 = vmatpush1.bf16.msra.mxu0 %v365
    %464 = vmatprep.subr.bf16.mxu0 0
    %465 = vmatpush1.bf16.msra.mxu0 %v366
    %466 = vmatprep.subr.bf16.mxu0 0
    %467 = vmatpush1.bf16.msra.mxu0 %v367
    %468 = vmatprep.subr.bf16.mxu0 0
    %469 = vmatpush1.bf16.msra.mxu0 %v368
    %470 = vmatprep.subr.bf16.mxu0 0
    %471 = vmatpush1.bf16.msra.mxu0 %v369
    %472 = vmatprep.subr.bf16.mxu0 0
    %473 = vmatpush1.bf16.msra.mxu0 %v370
    %474 = vmatprep.subr.bf16.mxu0 0
    %475 = vmatpush1.bf16.msra.mxu0 %v371
    %476 = vmatprep.subr.bf16.mxu0 0
    %477 = vmatpush1.bf16.msra.mxu0 %v372
    %478 = vmatprep.mubr.bf16.mxu0 %v212
    %479 = vmatmul.mubr.bf16.gmra.mrb[0].mxu0 %v211
    %v480 = vpop.f32.mrb[0].mxu0
    %v481 = vadd.f32 %v440, %v480
    %v482 = vpop.f32.mrb[0].mxu0
    %v483 = vpop.f32.mrb[0].mxu0
    %v484 = vadd.f32 %v443, %v483
    %v485 = vpop.f32.mrb[0].mxu0
    %486 = vdwg.mxu0
    %v487 = vld [vmem:[%s8] sm:$0x1]
    %v488 = vmul.f32 %v481, %v481
    %v489 = vmul.f32 %v484, %v484
    %490 = vadd.xlane.f32.xlu0 %v488
    %v491 = vpop.xlane.xlu0 %490
    %492 = vadd.xlane.f32.xlu0 %v489
    %v493 = vpop.xlane.xlu0 %492
    %v494 = vrcp.pop 128.0
    %v495 = vmul.f32 %v491, %v494
    %v496 = vmul.f32 %v493, %v494
    %v497 = vadd.f32 %v495, 1e-06
    %v498 = vadd.f32 %v496, 1e-06
    %v499 = vrsqrt.pop %v497
    %v500 = vrsqrt.pop %v498
    %v501 = vmul.f32 %v481, %v499
    %v502 = vmul.f32 %v484, %v500
    %v503 = vlaneseq
    %v504 = vshrl.u32 %v503, 7
    %v505 = vsub.s32 0, %v504
    %v506 = vrot.slane %v487, %v505
    %v507 = vmul.f32 %v501, %v506
    %v508 = vmul.f32 %v502, %v506
    %v509 = vpack.c.bf16 %v508, %v507
    %v510 = vld [vmem:[%s9] sm:$0xff]
    %v511 = vld [vmem:[%s9 + $0x8] sm:$0xf]
    %v512 = vld [vmem:[%s9 + $0xc] sm:$0xff]
    %v513 = vld [vmem:[%s9 + $0x14] sm:$0xf]
    %v514 = vld [vmem:[%s9 + $0x18] sm:$0xff]
    %v515 = vld [vmem:[%s9 + $0x20] sm:$0xf]
    %v516 = vld [vmem:[%s9 + $0x24] sm:$0xff]
    %v517 = vld [vmem:[%s9 + $0x2c] sm:$0xf]
    %v518 = vld [vmem:[%s9 + $0x30] sm:$0xff]
    %v519 = vld [vmem:[%s9 + $0x38] sm:$0xf]
    %v520 = vld [vmem:[%s9 + $0x3c] sm:$0xff]
    %v521 = vld [vmem:[%s9 + $0x44] sm:$0xf]
    %v522 = vld [vmem:[%s9 + $0x48] sm:$0xff]
    %v523 = vld [vmem:[%s9 + $0x50] sm:$0xf]
    %v524 = vld [vmem:[%s9 + $0x54] sm:$0xff]
    %v525 = vld [vmem:[%s9 + $0x5c] sm:$0xf]
    %v526 = vld [vmem:[%s9 + $0x60] sm:$0xff]
    %v527 = vld [vmem:[%s9 + $0x68] sm:$0xf]
    %v528 = vld [vmem:[%s9 + $0x6c] sm:$0xff]
    %v529 = vld [vmem:[%s9 + $0x74] sm:$0xf]
    %v530 = vld [vmem:[%s9 + $0x78] sm:$0xff]
    %v531 = vld [vmem:[%s9 + $0x80] sm:$0xf]
    %v532 = vld [vmem:[%s9 + $0x84] sm:$0xff]
    %v533 = vld [vmem:[%s9 + $0x8c] sm:$0xf]
    %v534 = vld [vmem:[%s9 + $0x90] sm:$0xff]
    %v535 = vld [vmem:[%s9 + $0x98] sm:$0xf]
    %v536 = vld [vmem:[%s9 + $0x9c] sm:$0xff]
    %v537 = vld [vmem:[%s9 + $0xa4] sm:$0xf]
    %v538 = vld [vmem:[%s9 + $0xa8] sm:$0xff]
    %v539 = vld [vmem:[%s9 + $0xb0] sm:$0xf]
    %v540 = vld [vmem:[%s9 + $0xb4] sm:$0xff]
    %v541 = vld [vmem:[%s9 + $0xbc] sm:$0xf]
    %v574 = vunpack.c.l.b16 %v510
    %v575 = vunpack.c.h.b16 %v510
    %v576 = vunpack.c.l.b16 %v511
    %v577 = vunpack.c.l.b16 %v512
    %v578 = vunpack.c.h.b16 %v512
    %v579 = vunpack.c.l.b16 %v513
    %v580 = vunpack.c.l.b16 %v514
    %v581 = vunpack.c.h.b16 %v514
    %v582 = vunpack.c.l.b16 %v515
    %v583 = vunpack.c.l.b16 %v516
    %v584 = vunpack.c.h.b16 %v516
    %v585 = vunpack.c.l.b16 %v517
    %v586 = vunpack.c.l.b16 %v518
    %v587 = vunpack.c.h.b16 %v518
    %v588 = vunpack.c.l.b16 %v519
    %v589 = vunpack.c.l.b16 %v520
    %v590 = vunpack.c.h.b16 %v520
    %v591 = vunpack.c.l.b16 %v521
    %v592 = vunpack.c.l.b16 %v522
    %v593 = vunpack.c.h.b16 %v522
    %v594 = vunpack.c.l.b16 %v523
    %v595 = vunpack.c.l.b16 %v524
    %v596 = vunpack.c.h.b16 %v524
    %v597 = vunpack.c.l.b16 %v525
    %v598 = vunpack.c.l.b16 %v526
    %v599 = vunpack.c.h.b16 %v526
    %v600 = vunpack.c.l.b16 %v527
    %v601 = vunpack.c.l.b16 %v528
    %v602 = vunpack.c.h.b16 %v528
    %v603 = vunpack.c.l.b16 %v529
    %v604 = vunpack.c.l.b16 %v530
    %v605 = vunpack.c.h.b16 %v530
    %v606 = vunpack.c.l.b16 %v531
    %v607 = vunpack.c.l.b16 %v532
    %v608 = vunpack.c.h.b16 %v532
    %v609 = vunpack.c.l.b16 %v533
    %v610 = vunpack.c.l.b16 %v534
    %v611 = vunpack.c.h.b16 %v534
    %v612 = vunpack.c.l.b16 %v535
    %v613 = vunpack.c.l.b16 %v536
    %v614 = vunpack.c.h.b16 %v536
    %v615 = vunpack.c.l.b16 %v537
    %v616 = vunpack.c.l.b16 %v538
    %v617 = vunpack.c.h.b16 %v538
    %v618 = vunpack.c.l.b16 %v539
    %v619 = vunpack.c.l.b16 %v540
    %v620 = vunpack.c.h.b16 %v540
    %v621 = vunpack.c.l.b16 %v541
    %v622 = vpack.c.b16 %v577, %v574
    %v623 = vpack.c.b16 %v578, %v575
    %v624 = vpack.c.b16 %v579, %v576
    %v625 = vpack.c.b16 %v583, %v580
    %v626 = vpack.c.b16 %v584, %v581
    %v627 = vpack.c.b16 %v585, %v582
    %v628 = vpack.c.b16 %v589, %v586
    %v629 = vpack.c.b16 %v590, %v587
    %v630 = vpack.c.b16 %v591, %v588
    %v631 = vpack.c.b16 %v595, %v592
    %v632 = vpack.c.b16 %v596, %v593
    %v633 = vpack.c.b16 %v597, %v594
    %v634 = vpack.c.b16 %v601, %v598
    %v635 = vpack.c.b16 %v602, %v599
    %v636 = vpack.c.b16 %v603, %v600
    %v637 = vpack.c.b16 %v607, %v604
    %v638 = vpack.c.b16 %v608, %v605
    %v639 = vpack.c.b16 %v609, %v606
    %v640 = vpack.c.b16 %v613, %v610
    %v641 = vpack.c.b16 %v614, %v611
    %v642 = vpack.c.b16 %v615, %v612
    %v643 = vpack.c.b16 %v619, %v616
    %v644 = vpack.c.b16 %v620, %v617
    %v645 = vpack.c.b16 %v621, %v618
    %670 = vmatprep.subr.bf16.mxu0 %v623
    %671 = vmatpush1.bf16.msra.mxu0 %v622
    %672 = vmatprep.subr.bf16.mxu0 %v626
    %673 = vmatpush1.bf16.msra.mxu0 %v625
    %674 = vmatprep.subr.bf16.mxu0 %v629
    %675 = vmatpush1.bf16.msra.mxu0 %v628
    %676 = vmatprep.subr.bf16.mxu0 %v632
    %677 = vmatpush1.bf16.msra.mxu0 %v631
    %678 = vmatprep.subr.bf16.mxu0 %v635
    %679 = vmatpush1.bf16.msra.mxu0 %v634
    %680 = vmatprep.subr.bf16.mxu0 %v638
    %681 = vmatpush1.bf16.msra.mxu0 %v637
    %682 = vmatprep.subr.bf16.mxu0 %v641
    %683 = vmatpush1.bf16.msra.mxu0 %v640
    %684 = vmatprep.subr.bf16.mxu0 %v644
    %685 = vmatpush1.bf16.msra.mxu0 %v643
    %686 = vmatprep.subr.bf16.mxu0 0
    %687 = vmatpush1.bf16.msra.mxu0 0
    %688 = vmatprep.subr.bf16.mxu0 0
    %689 = vmatpush1.bf16.msra.mxu0 0
    %690 = vmatprep.subr.bf16.mxu0 0
    %691 = vmatpush1.bf16.msra.mxu0 0
    %692 = vmatprep.subr.bf16.mxu0 0
    %693 = vmatpush1.bf16.msra.mxu0 0
    %694 = vmatprep.subr.bf16.mxu0 0
    %695 = vmatpush1.bf16.msra.mxu0 0
    %696 = vmatprep.subr.bf16.mxu0 0
    %697 = vmatpush1.bf16.msra.mxu0 0
    %698 = vmatprep.subr.bf16.mxu0 0
    %699 = vmatpush1.bf16.msra.mxu0 0
    %700 = vmatprep.subr.bf16.mxu0 0
    %701 = vmatpush1.bf16.msra.mxu0 0
    %702 = vmatprep.mubr.bf16.mxu0 0
    %703 = vmatmul.mubr.bf16.gmra.mrb[0].mxu0 %v509
    %v704 = vpop.f32.mrb[0].mxu0
    %v705 = vadd.f32 0.0, %v704
    %v706 = vpop.f32.mrb[0].mxu0
    %v707 = vadd.f32 0.0, %v706
    %v708 = vpop.f32.mrb[0].mxu0
    %v709 = vadd.f32 0.0, %v708
    %v710 = vpop.f32.mrb[0].mxu0
    %v711 = vadd.f32 0.0, %v710
    %712 = vdwg.mxu0
    %713 = vmatprep.subr.bf16.mxu0 0
    %714 = vmatpush1.bf16.msra.mxu0 %v624
    %715 = vmatprep.subr.bf16.mxu0 0
    %716 = vmatpush1.bf16.msra.mxu0 %v627
    %717 = vmatprep.subr.bf16.mxu0 0
    %718 = vmatpush1.bf16.msra.mxu0 %v630
    %719 = vmatprep.subr.bf16.mxu0 0
    %720 = vmatpush1.bf16.msra.mxu0 %v633
    %721 = vmatprep.subr.bf16.mxu0 0
    %722 = vmatpush1.bf16.msra.mxu0 %v636
    %723 = vmatprep.subr.bf16.mxu0 0
    %724 = vmatpush1.bf16.msra.mxu0 %v639
    %725 = vmatprep.subr.bf16.mxu0 0
    %726 = vmatpush1.bf16.msra.mxu0 %v642
    %727 = vmatprep.subr.bf16.mxu0 0
    %728 = vmatpush1.bf16.msra.mxu0 %v645
    %729 = vmatprep.subr.bf16.mxu0 0
    %730 = vmatpush1.bf16.msra.mxu0 0
    %731 = vmatprep.subr.bf16.mxu0 0
    %732 = vmatpush1.bf16.msra.mxu0 0
    %733 = vmatprep.subr.bf16.mxu0 0
    %734 = vmatpush1.bf16.msra.mxu0 0
    %735 = vmatprep.subr.bf16.mxu0 0
    %736 = vmatpush1.bf16.msra.mxu0 0
    %737 = vmatprep.subr.bf16.mxu0 0
    %738 = vmatpush1.bf16.msra.mxu0 0
    %739 = vmatprep.subr.bf16.mxu0 0
    %740 = vmatpush1.bf16.msra.mxu0 0
    %741 = vmatprep.subr.bf16.mxu0 0
    %742 = vmatpush1.bf16.msra.mxu0 0
    %743 = vmatprep.subr.bf16.mxu0 0
    %744 = vmatpush1.bf16.msra.mxu0 0
    %745 = vmatprep.mubr.bf16.mxu0 0
    %746 = vmatmul.mubr.bf16.gmra.mrb[0].mxu0 %v509
    %v747 = vpop.f32.mrb[0].mxu0
    %v748 = vadd.f32 0.0, %v747
    %v749 = vpop.f32.mrb[0].mxu0
    %v750 = vpop.f32.mrb[0].mxu0
    %v751 = vadd.f32 0.0, %v750
    %v752 = vpop.f32.mrb[0].mxu0
    %753 = vdwg.mxu0
    %v754 = vld [vmem:[%s10] sm:$0xf]
    %v755 = vld [vmem:[%s10 + $0x4] sm:$0xf]
    %v756 = vld [vmem:[%s10 + $0x8] sm:$0xf]
    %v757 = vld [vmem:[%s10 + $0xc] sm:$0xf]
    %v758 = vld [vmem:[%s10 + $0x10] sm:$0xf]
    %v759 = vld [vmem:[%s10 + $0x14] sm:$0xf]
    %v760 = vld [vmem:[%s10 + $0x18] sm:$0xf]
    %v761 = vld [vmem:[%s10 + $0x1c] sm:$0xf]
    %v762 = vld [vmem:[%s10 + $0x20] sm:$0xf]
    %v763 = vld [vmem:[%s10 + $0x24] sm:$0xf]
    %v764 = vld [vmem:[%s10 + $0x28] sm:$0xf]
    %v765 = vld [vmem:[%s10 + $0x2c] sm:$0xf]
    %v766 = vld [vmem:[%s10 + $0x30] sm:$0xf]
    %v767 = vld [vmem:[%s10 + $0x34] sm:$0xf]
    %v768 = vld [vmem:[%s10 + $0x38] sm:$0xf]
    %v769 = vld [vmem:[%s10 + $0x3c] sm:$0xf]
    %v770 = vpack.c.bf16 %v709, %v705
    %v772 = vunpack.c.l.b16 %v770
    %v773 = vunpack.c.h.b16 %v770
    %v774 = vpack.c.b16 %v772, %v772
    %v775 = vpack.c.b16 %v773, %v773
    %v776 = vpack.c.bf16 %v711, %v707
    %v778 = vunpack.c.l.b16 %v776
    %v779 = vunpack.c.h.b16 %v776
    %v780 = vpack.c.b16 %v778, %v778
    %v781 = vpack.c.b16 %v779, %v779
    %v782 = vpack.c.bf16 %v751, %v748
    %v784 = vunpack.c.l.b16 %v782
    %v785 = vunpack.c.h.b16 %v782
    %v786 = vpack.c.b16 %v784, %v784
    %v787 = vpack.c.b16 %v785, %v785
    %vm788 = vcmask 261120
    %v790 = vsel %vm788, %v774, 0
    %v793 = vsel %vm788, %v780, 0
    %795 = vmatprep.subr.bf16.mxu0 0
    %796 = vmatpush1.bf16.xpose.msra.mxu0 %v793
    %797 = vmatprep.subr.bf16.mxu0 0
    %798 = vmatpush1.bf16.xpose.msra.mxu0 0
    %799 = vmatprep.subr.bf16.mxu0 0
    %800 = vmatpush1.bf16.xpose.msra.mxu0 0
    %801 = vmatprep.subr.bf16.mxu0 0
    %802 = vmatpush1.bf16.xpose.msra.mxu0 0
    %803 = vmatprep.subr.bf16.mxu0 0
    %804 = vmatpush1.bf16.xpose.msra.mxu0 0
    %805 = vmatprep.subr.bf16.mxu0 0
    %806 = vmatpush1.bf16.xpose.msra.mxu0 0
    %807 = vmatprep.subr.bf16.mxu0 0
    %808 = vmatpush1.bf16.xpose.msra.mxu0 0
    %809 = vmatprep.subr.bf16.mxu0 0
    %810 = vmatpush1.bf16.xpose.msra.mxu0 0
    %811 = vmatprep.subr.bf16.mxu0 0
    %812 = vmatpush1.bf16.xpose.msra.mxu0 0
    %813 = vmatprep.subr.bf16.mxu0 0
    %814 = vmatpush1.bf16.xpose.msra.mxu0 0
    %815 = vmatprep.subr.bf16.mxu0 0
    %816 = vmatpush1.bf16.xpose.msra.mxu0 0
    %817 = vmatprep.subr.bf16.mxu0 0
    %818 = vmatpush1.bf16.xpose.msra.mxu0 0
    %819 = vmatprep.subr.bf16.mxu0 0
    %820 = vmatpush1.bf16.xpose.msra.mxu0 0
    %821 = vmatprep.subr.bf16.mxu0 0
    %822 = vmatpush1.bf16.xpose.msra.mxu0 0
    %823 = vmatprep.subr.bf16.mxu0 0
    %824 = vmatpush1.bf16.xpose.msra.mxu0 0
    %825 = vmatprep.subr.bf16.mxu0 0
    %826 = vmatpush1.bf16.xpose.msra.mxu0 0
    %827 = vmatprep.mubr.bf16.mxu0 0
    %828 = vmatmul.mubr.bf16.gmra.mrb[0].mxu0 %v790
    %v829 = vpop.f32.mrb[0].mxu0
    %v830 = vadd.f32 %v165, %v829
    %v831 = vpop.f32.mrb[0].mxu0
    %v832 = vpop.f32.mrb[0].mxu0
    %v833 = vpop.f32.mrb[0].mxu0
    %834 = vdwg.mxu0
    %v836 = vsel %vm788, %v775, 0
    %v839 = vsel %vm788, %v781, 0
    %841 = vmatprep.subr.bf16.mxu0 0
    %842 = vmatpush1.bf16.xpose.msra.mxu0 %v839
    %843 = vmatprep.subr.bf16.mxu0 0
    %844 = vmatpush1.bf16.xpose.msra.mxu0 0
    %845 = vmatprep.subr.bf16.mxu0 0
    %846 = vmatpush1.bf16.xpose.msra.mxu0 0
    %847 = vmatprep.subr.bf16.mxu0 0
    %848 = vmatpush1.bf16.xpose.msra.mxu0 0
    %849 = vmatprep.subr.bf16.mxu0 0
    %850 = vmatpush1.bf16.xpose.msra.mxu0 0
    %851 = vmatprep.subr.bf16.mxu0 0
    %852 = vmatpush1.bf16.xpose.msra.mxu0 0
    %853 = vmatprep.subr.bf16.mxu0 0
    %854 = vmatpush1.bf16.xpose.msra.mxu0 0
    %855 = vmatprep.subr.bf16.mxu0 0
    %856 = vmatpush1.bf16.xpose.msra.mxu0 0
    %857 = vmatprep.subr.bf16.mxu0 0
    %858 = vmatpush1.bf16.xpose.msra.mxu0 0
    %859 = vmatprep.subr.bf16.mxu0 0
    %860 = vmatpush1.bf16.xpose.msra.mxu0 0
    %861 = vmatprep.subr.bf16.mxu0 0
    %862 = vmatpush1.bf16.xpose.msra.mxu0 0
    %863 = vmatprep.subr.bf16.mxu0 0
    %864 = vmatpush1.bf16.xpose.msra.mxu0 0
    %865 = vmatprep.subr.bf16.mxu0 0
    %866 = vmatpush1.bf16.xpose.msra.mxu0 0
    %867 = vmatprep.subr.bf16.mxu0 0
    %868 = vmatpush1.bf16.xpose.msra.mxu0 0
    %869 = vmatprep.subr.bf16.mxu0 0
    %870 = vmatpush1.bf16.xpose.msra.mxu0 0
    %871 = vmatprep.subr.bf16.mxu0 0
    %872 = vmatpush1.bf16.xpose.msra.mxu0 0
    %873 = vmatprep.mubr.bf16.mxu0 0
    %874 = vmatmul.mubr.bf16.gmra.mrb[0].mxu0 %v836
    %v875 = vpop.f32.mrb[0].mxu0
    %v876 = vadd.f32 %v169, %v875
    %v877 = vpop.f32.mrb[0].mxu0
    %v878 = vpop.f32.mrb[0].mxu0
    %v879 = vpop.f32.mrb[0].mxu0
    %880 = vdwg.mxu0
    %vm881 = vcmask 64512
    %v882 = vsel %vm881, %v830, -inf
    %883 = vmax.xlane.f32.xlu0 %v882
    %v884 = vpop.xlane.xlu0 %883
    %v885 = vsel %vm881, %v876, -inf
    %886 = vmax.xlane.f32.xlu0 %v885
    %v887 = vpop.xlane.xlu0 %886
    %v888 = vsub.f32 %v830, %v884
    %v889 = vsub.f32 %v876, %v887
    %v890 = vmul.f32 %v888, 1.442695
    %v891 = vpow.pop %v890
    %v892 = vmul.f32 %v889, 1.442695
    %v893 = vpow.pop %v892
    %v894 = vsel %vm881, %v891, 0.0
    %895 = vadd.xlane.f32.xlu0 %v894
    %v896 = vpop.xlane.xlu0 %895
    %v897 = vsel %vm881, %v893, 0.0
    %898 = vadd.xlane.f32.xlu0 %v897
    %v899 = vpop.xlane.xlu0 %898
    %v900 = vrcp.pop %v896
    %v901 = vrcp.pop %v899
    %v902 = vmul.f32 %v891, %v900
    %v903 = vmul.f32 %v893, %v901
    %v904 = vpack.c.bf16 %v902, %v902
    %v905 = vpack.c.bf16 %v903, %v903
    %v907 = vsel %vm881, %v904, 0
    %vm909 = vcmask 1043456
    %v911 = vsel %vm909, %v786, 0
    %913 = vmatprep.subr.bf16.mxu0 0
    %914 = vmatpush1.bf16.msra.mxu0 %v911
    %915 = vmatprep.subr.bf16.mxu0 0
    %916 = vmatpush1.bf16.msra.mxu0 0
    %917 = vmatprep.subr.bf16.mxu0 0
    %918 = vmatpush1.bf16.msra.mxu0 0
    %919 = vmatprep.subr.bf16.mxu0 0
    %920 = vmatpush1.bf16.msra.mxu0 0
    %921 = vmatprep.subr.bf16.mxu0 0
    %922 = vmatpush1.bf16.msra.mxu0 0
    %923 = vmatprep.subr.bf16.mxu0 0
    %924 = vmatpush1.bf16.msra.mxu0 0
    %925 = vmatprep.subr.bf16.mxu0 0
    %926 = vmatpush1.bf16.msra.mxu0 0
    %927 = vmatprep.subr.bf16.mxu0 0
    %928 = vmatpush1.bf16.msra.mxu0 0
    %929 = vmatprep.subr.bf16.mxu0 0
    %930 = vmatpush1.bf16.msra.mxu0 0
    %931 = vmatprep.subr.bf16.mxu0 0
    %932 = vmatpush1.bf16.msra.mxu0 0
    %933 = vmatprep.subr.bf16.mxu0 0
    %934 = vmatpush1.bf16.msra.mxu0 0
    %935 = vmatprep.subr.bf16.mxu0 0
    %936 = vmatpush1.bf16.msra.mxu0 0
    %937 = vmatprep.subr.bf16.mxu0 0
    %938 = vmatpush1.bf16.msra.mxu0 0
    %939 = vmatprep.subr.bf16.mxu0 0
    %940 = vmatpush1.bf16.msra.mxu0 0
    %941 = vmatprep.subr.bf16.mxu0 0
    %942 = vmatpush1.bf16.msra.mxu0 0
    %943 = vmatprep.subr.bf16.mxu0 0
    %944 = vmatpush1.bf16.msra.mxu0 0
    %945 = vmatprep.mubr.bf16.mxu0 0
    %946 = vmatmul.mubr.bf16.gmra.mrb[0].mxu0 %v907
    %v947 = vpop.f32.mrb[0].mxu0
    %v948 = vadd.f32 0.0, %v947
    %v949 = vpop.f32.mrb[0].mxu0
    %v950 = vpop.f32.mrb[0].mxu0
    %v951 = vpop.f32.mrb[0].mxu0
    %952 = vdwg.mxu0
    %v954 = vsel %vm881, %v905, 0
    %v957 = vsel %vm909, %v787, 0
    %959 = vmatprep.subr.bf16.mxu0 0
    %960 = vmatpush1.bf16.msra.mxu0 %v957
    %961 = vmatprep.subr.bf16.mxu0 0
    %962 = vmatpush1.bf16.msra.mxu0 0
    %963 = vmatprep.subr.bf16.mxu0 0
    %964 = vmatpush1.bf16.msra.mxu0 0
    %965 = vmatprep.subr.bf16.mxu0 0
    %966 = vmatpush1.bf16.msra.mxu0 0
    %967 = vmatprep.subr.bf16.mxu0 0
    %968 = vmatpush1.bf16.msra.mxu0 0
    %969 = vmatprep.subr.bf16.mxu0 0
    %970 = vmatpush1.bf16.msra.mxu0 0
    %971 = vmatprep.subr.bf16.mxu0 0
    %972 = vmatpush1.bf16.msra.mxu0 0
    %973 = vmatprep.subr.bf16.mxu0 0
    %974 = vmatpush1.bf16.msra.mxu0 0
    %975 = vmatprep.subr.bf16.mxu0 0
    %976 = vmatpush1.bf16.msra.mxu0 0
    %977 = vmatprep.subr.bf16.mxu0 0
    %978 = vmatpush1.bf16.msra.mxu0 0
    %979 = vmatprep.subr.bf16.mxu0 0
    %980 = vmatpush1.bf16.msra.mxu0 0
    %981 = vmatprep.subr.bf16.mxu0 0
    %982 = vmatpush1.bf16.msra.mxu0 0
    %983 = vmatprep.subr.bf16.mxu0 0
    %984 = vmatpush1.bf16.msra.mxu0 0
    %985 = vmatprep.subr.bf16.mxu0 0
    %986 = vmatpush1.bf16.msra.mxu0 0
    %987 = vmatprep.subr.bf16.mxu0 0
    %988 = vmatpush1.bf16.msra.mxu0 0
    %989 = vmatprep.subr.bf16.mxu0 0
    %990 = vmatpush1.bf16.msra.mxu0 0
    %991 = vmatprep.mubr.bf16.mxu0 0
    %992 = vmatmul.mubr.bf16.gmra.mrb[0].mxu0 %v954
    %v993 = vpop.f32.mrb[0].mxu0
    %v994 = vadd.f32 0.0, %v993
    %v995 = vpop.f32.mrb[0].mxu0
    %v996 = vpop.f32.mrb[0].mxu0
    %v997 = vpop.f32.mrb[0].mxu0
    %998 = vdwg.mxu0
    %999 = vrot.lane.b32.xlu0 %v774, 96
    %v1000 = vpop.permute.xlu0 %999
    %1001 = vrot.lane.b32.xlu0 %v780, 96
    %v1002 = vpop.permute.xlu0 %1001
    %v1004 = vsel %vm788, %v1000, 0
    %v1007 = vsel %vm788, %v1002, 0
    %1009 = vmatprep.subr.bf16.mxu0 0
    %1010 = vmatpush1.bf16.xpose.msra.mxu0 %v1007
    %1011 = vmatprep.subr.bf16.mxu0 0
    %1012 = vmatpush1.bf16.xpose.msra.mxu0 0
    %1013 = vmatprep.subr.bf16.mxu0 0
    %1014 = vmatpush1.bf16.xpose.msra.mxu0 0
    %1015 = vmatprep.subr.bf16.mxu0 0
    %1016 = vmatpush1.bf16.xpose.msra.mxu0 0
    %1017 = vmatprep.subr.bf16.mxu0 0
    %1018 = vmatpush1.bf16.xpose.msra.mxu0 0
    %1019 = vmatprep.subr.bf16.mxu0 0
    %1020 = vmatpush1.bf16.xpose.msra.mxu0 0
    %1021 = vmatprep.subr.bf16.mxu0 0
    %1022 = vmatpush1.bf16.xpose.msra.mxu0 0
    %1023 = vmatprep.subr.bf16.mxu0 0
    %1024 = vmatpush1.bf16.xpose.msra.mxu0 0
    %1025 = vmatprep.subr.bf16.mxu0 0
    %1026 = vmatpush1.bf16.xpose.msra.mxu0 0
    %1027 = vmatprep.subr.bf16.mxu0 0
    %1028 = vmatpush1.bf16.xpose.msra.mxu0 0
    %1029 = vmatprep.subr.bf16.mxu0 0
    %1030 = vmatpush1.bf16.xpose.msra.mxu0 0
    %1031 = vmatprep.subr.bf16.mxu0 0
    %1032 = vmatpush1.bf16.xpose.msra.mxu0 0
    %1033 = vmatprep.subr.bf16.mxu0 0
    %1034 = vmatpush1.bf16.xpose.msra.mxu0 0
    %1035 = vmatprep.subr.bf16.mxu0 0
    %1036 = vmatpush1.bf16.xpose.msra.mxu0 0
    %1037 = vmatprep.subr.bf16.mxu0 0
    %1038 = vmatpush1.bf16.xpose.msra.mxu0 0
    %1039 = vmatprep.subr.bf16.mxu0 0
    %1040 = vmatpush1.bf16.xpose.msra.mxu0 0
    %1041 = vmatprep.mubr.bf16.mxu0 0
    %1042 = vmatmul.mubr.bf16.gmra.mrb[0].mxu0 %v1004
    %v1043 = vpop.f32.mrb[0].mxu0
    %v1044 = vadd.f32 %v165, %v1043
    %v1045 = vpop.f32.mrb[0].mxu0
    %v1046 = vpop.f32.mrb[0].mxu0
    %v1047 = vpop.f32.mrb[0].mxu0
    %1048 = vdwg.mxu0
    %1049 = vrot.lane.b32.xlu0 %v775, 96
    %v1050 = vpop.permute.xlu0 %1049
    %1051 = vrot.lane.b32.xlu0 %v781, 96
    %v1052 = vpop.permute.xlu0 %1051
    %v1054 = vsel %vm788, %v1050, 0
    %v1057 = vsel %vm788, %v1052, 0
    %1059 = vmatprep.subr.bf16.mxu0 0
    %1060 = vmatpush1.bf16.xpose.msra.mxu0 %v1057
    %1061 = vmatprep.subr.bf16.mxu0 0
    %1062 = vmatpush1.bf16.xpose.msra.mxu0 0
    %1063 = vmatprep.subr.bf16.mxu0 0
    %1064 = vmatpush1.bf16.xpose.msra.mxu0 0
    %1065 = vmatprep.subr.bf16.mxu0 0
    %1066 = vmatpush1.bf16.xpose.msra.mxu0 0
    %1067 = vmatprep.subr.bf16.mxu0 0
    %1068 = vmatpush1.bf16.xpose.msra.mxu0 0
    %1069 = vmatprep.subr.bf16.mxu0 0
    %1070 = vmatpush1.bf16.xpose.msra.mxu0 0
    %1071 = vmatprep.subr.bf16.mxu0 0
    %1072 = vmatpush1.bf16.xpose.msra.mxu0 0
    %1073 = vmatprep.subr.bf16.mxu0 0
    %1074 = vmatpush1.bf16.xpose.msra.mxu0 0
    %1075 = vmatprep.subr.bf16.mxu0 0
    %1076 = vmatpush1.bf16.xpose.msra.mxu0 0
    %1077 = vmatprep.subr.bf16.mxu0 0
    %1078 = vmatpush1.bf16.xpose.msra.mxu0 0
    %1079 = vmatprep.subr.bf16.mxu0 0
    %1080 = vmatpush1.bf16.xpose.msra.mxu0 0
    %1081 = vmatprep.subr.bf16.mxu0 0
    %1082 = vmatpush1.bf16.xpose.msra.mxu0 0
    %1083 = vmatprep.subr.bf16.mxu0 0
    %1084 = vmatpush1.bf16.xpose.msra.mxu0 0
    %1085 = vmatprep.subr.bf16.mxu0 0
    %1086 = vmatpush1.bf16.xpose.msra.mxu0 0
    %1087 = vmatprep.subr.bf16.mxu0 0
    %1088 = vmatpush1.bf16.xpose.msra.mxu0 0
    %1089 = vmatprep.subr.bf16.mxu0 0
    %1090 = vmatpush1.bf16.xpose.msra.mxu0 0
    %1091 = vmatprep.mubr.bf16.mxu0 0
    %1092 = vmatmul.mubr.bf16.gmra.mrb[0].mxu0 %v1054
    %v1093 = vpop.f32.mrb[0].mxu0
    %v1094 = vadd.f32 %v169, %v1093
    %v1095 = vpop.f32.mrb[0].mxu0
    %v1096 = vpop.f32.mrb[0].mxu0
    %v1097 = vpop.f32.mrb[0].mxu0
    %1098 = vdwg.mxu0
    %v1099 = vsel %vm881, %v1044, -inf
    %1100 = vmax.xlane.f32.xlu0 %v1099
    %v1101 = vpop.xlane.xlu0 %1100
    %v1102 = vsel %vm881, %v1094, -inf
    %1103 = vmax.xlane.f32.xlu0 %v1102
    %v1104 = vpop.xlane.xlu0 %1103
    %v1105 = vsub.f32 %v1044, %v1101
    %v1106 = vsub.f32 %v1094, %v1104
    %v1107 = vmul.f32 %v1105, 1.442695
    %v1108 = vpow.pop %v1107
    %v1109 = vmul.f32 %v1106, 1.442695
    %v1110 = vpow.pop %v1109
    %v1111 = vsel %vm881, %v1108, 0.0
    %1112 = vadd.xlane.f32.xlu0 %v1111
    %v1113 = vpop.xlane.xlu0 %1112
    %v1114 = vsel %vm881, %v1110, 0.0
    %1115 = vadd.xlane.f32.xlu0 %v1114
    %v1116 = vpop.xlane.xlu0 %1115
    %v1117 = vrcp.pop %v1113
    %v1118 = vrcp.pop %v1116
    %v1119 = vmul.f32 %v1108, %v1117
    %v1120 = vmul.f32 %v1110, %v1118
    %v1121 = vpack.c.bf16 %v1119, %v1119
    %v1122 = vpack.c.bf16 %v1120, %v1120
    %1123 = vrot.lane.b32.xlu0 %v786, 96
    %v1124 = vpop.permute.xlu0 %1123
    %v1126 = vsel %vm881, %v1121, 0
    %v1129 = vsel %vm909, %v1124, 0
    %1131 = vmatprep.subr.bf16.mxu0 0
    %1132 = vmatpush1.bf16.msra.mxu0 %v1129
    %1133 = vmatprep.subr.bf16.mxu0 0
    %1134 = vmatpush1.bf16.msra.mxu0 0
    %1135 = vmatprep.subr.bf16.mxu0 0
    %1136 = vmatpush1.bf16.msra.mxu0 0
    %1137 = vmatprep.subr.bf16.mxu0 0
    %1138 = vmatpush1.bf16.msra.mxu0 0
    %1139 = vmatprep.subr.bf16.mxu0 0
    %1140 = vmatpush1.bf16.msra.mxu0 0
    %1141 = vmatprep.subr.bf16.mxu0 0
    %1142 = vmatpush1.bf16.msra.mxu0 0
    %1143 = vmatprep.subr.bf16.mxu0 0
    %1144 = vmatpush1.bf16.msra.mxu0 0
    %1145 = vmatprep.subr.bf16.mxu0 0
    %1146 = vmatpush1.bf16.msra.mxu0 0
    %1147 = vmatprep.subr.bf16.mxu0 0
    %1148 = vmatpush1.bf16.msra.mxu0 0
    %1149 = vmatprep.subr.bf16.mxu0 0
    %1150 = vmatpush1.bf16.msra.mxu0 0
    %1151 = vmatprep.subr.bf16.mxu0 0
    %1152 = vmatpush1.bf16.msra.mxu0 0
    %1153 = vmatprep.subr.bf16.mxu0 0
    %1154 = vmatpush1.bf16.msra.mxu0 0
    %1155 = vmatprep.subr.bf16.mxu0 0
    %1156 = vmatpush1.bf16.msra.mxu0 0
    %1157 = vmatprep.subr.bf16.mxu0 0
    %1158 = vmatpush1.bf16.msra.mxu0 0
    %1159 = vmatprep.subr.bf16.mxu0 0
    %1160 = vmatpush1.bf16.msra.mxu0 0
    %1161 = vmatprep.subr.bf16.mxu0 0
    %1162 = vmatpush1.bf16.msra.mxu0 0
    %1163 = vmatprep.mubr.bf16.mxu0 0
    %1164 = vmatmul.mubr.bf16.gmra.mrb[0].mxu0 %v1126
    %v1165 = vpop.f32.mrb[0].mxu0
    %v1166 = vadd.f32 0.0, %v1165
    %v1167 = vpop.f32.mrb[0].mxu0
    %v1168 = vpop.f32.mrb[0].mxu0
    %v1169 = vpop.f32.mrb[0].mxu0
    %1170 = vdwg.mxu0
    %1171 = vrot.lane.b32.xlu0 %v787, 96
    %v1172 = vpop.permute.xlu0 %1171
    %v1174 = vsel %vm881, %v1122, 0
    %v1177 = vsel %vm909, %v1172, 0
    %1179 = vmatprep.subr.bf16.mxu0 0
    %1180 = vmatpush1.bf16.msra.mxu0 %v1177
    %1181 = vmatprep.subr.bf16.mxu0 0
    %1182 = vmatpush1.bf16.msra.mxu0 0
    %1183 = vmatprep.subr.bf16.mxu0 0
    %1184 = vmatpush1.bf16.msra.mxu0 0
    %1185 = vmatprep.subr.bf16.mxu0 0
    %1186 = vmatpush1.bf16.msra.mxu0 0
    %1187 = vmatprep.subr.bf16.mxu0 0
    %1188 = vmatpush1.bf16.msra.mxu0 0
    %1189 = vmatprep.subr.bf16.mxu0 0
    %1190 = vmatpush1.bf16.msra.mxu0 0
    %1191 = vmatprep.subr.bf16.mxu0 0
    %1192 = vmatpush1.bf16.msra.mxu0 0
    %1193 = vmatprep.subr.bf16.mxu0 0
    %1194 = vmatpush1.bf16.msra.mxu0 0
    %1195 = vmatprep.subr.bf16.mxu0 0
    %1196 = vmatpush1.bf16.msra.mxu0 0
    %1197 = vmatprep.subr.bf16.mxu0 0
    %1198 = vmatpush1.bf16.msra.mxu0 0
    %1199 = vmatprep.subr.bf16.mxu0 0
    %1200 = vmatpush1.bf16.msra.mxu0 0
    %1201 = vmatprep.subr.bf16.mxu0 0
    %1202 = vmatpush1.bf16.msra.mxu0 0
    %1203 = vmatprep.subr.bf16.mxu0 0
    %1204 = vmatpush1.bf16.msra.mxu0 0
    %1205 = vmatprep.subr.bf16.mxu0 0
    %1206 = vmatpush1.bf16.msra.mxu0 0
    %1207 = vmatprep.subr.bf16.mxu0 0
    %1208 = vmatpush1.bf16.msra.mxu0 0
    %1209 = vmatprep.subr.bf16.mxu0 0
    %1210 = vmatpush1.bf16.msra.mxu0 0
    %1211 = vmatprep.mubr.bf16.mxu0 0
    %1212 = vmatmul.mubr.bf16.gmra.mrb[0].mxu0 %v1174
    %v1213 = vpop.f32.mrb[0].mxu0
    %v1214 = vadd.f32 0.0, %v1213
    %v1215 = vpop.f32.mrb[0].mxu0
    %v1216 = vpop.f32.mrb[0].mxu0
    %v1217 = vpop.f32.mrb[0].mxu0
    %1218 = vdwg.mxu0
    %1219 = vrot.lane.b32.xlu0 %v774, 64
    %v1220 = vpop.permute.xlu0 %1219
    %1221 = vrot.lane.b32.xlu0 %v780, 64
    %v1222 = vpop.permute.xlu0 %1221
    %v1224 = vsel %vm788, %v1220, 0
    %v1227 = vsel %vm788, %v1222, 0
    %1229 = vmatprep.subr.bf16.mxu0 0
    %1230 = vmatpush1.bf16.xpose.msra.mxu0 %v1227
    %1231 = vmatprep.subr.bf16.mxu0 0
    %1232 = vmatpush1.bf16.xpose.msra.mxu0 0
    %1233 = vmatprep.subr.bf16.mxu0 0
    %1234 = vmatpush1.bf16.xpose.msra.mxu0 0
    %1235 = vmatprep.subr.bf16.mxu0 0
    %1236 = vmatpush1.bf16.xpose.msra.mxu0 0
    %1237 = vmatprep.subr.bf16.mxu0 0
    %1238 = vmatpush1.bf16.xpose.msra.mxu0 0
    %1239 = vmatprep.subr.bf16.mxu0 0
    %1240 = vmatpush1.bf16.xpose.msra.mxu0 0
    %1241 = vmatprep.subr.bf16.mxu0 0
    %1242 = vmatpush1.bf16.xpose.msra.mxu0 0
    %1243 = vmatprep.subr.bf16.mxu0 0
    %1244 = vmatpush1.bf16.xpose.msra.mxu0 0
    %1245 = vmatprep.subr.bf16.mxu0 0
    %1246 = vmatpush1.bf16.xpose.msra.mxu0 0
    %1247 = vmatprep.subr.bf16.mxu0 0
    %1248 = vmatpush1.bf16.xpose.msra.mxu0 0
    %1249 = vmatprep.subr.bf16.mxu0 0
    %1250 = vmatpush1.bf16.xpose.msra.mxu0 0
    %1251 = vmatprep.subr.bf16.mxu0 0
    %1252 = vmatpush1.bf16.xpose.msra.mxu0 0
    %1253 = vmatprep.subr.bf16.mxu0 0
    %1254 = vmatpush1.bf16.xpose.msra.mxu0 0
    %1255 = vmatprep.subr.bf16.mxu0 0
    %1256 = vmatpush1.bf16.xpose.msra.mxu0 0
    %1257 = vmatprep.subr.bf16.mxu0 0
    %1258 = vmatpush1.bf16.xpose.msra.mxu0 0
    %1259 = vmatprep.subr.bf16.mxu0 0
    %1260 = vmatpush1.bf16.xpose.msra.mxu0 0
    %1261 = vmatprep.mubr.bf16.mxu0 0
    %1262 = vmatmul.mubr.bf16.gmra.mrb[0].mxu0 %v1224
    %v1263 = vpop.f32.mrb[0].mxu0
    %v1264 = vadd.f32 %v165, %v1263
    %v1265 = vpop.f32.mrb[0].mxu0
    %v1266 = vpop.f32.mrb[0].mxu0
    %v1267 = vpop.f32.mrb[0].mxu0
    %1268 = vdwg.mxu0
    %1269 = vrot.lane.b32.xlu0 %v775, 64
    %v1270 = vpop.permute.xlu0 %1269
    %1271 = vrot.lane.b32.xlu0 %v781, 64
    %v1272 = vpop.permute.xlu0 %1271
    %v1274 = vsel %vm788, %v1270, 0
    %v1277 = vsel %vm788, %v1272, 0
    %1279 = vmatprep.subr.bf16.mxu0 0
    %1280 = vmatpush1.bf16.xpose.msra.mxu0 %v1277
    %1281 = vmatprep.subr.bf16.mxu0 0
    %1282 = vmatpush1.bf16.xpose.msra.mxu0 0
    %1283 = vmatprep.subr.bf16.mxu0 0
    %1284 = vmatpush1.bf16.xpose.msra.mxu0 0
    %1285 = vmatprep.subr.bf16.mxu0 0
    %1286 = vmatpush1.bf16.xpose.msra.mxu0 0
    %1287 = vmatprep.subr.bf16.mxu0 0
    %1288 = vmatpush1.bf16.xpose.msra.mxu0 0
    %1289 = vmatprep.subr.bf16.mxu0 0
    %1290 = vmatpush1.bf16.xpose.msra.mxu0 0
    %1291 = vmatprep.subr.bf16.mxu0 0
    %1292 = vmatpush1.bf16.xpose.msra.mxu0 0
    %1293 = vmatprep.subr.bf16.mxu0 0
    %1294 = vmatpush1.bf16.xpose.msra.mxu0 0
    %1295 = vmatprep.subr.bf16.mxu0 0
    %1296 = vmatpush1.bf16.xpose.msra.mxu0 0
    %1297 = vmatprep.subr.bf16.mxu0 0
    %1298 = vmatpush1.bf16.xpose.msra.mxu0 0
    %1299 = vmatprep.subr.bf16.mxu0 0
    %1300 = vmatpush1.bf16.xpose.msra.mxu0 0
    %1301 = vmatprep.subr.bf16.mxu0 0
    %1302 = vmatpush1.bf16.xpose.msra.mxu0 0
    %1303 = vmatprep.subr.bf16.mxu0 0
    %1304 = vmatpush1.bf16.xpose.msra.mxu0 0
    %1305 = vmatprep.subr.bf16.mxu0 0
    %1306 = vmatpush1.bf16.xpose.msra.mxu0 0
    %1307 = vmatprep.subr.bf16.mxu0 0
    %1308 = vmatpush1.bf16.xpose.msra.mxu0 0
    %1309 = vmatprep.subr.bf16.mxu0 0
    %1310 = vmatpush1.bf16.xpose.msra.mxu0 0
    %1311 = vmatprep.mubr.bf16.mxu0 0
    %1312 = vmatmul.mubr.bf16.gmra.mrb[0].mxu0 %v1274
    %v1313 = vpop.f32.mrb[0].mxu0
    %v1314 = vadd.f32 %v169, %v1313
    %v1315 = vpop.f32.mrb[0].mxu0
    %v1316 = vpop.f32.mrb[0].mxu0
    %v1317 = vpop.f32.mrb[0].mxu0
    %1318 = vdwg.mxu0
    %v1319 = vsel %vm881, %v1264, -inf
    %1320 = vmax.xlane.f32.xlu0 %v1319
    %v1321 = vpop.xlane.xlu0 %1320
    %v1322 = vsel %vm881, %v1314, -inf
    %1323 = vmax.xlane.f32.xlu0 %v1322
    %v1324 = vpop.xlane.xlu0 %1323
    %v1325 = vsub.f32 %v1264, %v1321
    %v1326 = vsub.f32 %v1314, %v1324
    %v1327 = vmul.f32 %v1325, 1.442695
    %v1328 = vpow.pop %v1327
    %v1329 = vmul.f32 %v1326, 1.442695
    %v1330 = vpow.pop %v1329
    %v1331 = vsel %vm881, %v1328, 0.0
    %1332 = vadd.xlane.f32.xlu0 %v1331
    %v1333 = vpop.xlane.xlu0 %1332
    %v1334 = vsel %vm881, %v1330, 0.0
    %1335 = vadd.xlane.f32.xlu0 %v1334
    %v1336 = vpop.xlane.xlu0 %1335
    %v1337 = vrcp.pop %v1333
    %v1338 = vrcp.pop %v1336
    %v1339 = vmul.f32 %v1328, %v1337
    %v1340 = vmul.f32 %v1330, %v1338
    %v1341 = vpack.c.bf16 %v1339, %v1339
    %v1342 = vpack.c.bf16 %v1340, %v1340
    %1343 = vrot.lane.b32.xlu0 %v786, 64
    %v1344 = vpop.permute.xlu0 %1343
    %v1346 = vsel %vm881, %v1341, 0
    %v1349 = vsel %vm909, %v1344, 0
    %1351 = vmatprep.subr.bf16.mxu0 0
    %1352 = vmatpush1.bf16.msra.mxu0 %v1349
    %1353 = vmatprep.subr.bf16.mxu0 0
    %1354 = vmatpush1.bf16.msra.mxu0 0
    %1355 = vmatprep.subr.bf16.mxu0 0
    %1356 = vmatpush1.bf16.msra.mxu0 0
    %1357 = vmatprep.subr.bf16.mxu0 0
    %1358 = vmatpush1.bf16.msra.mxu0 0
    %1359 = vmatprep.subr.bf16.mxu0 0
    %1360 = vmatpush1.bf16.msra.mxu0 0
    %1361 = vmatprep.subr.bf16.mxu0 0
    %1362 = vmatpush1.bf16.msra.mxu0 0
    %1363 = vmatprep.subr.bf16.mxu0 0
    %1364 = vmatpush1.bf16.msra.mxu0 0
    %1365 = vmatprep.subr.bf16.mxu0 0
    %1366 = vmatpush1.bf16.msra.mxu0 0
    %1367 = vmatprep.subr.bf16.mxu0 0
    %1368 = vmatpush1.bf16.msra.mxu0 0
    %1369 = vmatprep.subr.bf16.mxu0 0
    %1370 = vmatpush1.bf16.msra.mxu0 0
    %1371 = vmatprep.subr.bf16.mxu0 0
    %1372 = vmatpush1.bf16.msra.mxu0 0
    %1373 = vmatprep.subr.bf16.mxu0 0
    %1374 = vmatpush1.bf16.msra.mxu0 0
    %1375 = vmatprep.subr.bf16.mxu0 0
    %1376 = vmatpush1.bf16.msra.mxu0 0
    %1377 = vmatprep.subr.bf16.mxu0 0
    %1378 = vmatpush1.bf16.msra.mxu0 0
    %1379 = vmatprep.subr.bf16.mxu0 0
    %1380 = vmatpush1.bf16.msra.mxu0 0
    %1381 = vmatprep.subr.bf16.mxu0 0
    %1382 = vmatpush1.bf16.msra.mxu0 0
    %1383 = vmatprep.mubr.bf16.mxu0 0
    %1384 = vmatmul.mubr.bf16.gmra.mrb[0].mxu0 %v1346
    %v1385 = vpop.f32.mrb[0].mxu0
    %v1386 = vadd.f32 0.0, %v1385
    %v1387 = vpop.f32.mrb[0].mxu0
    %v1388 = vpop.f32.mrb[0].mxu0
    %v1389 = vpop.f32.mrb[0].mxu0
    %1390 = vdwg.mxu0
    %1391 = vrot.lane.b32.xlu0 %v787, 64
    %v1392 = vpop.permute.xlu0 %1391
    %v1394 = vsel %vm881, %v1342, 0
    %v1397 = vsel %vm909, %v1392, 0
    %1399 = vmatprep.subr.bf16.mxu0 0
    %1400 = vmatpush1.bf16.msra.mxu0 %v1397
    %1401 = vmatprep.subr.bf16.mxu0 0
    %1402 = vmatpush1.bf16.msra.mxu0 0
    %1403 = vmatprep.subr.bf16.mxu0 0
    %1404 = vmatpush1.bf16.msra.mxu0 0
    %1405 = vmatprep.subr.bf16.mxu0 0
    %1406 = vmatpush1.bf16.msra.mxu0 0
    %1407 = vmatprep.subr.bf16.mxu0 0
    %1408 = vmatpush1.bf16.msra.mxu0 0
    %1409 = vmatprep.subr.bf16.mxu0 0
    %1410 = vmatpush1.bf16.msra.mxu0 0
    %1411 = vmatprep.subr.bf16.mxu0 0
    %1412 = vmatpush1.bf16.msra.mxu0 0
    %1413 = vmatprep.subr.bf16.mxu0 0
    %1414 = vmatpush1.bf16.msra.mxu0 0
    %1415 = vmatprep.subr.bf16.mxu0 0
    %1416 = vmatpush1.bf16.msra.mxu0 0
    %1417 = vmatprep.subr.bf16.mxu0 0
    %1418 = vmatpush1.bf16.msra.mxu0 0
    %1419 = vmatprep.subr.bf16.mxu0 0
    %1420 = vmatpush1.bf16.msra.mxu0 0
    %1421 = vmatprep.subr.bf16.mxu0 0
    %1422 = vmatpush1.bf16.msra.mxu0 0
    %1423 = vmatprep.subr.bf16.mxu0 0
    %1424 = vmatpush1.bf16.msra.mxu0 0
    %1425 = vmatprep.subr.bf16.mxu0 0
    %1426 = vmatpush1.bf16.msra.mxu0 0
    %1427 = vmatprep.subr.bf16.mxu0 0
    %1428 = vmatpush1.bf16.msra.mxu0 0
    %1429 = vmatprep.subr.bf16.mxu0 0
    %1430 = vmatpush1.bf16.msra.mxu0 0
    %1431 = vmatprep.mubr.bf16.mxu0 0
    %1432 = vmatmul.mubr.bf16.gmra.mrb[0].mxu0 %v1394
    %v1433 = vpop.f32.mrb[0].mxu0
    %v1434 = vadd.f32 0.0, %v1433
    %v1435 = vpop.f32.mrb[0].mxu0
    %v1436 = vpop.f32.mrb[0].mxu0
    %v1437 = vpop.f32.mrb[0].mxu0
    %1438 = vdwg.mxu0
    %1439 = vrot.lane.b32.xlu0 %v774, 32
    %v1440 = vpop.permute.xlu0 %1439
    %1441 = vrot.lane.b32.xlu0 %v780, 32
    %v1442 = vpop.permute.xlu0 %1441
    %v1444 = vsel %vm788, %v1440, 0
    %v1447 = vsel %vm788, %v1442, 0
    %1449 = vmatprep.subr.bf16.mxu0 0
    %1450 = vmatpush1.bf16.xpose.msra.mxu0 %v1447
    %1451 = vmatprep.subr.bf16.mxu0 0
    %1452 = vmatpush1.bf16.xpose.msra.mxu0 0
    %1453 = vmatprep.subr.bf16.mxu0 0
    %1454 = vmatpush1.bf16.xpose.msra.mxu0 0
    %1455 = vmatprep.subr.bf16.mxu0 0
    %1456 = vmatpush1.bf16.xpose.msra.mxu0 0
    %1457 = vmatprep.subr.bf16.mxu0 0
    %1458 = vmatpush1.bf16.xpose.msra.mxu0 0
    %1459 = vmatprep.subr.bf16.mxu0 0
    %1460 = vmatpush1.bf16.xpose.msra.mxu0 0
    %1461 = vmatprep.subr.bf16.mxu0 0
    %1462 = vmatpush1.bf16.xpose.msra.mxu0 0
    %1463 = vmatprep.subr.bf16.mxu0 0
    %1464 = vmatpush1.bf16.xpose.msra.mxu0 0
    %1465 = vmatprep.subr.bf16.mxu0 0
    %1466 = vmatpush1.bf16.xpose.msra.mxu0 0
    %1467 = vmatprep.subr.bf16.mxu0 0
    %1468 = vmatpush1.bf16.xpose.msra.mxu0 0
    %1469 = vmatprep.subr.bf16.mxu0 0
    %1470 = vmatpush1.bf16.xpose.msra.mxu0 0
    %1471 = vmatprep.subr.bf16.mxu0 0
    %1472 = vmatpush1.bf16.xpose.msra.mxu0 0
    %1473 = vmatprep.subr.bf16.mxu0 0
    %1474 = vmatpush1.bf16.xpose.msra.mxu0 0
    %1475 = vmatprep.subr.bf16.mxu0 0
    %1476 = vmatpush1.bf16.xpose.msra.mxu0 0
    %1477 = vmatprep.subr.bf16.mxu0 0
    %1478 = vmatpush1.bf16.xpose.msra.mxu0 0
    %1479 = vmatprep.subr.bf16.mxu0 0
    %1480 = vmatpush1.bf16.xpose.msra.mxu0 0
    %1481 = vmatprep.mubr.bf16.mxu0 0
    %1482 = vmatmul.mubr.bf16.gmra.mrb[0].mxu0 %v1444
    %v1483 = vpop.f32.mrb[0].mxu0
    %v1484 = vadd.f32 %v165, %v1483
    %v1485 = vpop.f32.mrb[0].mxu0
    %v1486 = vpop.f32.mrb[0].mxu0
    %v1487 = vpop.f32.mrb[0].mxu0
    %1488 = vdwg.mxu0
    %1489 = vrot.lane.b32.xlu0 %v775, 32
    %v1490 = vpop.permute.xlu0 %1489
    %1491 = vrot.lane.b32.xlu0 %v781, 32
    %v1492 = vpop.permute.xlu0 %1491
    %v1494 = vsel %vm788, %v1490, 0
    %v1497 = vsel %vm788, %v1492, 0
    %1499 = vmatprep.subr.bf16.mxu0 0
    %1500 = vmatpush1.bf16.xpose.msra.mxu0 %v1497
    %1501 = vmatprep.subr.bf16.mxu0 0
    %1502 = vmatpush1.bf16.xpose.msra.mxu0 0
    %1503 = vmatprep.subr.bf16.mxu0 0
    %1504 = vmatpush1.bf16.xpose.msra.mxu0 0
    %1505 = vmatprep.subr.bf16.mxu0 0
    %1506 = vmatpush1.bf16.xpose.msra.mxu0 0
    %1507 = vmatprep.subr.bf16.mxu0 0
    %1508 = vmatpush1.bf16.xpose.msra.mxu0 0
    %1509 = vmatprep.subr.bf16.mxu0 0
    %1510 = vmatpush1.bf16.xpose.msra.mxu0 0
    %1511 = vmatprep.subr.bf16.mxu0 0
    %1512 = vmatpush1.bf16.xpose.msra.mxu0 0
    %1513 = vmatprep.subr.bf16.mxu0 0
    %1514 = vmatpush1.bf16.xpose.msra.mxu0 0
    %1515 = vmatprep.subr.bf16.mxu0 0
    %1516 = vmatpush1.bf16.xpose.msra.mxu0 0
    %1517 = vmatprep.subr.bf16.mxu0 0
    %1518 = vmatpush1.bf16.xpose.msra.mxu0 0
    %1519 = vmatprep.subr.bf16.mxu0 0
    %1520 = vmatpush1.bf16.xpose.msra.mxu0 0
    %1521 = vmatprep.subr.bf16.mxu0 0
    %1522 = vmatpush1.bf16.xpose.msra.mxu0 0
    %1523 = vmatprep.subr.bf16.mxu0 0
    %1524 = vmatpush1.bf16.xpose.msra.mxu0 0
    %1525 = vmatprep.subr.bf16.mxu0 0
    %1526 = vmatpush1.bf16.xpose.msra.mxu0 0
    %1527 = vmatprep.subr.bf16.mxu0 0
    %1528 = vmatpush1.bf16.xpose.msra.mxu0 0
    %1529 = vmatprep.subr.bf16.mxu0 0
    %1530 = vmatpush1.bf16.xpose.msra.mxu0 0
    %1531 = vmatprep.mubr.bf16.mxu0 0
    %1532 = vmatmul.mubr.bf16.gmra.mrb[0].mxu0 %v1494
    %v1533 = vpop.f32.mrb[0].mxu0
    %v1534 = vadd.f32 %v169, %v1533
    %v1535 = vpop.f32.mrb[0].mxu0
    %v1536 = vpop.f32.mrb[0].mxu0
    %v1537 = vpop.f32.mrb[0].mxu0
    %1538 = vdwg.mxu0
    %v1539 = vsel %vm881, %v1484, -inf
    %1540 = vmax.xlane.f32.xlu0 %v1539
    %v1541 = vpop.xlane.xlu0 %1540
    %v1542 = vsel %vm881, %v1534, -inf
    %1543 = vmax.xlane.f32.xlu0 %v1542
    %v1544 = vpop.xlane.xlu0 %1543
    %v1545 = vsub.f32 %v1484, %v1541
    %v1546 = vsub.f32 %v1534, %v1544
    %v1547 = vmul.f32 %v1545, 1.442695
    %v1548 = vpow.pop %v1547
    %v1549 = vmul.f32 %v1546, 1.442695
    %v1550 = vpow.pop %v1549
    %v1551 = vsel %vm881, %v1548, 0.0
    %1552 = vadd.xlane.f32.xlu0 %v1551
    %v1553 = vpop.xlane.xlu0 %1552
    %v1554 = vsel %vm881, %v1550, 0.0
    %1555 = vadd.xlane.f32.xlu0 %v1554
    %v1556 = vpop.xlane.xlu0 %1555
    %v1557 = vrcp.pop %v1553
    %v1558 = vrcp.pop %v1556
    %v1559 = vmul.f32 %v1548, %v1557
    %v1560 = vmul.f32 %v1550, %v1558
    %v1561 = vpack.c.bf16 %v1559, %v1559
    %v1562 = vpack.c.bf16 %v1560, %v1560
    %1563 = vrot.lane.b32.xlu0 %v786, 32
    %v1564 = vpop.permute.xlu0 %1563
    %v1566 = vsel %vm881, %v1561, 0
    %v1569 = vsel %vm909, %v1564, 0
    %1571 = vmatprep.subr.bf16.mxu0 0
    %1572 = vmatpush1.bf16.msra.mxu0 %v1569
    %1573 = vmatprep.subr.bf16.mxu0 0
    %1574 = vmatpush1.bf16.msra.mxu0 0
    %1575 = vmatprep.subr.bf16.mxu0 0
    %1576 = vmatpush1.bf16.msra.mxu0 0
    %1577 = vmatprep.subr.bf16.mxu0 0
    %1578 = vmatpush1.bf16.msra.mxu0 0
    %1579 = vmatprep.subr.bf16.mxu0 0
    %1580 = vmatpush1.bf16.msra.mxu0 0
    %1581 = vmatprep.subr.bf16.mxu0 0
    %1582 = vmatpush1.bf16.msra.mxu0 0
    %1583 = vmatprep.subr.bf16.mxu0 0
    %1584 = vmatpush1.bf16.msra.mxu0 0
    %1585 = vmatprep.subr.bf16.mxu0 0
    %1586 = vmatpush1.bf16.msra.mxu0 0
    %1587 = vmatprep.subr.bf16.mxu0 0
    %1588 = vmatpush1.bf16.msra.mxu0 0
    %1589 = vmatprep.subr.bf16.mxu0 0
    %1590 = vmatpush1.bf16.msra.mxu0 0
    %1591 = vmatprep.subr.bf16.mxu0 0
    %1592 = vmatpush1.bf16.msra.mxu0 0
    %1593 = vmatprep.subr.bf16.mxu0 0
    %1594 = vmatpush1.bf16.msra.mxu0 0
    %1595 = vmatprep.subr.bf16.mxu0 0
    %1596 = vmatpush1.bf16.msra.mxu0 0
    %1597 = vmatprep.subr.bf16.mxu0 0
    %1598 = vmatpush1.bf16.msra.mxu0 0
    %1599 = vmatprep.subr.bf16.mxu0 0
    %1600 = vmatpush1.bf16.msra.mxu0 0
    %1601 = vmatprep.subr.bf16.mxu0 0
    %1602 = vmatpush1.bf16.msra.mxu0 0
    %1603 = vmatprep.mubr.bf16.mxu0 0
    %1604 = vmatmul.mubr.bf16.gmra.mrb[0].mxu0 %v1566
    %v1605 = vpop.f32.mrb[0].mxu0
    %v1606 = vadd.f32 0.0, %v1605
    %v1607 = vpop.f32.mrb[0].mxu0
    %v1608 = vpop.f32.mrb[0].mxu0
    %v1609 = vpop.f32.mrb[0].mxu0
    %1610 = vdwg.mxu0
    %1611 = vrot.lane.b32.xlu0 %v787, 32
    %v1612 = vpop.permute.xlu0 %1611
    %v1614 = vsel %vm881, %v1562, 0
    %v1617 = vsel %vm909, %v1612, 0
    %1619 = vmatprep.subr.bf16.mxu0 0
    %1620 = vmatpush1.bf16.msra.mxu0 %v1617
    %1621 = vmatprep.subr.bf16.mxu0 0
    %1622 = vmatpush1.bf16.msra.mxu0 0
    %1623 = vmatprep.subr.bf16.mxu0 0
    %1624 = vmatpush1.bf16.msra.mxu0 0
    %1625 = vmatprep.subr.bf16.mxu0 0
    %1626 = vmatpush1.bf16.msra.mxu0 0
    %1627 = vmatprep.subr.bf16.mxu0 0
    %1628 = vmatpush1.bf16.msra.mxu0 0
    %1629 = vmatprep.subr.bf16.mxu0 0
    %1630 = vmatpush1.bf16.msra.mxu0 0
    %1631 = vmatprep.subr.bf16.mxu0 0
    %1632 = vmatpush1.bf16.msra.mxu0 0
    %1633 = vmatprep.subr.bf16.mxu0 0
    %1634 = vmatpush1.bf16.msra.mxu0 0
    %1635 = vmatprep.subr.bf16.mxu0 0
    %1636 = vmatpush1.bf16.msra.mxu0 0
    %1637 = vmatprep.subr.bf16.mxu0 0
    %1638 = vmatpush1.bf16.msra.mxu0 0
    %1639 = vmatprep.subr.bf16.mxu0 0
    %1640 = vmatpush1.bf16.msra.mxu0 0
    %1641 = vmatprep.subr.bf16.mxu0 0
    %1642 = vmatpush1.bf16.msra.mxu0 0
    %1643 = vmatprep.subr.bf16.mxu0 0
    %1644 = vmatpush1.bf16.msra.mxu0 0
    %1645 = vmatprep.subr.bf16.mxu0 0
    %1646 = vmatpush1.bf16.msra.mxu0 0
    %1647 = vmatprep.subr.bf16.mxu0 0
    %1648 = vmatpush1.bf16.msra.mxu0 0
    %1649 = vmatprep.subr.bf16.mxu0 0
    %1650 = vmatpush1.bf16.msra.mxu0 0
    %1651 = vmatprep.mubr.bf16.mxu0 0
    %1652 = vmatmul.mubr.bf16.gmra.mrb[0].mxu0 %v1614
    %v1653 = vpop.f32.mrb[0].mxu0
    %v1654 = vadd.f32 0.0, %v1653
    %v1655 = vpop.f32.mrb[0].mxu0
    %v1656 = vpop.f32.mrb[0].mxu0
    %v1657 = vpop.f32.mrb[0].mxu0
    %1658 = vdwg.mxu0
    %1661 = vrot.lane.b32.xlu0 %v1166, 32
    %v1662 = vpop.permute.xlu0 %1661
    %1663 = vrot.lane.b32.xlu0 %v1214, 32
    %v1664 = vpop.permute.xlu0 %1663
    %1669 = vrot.lane.b32.xlu0 %v1386, 64
    %v1670 = vpop.permute.xlu0 %1669
    %1671 = vrot.lane.b32.xlu0 %v1434, 64
    %v1672 = vpop.permute.xlu0 %1671
    %1677 = vrot.lane.b32.xlu0 %v1606, 96
    %v1678 = vpop.permute.xlu0 %1677
    %1679 = vrot.lane.b32.xlu0 %v1654, 96
    %v1680 = vpop.permute.xlu0 %1679
    %v1683 = vsel %vm788, %v948, %v1662
    %v1684 = vsel %vm788, %v994, %v1664
    %vm1685 = vcmask 523264
    %v1686 = vsel %vm1685, %v1683, %v1670
    %v1687 = vsel %vm1685, %v1684, %v1672
    %vm1688 = vcmask 785408
    %v1689 = vsel %vm1688, %v1686, %v1678
    %v1690 = vsel %vm1688, %v1687, %v1680
    %v1691 = vpack.c.bf16 %v1690, %v1689
    %v1708 = vunpack.c.l.b16 %v754
    %v1709 = vunpack.c.l.b16 %v755
    %v1710 = vunpack.c.l.b16 %v756
    %v1711 = vunpack.c.l.b16 %v757
    %v1712 = vunpack.c.l.b16 %v758
    %v1713 = vunpack.c.l.b16 %v759
    %v1714 = vunpack.c.l.b16 %v760
    %v1715 = vunpack.c.l.b16 %v761
    %v1716 = vunpack.c.l.b16 %v762
    %v1717 = vunpack.c.l.b16 %v763
    %v1718 = vunpack.c.l.b16 %v764
    %v1719 = vunpack.c.l.b16 %v765
    %v1720 = vunpack.c.l.b16 %v766
    %v1721 = vunpack.c.l.b16 %v767
    %v1722 = vunpack.c.l.b16 %v768
    %v1723 = vunpack.c.l.b16 %v769
    %v1724 = vpack.c.b16 %v1709, %v1708
    %v1725 = vpack.c.b16 %v1711, %v1710
    %v1726 = vpack.c.b16 %v1713, %v1712
    %v1727 = vpack.c.b16 %v1715, %v1714
    %v1728 = vpack.c.b16 %v1717, %v1716
    %v1729 = vpack.c.b16 %v1719, %v1718
    %v1730 = vpack.c.b16 %v1721, %v1720
    %v1731 = vpack.c.b16 %v1723, %v1722
    %1740 = vmatprep.subr.bf16.mxu0 0
    %1741 = vmatpush1.bf16.msra.mxu0 %v1724
    %1742 = vmatprep.subr.bf16.mxu0 0
    %1743 = vmatpush1.bf16.msra.mxu0 %v1725
    %1744 = vmatprep.subr.bf16.mxu0 0
    %1745 = vmatpush1.bf16.msra.mxu0 %v1726
    %1746 = vmatprep.subr.bf16.mxu0 0
    %1747 = vmatpush1.bf16.msra.mxu0 %v1727
    %1748 = vmatprep.subr.bf16.mxu0 0
    %1749 = vmatpush1.bf16.msra.mxu0 %v1728
    %1750 = vmatprep.subr.bf16.mxu0 0
    %1751 = vmatpush1.bf16.msra.mxu0 %v1729
    %1752 = vmatprep.subr.bf16.mxu0 0
    %1753 = vmatpush1.bf16.msra.mxu0 %v1730
    %1754 = vmatprep.subr.bf16.mxu0 0
    %1755 = vmatpush1.bf16.msra.mxu0 %v1731
    %1756 = vmatprep.subr.bf16.mxu0 0
    %1757 = vmatpush1.bf16.msra.mxu0 0
    %1758 = vmatprep.subr.bf16.mxu0 0
    %1759 = vmatpush1.bf16.msra.mxu0 0
    %1760 = vmatprep.subr.bf16.mxu0 0
    %1761 = vmatpush1.bf16.msra.mxu0 0
    %1762 = vmatprep.subr.bf16.mxu0 0
    %1763 = vmatpush1.bf16.msra.mxu0 0
    %1764 = vmatprep.subr.bf16.mxu0 0
    %1765 = vmatpush1.bf16.msra.mxu0 0
    %1766 = vmatprep.subr.bf16.mxu0 0
    %1767 = vmatpush1.bf16.msra.mxu0 0
    %1768 = vmatprep.subr.bf16.mxu0 0
    %1769 = vmatpush1.bf16.msra.mxu0 0
    %1770 = vmatprep.subr.bf16.mxu0 0
    %1771 = vmatpush1.bf16.msra.mxu0 0
    %1772 = vmatprep.mubr.bf16.mxu0 0
    %1773 = vmatmul.mubr.bf16.gmra.mrb[0].mxu0 %v1691
    %v1774 = vpop.f32.mrb[0].mxu0
    %v1775 = vadd.f32 0.0, %v1774
    %v1776 = vpop.f32.mrb[0].mxu0
    %v1777 = vpop.f32.mrb[0].mxu0
    %v1778 = vadd.f32 0.0, %v1777
    %v1779 = vpop.f32.mrb[0].mxu0
    %1780 = vdwg.mxu0
    %v1781 = vadd.f32 %v481, %v1775
    %v1782 = vadd.f32 %v484, %v1778
    %v1783 = vld [vmem:[%s8 + $0x1] sm:$0x1]
    %v1784 = vmul.f32 %v1781, %v1781
    %v1785 = vmul.f32 %v1782, %v1782
    %1786 = vadd.xlane.f32.xlu0 %v1784
    %v1787 = vpop.xlane.xlu0 %1786
    %1788 = vadd.xlane.f32.xlu0 %v1785
    %v1789 = vpop.xlane.xlu0 %1788
    %v1790 = vmul.f32 %v1787, %v494
    %v1791 = vmul.f32 %v1789, %v494
    %v1792 = vadd.f32 %v1790, 1e-06
    %v1793 = vadd.f32 %v1791, 1e-06
    %v1794 = vrsqrt.pop %v1792
    %v1795 = vrsqrt.pop %v1793
    %v1796 = vmul.f32 %v1781, %v1794
    %v1797 = vmul.f32 %v1782, %v1795
    %v1798 = vlaneseq
    %v1799 = vshrl.u32 %v1798, 7
    %v1800 = vsub.s32 0, %v1799
    %v1801 = vrot.slane %v1783, %v1800
    %v1802 = vmul.f32 %v1796, %v1801
    %v1803 = vmul.f32 %v1797, %v1801
    %v1804 = vpack.c.bf16 %v1803, %v1802
    %v1805 = vld [vmem:[%s11] sm:$0xff]
    %v1806 = vld [vmem:[%s11 + $0x8] sm:$0xff]
    %v1807 = vld [vmem:[%s11 + $0x10] sm:$0xff]
    %v1808 = vld [vmem:[%s11 + $0x18] sm:$0xff]
    %v1809 = vld [vmem:[%s11 + $0x20] sm:$0xff]
    %v1810 = vld [vmem:[%s11 + $0x28] sm:$0xff]
    %v1811 = vld [vmem:[%s11 + $0x30] sm:$0xff]
    %v1812 = vld [vmem:[%s11 + $0x38] sm:$0xff]
    %v1813 = vld [vmem:[%s11 + $0x40] sm:$0xff]
    %v1814 = vld [vmem:[%s11 + $0x48] sm:$0xff]
    %v1815 = vld [vmem:[%s11 + $0x50] sm:$0xff]
    %v1816 = vld [vmem:[%s11 + $0x58] sm:$0xff]
    %v1817 = vld [vmem:[%s11 + $0x60] sm:$0xff]
    %v1818 = vld [vmem:[%s11 + $0x68] sm:$0xff]
    %v1819 = vld [vmem:[%s11 + $0x70] sm:$0xff]
    %v1820 = vld [vmem:[%s11 + $0x78] sm:$0xff]
    %v1837 = vunpack.c.l.b16 %v1805
    %v1838 = vunpack.c.h.b16 %v1805
    %v1839 = vunpack.c.l.b16 %v1806
    %v1840 = vunpack.c.h.b16 %v1806
    %v1841 = vunpack.c.l.b16 %v1807
    %v1842 = vunpack.c.h.b16 %v1807
    %v1843 = vunpack.c.l.b16 %v1808
    %v1844 = vunpack.c.h.b16 %v1808
    %v1845 = vunpack.c.l.b16 %v1809
    %v1846 = vunpack.c.h.b16 %v1809
    %v1847 = vunpack.c.l.b16 %v1810
    %v1848 = vunpack.c.h.b16 %v1810
    %v1849 = vunpack.c.l.b16 %v1811
    %v1850 = vunpack.c.h.b16 %v1811
    %v1851 = vunpack.c.l.b16 %v1812
    %v1852 = vunpack.c.h.b16 %v1812
    %v1853 = vunpack.c.l.b16 %v1813
    %v1854 = vunpack.c.h.b16 %v1813
    %v1855 = vunpack.c.l.b16 %v1814
    %v1856 = vunpack.c.h.b16 %v1814
    %v1857 = vunpack.c.l.b16 %v1815
    %v1858 = vunpack.c.h.b16 %v1815
    %v1859 = vunpack.c.l.b16 %v1816
    %v1860 = vunpack.c.h.b16 %v1816
    %v1861 = vunpack.c.l.b16 %v1817
    %v1862 = vunpack.c.h.b16 %v1817
    %v1863 = vunpack.c.l.b16 %v1818
    %v1864 = vunpack.c.h.b16 %v1818
    %v1865 = vunpack.c.l.b16 %v1819
    %v1866 = vunpack.c.h.b16 %v1819
    %v1867 = vunpack.c.l.b16 %v1820
    %v1868 = vunpack.c.h.b16 %v1820
    %v1869 = vpack.c.b16 %v1839, %v1837
    %v1870 = vpack.c.b16 %v1840, %v1838
    %v1871 = vpack.c.b16 %v1843, %v1841
    %v1872 = vpack.c.b16 %v1844, %v1842
    %v1873 = vpack.c.b16 %v1847, %v1845
    %v1874 = vpack.c.b16 %v1848, %v1846
    %v1875 = vpack.c.b16 %v1851, %v1849
    %v1876 = vpack.c.b16 %v1852, %v1850
    %v1877 = vpack.c.b16 %v1855, %v1853
    %v1878 = vpack.c.b16 %v1856, %v1854
    %v1879 = vpack.c.b16 %v1859, %v1857
    %v1880 = vpack.c.b16 %v1860, %v1858
    %v1881 = vpack.c.b16 %v1863, %v1861
    %v1882 = vpack.c.b16 %v1864, %v1862
    %v1883 = vpack.c.b16 %v1867, %v1865
    %v1884 = vpack.c.b16 %v1868, %v1866
    %1901 = vmatprep.subr.bf16.mxu0 %v1870
    %1902 = vmatpush1.bf16.msra.mxu0 %v1869
    %1903 = vmatprep.subr.bf16.mxu0 %v1872
    %1904 = vmatpush1.bf16.msra.mxu0 %v1871
    %1905 = vmatprep.subr.bf16.mxu0 %v1874
    %1906 = vmatpush1.bf16.msra.mxu0 %v1873
    %1907 = vmatprep.subr.bf16.mxu0 %v1876
    %1908 = vmatpush1.bf16.msra.mxu0 %v1875
    %1909 = vmatprep.subr.bf16.mxu0 %v1878
    %1910 = vmatpush1.bf16.msra.mxu0 %v1877
    %1911 = vmatprep.subr.bf16.mxu0 %v1880
    %1912 = vmatpush1.bf16.msra.mxu0 %v1879
    %1913 = vmatprep.subr.bf16.mxu0 %v1882
    %1914 = vmatpush1.bf16.msra.mxu0 %v1881
    %1915 = vmatprep.subr.bf16.mxu0 %v1884
    %1916 = vmatpush1.bf16.msra.mxu0 %v1883
    %1917 = vmatprep.subr.bf16.mxu0 0
    %1918 = vmatpush1.bf16.msra.mxu0 0
    %1919 = vmatprep.subr.bf16.mxu0 0
    %1920 = vmatpush1.bf16.msra.mxu0 0
    %1921 = vmatprep.subr.bf16.mxu0 0
    %1922 = vmatpush1.bf16.msra.mxu0 0
    %1923 = vmatprep.subr.bf16.mxu0 0
    %1924 = vmatpush1.bf16.msra.mxu0 0
    %1925 = vmatprep.subr.bf16.mxu0 0
    %1926 = vmatpush1.bf16.msra.mxu0 0
    %1927 = vmatprep.subr.bf16.mxu0 0
    %1928 = vmatpush1.bf16.msra.mxu0 0
    %1929 = vmatprep.subr.bf16.mxu0 0
    %1930 = vmatpush1.bf16.msra.mxu0 0
    %1931 = vmatprep.subr.bf16.mxu0 0
    %1932 = vmatpush1.bf16.msra.mxu0 0
    %1933 = vmatprep.mubr.bf16.mxu0 0
    %1934 = vmatmul.mubr.bf16.gmra.mrb[0].mxu0 %v1804
    %v1935 = vpop.f32.mrb[0].mxu0
    %v1936 = vadd.f32 0.0, %v1935
    %v1937 = vpop.f32.mrb[0].mxu0
    %v1938 = vadd.f32 0.0, %v1937
    %v1939 = vpop.f32.mrb[0].mxu0
    %v1940 = vadd.f32 0.0, %v1939
    %v1941 = vpop.f32.mrb[0].mxu0
    %v1942 = vadd.f32 0.0, %v1941
    %1943 = vdwg.mxu0
    %v1944 = vmax.f32 %v1936, 0.0
    %v1945 = vmax.f32 %v1938, 0.0
    %v1946 = vmax.f32 %v1940, 0.0
    %v1947 = vmax.f32 %v1942, 0.0
    %v1948 = vpack.c.bf16 %v1946, %v1944
    %v1949 = vpack.c.bf16 %v1947, %v1945
    %v1950 = vld [vmem:[%s12] sm:$0xf]
    %v1951 = vld [vmem:[%s12 + $0x4] sm:$0xf]
    %v1952 = vld [vmem:[%s12 + $0x8] sm:$0xf]
    %v1953 = vld [vmem:[%s12 + $0xc] sm:$0xf]
    %v1954 = vld [vmem:[%s12 + $0x10] sm:$0xf]
    %v1955 = vld [vmem:[%s12 + $0x14] sm:$0xf]
    %v1956 = vld [vmem:[%s12 + $0x18] sm:$0xf]
    %v1957 = vld [vmem:[%s12 + $0x1c] sm:$0xf]
    %v1958 = vld [vmem:[%s12 + $0x20] sm:$0xf]
    %v1959 = vld [vmem:[%s12 + $0x24] sm:$0xf]
    %v1960 = vld [vmem:[%s12 + $0x28] sm:$0xf]
    %v1961 = vld [vmem:[%s12 + $0x2c] sm:$0xf]
    %v1962 = vld [vmem:[%s12 + $0x30] sm:$0xf]
    %v1963 = vld [vmem:[%s12 + $0x34] sm:$0xf]
    %v1964 = vld [vmem:[%s12 + $0x38] sm:$0xf]
    %v1965 = vld [vmem:[%s12 + $0x3c] sm:$0xf]
    %v1966 = vld [vmem:[%s12 + $0x40] sm:$0xf]
    %v1967 = vld [vmem:[%s12 + $0x44] sm:$0xf]
    %v1968 = vld [vmem:[%s12 + $0x48] sm:$0xf]
    %v1969 = vld [vmem:[%s12 + $0x4c] sm:$0xf]
    %v1970 = vld [vmem:[%s12 + $0x50] sm:$0xf]
    %v1971 = vld [vmem:[%s12 + $0x54] sm:$0xf]
    %v1972 = vld [vmem:[%s12 + $0x58] sm:$0xf]
    %v1973 = vld [vmem:[%s12 + $0x5c] sm:$0xf]
    %v1974 = vld [vmem:[%s12 + $0x60] sm:$0xf]
    %v1975 = vld [vmem:[%s12 + $0x64] sm:$0xf]
    %v1976 = vld [vmem:[%s12 + $0x68] sm:$0xf]
    %v1977 = vld [vmem:[%s12 + $0x6c] sm:$0xf]
    %v1978 = vld [vmem:[%s12 + $0x70] sm:$0xf]
    %v1979 = vld [vmem:[%s12 + $0x74] sm:$0xf]
    %v1980 = vld [vmem:[%s12 + $0x78] sm:$0xf]
    %v1981 = vld [vmem:[%s12 + $0x7c] sm:$0xf]
    %v2014 = vunpack.c.l.b16 %v1950
    %v2015 = vunpack.c.l.b16 %v1951
    %v2016 = vunpack.c.l.b16 %v1952
    %v2017 = vunpack.c.l.b16 %v1953
    %v2018 = vunpack.c.l.b16 %v1954
    %v2019 = vunpack.c.l.b16 %v1955
    %v2020 = vunpack.c.l.b16 %v1956
    %v2021 = vunpack.c.l.b16 %v1957
    %v2022 = vunpack.c.l.b16 %v1958
    %v2023 = vunpack.c.l.b16 %v1959
    %v2024 = vunpack.c.l.b16 %v1960
    %v2025 = vunpack.c.l.b16 %v1961
    %v2026 = vunpack.c.l.b16 %v1962
    %v2027 = vunpack.c.l.b16 %v1963
    %v2028 = vunpack.c.l.b16 %v1964
    %v2029 = vunpack.c.l.b16 %v1965
    %v2030 = vunpack.c.l.b16 %v1966
    %v2031 = vunpack.c.l.b16 %v1967
    %v2032 = vunpack.c.l.b16 %v1968
    %v2033 = vunpack.c.l.b16 %v1969
    %v2034 = vunpack.c.l.b16 %v1970
    %v2035 = vunpack.c.l.b16 %v1971
    %v2036 = vunpack.c.l.b16 %v1972
    %v2037 = vunpack.c.l.b16 %v1973
    %v2038 = vunpack.c.l.b16 %v1974
    %v2039 = vunpack.c.l.b16 %v1975
    %v2040 = vunpack.c.l.b16 %v1976
    %v2041 = vunpack.c.l.b16 %v1977
    %v2042 = vunpack.c.l.b16 %v1978
    %v2043 = vunpack.c.l.b16 %v1979
    %v2044 = vunpack.c.l.b16 %v1980
    %v2045 = vunpack.c.l.b16 %v1981
    %v2046 = vpack.c.b16 %v2015, %v2014
    %v2047 = vpack.c.b16 %v2017, %v2016
    %v2048 = vpack.c.b16 %v2019, %v2018
    %v2049 = vpack.c.b16 %v2021, %v2020
    %v2050 = vpack.c.b16 %v2023, %v2022
    %v2051 = vpack.c.b16 %v2025, %v2024
    %v2052 = vpack.c.b16 %v2027, %v2026
    %v2053 = vpack.c.b16 %v2029, %v2028
    %v2054 = vpack.c.b16 %v2031, %v2030
    %v2055 = vpack.c.b16 %v2033, %v2032
    %v2056 = vpack.c.b16 %v2035, %v2034
    %v2057 = vpack.c.b16 %v2037, %v2036
    %v2058 = vpack.c.b16 %v2039, %v2038
    %v2059 = vpack.c.b16 %v2041, %v2040
    %v2060 = vpack.c.b16 %v2043, %v2042
    %v2061 = vpack.c.b16 %v2045, %v2044
    %2078 = vmatprep.subr.bf16.mxu0 0
    %2079 = vmatpush1.bf16.msra.mxu0 %v2046
    %2080 = vmatprep.subr.bf16.mxu0 0
    %2081 = vmatpush1.bf16.msra.mxu0 %v2047
    %2082 = vmatprep.subr.bf16.mxu0 0
    %2083 = vmatpush1.bf16.msra.mxu0 %v2048
    %2084 = vmatprep.subr.bf16.mxu0 0
    %2085 = vmatpush1.bf16.msra.mxu0 %v2049
    %2086 = vmatprep.subr.bf16.mxu0 0
    %2087 = vmatpush1.bf16.msra.mxu0 %v2050
    %2088 = vmatprep.subr.bf16.mxu0 0
    %2089 = vmatpush1.bf16.msra.mxu0 %v2051
    %2090 = vmatprep.subr.bf16.mxu0 0
    %2091 = vmatpush1.bf16.msra.mxu0 %v2052
    %2092 = vmatprep.subr.bf16.mxu0 0
    %2093 = vmatpush1.bf16.msra.mxu0 %v2053
    %2094 = vmatprep.subr.bf16.mxu0 0
    %2095 = vmatpush1.bf16.msra.mxu0 %v2054
    %2096 = vmatprep.subr.bf16.mxu0 0
    %2097 = vmatpush1.bf16.msra.mxu0 %v2055
    %2098 = vmatprep.subr.bf16.mxu0 0
    %2099 = vmatpush1.bf16.msra.mxu0 %v2056
    %2100 = vmatprep.subr.bf16.mxu0 0
    %2101 = vmatpush1.bf16.msra.mxu0 %v2057
    %2102 = vmatprep.subr.bf16.mxu0 0
    %2103 = vmatpush1.bf16.msra.mxu0 %v2058
    %2104 = vmatprep.subr.bf16.mxu0 0
    %2105 = vmatpush1.bf16.msra.mxu0 %v2059
    %2106 = vmatprep.subr.bf16.mxu0 0
    %2107 = vmatpush1.bf16.msra.mxu0 %v2060
    %2108 = vmatprep.subr.bf16.mxu0 0
    %2109 = vmatpush1.bf16.msra.mxu0 %v2061
    %2110 = vmatprep.mubr.bf16.mxu0 %v1949
    %2111 = vmatmul.mubr.bf16.gmra.mrb[0].mxu0 %v1948
    %v2112 = vpop.f32.mrb[0].mxu0
    %v2113 = vadd.f32 0.0, %v2112
    %v2114 = vpop.f32.mrb[0].mxu0
    %v2115 = vpop.f32.mrb[0].mxu0
    %v2116 = vadd.f32 0.0, %v2115
    %v2117 = vpop.f32.mrb[0].mxu0
    %2118 = vdwg.mxu0
    %v2119 = vadd.f32 %v1781, %v2113
    %v2120 = vadd.f32 %v1782, %v2116
    %v2121 = vld [vmem:[%s8 + $0x2] sm:$0x1]
    %v2122 = vmul.f32 %v2119, %v2119
    %v2123 = vmul.f32 %v2120, %v2120
    %2124 = vadd.xlane.f32.xlu0 %v2122
    %v2125 = vpop.xlane.xlu0 %2124
    %2126 = vadd.xlane.f32.xlu0 %v2123
    %v2127 = vpop.xlane.xlu0 %2126
    %v2128 = vmul.f32 %v2125, %v494
    %v2129 = vmul.f32 %v2127, %v494
    %v2130 = vadd.f32 %v2128, 1e-06
    %v2131 = vadd.f32 %v2129, 1e-06
    %v2132 = vrsqrt.pop %v2130
    %v2133 = vrsqrt.pop %v2131
    %v2134 = vmul.f32 %v2119, %v2132
    %v2135 = vmul.f32 %v2120, %v2133
    %v2136 = vlaneseq
    %v2137 = vshrl.u32 %v2136, 7
    %v2138 = vsub.s32 0, %v2137
    %v2139 = vrot.slane %v2121, %v2138
    %v2140 = vmul.f32 %v2134, %v2139
    %v2141 = vmul.f32 %v2135, %v2139
    %v2142 = vld [vmem:[%s4] sm:$0x3]
    %v2143 = vlaneseq
    %v2144 = vshrl.u32 %v2143, 7
    %vm2145 = vcmp.le.s32.totalorder %v175, %v2144
    %v2146 = vsel %vm2145, 0.0, -1e+09
    %v2147 = vsub.f32 1.0, %v2142
    %v2150 = vunpack.c.l.s4 1966171168
    %v2151 = vunpack.c.0.s8 %v2150
    %v2152 = vlaneseq
    %v2153 = vshrl.u32 %v2152, 7
    %v2154 = vsub.s32 %v2151, %v2153
    %v2155 = vrot.slane %v2147, %v2154
    %v2156 = vcombine.high %v2155, %v2155
    %v2158 = vunpack.c.l.s4 1966171168
    %v2159 = vunpack.c.0.s8 %v2158
    %v2160 = vlaneseq
    %v2161 = vshrl.u32 %v2160, 7
    %v2162 = vsub.s32 %v2159, %v2161
    %v2163 = vrot.slane %v2155, %v2162
    %v2165 = vunpack.c.l.s4 1966171168
    %v2166 = vunpack.c.0.s8 %v2165
    %v2167 = vlaneseq
    %v2168 = vshrl.u32 %v2167, 7
    %v2169 = vsub.s32 %v2166, %v2168
    %v2170 = vrot.slane %v2156, %v2169
    %v2173 = vmul.f32 %v2163, -1e+09
    %v2174 = vmul.f32 %v2170, -1e+09
    %v2177 = vlaneseq
    %v2178 = vshrl.u32 %v2177, 7
    %v2179 = vsub.s32 0, %v2178
    %v2180 = vrot.slane %v2173, %v2179
    %v2181 = vlaneseq
    %v2182 = vshrl.u32 %v2181, 7
    %v2183 = vsub.s32 0, %v2182
    %v2184 = vrot.slane %v2174, %v2183
    %v2187 = vadd.f32 %v2180, %v2146
    %v2188 = vadd.f32 %v2184, %v2146
    %v2189 = vld [vmem:[%s1] sm:$0xff]
    %v2190 = vld [vmem:[%s1 + $0x8] sm:$0xff]
    %2191 = vset.pattern.permute.xlu0 0
    %2192 = vperm.xlu0 %2191, %v2189
    %v2193 = vpop.permute.xlu0 %2192
    %2194 = vset.pattern.permute.xlu0 0
    %2195 = vperm.xlu0 %2194, %v2190
    %v2196 = vpop.permute.xlu0 %2195
    %vm2197 = vcmp.eq.s32.totalorder %v175, %v2193
    %vm2198 = vcmp.eq.s32.totalorder %v176, %v2193
    %vm2199 = vcmp.eq.s32.totalorder %v177, %v2193
    %vm2200 = vcmp.eq.s32.totalorder %v178, %v2193
    %vm2201 = vcmp.eq.s32.totalorder %v175, %v2196
    %vm2202 = vcmp.eq.s32.totalorder %v176, %v2196
    %vm2203 = vcmp.eq.s32.totalorder %v177, %v2196
    %vm2204 = vcmp.eq.s32.totalorder %v178, %v2196
    %v2205 = vsel %vm2197, 1, 0
    %v2206 = vsel %vm2198, 1, 0
    %v2207 = vsel %vm2199, 1, 0
    %v2208 = vsel %vm2200, 1, 0
    %v2209 = vsel %vm2201, 1, 0
    %v2210 = vsel %vm2202, 1, 0
    %v2211 = vsel %vm2203, 1, 0
    %v2212 = vsel %vm2204, 1, 0
    %v2213 = vcvt.s32.f32 %v2205
    %v2214 = vcvt.s32.f32 %v2206
    %v2215 = vcvt.s32.f32 %v2207
    %v2216 = vcvt.s32.f32 %v2208
    %v2217 = vcvt.s32.f32 %v2209
    %v2218 = vcvt.s32.f32 %v2210
    %v2219 = vcvt.s32.f32 %v2211
    %v2220 = vcvt.s32.f32 %v2212
    %v2221 = vpack.c.bf16 %v2217, %v2213
    %v2222 = vpack.c.bf16 %v2218, %v2214
    %v2223 = vpack.c.bf16 %v2219, %v2215
    %v2224 = vpack.c.bf16 %v2220, %v2216
    %2225 = vmatprep.subr.bf16.mxu0 0
    %2226 = vmatpush1.bf16.msra.mxu0 %v341
    %2227 = vmatprep.subr.bf16.mxu0 0
    %2228 = vmatpush1.bf16.msra.mxu0 %v342
    %2229 = vmatprep.subr.bf16.mxu0 0
    %2230 = vmatpush1.bf16.msra.mxu0 %v343
    %2231 = vmatprep.subr.bf16.mxu0 0
    %2232 = vmatpush1.bf16.msra.mxu0 %v344
    %2233 = vmatprep.subr.bf16.mxu0 0
    %2234 = vmatpush1.bf16.msra.mxu0 %v345
    %2235 = vmatprep.subr.bf16.mxu0 0
    %2236 = vmatpush1.bf16.msra.mxu0 %v346
    %2237 = vmatprep.subr.bf16.mxu0 0
    %2238 = vmatpush1.bf16.msra.mxu0 %v347
    %2239 = vmatprep.subr.bf16.mxu0 0
    %2240 = vmatpush1.bf16.msra.mxu0 %v348
    %2241 = vmatprep.subr.bf16.mxu0 0
    %2242 = vmatpush1.bf16.msra.mxu0 %v349
    %2243 = vmatprep.subr.bf16.mxu0 0
    %2244 = vmatpush1.bf16.msra.mxu0 %v350
    %2245 = vmatprep.subr.bf16.mxu0 0
    %2246 = vmatpush1.bf16.msra.mxu0 %v351
    %2247 = vmatprep.subr.bf16.mxu0 0
    %2248 = vmatpush1.bf16.msra.mxu0 %v352
    %2249 = vmatprep.subr.bf16.mxu0 0
    %2250 = vmatpush1.bf16.msra.mxu0 %v353
    %2251 = vmatprep.subr.bf16.mxu0 0
    %2252 = vmatpush1.bf16.msra.mxu0 %v354
    %2253 = vmatprep.subr.bf16.mxu0 0
    %2254 = vmatpush1.bf16.msra.mxu0 %v355
    %2255 = vmatprep.subr.bf16.mxu0 0
    %2256 = vmatpush1.bf16.msra.mxu0 %v356
    %2257 = vmatprep.mubr.bf16.mxu0 %v2222
    %2258 = vmatmul.mubr.bf16.gmra.mrb[0].mxu0 %v2221
    %v2259 = vpop.f32.mrb[0].mxu0
    %v2260 = vadd.f32 0.0, %v2259
    %v2261 = vpop.f32.mrb[0].mxu0
    %v2262 = vpop.f32.mrb[0].mxu0
    %v2263 = vadd.f32 0.0, %v2262
    %v2264 = vpop.f32.mrb[0].mxu0
    %2265 = vdwg.mxu0
    %2266 = vmatprep.subr.bf16.mxu0 0
    %2267 = vmatpush1.bf16.msra.mxu0 %v357
    %2268 = vmatprep.subr.bf16.mxu0 0
    %2269 = vmatpush1.bf16.msra.mxu0 %v358
    %2270 = vmatprep.subr.bf16.mxu0 0
    %2271 = vmatpush1.bf16.msra.mxu0 %v359
    %2272 = vmatprep.subr.bf16.mxu0 0
    %2273 = vmatpush1.bf16.msra.mxu0 %v360
    %2274 = vmatprep.subr.bf16.mxu0 0
    %2275 = vmatpush1.bf16.msra.mxu0 %v361
    %2276 = vmatprep.subr.bf16.mxu0 0
    %2277 = vmatpush1.bf16.msra.mxu0 %v362
    %2278 = vmatprep.subr.bf16.mxu0 0
    %2279 = vmatpush1.bf16.msra.mxu0 %v363
    %2280 = vmatprep.subr.bf16.mxu0 0
    %2281 = vmatpush1.bf16.msra.mxu0 %v364
    %2282 = vmatprep.subr.bf16.mxu0 0
    %2283 = vmatpush1.bf16.msra.mxu0 %v365
    %2284 = vmatprep.subr.bf16.mxu0 0
    %2285 = vmatpush1.bf16.msra.mxu0 %v366
    %2286 = vmatprep.subr.bf16.mxu0 0
    %2287 = vmatpush1.bf16.msra.mxu0 %v367
    %2288 = vmatprep.subr.bf16.mxu0 0
    %2289 = vmatpush1.bf16.msra.mxu0 %v368
    %2290 = vmatprep.subr.bf16.mxu0 0
    %2291 = vmatpush1.bf16.msra.mxu0 %v369
    %2292 = vmatprep.subr.bf16.mxu0 0
    %2293 = vmatpush1.bf16.msra.mxu0 %v370
    %2294 = vmatprep.subr.bf16.mxu0 0
    %2295 = vmatpush1.bf16.msra.mxu0 %v371
    %2296 = vmatprep.subr.bf16.mxu0 0
    %2297 = vmatpush1.bf16.msra.mxu0 %v372
    %2298 = vmatprep.mubr.bf16.mxu0 %v2224
    %2299 = vmatmul.mubr.bf16.gmra.mrb[0].mxu0 %v2223
    %v2300 = vpop.f32.mrb[0].mxu0
    %v2301 = vadd.f32 %v2260, %v2300
    %v2302 = vpop.f32.mrb[0].mxu0
    %v2303 = vpop.f32.mrb[0].mxu0
    %v2304 = vadd.f32 %v2263, %v2303
    %v2305 = vpop.f32.mrb[0].mxu0
    %2306 = vdwg.mxu0
    %v2307 = vld [vmem:[%s8 + $0x3] sm:$0x1]
    %v2308 = vmul.f32 %v2301, %v2301
    %v2309 = vmul.f32 %v2304, %v2304
    %2310 = vadd.xlane.f32.xlu0 %v2308
    %v2311 = vpop.xlane.xlu0 %2310
    %2312 = vadd.xlane.f32.xlu0 %v2309
    %v2313 = vpop.xlane.xlu0 %2312
    %v2314 = vmul.f32 %v2311, %v494
    %v2315 = vmul.f32 %v2313, %v494
    %v2316 = vadd.f32 %v2314, 1e-06
    %v2317 = vadd.f32 %v2315, 1e-06
    %v2318 = vrsqrt.pop %v2316
    %v2319 = vrsqrt.pop %v2317
    %v2320 = vmul.f32 %v2301, %v2318
    %v2321 = vmul.f32 %v2304, %v2319
    %v2322 = vlaneseq
    %v2323 = vshrl.u32 %v2322, 7
    %v2324 = vsub.s32 0, %v2323
    %v2325 = vrot.slane %v2307, %v2324
    %v2326 = vmul.f32 %v2320, %v2325
    %v2327 = vmul.f32 %v2321, %v2325
    %v2328 = vpack.c.bf16 %v2327, %v2326
    %v2329 = vld [vmem:[%s13] sm:$0xff]
    %v2330 = vld [vmem:[%s13 + $0x8] sm:$0xf]
    %v2331 = vld [vmem:[%s13 + $0xc] sm:$0xff]
    %v2332 = vld [vmem:[%s13 + $0x14] sm:$0xf]
    %v2333 = vld [vmem:[%s13 + $0x18] sm:$0xff]
    %v2334 = vld [vmem:[%s13 + $0x20] sm:$0xf]
    %v2335 = vld [vmem:[%s13 + $0x24] sm:$0xff]
    %v2336 = vld [vmem:[%s13 + $0x2c] sm:$0xf]
    %v2337 = vld [vmem:[%s13 + $0x30] sm:$0xff]
    %v2338 = vld [vmem:[%s13 + $0x38] sm:$0xf]
    %v2339 = vld [vmem:[%s13 + $0x3c] sm:$0xff]
    %v2340 = vld [vmem:[%s13 + $0x44] sm:$0xf]
    %v2341 = vld [vmem:[%s13 + $0x48] sm:$0xff]
    %v2342 = vld [vmem:[%s13 + $0x50] sm:$0xf]
    %v2343 = vld [vmem:[%s13 + $0x54] sm:$0xff]
    %v2344 = vld [vmem:[%s13 + $0x5c] sm:$0xf]
    %v2345 = vld [vmem:[%s13 + $0x60] sm:$0xff]
    %v2346 = vld [vmem:[%s13 + $0x68] sm:$0xf]
    %v2347 = vld [vmem:[%s13 + $0x6c] sm:$0xff]
    %v2348 = vld [vmem:[%s13 + $0x74] sm:$0xf]
    %v2349 = vld [vmem:[%s13 + $0x78] sm:$0xff]
    %v2350 = vld [vmem:[%s13 + $0x80] sm:$0xf]
    %v2351 = vld [vmem:[%s13 + $0x84] sm:$0xff]
    %v2352 = vld [vmem:[%s13 + $0x8c] sm:$0xf]
    %v2353 = vld [vmem:[%s13 + $0x90] sm:$0xff]
    %v2354 = vld [vmem:[%s13 + $0x98] sm:$0xf]
    %v2355 = vld [vmem:[%s13 + $0x9c] sm:$0xff]
    %v2356 = vld [vmem:[%s13 + $0xa4] sm:$0xf]
    %v2357 = vld [vmem:[%s13 + $0xa8] sm:$0xff]
    %v2358 = vld [vmem:[%s13 + $0xb0] sm:$0xf]
    %v2359 = vld [vmem:[%s13 + $0xb4] sm:$0xff]
    %v2360 = vld [vmem:[%s13 + $0xbc] sm:$0xf]
    %v2393 = vunpack.c.l.b16 %v2329
    %v2394 = vunpack.c.h.b16 %v2329
    %v2395 = vunpack.c.l.b16 %v2330
    %v2396 = vunpack.c.l.b16 %v2331
    %v2397 = vunpack.c.h.b16 %v2331
    %v2398 = vunpack.c.l.b16 %v2332
    %v2399 = vunpack.c.l.b16 %v2333
    %v2400 = vunpack.c.h.b16 %v2333
    %v2401 = vunpack.c.l.b16 %v2334
    %v2402 = vunpack.c.l.b16 %v2335
    %v2403 = vunpack.c.h.b16 %v2335
    %v2404 = vunpack.c.l.b16 %v2336
    %v2405 = vunpack.c.l.b16 %v2337
    %v2406 = vunpack.c.h.b16 %v2337
    %v2407 = vunpack.c.l.b16 %v2338
    %v2408 = vunpack.c.l.b16 %v2339
    %v2409 = vunpack.c.h.b16 %v2339
    %v2410 = vunpack.c.l.b16 %v2340
    %v2411 = vunpack.c.l.b16 %v2341
    %v2412 = vunpack.c.h.b16 %v2341
    %v2413 = vunpack.c.l.b16 %v2342
    %v2414 = vunpack.c.l.b16 %v2343
    %v2415 = vunpack.c.h.b16 %v2343
    %v2416 = vunpack.c.l.b16 %v2344
    %v2417 = vunpack.c.l.b16 %v2345
    %v2418 = vunpack.c.h.b16 %v2345
    %v2419 = vunpack.c.l.b16 %v2346
    %v2420 = vunpack.c.l.b16 %v2347
    %v2421 = vunpack.c.h.b16 %v2347
    %v2422 = vunpack.c.l.b16 %v2348
    %v2423 = vunpack.c.l.b16 %v2349
    %v2424 = vunpack.c.h.b16 %v2349
    %v2425 = vunpack.c.l.b16 %v2350
    %v2426 = vunpack.c.l.b16 %v2351
    %v2427 = vunpack.c.h.b16 %v2351
    %v2428 = vunpack.c.l.b16 %v2352
    %v2429 = vunpack.c.l.b16 %v2353
    %v2430 = vunpack.c.h.b16 %v2353
    %v2431 = vunpack.c.l.b16 %v2354
    %v2432 = vunpack.c.l.b16 %v2355
    %v2433 = vunpack.c.h.b16 %v2355
    %v2434 = vunpack.c.l.b16 %v2356
    %v2435 = vunpack.c.l.b16 %v2357
    %v2436 = vunpack.c.h.b16 %v2357
    %v2437 = vunpack.c.l.b16 %v2358
    %v2438 = vunpack.c.l.b16 %v2359
    %v2439 = vunpack.c.h.b16 %v2359
    %v2440 = vunpack.c.l.b16 %v2360
    %v2441 = vpack.c.b16 %v2396, %v2393
    %v2442 = vpack.c.b16 %v2397, %v2394
    %v2443 = vpack.c.b16 %v2398, %v2395
    %v2444 = vpack.c.b16 %v2402, %v2399
    %v2445 = vpack.c.b16 %v2403, %v2400
    %v2446 = vpack.c.b16 %v2404, %v2401
    %v2447 = vpack.c.b16 %v2408, %v2405
    %v2448 = vpack.c.b16 %v2409, %v2406
    %v2449 = vpack.c.b16 %v2410, %v2407
    %v2450 = vpack.c.b16 %v2414, %v2411
    %v2451 = vpack.c.b16 %v2415, %v2412
    %v2452 = vpack.c.b16 %v2416, %v2413
    %v2453 = vpack.c.b16 %v2420, %v2417
    %v2454 = vpack.c.b16 %v2421, %v2418
    %v2455 = vpack.c.b16 %v2422, %v2419
    %v2456 = vpack.c.b16 %v2426, %v2423
    %v2457 = vpack.c.b16 %v2427, %v2424
    %v2458 = vpack.c.b16 %v2428, %v2425
    %v2459 = vpack.c.b16 %v2432, %v2429
    %v2460 = vpack.c.b16 %v2433, %v2430
    %v2461 = vpack.c.b16 %v2434, %v2431
    %v2462 = vpack.c.b16 %v2438, %v2435
    %v2463 = vpack.c.b16 %v2439, %v2436
    %v2464 = vpack.c.b16 %v2440, %v2437
    %2489 = vmatprep.subr.bf16.mxu0 %v2442
    %2490 = vmatpush1.bf16.msra.mxu0 %v2441
    %2491 = vmatprep.subr.bf16.mxu0 %v2445
    %2492 = vmatpush1.bf16.msra.mxu0 %v2444
    %2493 = vmatprep.subr.bf16.mxu0 %v2448
    %2494 = vmatpush1.bf16.msra.mxu0 %v2447
    %2495 = vmatprep.subr.bf16.mxu0 %v2451
    %2496 = vmatpush1.bf16.msra.mxu0 %v2450
    %2497 = vmatprep.subr.bf16.mxu0 %v2454
    %2498 = vmatpush1.bf16.msra.mxu0 %v2453
    %2499 = vmatprep.subr.bf16.mxu0 %v2457
    %2500 = vmatpush1.bf16.msra.mxu0 %v2456
    %2501 = vmatprep.subr.bf16.mxu0 %v2460
    %2502 = vmatpush1.bf16.msra.mxu0 %v2459
    %2503 = vmatprep.subr.bf16.mxu0 %v2463
    %2504 = vmatpush1.bf16.msra.mxu0 %v2462
    %2505 = vmatprep.subr.bf16.mxu0 0
    %2506 = vmatpush1.bf16.msra.mxu0 0
    %2507 = vmatprep.subr.bf16.mxu0 0
    %2508 = vmatpush1.bf16.msra.mxu0 0
    %2509 = vmatprep.subr.bf16.mxu0 0
    %2510 = vmatpush1.bf16.msra.mxu0 0
    %2511 = vmatprep.subr.bf16.mxu0 0
    %2512 = vmatpush1.bf16.msra.mxu0 0
    %2513 = vmatprep.subr.bf16.mxu0 0
    %2514 = vmatpush1.bf16.msra.mxu0 0
    %2515 = vmatprep.subr.bf16.mxu0 0
    %2516 = vmatpush1.bf16.msra.mxu0 0
    %2517 = vmatprep.subr.bf16.mxu0 0
    %2518 = vmatpush1.bf16.msra.mxu0 0
    %2519 = vmatprep.subr.bf16.mxu0 0
    %2520 = vmatpush1.bf16.msra.mxu0 0
    %2521 = vmatprep.mubr.bf16.mxu0 0
    %2522 = vmatmul.mubr.bf16.gmra.mrb[0].mxu0 %v2328
    %v2523 = vpop.f32.mrb[0].mxu0
    %v2524 = vadd.f32 0.0, %v2523
    %v2525 = vpop.f32.mrb[0].mxu0
    %v2526 = vadd.f32 0.0, %v2525
    %v2527 = vpop.f32.mrb[0].mxu0
    %v2528 = vadd.f32 0.0, %v2527
    %v2529 = vpop.f32.mrb[0].mxu0
    %v2530 = vadd.f32 0.0, %v2529
    %2531 = vdwg.mxu0
    %2532 = vmatprep.subr.bf16.mxu0 0
    %2533 = vmatpush1.bf16.msra.mxu0 %v2443
    %2534 = vmatprep.subr.bf16.mxu0 0
    %2535 = vmatpush1.bf16.msra.mxu0 %v2446
    %2536 = vmatprep.subr.bf16.mxu0 0
    %2537 = vmatpush1.bf16.msra.mxu0 %v2449
    %2538 = vmatprep.subr.bf16.mxu0 0
    %2539 = vmatpush1.bf16.msra.mxu0 %v2452
    %2540 = vmatprep.subr.bf16.mxu0 0
    %2541 = vmatpush1.bf16.msra.mxu0 %v2455
    %2542 = vmatprep.subr.bf16.mxu0 0
    %2543 = vmatpush1.bf16.msra.mxu0 %v2458
    %2544 = vmatprep.subr.bf16.mxu0 0
    %2545 = vmatpush1.bf16.msra.mxu0 %v2461
    %2546 = vmatprep.subr.bf16.mxu0 0
    %2547 = vmatpush1.bf16.msra.mxu0 %v2464
    %2548 = vmatprep.subr.bf16.mxu0 0
    %2549 = vmatpush1.bf16.msra.mxu0 0
    %2550 = vmatprep.subr.bf16.mxu0 0
    %2551 = vmatpush1.bf16.msra.mxu0 0
    %2552 = vmatprep.subr.bf16.mxu0 0
    %2553 = vmatpush1.bf16.msra.mxu0 0
    %2554 = vmatprep.subr.bf16.mxu0 0
    %2555 = vmatpush1.bf16.msra.mxu0 0
    %2556 = vmatprep.subr.bf16.mxu0 0
    %2557 = vmatpush1.bf16.msra.mxu0 0
    %2558 = vmatprep.subr.bf16.mxu0 0
    %2559 = vmatpush1.bf16.msra.mxu0 0
    %2560 = vmatprep.subr.bf16.mxu0 0
    %2561 = vmatpush1.bf16.msra.mxu0 0
    %2562 = vmatprep.subr.bf16.mxu0 0
    %2563 = vmatpush1.bf16.msra.mxu0 0
    %2564 = vmatprep.mubr.bf16.mxu0 0
    %2565 = vmatmul.mubr.bf16.gmra.mrb[0].mxu0 %v2328
    %v2566 = vpop.f32.mrb[0].mxu0
    %v2567 = vadd.f32 0.0, %v2566
    %v2568 = vpop.f32.mrb[0].mxu0
    %v2569 = vpop.f32.mrb[0].mxu0
    %v2570 = vadd.f32 0.0, %v2569
    %v2571 = vpop.f32.mrb[0].mxu0
    %2572 = vdwg.mxu0
    %v2573 = vld [vmem:[%s14] sm:$0xf]
    %v2574 = vld [vmem:[%s14 + $0x4] sm:$0xf]
    %v2575 = vld [vmem:[%s14 + $0x8] sm:$0xf]
    %v2576 = vld [vmem:[%s14 + $0xc] sm:$0xf]
    %v2577 = vld [vmem:[%s14 + $0x10] sm:$0xf]
    %v2578 = vld [vmem:[%s14 + $0x14] sm:$0xf]
    %v2579 = vld [vmem:[%s14 + $0x18] sm:$0xf]
    %v2580 = vld [vmem:[%s14 + $0x1c] sm:$0xf]
    %v2581 = vld [vmem:[%s14 + $0x20] sm:$0xf]
    %v2582 = vld [vmem:[%s14 + $0x24] sm:$0xf]
    %v2583 = vld [vmem:[%s14 + $0x28] sm:$0xf]
    %v2584 = vld [vmem:[%s14 + $0x2c] sm:$0xf]
    %v2585 = vld [vmem:[%s14 + $0x30] sm:$0xf]
    %v2586 = vld [vmem:[%s14 + $0x34] sm:$0xf]
    %v2587 = vld [vmem:[%s14 + $0x38] sm:$0xf]
    %v2588 = vld [vmem:[%s14 + $0x3c] sm:$0xf]
    %v2589 = vpack.c.bf16 %v2528, %v2524
    %v2591 = vunpack.c.l.b16 %v2589
    %v2592 = vunpack.c.h.b16 %v2589
    %v2593 = vpack.c.b16 %v2591, %v2591
    %v2594 = vpack.c.b16 %v2592, %v2592
    %v2595 = vpack.c.bf16 %v2530, %v2526
    %v2597 = vunpack.c.l.b16 %v2595
    %v2598 = vunpack.c.h.b16 %v2595
    %v2599 = vpack.c.b16 %v2597, %v2597
    %v2600 = vpack.c.b16 %v2598, %v2598
    %v2601 = vpack.c.bf16 %v2570, %v2567
    %v2603 = vunpack.c.l.b16 %v2601
    %v2604 = vunpack.c.h.b16 %v2601
    %v2605 = vpack.c.b16 %v2603, %v2603
    %v2606 = vpack.c.b16 %v2604, %v2604
    %v2608 = vsel %vm788, %v2593, 0
    %v2611 = vsel %vm788, %v2599, 0
    %2613 = vmatprep.subr.bf16.mxu0 0
    %2614 = vmatpush1.bf16.xpose.msra.mxu0 %v2611
    %2615 = vmatprep.subr.bf16.mxu0 0
    %2616 = vmatpush1.bf16.xpose.msra.mxu0 0
    %2617 = vmatprep.subr.bf16.mxu0 0
    %2618 = vmatpush1.bf16.xpose.msra.mxu0 0
    %2619 = vmatprep.subr.bf16.mxu0 0
    %2620 = vmatpush1.bf16.xpose.msra.mxu0 0
    %2621 = vmatprep.subr.bf16.mxu0 0
    %2622 = vmatpush1.bf16.xpose.msra.mxu0 0
    %2623 = vmatprep.subr.bf16.mxu0 0
    %2624 = vmatpush1.bf16.xpose.msra.mxu0 0
    %2625 = vmatprep.subr.bf16.mxu0 0
    %2626 = vmatpush1.bf16.xpose.msra.mxu0 0
    %2627 = vmatprep.subr.bf16.mxu0 0
    %2628 = vmatpush1.bf16.xpose.msra.mxu0 0
    %2629 = vmatprep.subr.bf16.mxu0 0
    %2630 = vmatpush1.bf16.xpose.msra.mxu0 0
    %2631 = vmatprep.subr.bf16.mxu0 0
    %2632 = vmatpush1.bf16.xpose.msra.mxu0 0
    %2633 = vmatprep.subr.bf16.mxu0 0
    %2634 = vmatpush1.bf16.xpose.msra.mxu0 0
    %2635 = vmatprep.subr.bf16.mxu0 0
    %2636 = vmatpush1.bf16.xpose.msra.mxu0 0
    %2637 = vmatprep.subr.bf16.mxu0 0
    %2638 = vmatpush1.bf16.xpose.msra.mxu0 0
    %2639 = vmatprep.subr.bf16.mxu0 0
    %2640 = vmatpush1.bf16.xpose.msra.mxu0 0
    %2641 = vmatprep.subr.bf16.mxu0 0
    %2642 = vmatpush1.bf16.xpose.msra.mxu0 0
    %2643 = vmatprep.subr.bf16.mxu0 0
    %2644 = vmatpush1.bf16.xpose.msra.mxu0 0
    %2645 = vmatprep.mubr.bf16.mxu0 0
    %2646 = vmatmul.mubr.bf16.gmra.mrb[0].mxu0 %v2608
    %v2647 = vpop.f32.mrb[0].mxu0
    %v2648 = vadd.f32 %v2187, %v2647
    %v2649 = vpop.f32.mrb[0].mxu0
    %v2650 = vpop.f32.mrb[0].mxu0
    %v2651 = vpop.f32.mrb[0].mxu0
    %2652 = vdwg.mxu0
    %v2654 = vsel %vm788, %v2594, 0
    %v2657 = vsel %vm788, %v2600, 0
    %2659 = vmatprep.subr.bf16.mxu0 0
    %2660 = vmatpush1.bf16.xpose.msra.mxu0 %v2657
    %2661 = vmatprep.subr.bf16.mxu0 0
    %2662 = vmatpush1.bf16.xpose.msra.mxu0 0
    %2663 = vmatprep.subr.bf16.mxu0 0
    %2664 = vmatpush1.bf16.xpose.msra.mxu0 0
    %2665 = vmatprep.subr.bf16.mxu0 0
    %2666 = vmatpush1.bf16.xpose.msra.mxu0 0
    %2667 = vmatprep.subr.bf16.mxu0 0
    %2668 = vmatpush1.bf16.xpose.msra.mxu0 0
    %2669 = vmatprep.subr.bf16.mxu0 0
    %2670 = vmatpush1.bf16.xpose.msra.mxu0 0
    %2671 = vmatprep.subr.bf16.mxu0 0
    %2672 = vmatpush1.bf16.xpose.msra.mxu0 0
    %2673 = vmatprep.subr.bf16.mxu0 0
    %2674 = vmatpush1.bf16.xpose.msra.mxu0 0
    %2675 = vmatprep.subr.bf16.mxu0 0
    %2676 = vmatpush1.bf16.xpose.msra.mxu0 0
    %2677 = vmatprep.subr.bf16.mxu0 0
    %2678 = vmatpush1.bf16.xpose.msra.mxu0 0
    %2679 = vmatprep.subr.bf16.mxu0 0
    %2680 = vmatpush1.bf16.xpose.msra.mxu0 0
    %2681 = vmatprep.subr.bf16.mxu0 0
    %2682 = vmatpush1.bf16.xpose.msra.mxu0 0
    %2683 = vmatprep.subr.bf16.mxu0 0
    %2684 = vmatpush1.bf16.xpose.msra.mxu0 0
    %2685 = vmatprep.subr.bf16.mxu0 0
    %2686 = vmatpush1.bf16.xpose.msra.mxu0 0
    %2687 = vmatprep.subr.bf16.mxu0 0
    %2688 = vmatpush1.bf16.xpose.msra.mxu0 0
    %2689 = vmatprep.subr.bf16.mxu0 0
    %2690 = vmatpush1.bf16.xpose.msra.mxu0 0
    %2691 = vmatprep.mubr.bf16.mxu0 0
    %2692 = vmatmul.mubr.bf16.gmra.mrb[0].mxu0 %v2654
    %v2693 = vpop.f32.mrb[0].mxu0
    %v2694 = vadd.f32 %v2188, %v2693
    %v2695 = vpop.f32.mrb[0].mxu0
    %v2696 = vpop.f32.mrb[0].mxu0
    %v2697 = vpop.f32.mrb[0].mxu0
    %2698 = vdwg.mxu0
    %v2699 = vsel %vm881, %v2648, -inf
    %2700 = vmax.xlane.f32.xlu0 %v2699
    %v2701 = vpop.xlane.xlu0 %2700
    %v2702 = vsel %vm881, %v2694, -inf
    %2703 = vmax.xlane.f32.xlu0 %v2702
    %v2704 = vpop.xlane.xlu0 %2703
    %v2705 = vsub.f32 %v2648, %v2701
    %v2706 = vsub.f32 %v2694, %v2704
    %v2707 = vmul.f32 %v2705, 1.442695
    %v2708 = vpow.pop %v2707
    %v2709 = vmul.f32 %v2706, 1.442695
    %v2710 = vpow.pop %v2709
    %v2711 = vsel %vm881, %v2708, 0.0
    %2712 = vadd.xlane.f32.xlu0 %v2711
    %v2713 = vpop.xlane.xlu0 %2712
    %v2714 = vsel %vm881, %v2710, 0.0
    %2715 = vadd.xlane.f32.xlu0 %v2714
    %v2716 = vpop.xlane.xlu0 %2715
    %v2717 = vrcp.pop %v2713
    %v2718 = vrcp.pop %v2716
    %v2719 = vmul.f32 %v2708, %v2717
    %v2720 = vmul.f32 %v2710, %v2718
    %v2721 = vpack.c.bf16 %v2719, %v2719
    %v2722 = vpack.c.bf16 %v2720, %v2720
    %v2724 = vsel %vm881, %v2721, 0
    %v2727 = vsel %vm909, %v2605, 0
    %2729 = vmatprep.subr.bf16.mxu0 0
    %2730 = vmatpush1.bf16.msra.mxu0 %v2727
    %2731 = vmatprep.subr.bf16.mxu0 0
    %2732 = vmatpush1.bf16.msra.mxu0 0
    %2733 = vmatprep.subr.bf16.mxu0 0
    %2734 = vmatpush1.bf16.msra.mxu0 0
    %2735 = vmatprep.subr.bf16.mxu0 0
    %2736 = vmatpush1.bf16.msra.mxu0 0
    %2737 = vmatprep.subr.bf16.mxu0 0
    %2738 = vmatpush1.bf16.msra.mxu0 0
    %2739 = vmatprep.subr.bf16.mxu0 0
    %2740 = vmatpush1.bf16.msra.mxu0 0
    %2741 = vmatprep.subr.bf16.mxu0 0
    %2742 = vmatpush1.bf16.msra.mxu0 0
    %2743 = vmatprep.subr.bf16.mxu0 0
    %2744 = vmatpush1.bf16.msra.mxu0 0
    %2745 = vmatprep.subr.bf16.mxu0 0
    %2746 = vmatpush1.bf16.msra.mxu0 0
    %2747 = vmatprep.subr.bf16.mxu0 0
    %2748 = vmatpush1.bf16.msra.mxu0 0
    %2749 = vmatprep.subr.bf16.mxu0 0
    %2750 = vmatpush1.bf16.msra.mxu0 0
    %2751 = vmatprep.subr.bf16.mxu0 0
    %2752 = vmatpush1.bf16.msra.mxu0 0
    %2753 = vmatprep.subr.bf16.mxu0 0
    %2754 = vmatpush1.bf16.msra.mxu0 0
    %2755 = vmatprep.subr.bf16.mxu0 0
    %2756 = vmatpush1.bf16.msra.mxu0 0
    %2757 = vmatprep.subr.bf16.mxu0 0
    %2758 = vmatpush1.bf16.msra.mxu0 0
    %2759 = vmatprep.subr.bf16.mxu0 0
    %2760 = vmatpush1.bf16.msra.mxu0 0
    %2761 = vmatprep.mubr.bf16.mxu0 0
    %2762 = vmatmul.mubr.bf16.gmra.mrb[0].mxu0 %v2724
    %v2763 = vpop.f32.mrb[0].mxu0
    %v2764 = vadd.f32 0.0, %v2763
    %v2765 = vpop.f32.mrb[0].mxu0
    %v2766 = vpop.f32.mrb[0].mxu0
    %v2767 = vpop.f32.mrb[0].mxu0
    %2768 = vdwg.mxu0
    %v2770 = vsel %vm881, %v2722, 0
    %v2773 = vsel %vm909, %v2606, 0
    %2775 = vmatprep.subr.bf16.mxu0 0
    %2776 = vmatpush1.bf16.msra.mxu0 %v2773
    %2777 = vmatprep.subr.bf16.mxu0 0
    %2778 = vmatpush1.bf16.msra.mxu0 0
    %2779 = vmatprep.subr.bf16.mxu0 0
    %2780 = vmatpush1.bf16.msra.mxu0 0
    %2781 = vmatprep.subr.bf16.mxu0 0
    %2782 = vmatpush1.bf16.msra.mxu0 0
    %2783 = vmatprep.subr.bf16.mxu0 0
    %2784 = vmatpush1.bf16.msra.mxu0 0
    %2785 = vmatprep.subr.bf16.mxu0 0
    %2786 = vmatpush1.bf16.msra.mxu0 0
    %2787 = vmatprep.subr.bf16.mxu0 0
    %2788 = vmatpush1.bf16.msra.mxu0 0
    %2789 = vmatprep.subr.bf16.mxu0 0
    %2790 = vmatpush1.bf16.msra.mxu0 0
    %2791 = vmatprep.subr.bf16.mxu0 0
    %2792 = vmatpush1.bf16.msra.mxu0 0
    %2793 = vmatprep.subr.bf16.mxu0 0
    %2794 = vmatpush1.bf16.msra.mxu0 0
    %2795 = vmatprep.subr.bf16.mxu0 0
    %2796 = vmatpush1.bf16.msra.mxu0 0
    %2797 = vmatprep.subr.bf16.mxu0 0
    %2798 = vmatpush1.bf16.msra.mxu0 0
    %2799 = vmatprep.subr.bf16.mxu0 0
    %2800 = vmatpush1.bf16.msra.mxu0 0
    %2801 = vmatprep.subr.bf16.mxu0 0
    %2802 = vmatpush1.bf16.msra.mxu0 0
    %2803 = vmatprep.subr.bf16.mxu0 0
    %2804 = vmatpush1.bf16.msra.mxu0 0
    %2805 = vmatprep.subr.bf16.mxu0 0
    %2806 = vmatpush1.bf16.msra.mxu0 0
    %2807 = vmatprep.mubr.bf16.mxu0 0
    %2808 = vmatmul.mubr.bf16.gmra.mrb[0].mxu0 %v2770
    %v2809 = vpop.f32.mrb[0].mxu0
    %v2810 = vadd.f32 0.0, %v2809
    %v2811 = vpop.f32.mrb[0].mxu0
    %v2812 = vpop.f32.mrb[0].mxu0
    %v2813 = vpop.f32.mrb[0].mxu0
    %2814 = vdwg.mxu0
    %2815 = vrot.lane.b32.xlu0 %v2593, 96
    %v2816 = vpop.permute.xlu0 %2815
    %2817 = vrot.lane.b32.xlu0 %v2599, 96
    %v2818 = vpop.permute.xlu0 %2817
    %v2820 = vsel %vm788, %v2816, 0
    %v2823 = vsel %vm788, %v2818, 0
    %2825 = vmatprep.subr.bf16.mxu0 0
    %2826 = vmatpush1.bf16.xpose.msra.mxu0 %v2823
    %2827 = vmatprep.subr.bf16.mxu0 0
    %2828 = vmatpush1.bf16.xpose.msra.mxu0 0
    %2829 = vmatprep.subr.bf16.mxu0 0
    %2830 = vmatpush1.bf16.xpose.msra.mxu0 0
    %2831 = vmatprep.subr.bf16.mxu0 0
    %2832 = vmatpush1.bf16.xpose.msra.mxu0 0
    %2833 = vmatprep.subr.bf16.mxu0 0
    %2834 = vmatpush1.bf16.xpose.msra.mxu0 0
    %2835 = vmatprep.subr.bf16.mxu0 0
    %2836 = vmatpush1.bf16.xpose.msra.mxu0 0
    %2837 = vmatprep.subr.bf16.mxu0 0
    %2838 = vmatpush1.bf16.xpose.msra.mxu0 0
    %2839 = vmatprep.subr.bf16.mxu0 0
    %2840 = vmatpush1.bf16.xpose.msra.mxu0 0
    %2841 = vmatprep.subr.bf16.mxu0 0
    %2842 = vmatpush1.bf16.xpose.msra.mxu0 0
    %2843 = vmatprep.subr.bf16.mxu0 0
    %2844 = vmatpush1.bf16.xpose.msra.mxu0 0
    %2845 = vmatprep.subr.bf16.mxu0 0
    %2846 = vmatpush1.bf16.xpose.msra.mxu0 0
    %2847 = vmatprep.subr.bf16.mxu0 0
    %2848 = vmatpush1.bf16.xpose.msra.mxu0 0
    %2849 = vmatprep.subr.bf16.mxu0 0
    %2850 = vmatpush1.bf16.xpose.msra.mxu0 0
    %2851 = vmatprep.subr.bf16.mxu0 0
    %2852 = vmatpush1.bf16.xpose.msra.mxu0 0
    %2853 = vmatprep.subr.bf16.mxu0 0
    %2854 = vmatpush1.bf16.xpose.msra.mxu0 0
    %2855 = vmatprep.subr.bf16.mxu0 0
    %2856 = vmatpush1.bf16.xpose.msra.mxu0 0
    %2857 = vmatprep.mubr.bf16.mxu0 0
    %2858 = vmatmul.mubr.bf16.gmra.mrb[0].mxu0 %v2820
    %v2859 = vpop.f32.mrb[0].mxu0
    %v2860 = vadd.f32 %v2187, %v2859
    %v2861 = vpop.f32.mrb[0].mxu0
    %v2862 = vpop.f32.mrb[0].mxu0
    %v2863 = vpop.f32.mrb[0].mxu0
    %2864 = vdwg.mxu0
    %2865 = vrot.lane.b32.xlu0 %v2594, 96
    %v2866 = vpop.permute.xlu0 %2865
    %2867 = vrot.lane.b32.xlu0 %v2600, 96
    %v2868 = vpop.permute.xlu0 %2867
    %v2870 = vsel %vm788, %v2866, 0
    %v2873 = vsel %vm788, %v2868, 0
    %2875 = vmatprep.subr.bf16.mxu0 0
    %2876 = vmatpush1.bf16.xpose.msra.mxu0 %v2873
    %2877 = vmatprep.subr.bf16.mxu0 0
    %2878 = vmatpush1.bf16.xpose.msra.mxu0 0
    %2879 = vmatprep.subr.bf16.mxu0 0
    %2880 = vmatpush1.bf16.xpose.msra.mxu0 0
    %2881 = vmatprep.subr.bf16.mxu0 0
    %2882 = vmatpush1.bf16.xpose.msra.mxu0 0
    %2883 = vmatprep.subr.bf16.mxu0 0
    %2884 = vmatpush1.bf16.xpose.msra.mxu0 0
    %2885 = vmatprep.subr.bf16.mxu0 0
    %2886 = vmatpush1.bf16.xpose.msra.mxu0 0
    %2887 = vmatprep.subr.bf16.mxu0 0
    %2888 = vmatpush1.bf16.xpose.msra.mxu0 0
    %2889 = vmatprep.subr.bf16.mxu0 0
    %2890 = vmatpush1.bf16.xpose.msra.mxu0 0
    %2891 = vmatprep.subr.bf16.mxu0 0
    %2892 = vmatpush1.bf16.xpose.msra.mxu0 0
    %2893 = vmatprep.subr.bf16.mxu0 0
    %2894 = vmatpush1.bf16.xpose.msra.mxu0 0
    %2895 = vmatprep.subr.bf16.mxu0 0
    %2896 = vmatpush1.bf16.xpose.msra.mxu0 0
    %2897 = vmatprep.subr.bf16.mxu0 0
    %2898 = vmatpush1.bf16.xpose.msra.mxu0 0
    %2899 = vmatprep.subr.bf16.mxu0 0
    %2900 = vmatpush1.bf16.xpose.msra.mxu0 0
    %2901 = vmatprep.subr.bf16.mxu0 0
    %2902 = vmatpush1.bf16.xpose.msra.mxu0 0
    %2903 = vmatprep.subr.bf16.mxu0 0
    %2904 = vmatpush1.bf16.xpose.msra.mxu0 0
    %2905 = vmatprep.subr.bf16.mxu0 0
    %2906 = vmatpush1.bf16.xpose.msra.mxu0 0
    %2907 = vmatprep.mubr.bf16.mxu0 0
    %2908 = vmatmul.mubr.bf16.gmra.mrb[0].mxu0 %v2870
    %v2909 = vpop.f32.mrb[0].mxu0
    %v2910 = vadd.f32 %v2188, %v2909
    %v2911 = vpop.f32.mrb[0].mxu0
    %v2912 = vpop.f32.mrb[0].mxu0
    %v2913 = vpop.f32.mrb[0].mxu0
    %2914 = vdwg.mxu0
    %v2915 = vsel %vm881, %v2860, -inf
    %2916 = vmax.xlane.f32.xlu0 %v2915
    %v2917 = vpop.xlane.xlu0 %2916
    %v2918 = vsel %vm881, %v2910, -inf
    %2919 = vmax.xlane.f32.xlu0 %v2918
    %v2920 = vpop.xlane.xlu0 %2919
    %v2921 = vsub.f32 %v2860, %v2917
    %v2922 = vsub.f32 %v2910, %v2920
    %v2923 = vmul.f32 %v2921, 1.442695
    %v2924 = vpow.pop %v2923
    %v2925 = vmul.f32 %v2922, 1.442695
    %v2926 = vpow.pop %v2925
    %v2927 = vsel %vm881, %v2924, 0.0
    %2928 = vadd.xlane.f32.xlu0 %v2927
    %v2929 = vpop.xlane.xlu0 %2928
    %v2930 = vsel %vm881, %v2926, 0.0
    %2931 = vadd.xlane.f32.xlu0 %v2930
    %v2932 = vpop.xlane.xlu0 %2931
    %v2933 = vrcp.pop %v2929
    %v2934 = vrcp.pop %v2932
    %v2935 = vmul.f32 %v2924, %v2933
    %v2936 = vmul.f32 %v2926, %v2934
    %v2937 = vpack.c.bf16 %v2935, %v2935
    %v2938 = vpack.c.bf16 %v2936, %v2936
    %2939 = vrot.lane.b32.xlu0 %v2605, 96
    %v2940 = vpop.permute.xlu0 %2939
    %v2942 = vsel %vm881, %v2937, 0
    %v2945 = vsel %vm909, %v2940, 0
    %2947 = vmatprep.subr.bf16.mxu0 0
    %2948 = vmatpush1.bf16.msra.mxu0 %v2945
    %2949 = vmatprep.subr.bf16.mxu0 0
    %2950 = vmatpush1.bf16.msra.mxu0 0
    %2951 = vmatprep.subr.bf16.mxu0 0
    %2952 = vmatpush1.bf16.msra.mxu0 0
    %2953 = vmatprep.subr.bf16.mxu0 0
    %2954 = vmatpush1.bf16.msra.mxu0 0
    %2955 = vmatprep.subr.bf16.mxu0 0
    %2956 = vmatpush1.bf16.msra.mxu0 0
    %2957 = vmatprep.subr.bf16.mxu0 0
    %2958 = vmatpush1.bf16.msra.mxu0 0
    %2959 = vmatprep.subr.bf16.mxu0 0
    %2960 = vmatpush1.bf16.msra.mxu0 0
    %2961 = vmatprep.subr.bf16.mxu0 0
    %2962 = vmatpush1.bf16.msra.mxu0 0
    %2963 = vmatprep.subr.bf16.mxu0 0
    %2964 = vmatpush1.bf16.msra.mxu0 0
    %2965 = vmatprep.subr.bf16.mxu0 0
    %2966 = vmatpush1.bf16.msra.mxu0 0
    %2967 = vmatprep.subr.bf16.mxu0 0
    %2968 = vmatpush1.bf16.msra.mxu0 0
    %2969 = vmatprep.subr.bf16.mxu0 0
    %2970 = vmatpush1.bf16.msra.mxu0 0
    %2971 = vmatprep.subr.bf16.mxu0 0
    %2972 = vmatpush1.bf16.msra.mxu0 0
    %2973 = vmatprep.subr.bf16.mxu0 0
    %2974 = vmatpush1.bf16.msra.mxu0 0
    %2975 = vmatprep.subr.bf16.mxu0 0
    %2976 = vmatpush1.bf16.msra.mxu0 0
    %2977 = vmatprep.subr.bf16.mxu0 0
    %2978 = vmatpush1.bf16.msra.mxu0 0
    %2979 = vmatprep.mubr.bf16.mxu0 0
    %2980 = vmatmul.mubr.bf16.gmra.mrb[0].mxu0 %v2942
    %v2981 = vpop.f32.mrb[0].mxu0
    %v2982 = vadd.f32 0.0, %v2981
    %v2983 = vpop.f32.mrb[0].mxu0
    %v2984 = vpop.f32.mrb[0].mxu0
    %v2985 = vpop.f32.mrb[0].mxu0
    %2986 = vdwg.mxu0
    %2987 = vrot.lane.b32.xlu0 %v2606, 96
    %v2988 = vpop.permute.xlu0 %2987
    %v2990 = vsel %vm881, %v2938, 0
    %v2993 = vsel %vm909, %v2988, 0
    %2995 = vmatprep.subr.bf16.mxu0 0
    %2996 = vmatpush1.bf16.msra.mxu0 %v2993
    %2997 = vmatprep.subr.bf16.mxu0 0
    %2998 = vmatpush1.bf16.msra.mxu0 0
    %2999 = vmatprep.subr.bf16.mxu0 0
    %3000 = vmatpush1.bf16.msra.mxu0 0
    %3001 = vmatprep.subr.bf16.mxu0 0
    %3002 = vmatpush1.bf16.msra.mxu0 0
    %3003 = vmatprep.subr.bf16.mxu0 0
    %3004 = vmatpush1.bf16.msra.mxu0 0
    %3005 = vmatprep.subr.bf16.mxu0 0
    %3006 = vmatpush1.bf16.msra.mxu0 0
    %3007 = vmatprep.subr.bf16.mxu0 0
    %3008 = vmatpush1.bf16.msra.mxu0 0
    %3009 = vmatprep.subr.bf16.mxu0 0
    %3010 = vmatpush1.bf16.msra.mxu0 0
    %3011 = vmatprep.subr.bf16.mxu0 0
    %3012 = vmatpush1.bf16.msra.mxu0 0
    %3013 = vmatprep.subr.bf16.mxu0 0
    %3014 = vmatpush1.bf16.msra.mxu0 0
    %3015 = vmatprep.subr.bf16.mxu0 0
    %3016 = vmatpush1.bf16.msra.mxu0 0
    %3017 = vmatprep.subr.bf16.mxu0 0
    %3018 = vmatpush1.bf16.msra.mxu0 0
    %3019 = vmatprep.subr.bf16.mxu0 0
    %3020 = vmatpush1.bf16.msra.mxu0 0
    %3021 = vmatprep.subr.bf16.mxu0 0
    %3022 = vmatpush1.bf16.msra.mxu0 0
    %3023 = vmatprep.subr.bf16.mxu0 0
    %3024 = vmatpush1.bf16.msra.mxu0 0
    %3025 = vmatprep.subr.bf16.mxu0 0
    %3026 = vmatpush1.bf16.msra.mxu0 0
    %3027 = vmatprep.mubr.bf16.mxu0 0
    %3028 = vmatmul.mubr.bf16.gmra.mrb[0].mxu0 %v2990
    %v3029 = vpop.f32.mrb[0].mxu0
    %v3030 = vadd.f32 0.0, %v3029
    %v3031 = vpop.f32.mrb[0].mxu0
    %v3032 = vpop.f32.mrb[0].mxu0
    %v3033 = vpop.f32.mrb[0].mxu0
    %3034 = vdwg.mxu0
    %3035 = vrot.lane.b32.xlu0 %v2593, 64
    %v3036 = vpop.permute.xlu0 %3035
    %3037 = vrot.lane.b32.xlu0 %v2599, 64
    %v3038 = vpop.permute.xlu0 %3037
    %v3040 = vsel %vm788, %v3036, 0
    %v3043 = vsel %vm788, %v3038, 0
    %3045 = vmatprep.subr.bf16.mxu0 0
    %3046 = vmatpush1.bf16.xpose.msra.mxu0 %v3043
    %3047 = vmatprep.subr.bf16.mxu0 0
    %3048 = vmatpush1.bf16.xpose.msra.mxu0 0
    %3049 = vmatprep.subr.bf16.mxu0 0
    %3050 = vmatpush1.bf16.xpose.msra.mxu0 0
    %3051 = vmatprep.subr.bf16.mxu0 0
    %3052 = vmatpush1.bf16.xpose.msra.mxu0 0
    %3053 = vmatprep.subr.bf16.mxu0 0
    %3054 = vmatpush1.bf16.xpose.msra.mxu0 0
    %3055 = vmatprep.subr.bf16.mxu0 0
    %3056 = vmatpush1.bf16.xpose.msra.mxu0 0
    %3057 = vmatprep.subr.bf16.mxu0 0
    %3058 = vmatpush1.bf16.xpose.msra.mxu0 0
    %3059 = vmatprep.subr.bf16.mxu0 0
    %3060 = vmatpush1.bf16.xpose.msra.mxu0 0
    %3061 = vmatprep.subr.bf16.mxu0 0
    %3062 = vmatpush1.bf16.xpose.msra.mxu0 0
    %3063 = vmatprep.subr.bf16.mxu0 0
    %3064 = vmatpush1.bf16.xpose.msra.mxu0 0
    %3065 = vmatprep.subr.bf16.mxu0 0
    %3066 = vmatpush1.bf16.xpose.msra.mxu0 0
    %3067 = vmatprep.subr.bf16.mxu0 0
    %3068 = vmatpush1.bf16.xpose.msra.mxu0 0
    %3069 = vmatprep.subr.bf16.mxu0 0
    %3070 = vmatpush1.bf16.xpose.msra.mxu0 0
    %3071 = vmatprep.subr.bf16.mxu0 0
    %3072 = vmatpush1.bf16.xpose.msra.mxu0 0
    %3073 = vmatprep.subr.bf16.mxu0 0
    %3074 = vmatpush1.bf16.xpose.msra.mxu0 0
    %3075 = vmatprep.subr.bf16.mxu0 0
    %3076 = vmatpush1.bf16.xpose.msra.mxu0 0
    %3077 = vmatprep.mubr.bf16.mxu0 0
    %3078 = vmatmul.mubr.bf16.gmra.mrb[0].mxu0 %v3040
    %v3079 = vpop.f32.mrb[0].mxu0
    %v3080 = vadd.f32 %v2187, %v3079
    %v3081 = vpop.f32.mrb[0].mxu0
    %v3082 = vpop.f32.mrb[0].mxu0
    %v3083 = vpop.f32.mrb[0].mxu0
    %3084 = vdwg.mxu0
    %3085 = vrot.lane.b32.xlu0 %v2594, 64
    %v3086 = vpop.permute.xlu0 %3085
    %3087 = vrot.lane.b32.xlu0 %v2600, 64
    %v3088 = vpop.permute.xlu0 %3087
    %v3090 = vsel %vm788, %v3086, 0
    %v3093 = vsel %vm788, %v3088, 0
    %3095 = vmatprep.subr.bf16.mxu0 0
    %3096 = vmatpush1.bf16.xpose.msra.mxu0 %v3093
    %3097 = vmatprep.subr.bf16.mxu0 0
    %3098 = vmatpush1.bf16.xpose.msra.mxu0 0
    %3099 = vmatprep.subr.bf16.mxu0 0
    %3100 = vmatpush1.bf16.xpose.msra.mxu0 0
    %3101 = vmatprep.subr.bf16.mxu0 0
    %3102 = vmatpush1.bf16.xpose.msra.mxu0 0
    %3103 = vmatprep.subr.bf16.mxu0 0
    %3104 = vmatpush1.bf16.xpose.msra.mxu0 0
    %3105 = vmatprep.subr.bf16.mxu0 0
    %3106 = vmatpush1.bf16.xpose.msra.mxu0 0
    %3107 = vmatprep.subr.bf16.mxu0 0
    %3108 = vmatpush1.bf16.xpose.msra.mxu0 0
    %3109 = vmatprep.subr.bf16.mxu0 0
    %3110 = vmatpush1.bf16.xpose.msra.mxu0 0
    %3111 = vmatprep.subr.bf16.mxu0 0
    %3112 = vmatpush1.bf16.xpose.msra.mxu0 0
    %3113 = vmatprep.subr.bf16.mxu0 0
    %3114 = vmatpush1.bf16.xpose.msra.mxu0 0
    %3115 = vmatprep.subr.bf16.mxu0 0
    %3116 = vmatpush1.bf16.xpose.msra.mxu0 0
    %3117 = vmatprep.subr.bf16.mxu0 0
    %3118 = vmatpush1.bf16.xpose.msra.mxu0 0
    %3119 = vmatprep.subr.bf16.mxu0 0
    %3120 = vmatpush1.bf16.xpose.msra.mxu0 0
    %3121 = vmatprep.subr.bf16.mxu0 0
    %3122 = vmatpush1.bf16.xpose.msra.mxu0 0
    %3123 = vmatprep.subr.bf16.mxu0 0
    %3124 = vmatpush1.bf16.xpose.msra.mxu0 0
    %3125 = vmatprep.subr.bf16.mxu0 0
    %3126 = vmatpush1.bf16.xpose.msra.mxu0 0
    %3127 = vmatprep.mubr.bf16.mxu0 0
    %3128 = vmatmul.mubr.bf16.gmra.mrb[0].mxu0 %v3090
    %v3129 = vpop.f32.mrb[0].mxu0
    %v3130 = vadd.f32 %v2188, %v3129
    %v3131 = vpop.f32.mrb[0].mxu0
    %v3132 = vpop.f32.mrb[0].mxu0
    %v3133 = vpop.f32.mrb[0].mxu0
    %3134 = vdwg.mxu0
    %v3135 = vsel %vm881, %v3080, -inf
    %3136 = vmax.xlane.f32.xlu0 %v3135
    %v3137 = vpop.xlane.xlu0 %3136
    %v3138 = vsel %vm881, %v3130, -inf
    %3139 = vmax.xlane.f32.xlu0 %v3138
    %v3140 = vpop.xlane.xlu0 %3139
    %v3141 = vsub.f32 %v3080, %v3137
    %v3142 = vsub.f32 %v3130, %v3140
    %v3143 = vmul.f32 %v3141, 1.442695
    %v3144 = vpow.pop %v3143
    %v3145 = vmul.f32 %v3142, 1.442695
    %v3146 = vpow.pop %v3145
    %v3147 = vsel %vm881, %v3144, 0.0
    %3148 = vadd.xlane.f32.xlu0 %v3147
    %v3149 = vpop.xlane.xlu0 %3148
    %v3150 = vsel %vm881, %v3146, 0.0
    %3151 = vadd.xlane.f32.xlu0 %v3150
    %v3152 = vpop.xlane.xlu0 %3151
    %v3153 = vrcp.pop %v3149
    %v3154 = vrcp.pop %v3152
    %v3155 = vmul.f32 %v3144, %v3153
    %v3156 = vmul.f32 %v3146, %v3154
    %v3157 = vpack.c.bf16 %v3155, %v3155
    %v3158 = vpack.c.bf16 %v3156, %v3156
    %3159 = vrot.lane.b32.xlu0 %v2605, 64
    %v3160 = vpop.permute.xlu0 %3159
    %v3162 = vsel %vm881, %v3157, 0
    %v3165 = vsel %vm909, %v3160, 0
    %3167 = vmatprep.subr.bf16.mxu0 0
    %3168 = vmatpush1.bf16.msra.mxu0 %v3165
    %3169 = vmatprep.subr.bf16.mxu0 0
    %3170 = vmatpush1.bf16.msra.mxu0 0
    %3171 = vmatprep.subr.bf16.mxu0 0
    %3172 = vmatpush1.bf16.msra.mxu0 0
    %3173 = vmatprep.subr.bf16.mxu0 0
    %3174 = vmatpush1.bf16.msra.mxu0 0
    %3175 = vmatprep.subr.bf16.mxu0 0
    %3176 = vmatpush1.bf16.msra.mxu0 0
    %3177 = vmatprep.subr.bf16.mxu0 0
    %3178 = vmatpush1.bf16.msra.mxu0 0
    %3179 = vmatprep.subr.bf16.mxu0 0
    %3180 = vmatpush1.bf16.msra.mxu0 0
    %3181 = vmatprep.subr.bf16.mxu0 0
    %3182 = vmatpush1.bf16.msra.mxu0 0
    %3183 = vmatprep.subr.bf16.mxu0 0
    %3184 = vmatpush1.bf16.msra.mxu0 0
    %3185 = vmatprep.subr.bf16.mxu0 0
    %3186 = vmatpush1.bf16.msra.mxu0 0
    %3187 = vmatprep.subr.bf16.mxu0 0
    %3188 = vmatpush1.bf16.msra.mxu0 0
    %3189 = vmatprep.subr.bf16.mxu0 0
    %3190 = vmatpush1.bf16.msra.mxu0 0
    %3191 = vmatprep.subr.bf16.mxu0 0
    %3192 = vmatpush1.bf16.msra.mxu0 0
    %3193 = vmatprep.subr.bf16.mxu0 0
    %3194 = vmatpush1.bf16.msra.mxu0 0
    %3195 = vmatprep.subr.bf16.mxu0 0
    %3196 = vmatpush1.bf16.msra.mxu0 0
    %3197 = vmatprep.subr.bf16.mxu0 0
    %3198 = vmatpush1.bf16.msra.mxu0 0
    %3199 = vmatprep.mubr.bf16.mxu0 0
    %3200 = vmatmul.mubr.bf16.gmra.mrb[0].mxu0 %v3162
    %v3201 = vpop.f32.mrb[0].mxu0
    %v3202 = vadd.f32 0.0, %v3201
    %v3203 = vpop.f32.mrb[0].mxu0
    %v3204 = vpop.f32.mrb[0].mxu0
    %v3205 = vpop.f32.mrb[0].mxu0
    %3206 = vdwg.mxu0
    %3207 = vrot.lane.b32.xlu0 %v2606, 64
    %v3208 = vpop.permute.xlu0 %3207
    %v3210 = vsel %vm881, %v3158, 0
    %v3213 = vsel %vm909, %v3208, 0
    %3215 = vmatprep.subr.bf16.mxu0 0
    %3216 = vmatpush1.bf16.msra.mxu0 %v3213
    %3217 = vmatprep.subr.bf16.mxu0 0
    %3218 = vmatpush1.bf16.msra.mxu0 0
    %3219 = vmatprep.subr.bf16.mxu0 0
    %3220 = vmatpush1.bf16.msra.mxu0 0
    %3221 = vmatprep.subr.bf16.mxu0 0
    %3222 = vmatpush1.bf16.msra.mxu0 0
    %3223 = vmatprep.subr.bf16.mxu0 0
    %3224 = vmatpush1.bf16.msra.mxu0 0
    %3225 = vmatprep.subr.bf16.mxu0 0
    %3226 = vmatpush1.bf16.msra.mxu0 0
    %3227 = vmatprep.subr.bf16.mxu0 0
    %3228 = vmatpush1.bf16.msra.mxu0 0
    %3229 = vmatprep.subr.bf16.mxu0 0
    %3230 = vmatpush1.bf16.msra.mxu0 0
    %3231 = vmatprep.subr.bf16.mxu0 0
    %3232 = vmatpush1.bf16.msra.mxu0 0
    %3233 = vmatprep.subr.bf16.mxu0 0
    %3234 = vmatpush1.bf16.msra.mxu0 0
    %3235 = vmatprep.subr.bf16.mxu0 0
    %3236 = vmatpush1.bf16.msra.mxu0 0
    %3237 = vmatprep.subr.bf16.mxu0 0
    %3238 = vmatpush1.bf16.msra.mxu0 0
    %3239 = vmatprep.subr.bf16.mxu0 0
    %3240 = vmatpush1.bf16.msra.mxu0 0
    %3241 = vmatprep.subr.bf16.mxu0 0
    %3242 = vmatpush1.bf16.msra.mxu0 0
    %3243 = vmatprep.subr.bf16.mxu0 0
    %3244 = vmatpush1.bf16.msra.mxu0 0
    %3245 = vmatprep.subr.bf16.mxu0 0
    %3246 = vmatpush1.bf16.msra.mxu0 0
    %3247 = vmatprep.mubr.bf16.mxu0 0
    %3248 = vmatmul.mubr.bf16.gmra.mrb[0].mxu0 %v3210
    %v3249 = vpop.f32.mrb[0].mxu0
    %v3250 = vadd.f32 0.0, %v3249
    %v3251 = vpop.f32.mrb[0].mxu0
    %v3252 = vpop.f32.mrb[0].mxu0
    %v3253 = vpop.f32.mrb[0].mxu0
    %3254 = vdwg.mxu0
    %3255 = vrot.lane.b32.xlu0 %v2593, 32
    %v3256 = vpop.permute.xlu0 %3255
    %3257 = vrot.lane.b32.xlu0 %v2599, 32
    %v3258 = vpop.permute.xlu0 %3257
    %v3260 = vsel %vm788, %v3256, 0
    %v3263 = vsel %vm788, %v3258, 0
    %3265 = vmatprep.subr.bf16.mxu0 0
    %3266 = vmatpush1.bf16.xpose.msra.mxu0 %v3263
    %3267 = vmatprep.subr.bf16.mxu0 0
    %3268 = vmatpush1.bf16.xpose.msra.mxu0 0
    %3269 = vmatprep.subr.bf16.mxu0 0
    %3270 = vmatpush1.bf16.xpose.msra.mxu0 0
    %3271 = vmatprep.subr.bf16.mxu0 0
    %3272 = vmatpush1.bf16.xpose.msra.mxu0 0
    %3273 = vmatprep.subr.bf16.mxu0 0
    %3274 = vmatpush1.bf16.xpose.msra.mxu0 0
    %3275 = vmatprep.subr.bf16.mxu0 0
    %3276 = vmatpush1.bf16.xpose.msra.mxu0 0
    %3277 = vmatprep.subr.bf16.mxu0 0
    %3278 = vmatpush1.bf16.xpose.msra.mxu0 0
    %3279 = vmatprep.subr.bf16.mxu0 0
    %3280 = vmatpush1.bf16.xpose.msra.mxu0 0
    %3281 = vmatprep.subr.bf16.mxu0 0
    %3282 = vmatpush1.bf16.xpose.msra.mxu0 0
    %3283 = vmatprep.subr.bf16.mxu0 0
    %3284 = vmatpush1.bf16.xpose.msra.mxu0 0
    %3285 = vmatprep.subr.bf16.mxu0 0
    %3286 = vmatpush1.bf16.xpose.msra.mxu0 0
    %3287 = vmatprep.subr.bf16.mxu0 0
    %3288 = vmatpush1.bf16.xpose.msra.mxu0 0
    %3289 = vmatprep.subr.bf16.mxu0 0
    %3290 = vmatpush1.bf16.xpose.msra.mxu0 0
    %3291 = vmatprep.subr.bf16.mxu0 0
    %3292 = vmatpush1.bf16.xpose.msra.mxu0 0
    %3293 = vmatprep.subr.bf16.mxu0 0
    %3294 = vmatpush1.bf16.xpose.msra.mxu0 0
    %3295 = vmatprep.subr.bf16.mxu0 0
    %3296 = vmatpush1.bf16.xpose.msra.mxu0 0
    %3297 = vmatprep.mubr.bf16.mxu0 0
    %3298 = vmatmul.mubr.bf16.gmra.mrb[0].mxu0 %v3260
    %v3299 = vpop.f32.mrb[0].mxu0
    %v3300 = vadd.f32 %v2187, %v3299
    %v3301 = vpop.f32.mrb[0].mxu0
    %v3302 = vpop.f32.mrb[0].mxu0
    %v3303 = vpop.f32.mrb[0].mxu0
    %3304 = vdwg.mxu0
    %3305 = vrot.lane.b32.xlu0 %v2594, 32
    %v3306 = vpop.permute.xlu0 %3305
    %3307 = vrot.lane.b32.xlu0 %v2600, 32
    %v3308 = vpop.permute.xlu0 %3307
    %v3310 = vsel %vm788, %v3306, 0
    %v3313 = vsel %vm788, %v3308, 0
    %3315 = vmatprep.subr.bf16.mxu0 0
    %3316 = vmatpush1.bf16.xpose.msra.mxu0 %v3313
    %3317 = vmatprep.subr.bf16.mxu0 0
    %3318 = vmatpush1.bf16.xpose.msra.mxu0 0
    %3319 = vmatprep.subr.bf16.mxu0 0
    %3320 = vmatpush1.bf16.xpose.msra.mxu0 0
    %3321 = vmatprep.subr.bf16.mxu0 0
    %3322 = vmatpush1.bf16.xpose.msra.mxu0 0
    %3323 = vmatprep.subr.bf16.mxu0 0
    %3324 = vmatpush1.bf16.xpose.msra.mxu0 0
    %3325 = vmatprep.subr.bf16.mxu0 0
    %3326 = vmatpush1.bf16.xpose.msra.mxu0 0
    %3327 = vmatprep.subr.bf16.mxu0 0
    %3328 = vmatpush1.bf16.xpose.msra.mxu0 0
    %3329 = vmatprep.subr.bf16.mxu0 0
    %3330 = vmatpush1.bf16.xpose.msra.mxu0 0
    %3331 = vmatprep.subr.bf16.mxu0 0
    %3332 = vmatpush1.bf16.xpose.msra.mxu0 0
    %3333 = vmatprep.subr.bf16.mxu0 0
    %3334 = vmatpush1.bf16.xpose.msra.mxu0 0
    %3335 = vmatprep.subr.bf16.mxu0 0
    %3336 = vmatpush1.bf16.xpose.msra.mxu0 0
    %3337 = vmatprep.subr.bf16.mxu0 0
    %3338 = vmatpush1.bf16.xpose.msra.mxu0 0
    %3339 = vmatprep.subr.bf16.mxu0 0
    %3340 = vmatpush1.bf16.xpose.msra.mxu0 0
    %3341 = vmatprep.subr.bf16.mxu0 0
    %3342 = vmatpush1.bf16.xpose.msra.mxu0 0
    %3343 = vmatprep.subr.bf16.mxu0 0
    %3344 = vmatpush1.bf16.xpose.msra.mxu0 0
    %3345 = vmatprep.subr.bf16.mxu0 0
    %3346 = vmatpush1.bf16.xpose.msra.mxu0 0
    %3347 = vmatprep.mubr.bf16.mxu0 0
    %3348 = vmatmul.mubr.bf16.gmra.mrb[0].mxu0 %v3310
    %v3349 = vpop.f32.mrb[0].mxu0
    %v3350 = vadd.f32 %v2188, %v3349
    %v3351 = vpop.f32.mrb[0].mxu0
    %v3352 = vpop.f32.mrb[0].mxu0
    %v3353 = vpop.f32.mrb[0].mxu0
    %3354 = vdwg.mxu0
    %v3355 = vsel %vm881, %v3300, -inf
    %3356 = vmax.xlane.f32.xlu0 %v3355
    %v3357 = vpop.xlane.xlu0 %3356
    %v3358 = vsel %vm881, %v3350, -inf
    %3359 = vmax.xlane.f32.xlu0 %v3358
    %v3360 = vpop.xlane.xlu0 %3359
    %v3361 = vsub.f32 %v3300, %v3357
    %v3362 = vsub.f32 %v3350, %v3360
    %v3363 = vmul.f32 %v3361, 1.442695
    %v3364 = vpow.pop %v3363
    %v3365 = vmul.f32 %v3362, 1.442695
    %v3366 = vpow.pop %v3365
    %v3367 = vsel %vm881, %v3364, 0.0
    %3368 = vadd.xlane.f32.xlu0 %v3367
    %v3369 = vpop.xlane.xlu0 %3368
    %v3370 = vsel %vm881, %v3366, 0.0
    %3371 = vadd.xlane.f32.xlu0 %v3370
    %v3372 = vpop.xlane.xlu0 %3371
    %v3373 = vrcp.pop %v3369
    %v3374 = vrcp.pop %v3372
    %v3375 = vmul.f32 %v3364, %v3373
    %v3376 = vmul.f32 %v3366, %v3374
    %v3377 = vpack.c.bf16 %v3375, %v3375
    %v3378 = vpack.c.bf16 %v3376, %v3376
    %3379 = vrot.lane.b32.xlu0 %v2605, 32
    %v3380 = vpop.permute.xlu0 %3379
    %v3382 = vsel %vm881, %v3377, 0
    %v3385 = vsel %vm909, %v3380, 0
    %3387 = vmatprep.subr.bf16.mxu0 0
    %3388 = vmatpush1.bf16.msra.mxu0 %v3385
    %3389 = vmatprep.subr.bf16.mxu0 0
    %3390 = vmatpush1.bf16.msra.mxu0 0
    %3391 = vmatprep.subr.bf16.mxu0 0
    %3392 = vmatpush1.bf16.msra.mxu0 0
    %3393 = vmatprep.subr.bf16.mxu0 0
    %3394 = vmatpush1.bf16.msra.mxu0 0
    %3395 = vmatprep.subr.bf16.mxu0 0
    %3396 = vmatpush1.bf16.msra.mxu0 0
    %3397 = vmatprep.subr.bf16.mxu0 0
    %3398 = vmatpush1.bf16.msra.mxu0 0
    %3399 = vmatprep.subr.bf16.mxu0 0
    %3400 = vmatpush1.bf16.msra.mxu0 0
    %3401 = vmatprep.subr.bf16.mxu0 0
    %3402 = vmatpush1.bf16.msra.mxu0 0
    %3403 = vmatprep.subr.bf16.mxu0 0
    %3404 = vmatpush1.bf16.msra.mxu0 0
    %3405 = vmatprep.subr.bf16.mxu0 0
    %3406 = vmatpush1.bf16.msra.mxu0 0
    %3407 = vmatprep.subr.bf16.mxu0 0
    %3408 = vmatpush1.bf16.msra.mxu0 0
    %3409 = vmatprep.subr.bf16.mxu0 0
    %3410 = vmatpush1.bf16.msra.mxu0 0
    %3411 = vmatprep.subr.bf16.mxu0 0
    %3412 = vmatpush1.bf16.msra.mxu0 0
    %3413 = vmatprep.subr.bf16.mxu0 0
    %3414 = vmatpush1.bf16.msra.mxu0 0
    %3415 = vmatprep.subr.bf16.mxu0 0
    %3416 = vmatpush1.bf16.msra.mxu0 0
    %3417 = vmatprep.subr.bf16.mxu0 0
    %3418 = vmatpush1.bf16.msra.mxu0 0
    %3419 = vmatprep.mubr.bf16.mxu0 0
    %3420 = vmatmul.mubr.bf16.gmra.mrb[0].mxu0 %v3382
    %v3421 = vpop.f32.mrb[0].mxu0
    %v3422 = vadd.f32 0.0, %v3421
    %v3423 = vpop.f32.mrb[0].mxu0
    %v3424 = vpop.f32.mrb[0].mxu0
    %v3425 = vpop.f32.mrb[0].mxu0
    %3426 = vdwg.mxu0
    %3427 = vrot.lane.b32.xlu0 %v2606, 32
    %v3428 = vpop.permute.xlu0 %3427
    %v3430 = vsel %vm881, %v3378, 0
    %v3433 = vsel %vm909, %v3428, 0
    %3435 = vmatprep.subr.bf16.mxu0 0
    %3436 = vmatpush1.bf16.msra.mxu0 %v3433
    %3437 = vmatprep.subr.bf16.mxu0 0
    %3438 = vmatpush1.bf16.msra.mxu0 0
    %3439 = vmatprep.subr.bf16.mxu0 0
    %3440 = vmatpush1.bf16.msra.mxu0 0
    %3441 = vmatprep.subr.bf16.mxu0 0
    %3442 = vmatpush1.bf16.msra.mxu0 0
    %3443 = vmatprep.subr.bf16.mxu0 0
    %3444 = vmatpush1.bf16.msra.mxu0 0
    %3445 = vmatprep.subr.bf16.mxu0 0
    %3446 = vmatpush1.bf16.msra.mxu0 0
    %3447 = vmatprep.subr.bf16.mxu0 0
    %3448 = vmatpush1.bf16.msra.mxu0 0
    %3449 = vmatprep.subr.bf16.mxu0 0
    %3450 = vmatpush1.bf16.msra.mxu0 0
    %3451 = vmatprep.subr.bf16.mxu0 0
    %3452 = vmatpush1.bf16.msra.mxu0 0
    %3453 = vmatprep.subr.bf16.mxu0 0
    %3454 = vmatpush1.bf16.msra.mxu0 0
    %3455 = vmatprep.subr.bf16.mxu0 0
    %3456 = vmatpush1.bf16.msra.mxu0 0
    %3457 = vmatprep.subr.bf16.mxu0 0
    %3458 = vmatpush1.bf16.msra.mxu0 0
    %3459 = vmatprep.subr.bf16.mxu0 0
    %3460 = vmatpush1.bf16.msra.mxu0 0
    %3461 = vmatprep.subr.bf16.mxu0 0
    %3462 = vmatpush1.bf16.msra.mxu0 0
    %3463 = vmatprep.subr.bf16.mxu0 0
    %3464 = vmatpush1.bf16.msra.mxu0 0
    %3465 = vmatprep.subr.bf16.mxu0 0
    %3466 = vmatpush1.bf16.msra.mxu0 0
    %3467 = vmatprep.mubr.bf16.mxu0 0
    %3468 = vmatmul.mubr.bf16.gmra.mrb[0].mxu0 %v3430
    %v3469 = vpop.f32.mrb[0].mxu0
    %v3470 = vadd.f32 0.0, %v3469
    %v3471 = vpop.f32.mrb[0].mxu0
    %v3472 = vpop.f32.mrb[0].mxu0
    %v3473 = vpop.f32.mrb[0].mxu0
    %3474 = vdwg.mxu0
    %3477 = vrot.lane.b32.xlu0 %v2982, 32
    %v3478 = vpop.permute.xlu0 %3477
    %3479 = vrot.lane.b32.xlu0 %v3030, 32
    %v3480 = vpop.permute.xlu0 %3479
    %3485 = vrot.lane.b32.xlu0 %v3202, 64
    %v3486 = vpop.permute.xlu0 %3485
    %3487 = vrot.lane.b32.xlu0 %v3250, 64
    %v3488 = vpop.permute.xlu0 %3487
    %3493 = vrot.lane.b32.xlu0 %v3422, 96
    %v3494 = vpop.permute.xlu0 %3493
    %3495 = vrot.lane.b32.xlu0 %v3470, 96
    %v3496 = vpop.permute.xlu0 %3495
    %v3499 = vsel %vm788, %v2764, %v3478
    %v3500 = vsel %vm788, %v2810, %v3480
    %v3501 = vsel %vm1685, %v3499, %v3486
    %v3502 = vsel %vm1685, %v3500, %v3488
    %v3503 = vsel %vm1688, %v3501, %v3494
    %v3504 = vsel %vm1688, %v3502, %v3496
    %v3505 = vpack.c.bf16 %v3504, %v3503
    %v3522 = vunpack.c.l.b16 %v2573
    %v3523 = vunpack.c.l.b16 %v2574
    %v3524 = vunpack.c.l.b16 %v2575
    %v3525 = vunpack.c.l.b16 %v2576
    %v3526 = vunpack.c.l.b16 %v2577
    %v3527 = vunpack.c.l.b16 %v2578
    %v3528 = vunpack.c.l.b16 %v2579
    %v3529 = vunpack.c.l.b16 %v2580
    %v3530 = vunpack.c.l.b16 %v2581
    %v3531 = vunpack.c.l.b16 %v2582
    %v3532 = vunpack.c.l.b16 %v2583
    %v3533 = vunpack.c.l.b16 %v2584
    %v3534 = vunpack.c.l.b16 %v2585
    %v3535 = vunpack.c.l.b16 %v2586
    %v3536 = vunpack.c.l.b16 %v2587
    %v3537 = vunpack.c.l.b16 %v2588
    %v3538 = vpack.c.b16 %v3523, %v3522
    %v3539 = vpack.c.b16 %v3525, %v3524
    %v3540 = vpack.c.b16 %v3527, %v3526
    %v3541 = vpack.c.b16 %v3529, %v3528
    %v3542 = vpack.c.b16 %v3531, %v3530
    %v3543 = vpack.c.b16 %v3533, %v3532
    %v3544 = vpack.c.b16 %v3535, %v3534
    %v3545 = vpack.c.b16 %v3537, %v3536
    %3554 = vmatprep.subr.bf16.mxu0 0
    %3555 = vmatpush1.bf16.msra.mxu0 %v3538
    %3556 = vmatprep.subr.bf16.mxu0 0
    %3557 = vmatpush1.bf16.msra.mxu0 %v3539
    %3558 = vmatprep.subr.bf16.mxu0 0
    %3559 = vmatpush1.bf16.msra.mxu0 %v3540
    %3560 = vmatprep.subr.bf16.mxu0 0
    %3561 = vmatpush1.bf16.msra.mxu0 %v3541
    %3562 = vmatprep.subr.bf16.mxu0 0
    %3563 = vmatpush1.bf16.msra.mxu0 %v3542
    %3564 = vmatprep.subr.bf16.mxu0 0
    %3565 = vmatpush1.bf16.msra.mxu0 %v3543
    %3566 = vmatprep.subr.bf16.mxu0 0
    %3567 = vmatpush1.bf16.msra.mxu0 %v3544
    %3568 = vmatprep.subr.bf16.mxu0 0
    %3569 = vmatpush1.bf16.msra.mxu0 %v3545
    %3570 = vmatprep.subr.bf16.mxu0 0
    %3571 = vmatpush1.bf16.msra.mxu0 0
    %3572 = vmatprep.subr.bf16.mxu0 0
    %3573 = vmatpush1.bf16.msra.mxu0 0
    %3574 = vmatprep.subr.bf16.mxu0 0
    %3575 = vmatpush1.bf16.msra.mxu0 0
    %3576 = vmatprep.subr.bf16.mxu0 0
    %3577 = vmatpush1.bf16.msra.mxu0 0
    %3578 = vmatprep.subr.bf16.mxu0 0
    %3579 = vmatpush1.bf16.msra.mxu0 0
    %3580 = vmatprep.subr.bf16.mxu0 0
    %3581 = vmatpush1.bf16.msra.mxu0 0
    %3582 = vmatprep.subr.bf16.mxu0 0
    %3583 = vmatpush1.bf16.msra.mxu0 0
    %3584 = vmatprep.subr.bf16.mxu0 0
    %3585 = vmatpush1.bf16.msra.mxu0 0
    %3586 = vmatprep.mubr.bf16.mxu0 0
    %3587 = vmatmul.mubr.bf16.gmra.mrb[0].mxu0 %v3505
    %v3588 = vpop.f32.mrb[0].mxu0
    %v3589 = vadd.f32 0.0, %v3588
    %v3590 = vpop.f32.mrb[0].mxu0
    %v3591 = vpop.f32.mrb[0].mxu0
    %v3592 = vadd.f32 0.0, %v3591
    %v3593 = vpop.f32.mrb[0].mxu0
    %3594 = vdwg.mxu0
    %v3595 = vadd.f32 %v2301, %v3589
    %v3596 = vadd.f32 %v2304, %v3592
    %v3597 = vld [vmem:[%s8 + $0x4] sm:$0x1]
    %v3598 = vmul.f32 %v3595, %v3595
    %v3599 = vmul.f32 %v3596, %v3596
    %3600 = vadd.xlane.f32.xlu0 %v3598
    %v3601 = vpop.xlane.xlu0 %3600
    %3602 = vadd.xlane.f32.xlu0 %v3599
    %v3603 = vpop.xlane.xlu0 %3602
    %v3604 = vmul.f32 %v3601, %v494
    %v3605 = vmul.f32 %v3603, %v494
    %v3606 = vadd.f32 %v3604, 1e-06
    %v3607 = vadd.f32 %v3605, 1e-06
    %v3608 = vrsqrt.pop %v3606
    %v3609 = vrsqrt.pop %v3607
    %v3610 = vmul.f32 %v3595, %v3608
    %v3611 = vmul.f32 %v3596, %v3609
    %v3612 = vlaneseq
    %v3613 = vshrl.u32 %v3612, 7
    %v3614 = vsub.s32 0, %v3613
    %v3615 = vrot.slane %v3597, %v3614
    %v3616 = vmul.f32 %v3610, %v3615
    %v3617 = vmul.f32 %v3611, %v3615
    %v3618 = vpack.c.bf16 %v3617, %v3616
    %v3619 = vld [vmem:[%s15] sm:$0xf]
    %v3620 = vld [vmem:[%s15 + $0x4] sm:$0xf]
    %v3621 = vld [vmem:[%s15 + $0x8] sm:$0xf]
    %v3622 = vld [vmem:[%s15 + $0xc] sm:$0xf]
    %v3623 = vld [vmem:[%s15 + $0x10] sm:$0xf]
    %v3624 = vld [vmem:[%s15 + $0x14] sm:$0xf]
    %v3625 = vld [vmem:[%s15 + $0x18] sm:$0xf]
    %v3626 = vld [vmem:[%s15 + $0x1c] sm:$0xf]
    %v3627 = vld [vmem:[%s15 + $0x20] sm:$0xf]
    %v3628 = vld [vmem:[%s15 + $0x24] sm:$0xf]
    %v3629 = vld [vmem:[%s15 + $0x28] sm:$0xf]
    %v3630 = vld [vmem:[%s15 + $0x2c] sm:$0xf]
    %v3631 = vld [vmem:[%s15 + $0x30] sm:$0xf]
    %v3632 = vld [vmem:[%s15 + $0x34] sm:$0xf]
    %v3633 = vld [vmem:[%s15 + $0x38] sm:$0xf]
    %v3634 = vld [vmem:[%s15 + $0x3c] sm:$0xf]
    %v3651 = vunpack.c.l.b16 %v3619
    %v3652 = vunpack.c.l.b16 %v3620
    %v3653 = vunpack.c.l.b16 %v3621
    %v3654 = vunpack.c.l.b16 %v3622
    %v3655 = vunpack.c.l.b16 %v3623
    %v3656 = vunpack.c.l.b16 %v3624
    %v3657 = vunpack.c.l.b16 %v3625
    %v3658 = vunpack.c.l.b16 %v3626
    %v3659 = vunpack.c.l.b16 %v3627
    %v3660 = vunpack.c.l.b16 %v3628
    %v3661 = vunpack.c.l.b16 %v3629
    %v3662 = vunpack.c.l.b16 %v3630
    %v3663 = vunpack.c.l.b16 %v3631
    %v3664 = vunpack.c.l.b16 %v3632
    %v3665 = vunpack.c.l.b16 %v3633
    %v3666 = vunpack.c.l.b16 %v3634
    %v3667 = vpack.c.b16 %v3652, %v3651
    %v3668 = vpack.c.b16 %v3654, %v3653
    %v3669 = vpack.c.b16 %v3656, %v3655
    %v3670 = vpack.c.b16 %v3658, %v3657
    %v3671 = vpack.c.b16 %v3660, %v3659
    %v3672 = vpack.c.b16 %v3662, %v3661
    %v3673 = vpack.c.b16 %v3664, %v3663
    %v3674 = vpack.c.b16 %v3666, %v3665
    %3683 = vmatprep.subr.bf16.mxu0 0
    %3684 = vmatpush1.bf16.msra.mxu0 %v3667
    %3685 = vmatprep.subr.bf16.mxu0 0
    %3686 = vmatpush1.bf16.msra.mxu0 %v3668
    %3687 = vmatprep.subr.bf16.mxu0 0
    %3688 = vmatpush1.bf16.msra.mxu0 %v3669
    %3689 = vmatprep.subr.bf16.mxu0 0
    %3690 = vmatpush1.bf16.msra.mxu0 %v3670
    %3691 = vmatprep.subr.bf16.mxu0 0
    %3692 = vmatpush1.bf16.msra.mxu0 %v3671
    %3693 = vmatprep.subr.bf16.mxu0 0
    %3694 = vmatpush1.bf16.msra.mxu0 %v3672
    %3695 = vmatprep.subr.bf16.mxu0 0
    %3696 = vmatpush1.bf16.msra.mxu0 %v3673
    %3697 = vmatprep.subr.bf16.mxu0 0
    %3698 = vmatpush1.bf16.msra.mxu0 %v3674
    %3699 = vmatprep.subr.bf16.mxu0 0
    %3700 = vmatpush1.bf16.msra.mxu0 0
    %3701 = vmatprep.subr.bf16.mxu0 0
    %3702 = vmatpush1.bf16.msra.mxu0 0
    %3703 = vmatprep.subr.bf16.mxu0 0
    %3704 = vmatpush1.bf16.msra.mxu0 0
    %3705 = vmatprep.subr.bf16.mxu0 0
    %3706 = vmatpush1.bf16.msra.mxu0 0
    %3707 = vmatprep.subr.bf16.mxu0 0
    %3708 = vmatpush1.bf16.msra.mxu0 0
    %3709 = vmatprep.subr.bf16.mxu0 0
    %3710 = vmatpush1.bf16.msra.mxu0 0
    %3711 = vmatprep.subr.bf16.mxu0 0
    %3712 = vmatpush1.bf16.msra.mxu0 0
    %3713 = vmatprep.subr.bf16.mxu0 0
    %3714 = vmatpush1.bf16.msra.mxu0 0
    %3715 = vmatprep.mubr.bf16.mxu0 0
    %3716 = vmatmul.mubr.bf16.gmra.mrb[0].mxu0 %v3618
    %v3717 = vpop.f32.mrb[0].mxu0
    %v3718 = vadd.f32 0.0, %v3717
    %v3719 = vpop.f32.mrb[0].mxu0
    %v3720 = vpop.f32.mrb[0].mxu0
    %v3721 = vadd.f32 0.0, %v3720
    %v3722 = vpop.f32.mrb[0].mxu0
    %3723 = vdwg.mxu0
    %v3724 = vpack.c.bf16 %v2141, %v2140
    %v3725 = vld [vmem:[%s16] sm:$0xff]
    %v3726 = vld [vmem:[%s16 + $0x8] sm:$0xff]
    %v3727 = vld [vmem:[%s16 + $0x10] sm:$0xff]
    %v3728 = vld [vmem:[%s16 + $0x18] sm:$0xff]
    %v3729 = vld [vmem:[%s16 + $0x20] sm:$0xff]
    %v3730 = vld [vmem:[%s16 + $0x28] sm:$0xff]
    %v3731 = vld [vmem:[%s16 + $0x30] sm:$0xff]
    %v3732 = vld [vmem:[%s16 + $0x38] sm:$0xff]
    %v3733 = vld [vmem:[%s16 + $0x40] sm:$0xff]
    %v3734 = vld [vmem:[%s16 + $0x48] sm:$0xff]
    %v3735 = vld [vmem:[%s16 + $0x50] sm:$0xff]
    %v3736 = vld [vmem:[%s16 + $0x58] sm:$0xff]
    %v3737 = vld [vmem:[%s16 + $0x60] sm:$0xff]
    %v3738 = vld [vmem:[%s16 + $0x68] sm:$0xff]
    %v3739 = vld [vmem:[%s16 + $0x70] sm:$0xff]
    %v3740 = vld [vmem:[%s16 + $0x78] sm:$0xff]
    %v3757 = vunpack.c.l.b16 %v3725
    %v3758 = vunpack.c.h.b16 %v3725
    %v3759 = vunpack.c.l.b16 %v3726
    %v3760 = vunpack.c.h.b16 %v3726
    %v3761 = vunpack.c.l.b16 %v3727
    %v3762 = vunpack.c.h.b16 %v3727
    %v3763 = vunpack.c.l.b16 %v3728
    %v3764 = vunpack.c.h.b16 %v3728
    %v3765 = vunpack.c.l.b16 %v3729
    %v3766 = vunpack.c.h.b16 %v3729
    %v3767 = vunpack.c.l.b16 %v3730
    %v3768 = vunpack.c.h.b16 %v3730
    %v3769 = vunpack.c.l.b16 %v3731
    %v3770 = vunpack.c.h.b16 %v3731
    %v3771 = vunpack.c.l.b16 %v3732
    %v3772 = vunpack.c.h.b16 %v3732
    %v3773 = vunpack.c.l.b16 %v3733
    %v3774 = vunpack.c.h.b16 %v3733
    %v3775 = vunpack.c.l.b16 %v3734
    %v3776 = vunpack.c.h.b16 %v3734
    %v3777 = vunpack.c.l.b16 %v3735
    %v3778 = vunpack.c.h.b16 %v3735
    %v3779 = vunpack.c.l.b16 %v3736
    %v3780 = vunpack.c.h.b16 %v3736
    %v3781 = vunpack.c.l.b16 %v3737
    %v3782 = vunpack.c.h.b16 %v3737
    %v3783 = vunpack.c.l.b16 %v3738
    %v3784 = vunpack.c.h.b16 %v3738
    %v3785 = vunpack.c.l.b16 %v3739
    %v3786 = vunpack.c.h.b16 %v3739
    %v3787 = vunpack.c.l.b16 %v3740
    %v3788 = vunpack.c.h.b16 %v3740
    %v3789 = vpack.c.b16 %v3759, %v3757
    %v3790 = vpack.c.b16 %v3760, %v3758
    %v3791 = vpack.c.b16 %v3763, %v3761
    %v3792 = vpack.c.b16 %v3764, %v3762
    %v3793 = vpack.c.b16 %v3767, %v3765
    %v3794 = vpack.c.b16 %v3768, %v3766
    %v3795 = vpack.c.b16 %v3771, %v3769
    %v3796 = vpack.c.b16 %v3772, %v3770
    %v3797 = vpack.c.b16 %v3775, %v3773
    %v3798 = vpack.c.b16 %v3776, %v3774
    %v3799 = vpack.c.b16 %v3779, %v3777
    %v3800 = vpack.c.b16 %v3780, %v3778
    %v3801 = vpack.c.b16 %v3783, %v3781
    %v3802 = vpack.c.b16 %v3784, %v3782
    %v3803 = vpack.c.b16 %v3787, %v3785
    %v3804 = vpack.c.b16 %v3788, %v3786
    %3821 = vmatprep.subr.bf16.mxu0 %v3790
    %3822 = vmatpush1.bf16.msra.mxu0 %v3789
    %3823 = vmatprep.subr.bf16.mxu0 %v3792
    %3824 = vmatpush1.bf16.msra.mxu0 %v3791
    %3825 = vmatprep.subr.bf16.mxu0 %v3794
    %3826 = vmatpush1.bf16.msra.mxu0 %v3793
    %3827 = vmatprep.subr.bf16.mxu0 %v3796
    %3828 = vmatpush1.bf16.msra.mxu0 %v3795
    %3829 = vmatprep.subr.bf16.mxu0 %v3798
    %3830 = vmatpush1.bf16.msra.mxu0 %v3797
    %3831 = vmatprep.subr.bf16.mxu0 %v3800
    %3832 = vmatpush1.bf16.msra.mxu0 %v3799
    %3833 = vmatprep.subr.bf16.mxu0 %v3802
    %3834 = vmatpush1.bf16.msra.mxu0 %v3801
    %3835 = vmatprep.subr.bf16.mxu0 %v3804
    %3836 = vmatpush1.bf16.msra.mxu0 %v3803
    %3837 = vmatprep.subr.bf16.mxu0 0
    %3838 = vmatpush1.bf16.msra.mxu0 0
    %3839 = vmatprep.subr.bf16.mxu0 0
    %3840 = vmatpush1.bf16.msra.mxu0 0
    %3841 = vmatprep.subr.bf16.mxu0 0
    %3842 = vmatpush1.bf16.msra.mxu0 0
    %3843 = vmatprep.subr.bf16.mxu0 0
    %3844 = vmatpush1.bf16.msra.mxu0 0
    %3845 = vmatprep.subr.bf16.mxu0 0
    %3846 = vmatpush1.bf16.msra.mxu0 0
    %3847 = vmatprep.subr.bf16.mxu0 0
    %3848 = vmatpush1.bf16.msra.mxu0 0
    %3849 = vmatprep.subr.bf16.mxu0 0
    %3850 = vmatpush1.bf16.msra.mxu0 0
    %3851 = vmatprep.subr.bf16.mxu0 0
    %3852 = vmatpush1.bf16.msra.mxu0 0
    %3853 = vmatprep.mubr.bf16.mxu0 0
    %3854 = vmatmul.mubr.bf16.gmra.mrb[0].mxu0 %v3724
    %v3855 = vpop.f32.mrb[0].mxu0
    %v3856 = vadd.f32 0.0, %v3855
    %v3857 = vpop.f32.mrb[0].mxu0
    %v3858 = vadd.f32 0.0, %v3857
    %v3859 = vpop.f32.mrb[0].mxu0
    %v3860 = vadd.f32 0.0, %v3859
    %v3861 = vpop.f32.mrb[0].mxu0
    %v3862 = vadd.f32 0.0, %v3861
    %3863 = vdwg.mxu0
    %v3864 = vld [vmem:[%s17] sm:$0xf]
    %v3865 = vld [vmem:[%s17 + $0x4] sm:$0xf]
    %v3866 = vld [vmem:[%s17 + $0x8] sm:$0xf]
    %v3867 = vld [vmem:[%s17 + $0xc] sm:$0xf]
    %v3868 = vld [vmem:[%s17 + $0x10] sm:$0xf]
    %v3869 = vld [vmem:[%s17 + $0x14] sm:$0xf]
    %v3870 = vld [vmem:[%s17 + $0x18] sm:$0xf]
    %v3871 = vld [vmem:[%s17 + $0x1c] sm:$0xf]
    %v3872 = vld [vmem:[%s17 + $0x20] sm:$0xf]
    %v3873 = vld [vmem:[%s17 + $0x24] sm:$0xf]
    %v3874 = vld [vmem:[%s17 + $0x28] sm:$0xf]
    %v3875 = vld [vmem:[%s17 + $0x2c] sm:$0xf]
    %v3876 = vld [vmem:[%s17 + $0x30] sm:$0xf]
    %v3877 = vld [vmem:[%s17 + $0x34] sm:$0xf]
    %v3878 = vld [vmem:[%s17 + $0x38] sm:$0xf]
    %v3879 = vld [vmem:[%s17 + $0x3c] sm:$0xf]
    %v3880 = vpack.c.bf16 %v3721, %v3718
    %v3882 = vunpack.c.l.b16 %v3880
    %v3883 = vunpack.c.h.b16 %v3880
    %v3884 = vpack.c.b16 %v3882, %v3882
    %v3885 = vpack.c.b16 %v3883, %v3883
    %v3886 = vpack.c.bf16 %v3860, %v3856
    %v3888 = vunpack.c.l.b16 %v3886
    %v3889 = vunpack.c.h.b16 %v3886
    %v3890 = vpack.c.b16 %v3888, %v3888
    %v3891 = vpack.c.b16 %v3889, %v3889
    %v3892 = vpack.c.bf16 %v3862, %v3858
    %v3894 = vunpack.c.l.b16 %v3892
    %v3895 = vunpack.c.h.b16 %v3892
    %v3896 = vpack.c.b16 %v3894, %v3894
    %v3897 = vpack.c.b16 %v3895, %v3895
    %v3899 = vsel %vm788, %v3884, 0
    %v3902 = vsel %vm788, %v3890, 0
    %3904 = vmatprep.subr.bf16.mxu0 0
    %3905 = vmatpush1.bf16.xpose.msra.mxu0 %v3902
    %3906 = vmatprep.subr.bf16.mxu0 0
    %3907 = vmatpush1.bf16.xpose.msra.mxu0 0
    %3908 = vmatprep.subr.bf16.mxu0 0
    %3909 = vmatpush1.bf16.xpose.msra.mxu0 0
    %3910 = vmatprep.subr.bf16.mxu0 0
    %3911 = vmatpush1.bf16.xpose.msra.mxu0 0
    %3912 = vmatprep.subr.bf16.mxu0 0
    %3913 = vmatpush1.bf16.xpose.msra.mxu0 0
    %3914 = vmatprep.subr.bf16.mxu0 0
    %3915 = vmatpush1.bf16.xpose.msra.mxu0 0
    %3916 = vmatprep.subr.bf16.mxu0 0
    %3917 = vmatpush1.bf16.xpose.msra.mxu0 0
    %3918 = vmatprep.subr.bf16.mxu0 0
    %3919 = vmatpush1.bf16.xpose.msra.mxu0 0
    %3920 = vmatprep.subr.bf16.mxu0 0
    %3921 = vmatpush1.bf16.xpose.msra.mxu0 0
    %3922 = vmatprep.subr.bf16.mxu0 0
    %3923 = vmatpush1.bf16.xpose.msra.mxu0 0
    %3924 = vmatprep.subr.bf16.mxu0 0
    %3925 = vmatpush1.bf16.xpose.msra.mxu0 0
    %3926 = vmatprep.subr.bf16.mxu0 0
    %3927 = vmatpush1.bf16.xpose.msra.mxu0 0
    %3928 = vmatprep.subr.bf16.mxu0 0
    %3929 = vmatpush1.bf16.xpose.msra.mxu0 0
    %3930 = vmatprep.subr.bf16.mxu0 0
    %3931 = vmatpush1.bf16.xpose.msra.mxu0 0
    %3932 = vmatprep.subr.bf16.mxu0 0
    %3933 = vmatpush1.bf16.xpose.msra.mxu0 0
    %3934 = vmatprep.subr.bf16.mxu0 0
    %3935 = vmatpush1.bf16.xpose.msra.mxu0 0
    %3936 = vmatprep.mubr.bf16.mxu0 0
    %3937 = vmatmul.mubr.bf16.gmra.mrb[0].mxu0 %v3899
    %v3938 = vpop.f32.mrb[0].mxu0
    %v3939 = vadd.f32 %v165, %v3938
    %v3940 = vpop.f32.mrb[0].mxu0
    %v3941 = vpop.f32.mrb[0].mxu0
    %v3942 = vpop.f32.mrb[0].mxu0
    %3943 = vdwg.mxu0
    %v3945 = vsel %vm788, %v3885, 0
    %v3948 = vsel %vm788, %v3891, 0
    %3950 = vmatprep.subr.bf16.mxu0 0
    %3951 = vmatpush1.bf16.xpose.msra.mxu0 %v3948
    %3952 = vmatprep.subr.bf16.mxu0 0
    %3953 = vmatpush1.bf16.xpose.msra.mxu0 0
    %3954 = vmatprep.subr.bf16.mxu0 0
    %3955 = vmatpush1.bf16.xpose.msra.mxu0 0
    %3956 = vmatprep.subr.bf16.mxu0 0
    %3957 = vmatpush1.bf16.xpose.msra.mxu0 0
    %3958 = vmatprep.subr.bf16.mxu0 0
    %3959 = vmatpush1.bf16.xpose.msra.mxu0 0
    %3960 = vmatprep.subr.bf16.mxu0 0
    %3961 = vmatpush1.bf16.xpose.msra.mxu0 0
    %3962 = vmatprep.subr.bf16.mxu0 0
    %3963 = vmatpush1.bf16.xpose.msra.mxu0 0
    %3964 = vmatprep.subr.bf16.mxu0 0
    %3965 = vmatpush1.bf16.xpose.msra.mxu0 0
    %3966 = vmatprep.subr.bf16.mxu0 0
    %3967 = vmatpush1.bf16.xpose.msra.mxu0 0
    %3968 = vmatprep.subr.bf16.mxu0 0
    %3969 = vmatpush1.bf16.xpose.msra.mxu0 0
    %3970 = vmatprep.subr.bf16.mxu0 0
    %3971 = vmatpush1.bf16.xpose.msra.mxu0 0
    %3972 = vmatprep.subr.bf16.mxu0 0
    %3973 = vmatpush1.bf16.xpose.msra.mxu0 0
    %3974 = vmatprep.subr.bf16.mxu0 0
    %3975 = vmatpush1.bf16.xpose.msra.mxu0 0
    %3976 = vmatprep.subr.bf16.mxu0 0
    %3977 = vmatpush1.bf16.xpose.msra.mxu0 0
    %3978 = vmatprep.subr.bf16.mxu0 0
    %3979 = vmatpush1.bf16.xpose.msra.mxu0 0
    %3980 = vmatprep.subr.bf16.mxu0 0
    %3981 = vmatpush1.bf16.xpose.msra.mxu0 0
    %3982 = vmatprep.mubr.bf16.mxu0 0
    %3983 = vmatmul.mubr.bf16.gmra.mrb[0].mxu0 %v3945
    %v3984 = vpop.f32.mrb[0].mxu0
    %v3985 = vadd.f32 %v169, %v3984
    %v3986 = vpop.f32.mrb[0].mxu0
    %v3987 = vpop.f32.mrb[0].mxu0
    %v3988 = vpop.f32.mrb[0].mxu0
    %3989 = vdwg.mxu0
    %v3990 = vsel %vm881, %v3939, -inf
    %3991 = vmax.xlane.f32.xlu0 %v3990
    %v3992 = vpop.xlane.xlu0 %3991
    %v3993 = vsel %vm881, %v3985, -inf
    %3994 = vmax.xlane.f32.xlu0 %v3993
    %v3995 = vpop.xlane.xlu0 %3994
    %v3996 = vsub.f32 %v3939, %v3992
    %v3997 = vsub.f32 %v3985, %v3995
    %v3998 = vmul.f32 %v3996, 1.442695
    %v3999 = vpow.pop %v3998
    %v4000 = vmul.f32 %v3997, 1.442695
    %v4001 = vpow.pop %v4000
    %v4002 = vsel %vm881, %v3999, 0.0
    %4003 = vadd.xlane.f32.xlu0 %v4002
    %v4004 = vpop.xlane.xlu0 %4003
    %v4005 = vsel %vm881, %v4001, 0.0
    %4006 = vadd.xlane.f32.xlu0 %v4005
    %v4007 = vpop.xlane.xlu0 %4006
    %v4008 = vrcp.pop %v4004
    %v4009 = vrcp.pop %v4007
    %v4010 = vmul.f32 %v3999, %v4008
    %v4011 = vmul.f32 %v4001, %v4009
    %v4012 = vpack.c.bf16 %v4010, %v4010
    %v4013 = vpack.c.bf16 %v4011, %v4011
    %v4015 = vsel %vm881, %v4012, 0
    %v4018 = vsel %vm909, %v3896, 0
    %4020 = vmatprep.subr.bf16.mxu0 0
    %4021 = vmatpush1.bf16.msra.mxu0 %v4018
    %4022 = vmatprep.subr.bf16.mxu0 0
    %4023 = vmatpush1.bf16.msra.mxu0 0
    %4024 = vmatprep.subr.bf16.mxu0 0
    %4025 = vmatpush1.bf16.msra.mxu0 0
    %4026 = vmatprep.subr.bf16.mxu0 0
    %4027 = vmatpush1.bf16.msra.mxu0 0
    %4028 = vmatprep.subr.bf16.mxu0 0
    %4029 = vmatpush1.bf16.msra.mxu0 0
    %4030 = vmatprep.subr.bf16.mxu0 0
    %4031 = vmatpush1.bf16.msra.mxu0 0
    %4032 = vmatprep.subr.bf16.mxu0 0
    %4033 = vmatpush1.bf16.msra.mxu0 0
    %4034 = vmatprep.subr.bf16.mxu0 0
    %4035 = vmatpush1.bf16.msra.mxu0 0
    %4036 = vmatprep.subr.bf16.mxu0 0
    %4037 = vmatpush1.bf16.msra.mxu0 0
    %4038 = vmatprep.subr.bf16.mxu0 0
    %4039 = vmatpush1.bf16.msra.mxu0 0
    %4040 = vmatprep.subr.bf16.mxu0 0
    %4041 = vmatpush1.bf16.msra.mxu0 0
    %4042 = vmatprep.subr.bf16.mxu0 0
    %4043 = vmatpush1.bf16.msra.mxu0 0
    %4044 = vmatprep.subr.bf16.mxu0 0
    %4045 = vmatpush1.bf16.msra.mxu0 0
    %4046 = vmatprep.subr.bf16.mxu0 0
    %4047 = vmatpush1.bf16.msra.mxu0 0
    %4048 = vmatprep.subr.bf16.mxu0 0
    %4049 = vmatpush1.bf16.msra.mxu0 0
    %4050 = vmatprep.subr.bf16.mxu0 0
    %4051 = vmatpush1.bf16.msra.mxu0 0
    %4052 = vmatprep.mubr.bf16.mxu0 0
    %4053 = vmatmul.mubr.bf16.gmra.mrb[0].mxu0 %v4015
    %v4054 = vpop.f32.mrb[0].mxu0
    %v4055 = vadd.f32 0.0, %v4054
    %v4056 = vpop.f32.mrb[0].mxu0
    %v4057 = vpop.f32.mrb[0].mxu0
    %v4058 = vpop.f32.mrb[0].mxu0
    %4059 = vdwg.mxu0
    %v4061 = vsel %vm881, %v4013, 0
    %v4064 = vsel %vm909, %v3897, 0
    %4066 = vmatprep.subr.bf16.mxu0 0
    %4067 = vmatpush1.bf16.msra.mxu0 %v4064
    %4068 = vmatprep.subr.bf16.mxu0 0
    %4069 = vmatpush1.bf16.msra.mxu0 0
    %4070 = vmatprep.subr.bf16.mxu0 0
    %4071 = vmatpush1.bf16.msra.mxu0 0
    %4072 = vmatprep.subr.bf16.mxu0 0
    %4073 = vmatpush1.bf16.msra.mxu0 0
    %4074 = vmatprep.subr.bf16.mxu0 0
    %4075 = vmatpush1.bf16.msra.mxu0 0
    %4076 = vmatprep.subr.bf16.mxu0 0
    %4077 = vmatpush1.bf16.msra.mxu0 0
    %4078 = vmatprep.subr.bf16.mxu0 0
    %4079 = vmatpush1.bf16.msra.mxu0 0
    %4080 = vmatprep.subr.bf16.mxu0 0
    %4081 = vmatpush1.bf16.msra.mxu0 0
    %4082 = vmatprep.subr.bf16.mxu0 0
    %4083 = vmatpush1.bf16.msra.mxu0 0
    %4084 = vmatprep.subr.bf16.mxu0 0
    %4085 = vmatpush1.bf16.msra.mxu0 0
    %4086 = vmatprep.subr.bf16.mxu0 0
    %4087 = vmatpush1.bf16.msra.mxu0 0
    %4088 = vmatprep.subr.bf16.mxu0 0
    %4089 = vmatpush1.bf16.msra.mxu0 0
    %4090 = vmatprep.subr.bf16.mxu0 0
    %4091 = vmatpush1.bf16.msra.mxu0 0
    %4092 = vmatprep.subr.bf16.mxu0 0
    %4093 = vmatpush1.bf16.msra.mxu0 0
    %4094 = vmatprep.subr.bf16.mxu0 0
    %4095 = vmatpush1.bf16.msra.mxu0 0
    %4096 = vmatprep.subr.bf16.mxu0 0
    %4097 = vmatpush1.bf16.msra.mxu0 0
    %4098 = vmatprep.mubr.bf16.mxu0 0
    %4099 = vmatmul.mubr.bf16.gmra.mrb[0].mxu0 %v4061
    %v4100 = vpop.f32.mrb[0].mxu0
    %v4101 = vadd.f32 0.0, %v4100
    %v4102 = vpop.f32.mrb[0].mxu0
    %v4103 = vpop.f32.mrb[0].mxu0
    %v4104 = vpop.f32.mrb[0].mxu0
    %4105 = vdwg.mxu0
    %4106 = vrot.lane.b32.xlu0 %v3884, 96
    %v4107 = vpop.permute.xlu0 %4106
    %4108 = vrot.lane.b32.xlu0 %v3890, 96
    %v4109 = vpop.permute.xlu0 %4108
    %v4111 = vsel %vm788, %v4107, 0
    %v4114 = vsel %vm788, %v4109, 0
    %4116 = vmatprep.subr.bf16.mxu0 0
    %4117 = vmatpush1.bf16.xpose.msra.mxu0 %v4114
    %4118 = vmatprep.subr.bf16.mxu0 0
    %4119 = vmatpush1.bf16.xpose.msra.mxu0 0
    %4120 = vmatprep.subr.bf16.mxu0 0
    %4121 = vmatpush1.bf16.xpose.msra.mxu0 0
    %4122 = vmatprep.subr.bf16.mxu0 0
    %4123 = vmatpush1.bf16.xpose.msra.mxu0 0
    %4124 = vmatprep.subr.bf16.mxu0 0
    %4125 = vmatpush1.bf16.xpose.msra.mxu0 0
    %4126 = vmatprep.subr.bf16.mxu0 0
    %4127 = vmatpush1.bf16.xpose.msra.mxu0 0
    %4128 = vmatprep.subr.bf16.mxu0 0
    %4129 = vmatpush1.bf16.xpose.msra.mxu0 0
    %4130 = vmatprep.subr.bf16.mxu0 0
    %4131 = vmatpush1.bf16.xpose.msra.mxu0 0
    %4132 = vmatprep.subr.bf16.mxu0 0
    %4133 = vmatpush1.bf16.xpose.msra.mxu0 0
    %4134 = vmatprep.subr.bf16.mxu0 0
    %4135 = vmatpush1.bf16.xpose.msra.mxu0 0
    %4136 = vmatprep.subr.bf16.mxu0 0
    %4137 = vmatpush1.bf16.xpose.msra.mxu0 0
    %4138 = vmatprep.subr.bf16.mxu0 0
    %4139 = vmatpush1.bf16.xpose.msra.mxu0 0
    %4140 = vmatprep.subr.bf16.mxu0 0
    %4141 = vmatpush1.bf16.xpose.msra.mxu0 0
    %4142 = vmatprep.subr.bf16.mxu0 0
    %4143 = vmatpush1.bf16.xpose.msra.mxu0 0
    %4144 = vmatprep.subr.bf16.mxu0 0
    %4145 = vmatpush1.bf16.xpose.msra.mxu0 0
    %4146 = vmatprep.subr.bf16.mxu0 0
    %4147 = vmatpush1.bf16.xpose.msra.mxu0 0
    %4148 = vmatprep.mubr.bf16.mxu0 0
    %4149 = vmatmul.mubr.bf16.gmra.mrb[0].mxu0 %v4111
    %v4150 = vpop.f32.mrb[0].mxu0
    %v4151 = vadd.f32 %v165, %v4150
    %v4152 = vpop.f32.mrb[0].mxu0
    %v4153 = vpop.f32.mrb[0].mxu0
    %v4154 = vpop.f32.mrb[0].mxu0
    %4155 = vdwg.mxu0
    %4156 = vrot.lane.b32.xlu0 %v3885, 96
    %v4157 = vpop.permute.xlu0 %4156
    %4158 = vrot.lane.b32.xlu0 %v3891, 96
    %v4159 = vpop.permute.xlu0 %4158
    %v4161 = vsel %vm788, %v4157, 0
    %v4164 = vsel %vm788, %v4159, 0
    %4166 = vmatprep.subr.bf16.mxu0 0
    %4167 = vmatpush1.bf16.xpose.msra.mxu0 %v4164
    %4168 = vmatprep.subr.bf16.mxu0 0
    %4169 = vmatpush1.bf16.xpose.msra.mxu0 0
    %4170 = vmatprep.subr.bf16.mxu0 0
    %4171 = vmatpush1.bf16.xpose.msra.mxu0 0
    %4172 = vmatprep.subr.bf16.mxu0 0
    %4173 = vmatpush1.bf16.xpose.msra.mxu0 0
    %4174 = vmatprep.subr.bf16.mxu0 0
    %4175 = vmatpush1.bf16.xpose.msra.mxu0 0
    %4176 = vmatprep.subr.bf16.mxu0 0
    %4177 = vmatpush1.bf16.xpose.msra.mxu0 0
    %4178 = vmatprep.subr.bf16.mxu0 0
    %4179 = vmatpush1.bf16.xpose.msra.mxu0 0
    %4180 = vmatprep.subr.bf16.mxu0 0
    %4181 = vmatpush1.bf16.xpose.msra.mxu0 0
    %4182 = vmatprep.subr.bf16.mxu0 0
    %4183 = vmatpush1.bf16.xpose.msra.mxu0 0
    %4184 = vmatprep.subr.bf16.mxu0 0
    %4185 = vmatpush1.bf16.xpose.msra.mxu0 0
    %4186 = vmatprep.subr.bf16.mxu0 0
    %4187 = vmatpush1.bf16.xpose.msra.mxu0 0
    %4188 = vmatprep.subr.bf16.mxu0 0
    %4189 = vmatpush1.bf16.xpose.msra.mxu0 0
    %4190 = vmatprep.subr.bf16.mxu0 0
    %4191 = vmatpush1.bf16.xpose.msra.mxu0 0
    %4192 = vmatprep.subr.bf16.mxu0 0
    %4193 = vmatpush1.bf16.xpose.msra.mxu0 0
    %4194 = vmatprep.subr.bf16.mxu0 0
    %4195 = vmatpush1.bf16.xpose.msra.mxu0 0
    %4196 = vmatprep.subr.bf16.mxu0 0
    %4197 = vmatpush1.bf16.xpose.msra.mxu0 0
    %4198 = vmatprep.mubr.bf16.mxu0 0
    %4199 = vmatmul.mubr.bf16.gmra.mrb[0].mxu0 %v4161
    %v4200 = vpop.f32.mrb[0].mxu0
    %v4201 = vadd.f32 %v169, %v4200
    %v4202 = vpop.f32.mrb[0].mxu0
    %v4203 = vpop.f32.mrb[0].mxu0
    %v4204 = vpop.f32.mrb[0].mxu0
    %4205 = vdwg.mxu0
    %v4206 = vsel %vm881, %v4151, -inf
    %4207 = vmax.xlane.f32.xlu0 %v4206
    %v4208 = vpop.xlane.xlu0 %4207
    %v4209 = vsel %vm881, %v4201, -inf
    %4210 = vmax.xlane.f32.xlu0 %v4209
    %v4211 = vpop.xlane.xlu0 %4210
    %v4212 = vsub.f32 %v4151, %v4208
    %v4213 = vsub.f32 %v4201, %v4211
    %v4214 = vmul.f32 %v4212, 1.442695
    %v4215 = vpow.pop %v4214
    %v4216 = vmul.f32 %v4213, 1.442695
    %v4217 = vpow.pop %v4216
    %v4218 = vsel %vm881, %v4215, 0.0
    %4219 = vadd.xlane.f32.xlu0 %v4218
    %v4220 = vpop.xlane.xlu0 %4219
    %v4221 = vsel %vm881, %v4217, 0.0
    %4222 = vadd.xlane.f32.xlu0 %v4221
    %v4223 = vpop.xlane.xlu0 %4222
    %v4224 = vrcp.pop %v4220
    %v4225 = vrcp.pop %v4223
    %v4226 = vmul.f32 %v4215, %v4224
    %v4227 = vmul.f32 %v4217, %v4225
    %v4228 = vpack.c.bf16 %v4226, %v4226
    %v4229 = vpack.c.bf16 %v4227, %v4227
    %4230 = vrot.lane.b32.xlu0 %v3896, 96
    %v4231 = vpop.permute.xlu0 %4230
    %v4233 = vsel %vm881, %v4228, 0
    %v4236 = vsel %vm909, %v4231, 0
    %4238 = vmatprep.subr.bf16.mxu0 0
    %4239 = vmatpush1.bf16.msra.mxu0 %v4236
    %4240 = vmatprep.subr.bf16.mxu0 0
    %4241 = vmatpush1.bf16.msra.mxu0 0
    %4242 = vmatprep.subr.bf16.mxu0 0
    %4243 = vmatpush1.bf16.msra.mxu0 0
    %4244 = vmatprep.subr.bf16.mxu0 0
    %4245 = vmatpush1.bf16.msra.mxu0 0
    %4246 = vmatprep.subr.bf16.mxu0 0
    %4247 = vmatpush1.bf16.msra.mxu0 0
    %4248 = vmatprep.subr.bf16.mxu0 0
    %4249 = vmatpush1.bf16.msra.mxu0 0
    %4250 = vmatprep.subr.bf16.mxu0 0
    %4251 = vmatpush1.bf16.msra.mxu0 0
    %4252 = vmatprep.subr.bf16.mxu0 0
    %4253 = vmatpush1.bf16.msra.mxu0 0
    %4254 = vmatprep.subr.bf16.mxu0 0
    %4255 = vmatpush1.bf16.msra.mxu0 0
    %4256 = vmatprep.subr.bf16.mxu0 0
    %4257 = vmatpush1.bf16.msra.mxu0 0
    %4258 = vmatprep.subr.bf16.mxu0 0
    %4259 = vmatpush1.bf16.msra.mxu0 0
    %4260 = vmatprep.subr.bf16.mxu0 0
    %4261 = vmatpush1.bf16.msra.mxu0 0
    %4262 = vmatprep.subr.bf16.mxu0 0
    %4263 = vmatpush1.bf16.msra.mxu0 0
    %4264 = vmatprep.subr.bf16.mxu0 0
    %4265 = vmatpush1.bf16.msra.mxu0 0
    %4266 = vmatprep.subr.bf16.mxu0 0
    %4267 = vmatpush1.bf16.msra.mxu0 0
    %4268 = vmatprep.subr.bf16.mxu0 0
    %4269 = vmatpush1.bf16.msra.mxu0 0
    %4270 = vmatprep.mubr.bf16.mxu0 0
    %4271 = vmatmul.mubr.bf16.gmra.mrb[0].mxu0 %v4233
    %v4272 = vpop.f32.mrb[0].mxu0
    %v4273 = vadd.f32 0.0, %v4272
    %v4274 = vpop.f32.mrb[0].mxu0
    %v4275 = vpop.f32.mrb[0].mxu0
    %v4276 = vpop.f32.mrb[0].mxu0
    %4277 = vdwg.mxu0
    %4278 = vrot.lane.b32.xlu0 %v3897, 96
    %v4279 = vpop.permute.xlu0 %4278
    %v4281 = vsel %vm881, %v4229, 0
    %v4284 = vsel %vm909, %v4279, 0
    %4286 = vmatprep.subr.bf16.mxu0 0
    %4287 = vmatpush1.bf16.msra.mxu0 %v4284
    %4288 = vmatprep.subr.bf16.mxu0 0
    %4289 = vmatpush1.bf16.msra.mxu0 0
    %4290 = vmatprep.subr.bf16.mxu0 0
    %4291 = vmatpush1.bf16.msra.mxu0 0
    %4292 = vmatprep.subr.bf16.mxu0 0
    %4293 = vmatpush1.bf16.msra.mxu0 0
    %4294 = vmatprep.subr.bf16.mxu0 0
    %4295 = vmatpush1.bf16.msra.mxu0 0
    %4296 = vmatprep.subr.bf16.mxu0 0
    %4297 = vmatpush1.bf16.msra.mxu0 0
    %4298 = vmatprep.subr.bf16.mxu0 0
    %4299 = vmatpush1.bf16.msra.mxu0 0
    %4300 = vmatprep.subr.bf16.mxu0 0
    %4301 = vmatpush1.bf16.msra.mxu0 0
    %4302 = vmatprep.subr.bf16.mxu0 0
    %4303 = vmatpush1.bf16.msra.mxu0 0
    %4304 = vmatprep.subr.bf16.mxu0 0
    %4305 = vmatpush1.bf16.msra.mxu0 0
    %4306 = vmatprep.subr.bf16.mxu0 0
    %4307 = vmatpush1.bf16.msra.mxu0 0
    %4308 = vmatprep.subr.bf16.mxu0 0
    %4309 = vmatpush1.bf16.msra.mxu0 0
    %4310 = vmatprep.subr.bf16.mxu0 0
    %4311 = vmatpush1.bf16.msra.mxu0 0
    %4312 = vmatprep.subr.bf16.mxu0 0
    %4313 = vmatpush1.bf16.msra.mxu0 0
    %4314 = vmatprep.subr.bf16.mxu0 0
    %4315 = vmatpush1.bf16.msra.mxu0 0
    %4316 = vmatprep.subr.bf16.mxu0 0
    %4317 = vmatpush1.bf16.msra.mxu0 0
    %4318 = vmatprep.mubr.bf16.mxu0 0
    %4319 = vmatmul.mubr.bf16.gmra.mrb[0].mxu0 %v4281
    %v4320 = vpop.f32.mrb[0].mxu0
    %v4321 = vadd.f32 0.0, %v4320
    %v4322 = vpop.f32.mrb[0].mxu0
    %v4323 = vpop.f32.mrb[0].mxu0
    %v4324 = vpop.f32.mrb[0].mxu0
    %4325 = vdwg.mxu0
    %4326 = vrot.lane.b32.xlu0 %v3884, 64
    %v4327 = vpop.permute.xlu0 %4326
    %4328 = vrot.lane.b32.xlu0 %v3890, 64
    %v4329 = vpop.permute.xlu0 %4328
    %v4331 = vsel %vm788, %v4327, 0
    %v4334 = vsel %vm788, %v4329, 0
    %4336 = vmatprep.subr.bf16.mxu0 0
    %4337 = vmatpush1.bf16.xpose.msra.mxu0 %v4334
    %4338 = vmatprep.subr.bf16.mxu0 0
    %4339 = vmatpush1.bf16.xpose.msra.mxu0 0
    %4340 = vmatprep.subr.bf16.mxu0 0
    %4341 = vmatpush1.bf16.xpose.msra.mxu0 0
    %4342 = vmatprep.subr.bf16.mxu0 0
    %4343 = vmatpush1.bf16.xpose.msra.mxu0 0
    %4344 = vmatprep.subr.bf16.mxu0 0
    %4345 = vmatpush1.bf16.xpose.msra.mxu0 0
    %4346 = vmatprep.subr.bf16.mxu0 0
    %4347 = vmatpush1.bf16.xpose.msra.mxu0 0
    %4348 = vmatprep.subr.bf16.mxu0 0
    %4349 = vmatpush1.bf16.xpose.msra.mxu0 0
    %4350 = vmatprep.subr.bf16.mxu0 0
    %4351 = vmatpush1.bf16.xpose.msra.mxu0 0
    %4352 = vmatprep.subr.bf16.mxu0 0
    %4353 = vmatpush1.bf16.xpose.msra.mxu0 0
    %4354 = vmatprep.subr.bf16.mxu0 0
    %4355 = vmatpush1.bf16.xpose.msra.mxu0 0
    %4356 = vmatprep.subr.bf16.mxu0 0
    %4357 = vmatpush1.bf16.xpose.msra.mxu0 0
    %4358 = vmatprep.subr.bf16.mxu0 0
    %4359 = vmatpush1.bf16.xpose.msra.mxu0 0
    %4360 = vmatprep.subr.bf16.mxu0 0
    %4361 = vmatpush1.bf16.xpose.msra.mxu0 0
    %4362 = vmatprep.subr.bf16.mxu0 0
    %4363 = vmatpush1.bf16.xpose.msra.mxu0 0
    %4364 = vmatprep.subr.bf16.mxu0 0
    %4365 = vmatpush1.bf16.xpose.msra.mxu0 0
    %4366 = vmatprep.subr.bf16.mxu0 0
    %4367 = vmatpush1.bf16.xpose.msra.mxu0 0
    %4368 = vmatprep.mubr.bf16.mxu0 0
    %4369 = vmatmul.mubr.bf16.gmra.mrb[0].mxu0 %v4331
    %v4370 = vpop.f32.mrb[0].mxu0
    %v4371 = vadd.f32 %v165, %v4370
    %v4372 = vpop.f32.mrb[0].mxu0
    %v4373 = vpop.f32.mrb[0].mxu0
    %v4374 = vpop.f32.mrb[0].mxu0
    %4375 = vdwg.mxu0
    %4376 = vrot.lane.b32.xlu0 %v3885, 64
    %v4377 = vpop.permute.xlu0 %4376
    %4378 = vrot.lane.b32.xlu0 %v3891, 64
    %v4379 = vpop.permute.xlu0 %4378
    %v4381 = vsel %vm788, %v4377, 0
    %v4384 = vsel %vm788, %v4379, 0
    %4386 = vmatprep.subr.bf16.mxu0 0
    %4387 = vmatpush1.bf16.xpose.msra.mxu0 %v4384
    %4388 = vmatprep.subr.bf16.mxu0 0
    %4389 = vmatpush1.bf16.xpose.msra.mxu0 0
    %4390 = vmatprep.subr.bf16.mxu0 0
    %4391 = vmatpush1.bf16.xpose.msra.mxu0 0
    %4392 = vmatprep.subr.bf16.mxu0 0
    %4393 = vmatpush1.bf16.xpose.msra.mxu0 0
    %4394 = vmatprep.subr.bf16.mxu0 0
    %4395 = vmatpush1.bf16.xpose.msra.mxu0 0
    %4396 = vmatprep.subr.bf16.mxu0 0
    %4397 = vmatpush1.bf16.xpose.msra.mxu0 0
    %4398 = vmatprep.subr.bf16.mxu0 0
    %4399 = vmatpush1.bf16.xpose.msra.mxu0 0
    %4400 = vmatprep.subr.bf16.mxu0 0
    %4401 = vmatpush1.bf16.xpose.msra.mxu0 0
    %4402 = vmatprep.subr.bf16.mxu0 0
    %4403 = vmatpush1.bf16.xpose.msra.mxu0 0
    %4404 = vmatprep.subr.bf16.mxu0 0
    %4405 = vmatpush1.bf16.xpose.msra.mxu0 0
    %4406 = vmatprep.subr.bf16.mxu0 0
    %4407 = vmatpush1.bf16.xpose.msra.mxu0 0
    %4408 = vmatprep.subr.bf16.mxu0 0
    %4409 = vmatpush1.bf16.xpose.msra.mxu0 0
    %4410 = vmatprep.subr.bf16.mxu0 0
    %4411 = vmatpush1.bf16.xpose.msra.mxu0 0
    %4412 = vmatprep.subr.bf16.mxu0 0
    %4413 = vmatpush1.bf16.xpose.msra.mxu0 0
    %4414 = vmatprep.subr.bf16.mxu0 0
    %4415 = vmatpush1.bf16.xpose.msra.mxu0 0
    %4416 = vmatprep.subr.bf16.mxu0 0
    %4417 = vmatpush1.bf16.xpose.msra.mxu0 0
    %4418 = vmatprep.mubr.bf16.mxu0 0
    %4419 = vmatmul.mubr.bf16.gmra.mrb[0].mxu0 %v4381
    %v4420 = vpop.f32.mrb[0].mxu0
    %v4421 = vadd.f32 %v169, %v4420
    %v4422 = vpop.f32.mrb[0].mxu0
    %v4423 = vpop.f32.mrb[0].mxu0
    %v4424 = vpop.f32.mrb[0].mxu0
    %4425 = vdwg.mxu0
    %v4426 = vsel %vm881, %v4371, -inf
    %4427 = vmax.xlane.f32.xlu0 %v4426
    %v4428 = vpop.xlane.xlu0 %4427
    %v4429 = vsel %vm881, %v4421, -inf
    %4430 = vmax.xlane.f32.xlu0 %v4429
    %v4431 = vpop.xlane.xlu0 %4430
    %v4432 = vsub.f32 %v4371, %v4428
    %v4433 = vsub.f32 %v4421, %v4431
    %v4434 = vmul.f32 %v4432, 1.442695
    %v4435 = vpow.pop %v4434
    %v4436 = vmul.f32 %v4433, 1.442695
    %v4437 = vpow.pop %v4436
    %v4438 = vsel %vm881, %v4435, 0.0
    %4439 = vadd.xlane.f32.xlu0 %v4438
    %v4440 = vpop.xlane.xlu0 %4439
    %v4441 = vsel %vm881, %v4437, 0.0
    %4442 = vadd.xlane.f32.xlu0 %v4441
    %v4443 = vpop.xlane.xlu0 %4442
    %v4444 = vrcp.pop %v4440
    %v4445 = vrcp.pop %v4443
    %v4446 = vmul.f32 %v4435, %v4444
    %v4447 = vmul.f32 %v4437, %v4445
    %v4448 = vpack.c.bf16 %v4446, %v4446
    %v4449 = vpack.c.bf16 %v4447, %v4447
    %4450 = vrot.lane.b32.xlu0 %v3896, 64
    %v4451 = vpop.permute.xlu0 %4450
    %v4453 = vsel %vm881, %v4448, 0
    %v4456 = vsel %vm909, %v4451, 0
    %4458 = vmatprep.subr.bf16.mxu0 0
    %4459 = vmatpush1.bf16.msra.mxu0 %v4456
    %4460 = vmatprep.subr.bf16.mxu0 0
    %4461 = vmatpush1.bf16.msra.mxu0 0
    %4462 = vmatprep.subr.bf16.mxu0 0
    %4463 = vmatpush1.bf16.msra.mxu0 0
    %4464 = vmatprep.subr.bf16.mxu0 0
    %4465 = vmatpush1.bf16.msra.mxu0 0
    %4466 = vmatprep.subr.bf16.mxu0 0
    %4467 = vmatpush1.bf16.msra.mxu0 0
    %4468 = vmatprep.subr.bf16.mxu0 0
    %4469 = vmatpush1.bf16.msra.mxu0 0
    %4470 = vmatprep.subr.bf16.mxu0 0
    %4471 = vmatpush1.bf16.msra.mxu0 0
    %4472 = vmatprep.subr.bf16.mxu0 0
    %4473 = vmatpush1.bf16.msra.mxu0 0
    %4474 = vmatprep.subr.bf16.mxu0 0
    %4475 = vmatpush1.bf16.msra.mxu0 0
    %4476 = vmatprep.subr.bf16.mxu0 0
    %4477 = vmatpush1.bf16.msra.mxu0 0
    %4478 = vmatprep.subr.bf16.mxu0 0
    %4479 = vmatpush1.bf16.msra.mxu0 0
    %4480 = vmatprep.subr.bf16.mxu0 0
    %4481 = vmatpush1.bf16.msra.mxu0 0
    %4482 = vmatprep.subr.bf16.mxu0 0
    %4483 = vmatpush1.bf16.msra.mxu0 0
    %4484 = vmatprep.subr.bf16.mxu0 0
    %4485 = vmatpush1.bf16.msra.mxu0 0
    %4486 = vmatprep.subr.bf16.mxu0 0
    %4487 = vmatpush1.bf16.msra.mxu0 0
    %4488 = vmatprep.subr.bf16.mxu0 0
    %4489 = vmatpush1.bf16.msra.mxu0 0
    %4490 = vmatprep.mubr.bf16.mxu0 0
    %4491 = vmatmul.mubr.bf16.gmra.mrb[0].mxu0 %v4453
    %v4492 = vpop.f32.mrb[0].mxu0
    %v4493 = vadd.f32 0.0, %v4492
    %v4494 = vpop.f32.mrb[0].mxu0
    %v4495 = vpop.f32.mrb[0].mxu0
    %v4496 = vpop.f32.mrb[0].mxu0
    %4497 = vdwg.mxu0
    %4498 = vrot.lane.b32.xlu0 %v3897, 64
    %v4499 = vpop.permute.xlu0 %4498
    %v4501 = vsel %vm881, %v4449, 0
    %v4504 = vsel %vm909, %v4499, 0
    %4506 = vmatprep.subr.bf16.mxu0 0
    %4507 = vmatpush1.bf16.msra.mxu0 %v4504
    %4508 = vmatprep.subr.bf16.mxu0 0
    %4509 = vmatpush1.bf16.msra.mxu0 0
    %4510 = vmatprep.subr.bf16.mxu0 0
    %4511 = vmatpush1.bf16.msra.mxu0 0
    %4512 = vmatprep.subr.bf16.mxu0 0
    %4513 = vmatpush1.bf16.msra.mxu0 0
    %4514 = vmatprep.subr.bf16.mxu0 0
    %4515 = vmatpush1.bf16.msra.mxu0 0
    %4516 = vmatprep.subr.bf16.mxu0 0
    %4517 = vmatpush1.bf16.msra.mxu0 0
    %4518 = vmatprep.subr.bf16.mxu0 0
    %4519 = vmatpush1.bf16.msra.mxu0 0
    %4520 = vmatprep.subr.bf16.mxu0 0
    %4521 = vmatpush1.bf16.msra.mxu0 0
    %4522 = vmatprep.subr.bf16.mxu0 0
    %4523 = vmatpush1.bf16.msra.mxu0 0
    %4524 = vmatprep.subr.bf16.mxu0 0
    %4525 = vmatpush1.bf16.msra.mxu0 0
    %4526 = vmatprep.subr.bf16.mxu0 0
    %4527 = vmatpush1.bf16.msra.mxu0 0
    %4528 = vmatprep.subr.bf16.mxu0 0
    %4529 = vmatpush1.bf16.msra.mxu0 0
    %4530 = vmatprep.subr.bf16.mxu0 0
    %4531 = vmatpush1.bf16.msra.mxu0 0
    %4532 = vmatprep.subr.bf16.mxu0 0
    %4533 = vmatpush1.bf16.msra.mxu0 0
    %4534 = vmatprep.subr.bf16.mxu0 0
    %4535 = vmatpush1.bf16.msra.mxu0 0
    %4536 = vmatprep.subr.bf16.mxu0 0
    %4537 = vmatpush1.bf16.msra.mxu0 0
    %4538 = vmatprep.mubr.bf16.mxu0 0
    %4539 = vmatmul.mubr.bf16.gmra.mrb[0].mxu0 %v4501
    %v4540 = vpop.f32.mrb[0].mxu0
    %v4541 = vadd.f32 0.0, %v4540
    %v4542 = vpop.f32.mrb[0].mxu0
    %v4543 = vpop.f32.mrb[0].mxu0
    %v4544 = vpop.f32.mrb[0].mxu0
    %4545 = vdwg.mxu0
    %4546 = vrot.lane.b32.xlu0 %v3884, 32
    %v4547 = vpop.permute.xlu0 %4546
    %4548 = vrot.lane.b32.xlu0 %v3890, 32
    %v4549 = vpop.permute.xlu0 %4548
    %v4551 = vsel %vm788, %v4547, 0
    %v4554 = vsel %vm788, %v4549, 0
    %4556 = vmatprep.subr.bf16.mxu0 0
    %4557 = vmatpush1.bf16.xpose.msra.mxu0 %v4554
    %4558 = vmatprep.subr.bf16.mxu0 0
    %4559 = vmatpush1.bf16.xpose.msra.mxu0 0
    %4560 = vmatprep.subr.bf16.mxu0 0
    %4561 = vmatpush1.bf16.xpose.msra.mxu0 0
    %4562 = vmatprep.subr.bf16.mxu0 0
    %4563 = vmatpush1.bf16.xpose.msra.mxu0 0
    %4564 = vmatprep.subr.bf16.mxu0 0
    %4565 = vmatpush1.bf16.xpose.msra.mxu0 0
    %4566 = vmatprep.subr.bf16.mxu0 0
    %4567 = vmatpush1.bf16.xpose.msra.mxu0 0
    %4568 = vmatprep.subr.bf16.mxu0 0
    %4569 = vmatpush1.bf16.xpose.msra.mxu0 0
    %4570 = vmatprep.subr.bf16.mxu0 0
    %4571 = vmatpush1.bf16.xpose.msra.mxu0 0
    %4572 = vmatprep.subr.bf16.mxu0 0
    %4573 = vmatpush1.bf16.xpose.msra.mxu0 0
    %4574 = vmatprep.subr.bf16.mxu0 0
    %4575 = vmatpush1.bf16.xpose.msra.mxu0 0
    %4576 = vmatprep.subr.bf16.mxu0 0
    %4577 = vmatpush1.bf16.xpose.msra.mxu0 0
    %4578 = vmatprep.subr.bf16.mxu0 0
    %4579 = vmatpush1.bf16.xpose.msra.mxu0 0
    %4580 = vmatprep.subr.bf16.mxu0 0
    %4581 = vmatpush1.bf16.xpose.msra.mxu0 0
    %4582 = vmatprep.subr.bf16.mxu0 0
    %4583 = vmatpush1.bf16.xpose.msra.mxu0 0
    %4584 = vmatprep.subr.bf16.mxu0 0
    %4585 = vmatpush1.bf16.xpose.msra.mxu0 0
    %4586 = vmatprep.subr.bf16.mxu0 0
    %4587 = vmatpush1.bf16.xpose.msra.mxu0 0
    %4588 = vmatprep.mubr.bf16.mxu0 0
    %4589 = vmatmul.mubr.bf16.gmra.mrb[0].mxu0 %v4551
    %v4590 = vpop.f32.mrb[0].mxu0
    %v4591 = vadd.f32 %v165, %v4590
    %v4592 = vpop.f32.mrb[0].mxu0
    %v4593 = vpop.f32.mrb[0].mxu0
    %v4594 = vpop.f32.mrb[0].mxu0
    %4595 = vdwg.mxu0
    %4596 = vrot.lane.b32.xlu0 %v3885, 32
    %v4597 = vpop.permute.xlu0 %4596
    %4598 = vrot.lane.b32.xlu0 %v3891, 32
    %v4599 = vpop.permute.xlu0 %4598
    %v4601 = vsel %vm788, %v4597, 0
    %v4604 = vsel %vm788, %v4599, 0
    %4606 = vmatprep.subr.bf16.mxu0 0
    %4607 = vmatpush1.bf16.xpose.msra.mxu0 %v4604
    %4608 = vmatprep.subr.bf16.mxu0 0
    %4609 = vmatpush1.bf16.xpose.msra.mxu0 0
    %4610 = vmatprep.subr.bf16.mxu0 0
    %4611 = vmatpush1.bf16.xpose.msra.mxu0 0
    %4612 = vmatprep.subr.bf16.mxu0 0
    %4613 = vmatpush1.bf16.xpose.msra.mxu0 0
    %4614 = vmatprep.subr.bf16.mxu0 0
    %4615 = vmatpush1.bf16.xpose.msra.mxu0 0
    %4616 = vmatprep.subr.bf16.mxu0 0
    %4617 = vmatpush1.bf16.xpose.msra.mxu0 0
    %4618 = vmatprep.subr.bf16.mxu0 0
    %4619 = vmatpush1.bf16.xpose.msra.mxu0 0
    %4620 = vmatprep.subr.bf16.mxu0 0
    %4621 = vmatpush1.bf16.xpose.msra.mxu0 0
    %4622 = vmatprep.subr.bf16.mxu0 0
    %4623 = vmatpush1.bf16.xpose.msra.mxu0 0
    %4624 = vmatprep.subr.bf16.mxu0 0
    %4625 = vmatpush1.bf16.xpose.msra.mxu0 0
    %4626 = vmatprep.subr.bf16.mxu0 0
    %4627 = vmatpush1.bf16.xpose.msra.mxu0 0
    %4628 = vmatprep.subr.bf16.mxu0 0
    %4629 = vmatpush1.bf16.xpose.msra.mxu0 0
    %4630 = vmatprep.subr.bf16.mxu0 0
    %4631 = vmatpush1.bf16.xpose.msra.mxu0 0
    %4632 = vmatprep.subr.bf16.mxu0 0
    %4633 = vmatpush1.bf16.xpose.msra.mxu0 0
    %4634 = vmatprep.subr.bf16.mxu0 0
    %4635 = vmatpush1.bf16.xpose.msra.mxu0 0
    %4636 = vmatprep.subr.bf16.mxu0 0
    %4637 = vmatpush1.bf16.xpose.msra.mxu0 0
    %4638 = vmatprep.mubr.bf16.mxu0 0
    %4639 = vmatmul.mubr.bf16.gmra.mrb[0].mxu0 %v4601
    %v4640 = vpop.f32.mrb[0].mxu0
    %v4641 = vadd.f32 %v169, %v4640
    %v4642 = vpop.f32.mrb[0].mxu0
    %v4643 = vpop.f32.mrb[0].mxu0
    %v4644 = vpop.f32.mrb[0].mxu0
    %4645 = vdwg.mxu0
    %v4646 = vsel %vm881, %v4591, -inf
    %4647 = vmax.xlane.f32.xlu0 %v4646
    %v4648 = vpop.xlane.xlu0 %4647
    %v4649 = vsel %vm881, %v4641, -inf
    %4650 = vmax.xlane.f32.xlu0 %v4649
    %v4651 = vpop.xlane.xlu0 %4650
    %v4652 = vsub.f32 %v4591, %v4648
    %v4653 = vsub.f32 %v4641, %v4651
    %v4654 = vmul.f32 %v4652, 1.442695
    %v4655 = vpow.pop %v4654
    %v4656 = vmul.f32 %v4653, 1.442695
    %v4657 = vpow.pop %v4656
    %v4658 = vsel %vm881, %v4655, 0.0
    %4659 = vadd.xlane.f32.xlu0 %v4658
    %v4660 = vpop.xlane.xlu0 %4659
    %v4661 = vsel %vm881, %v4657, 0.0
    %4662 = vadd.xlane.f32.xlu0 %v4661
    %v4663 = vpop.xlane.xlu0 %4662
    %v4664 = vrcp.pop %v4660
    %v4665 = vrcp.pop %v4663
    %v4666 = vmul.f32 %v4655, %v4664
    %v4667 = vmul.f32 %v4657, %v4665
    %v4668 = vpack.c.bf16 %v4666, %v4666
    %v4669 = vpack.c.bf16 %v4667, %v4667
    %4670 = vrot.lane.b32.xlu0 %v3896, 32
    %v4671 = vpop.permute.xlu0 %4670
    %v4673 = vsel %vm881, %v4668, 0
    %v4676 = vsel %vm909, %v4671, 0
    %4678 = vmatprep.subr.bf16.mxu0 0
    %4679 = vmatpush1.bf16.msra.mxu0 %v4676
    %4680 = vmatprep.subr.bf16.mxu0 0
    %4681 = vmatpush1.bf16.msra.mxu0 0
    %4682 = vmatprep.subr.bf16.mxu0 0
    %4683 = vmatpush1.bf16.msra.mxu0 0
    %4684 = vmatprep.subr.bf16.mxu0 0
    %4685 = vmatpush1.bf16.msra.mxu0 0
    %4686 = vmatprep.subr.bf16.mxu0 0
    %4687 = vmatpush1.bf16.msra.mxu0 0
    %4688 = vmatprep.subr.bf16.mxu0 0
    %4689 = vmatpush1.bf16.msra.mxu0 0
    %4690 = vmatprep.subr.bf16.mxu0 0
    %4691 = vmatpush1.bf16.msra.mxu0 0
    %4692 = vmatprep.subr.bf16.mxu0 0
    %4693 = vmatpush1.bf16.msra.mxu0 0
    %4694 = vmatprep.subr.bf16.mxu0 0
    %4695 = vmatpush1.bf16.msra.mxu0 0
    %4696 = vmatprep.subr.bf16.mxu0 0
    %4697 = vmatpush1.bf16.msra.mxu0 0
    %4698 = vmatprep.subr.bf16.mxu0 0
    %4699 = vmatpush1.bf16.msra.mxu0 0
    %4700 = vmatprep.subr.bf16.mxu0 0
    %4701 = vmatpush1.bf16.msra.mxu0 0
    %4702 = vmatprep.subr.bf16.mxu0 0
    %4703 = vmatpush1.bf16.msra.mxu0 0
    %4704 = vmatprep.subr.bf16.mxu0 0
    %4705 = vmatpush1.bf16.msra.mxu0 0
    %4706 = vmatprep.subr.bf16.mxu0 0
    %4707 = vmatpush1.bf16.msra.mxu0 0
    %4708 = vmatprep.subr.bf16.mxu0 0
    %4709 = vmatpush1.bf16.msra.mxu0 0
    %4710 = vmatprep.mubr.bf16.mxu0 0
    %4711 = vmatmul.mubr.bf16.gmra.mrb[0].mxu0 %v4673
    %v4712 = vpop.f32.mrb[0].mxu0
    %v4713 = vadd.f32 0.0, %v4712
    %v4714 = vpop.f32.mrb[0].mxu0
    %v4715 = vpop.f32.mrb[0].mxu0
    %v4716 = vpop.f32.mrb[0].mxu0
    %4717 = vdwg.mxu0
    %4718 = vrot.lane.b32.xlu0 %v3897, 32
    %v4719 = vpop.permute.xlu0 %4718
    %v4721 = vsel %vm881, %v4669, 0
    %v4724 = vsel %vm909, %v4719, 0
    %4726 = vmatprep.subr.bf16.mxu0 0
    %4727 = vmatpush1.bf16.msra.mxu0 %v4724
    %4728 = vmatprep.subr.bf16.mxu0 0
    %4729 = vmatpush1.bf16.msra.mxu0 0
    %4730 = vmatprep.subr.bf16.mxu0 0
    %4731 = vmatpush1.bf16.msra.mxu0 0
    %4732 = vmatprep.subr.bf16.mxu0 0
    %4733 = vmatpush1.bf16.msra.mxu0 0
    %4734 = vmatprep.subr.bf16.mxu0 0
    %4735 = vmatpush1.bf16.msra.mxu0 0
    %4736 = vmatprep.subr.bf16.mxu0 0
    %4737 = vmatpush1.bf16.msra.mxu0 0
    %4738 = vmatprep.subr.bf16.mxu0 0
    %4739 = vmatpush1.bf16.msra.mxu0 0
    %4740 = vmatprep.subr.bf16.mxu0 0
    %4741 = vmatpush1.bf16.msra.mxu0 0
    %4742 = vmatprep.subr.bf16.mxu0 0
    %4743 = vmatpush1.bf16.msra.mxu0 0
    %4744 = vmatprep.subr.bf16.mxu0 0
    %4745 = vmatpush1.bf16.msra.mxu0 0
    %4746 = vmatprep.subr.bf16.mxu0 0
    %4747 = vmatpush1.bf16.msra.mxu0 0
    %4748 = vmatprep.subr.bf16.mxu0 0
    %4749 = vmatpush1.bf16.msra.mxu0 0
    %4750 = vmatprep.subr.bf16.mxu0 0
    %4751 = vmatpush1.bf16.msra.mxu0 0
    %4752 = vmatprep.subr.bf16.mxu0 0
    %4753 = vmatpush1.bf16.msra.mxu0 0
    %4754 = vmatprep.subr.bf16.mxu0 0
    %4755 = vmatpush1.bf16.msra.mxu0 0
    %4756 = vmatprep.subr.bf16.mxu0 0
    %4757 = vmatpush1.bf16.msra.mxu0 0
    %4758 = vmatprep.mubr.bf16.mxu0 0
    %4759 = vmatmul.mubr.bf16.gmra.mrb[0].mxu0 %v4721
    %v4760 = vpop.f32.mrb[0].mxu0
    %v4761 = vadd.f32 0.0, %v4760
    %v4762 = vpop.f32.mrb[0].mxu0
    %v4763 = vpop.f32.mrb[0].mxu0
    %v4764 = vpop.f32.mrb[0].mxu0
    %4765 = vdwg.mxu0
    %4768 = vrot.lane.b32.xlu0 %v4273, 32
    %v4769 = vpop.permute.xlu0 %4768
    %4770 = vrot.lane.b32.xlu0 %v4321, 32
    %v4771 = vpop.permute.xlu0 %4770
    %4776 = vrot.lane.b32.xlu0 %v4493, 64
    %v4777 = vpop.permute.xlu0 %4776
    %4778 = vrot.lane.b32.xlu0 %v4541, 64
    %v4779 = vpop.permute.xlu0 %4778
    %4784 = vrot.lane.b32.xlu0 %v4713, 96
    %v4785 = vpop.permute.xlu0 %4784
    %4786 = vrot.lane.b32.xlu0 %v4761, 96
    %v4787 = vpop.permute.xlu0 %4786
    %v4790 = vsel %vm788, %v4055, %v4769
    %v4791 = vsel %vm788, %v4101, %v4771
    %v4792 = vsel %vm1685, %v4790, %v4777
    %v4793 = vsel %vm1685, %v4791, %v4779
    %v4794 = vsel %vm1688, %v4792, %v4785
    %v4795 = vsel %vm1688, %v4793, %v4787
    %v4796 = vpack.c.bf16 %v4795, %v4794
    %v4813 = vunpack.c.l.b16 %v3864
    %v4814 = vunpack.c.l.b16 %v3865
    %v4815 = vunpack.c.l.b16 %v3866
    %v4816 = vunpack.c.l.b16 %v3867
    %v4817 = vunpack.c.l.b16 %v3868
    %v4818 = vunpack.c.l.b16 %v3869
    %v4819 = vunpack.c.l.b16 %v3870
    %v4820 = vunpack.c.l.b16 %v3871
    %v4821 = vunpack.c.l.b16 %v3872
    %v4822 = vunpack.c.l.b16 %v3873
    %v4823 = vunpack.c.l.b16 %v3874
    %v4824 = vunpack.c.l.b16 %v3875
    %v4825 = vunpack.c.l.b16 %v3876
    %v4826 = vunpack.c.l.b16 %v3877
    %v4827 = vunpack.c.l.b16 %v3878
    %v4828 = vunpack.c.l.b16 %v3879
    %v4829 = vpack.c.b16 %v4814, %v4813
    %v4830 = vpack.c.b16 %v4816, %v4815
    %v4831 = vpack.c.b16 %v4818, %v4817
    %v4832 = vpack.c.b16 %v4820, %v4819
    %v4833 = vpack.c.b16 %v4822, %v4821
    %v4834 = vpack.c.b16 %v4824, %v4823
    %v4835 = vpack.c.b16 %v4826, %v4825
    %v4836 = vpack.c.b16 %v4828, %v4827
    %4845 = vmatprep.subr.bf16.mxu0 0
    %4846 = vmatpush1.bf16.msra.mxu0 %v4829
    %4847 = vmatprep.subr.bf16.mxu0 0
    %4848 = vmatpush1.bf16.msra.mxu0 %v4830
    %4849 = vmatprep.subr.bf16.mxu0 0
    %4850 = vmatpush1.bf16.msra.mxu0 %v4831
    %4851 = vmatprep.subr.bf16.mxu0 0
    %4852 = vmatpush1.bf16.msra.mxu0 %v4832
    %4853 = vmatprep.subr.bf16.mxu0 0
    %4854 = vmatpush1.bf16.msra.mxu0 %v4833
    %4855 = vmatprep.subr.bf16.mxu0 0
    %4856 = vmatpush1.bf16.msra.mxu0 %v4834
    %4857 = vmatprep.subr.bf16.mxu0 0
    %4858 = vmatpush1.bf16.msra.mxu0 %v4835
    %4859 = vmatprep.subr.bf16.mxu0 0
    %4860 = vmatpush1.bf16.msra.mxu0 %v4836
    %4861 = vmatprep.subr.bf16.mxu0 0
    %4862 = vmatpush1.bf16.msra.mxu0 0
    %4863 = vmatprep.subr.bf16.mxu0 0
    %4864 = vmatpush1.bf16.msra.mxu0 0
    %4865 = vmatprep.subr.bf16.mxu0 0
    %4866 = vmatpush1.bf16.msra.mxu0 0
    %4867 = vmatprep.subr.bf16.mxu0 0
    %4868 = vmatpush1.bf16.msra.mxu0 0
    %4869 = vmatprep.subr.bf16.mxu0 0
    %4870 = vmatpush1.bf16.msra.mxu0 0
    %4871 = vmatprep.subr.bf16.mxu0 0
    %4872 = vmatpush1.bf16.msra.mxu0 0
    %4873 = vmatprep.subr.bf16.mxu0 0
    %4874 = vmatpush1.bf16.msra.mxu0 0
    %4875 = vmatprep.subr.bf16.mxu0 0
    %4876 = vmatpush1.bf16.msra.mxu0 0
    %4877 = vmatprep.mubr.bf16.mxu0 0
    %4878 = vmatmul.mubr.bf16.gmra.mrb[0].mxu0 %v4796
    %v4879 = vpop.f32.mrb[0].mxu0
    %v4880 = vadd.f32 0.0, %v4879
    %v4881 = vpop.f32.mrb[0].mxu0
    %v4882 = vpop.f32.mrb[0].mxu0
    %v4883 = vadd.f32 0.0, %v4882
    %v4884 = vpop.f32.mrb[0].mxu0
    %4885 = vdwg.mxu0
    %v4886 = vadd.f32 %v3595, %v4880
    %v4887 = vadd.f32 %v3596, %v4883
    %v4888 = vld [vmem:[%s8 + $0x5] sm:$0x1]
    %v4889 = vmul.f32 %v4886, %v4886
    %v4890 = vmul.f32 %v4887, %v4887
    %4891 = vadd.xlane.f32.xlu0 %v4889
    %v4892 = vpop.xlane.xlu0 %4891
    %4893 = vadd.xlane.f32.xlu0 %v4890
    %v4894 = vpop.xlane.xlu0 %4893
    %v4895 = vmul.f32 %v4892, %v494
    %v4896 = vmul.f32 %v4894, %v494
    %v4897 = vadd.f32 %v4895, 1e-06
    %v4898 = vadd.f32 %v4896, 1e-06
    %v4899 = vrsqrt.pop %v4897
    %v4900 = vrsqrt.pop %v4898
    %v4901 = vmul.f32 %v4886, %v4899
    %v4902 = vmul.f32 %v4887, %v4900
    %v4903 = vlaneseq
    %v4904 = vshrl.u32 %v4903, 7
    %v4905 = vsub.s32 0, %v4904
    %v4906 = vrot.slane %v4888, %v4905
    %v4907 = vmul.f32 %v4901, %v4906
    %v4908 = vmul.f32 %v4902, %v4906
    %v4909 = vpack.c.bf16 %v4908, %v4907
    %v4910 = vld [vmem:[%s18] sm:$0xff]
    %v4911 = vld [vmem:[%s18 + $0x8] sm:$0xff]
    %v4912 = vld [vmem:[%s18 + $0x10] sm:$0xff]
    %v4913 = vld [vmem:[%s18 + $0x18] sm:$0xff]
    %v4914 = vld [vmem:[%s18 + $0x20] sm:$0xff]
    %v4915 = vld [vmem:[%s18 + $0x28] sm:$0xff]
    %v4916 = vld [vmem:[%s18 + $0x30] sm:$0xff]
    %v4917 = vld [vmem:[%s18 + $0x38] sm:$0xff]
    %v4918 = vld [vmem:[%s18 + $0x40] sm:$0xff]
    %v4919 = vld [vmem:[%s18 + $0x48] sm:$0xff]
    %v4920 = vld [vmem:[%s18 + $0x50] sm:$0xff]
    %v4921 = vld [vmem:[%s18 + $0x58] sm:$0xff]
    %v4922 = vld [vmem:[%s18 + $0x60] sm:$0xff]
    %v4923 = vld [vmem:[%s18 + $0x68] sm:$0xff]
    %v4924 = vld [vmem:[%s18 + $0x70] sm:$0xff]
    %v4925 = vld [vmem:[%s18 + $0x78] sm:$0xff]
    %v4942 = vunpack.c.l.b16 %v4910
    %v4943 = vunpack.c.h.b16 %v4910
    %v4944 = vunpack.c.l.b16 %v4911
    %v4945 = vunpack.c.h.b16 %v4911
    %v4946 = vunpack.c.l.b16 %v4912
    %v4947 = vunpack.c.h.b16 %v4912
    %v4948 = vunpack.c.l.b16 %v4913
    %v4949 = vunpack.c.h.b16 %v4913
    %v4950 = vunpack.c.l.b16 %v4914
    %v4951 = vunpack.c.h.b16 %v4914
    %v4952 = vunpack.c.l.b16 %v4915
    %v4953 = vunpack.c.h.b16 %v4915
    %v4954 = vunpack.c.l.b16 %v4916
    %v4955 = vunpack.c.h.b16 %v4916
    %v4956 = vunpack.c.l.b16 %v4917
    %v4957 = vunpack.c.h.b16 %v4917
    %v4958 = vunpack.c.l.b16 %v4918
    %v4959 = vunpack.c.h.b16 %v4918
    %v4960 = vunpack.c.l.b16 %v4919
    %v4961 = vunpack.c.h.b16 %v4919
    %v4962 = vunpack.c.l.b16 %v4920
    %v4963 = vunpack.c.h.b16 %v4920
    %v4964 = vunpack.c.l.b16 %v4921
    %v4965 = vunpack.c.h.b16 %v4921
    %v4966 = vunpack.c.l.b16 %v4922
    %v4967 = vunpack.c.h.b16 %v4922
    %v4968 = vunpack.c.l.b16 %v4923
    %v4969 = vunpack.c.h.b16 %v4923
    %v4970 = vunpack.c.l.b16 %v4924
    %v4971 = vunpack.c.h.b16 %v4924
    %v4972 = vunpack.c.l.b16 %v4925
    %v4973 = vunpack.c.h.b16 %v4925
    %v4974 = vpack.c.b16 %v4944, %v4942
    %v4975 = vpack.c.b16 %v4945, %v4943
    %v4976 = vpack.c.b16 %v4948, %v4946
    %v4977 = vpack.c.b16 %v4949, %v4947
    %v4978 = vpack.c.b16 %v4952, %v4950
    %v4979 = vpack.c.b16 %v4953, %v4951
    %v4980 = vpack.c.b16 %v4956, %v4954
    %v4981 = vpack.c.b16 %v4957, %v4955
    %v4982 = vpack.c.b16 %v4960, %v4958
    %v4983 = vpack.c.b16 %v4961, %v4959
    %v4984 = vpack.c.b16 %v4964, %v4962
    %v4985 = vpack.c.b16 %v4965, %v4963
    %v4986 = vpack.c.b16 %v4968, %v4966
    %v4987 = vpack.c.b16 %v4969, %v4967
    %v4988 = vpack.c.b16 %v4972, %v4970
    %v4989 = vpack.c.b16 %v4973, %v4971
    %5006 = vmatprep.subr.bf16.mxu0 %v4975
    %5007 = vmatpush1.bf16.msra.mxu0 %v4974
    %5008 = vmatprep.subr.bf16.mxu0 %v4977
    %5009 = vmatpush1.bf16.msra.mxu0 %v4976
    %5010 = vmatprep.subr.bf16.mxu0 %v4979
    %5011 = vmatpush1.bf16.msra.mxu0 %v4978
    %5012 = vmatprep.subr.bf16.mxu0 %v4981
    %5013 = vmatpush1.bf16.msra.mxu0 %v4980
    %5014 = vmatprep.subr.bf16.mxu0 %v4983
    %5015 = vmatpush1.bf16.msra.mxu0 %v4982
    %5016 = vmatprep.subr.bf16.mxu0 %v4985
    %5017 = vmatpush1.bf16.msra.mxu0 %v4984
    %5018 = vmatprep.subr.bf16.mxu0 %v4987
    %5019 = vmatpush1.bf16.msra.mxu0 %v4986
    %5020 = vmatprep.subr.bf16.mxu0 %v4989
    %5021 = vmatpush1.bf16.msra.mxu0 %v4988
    %5022 = vmatprep.subr.bf16.mxu0 0
    %5023 = vmatpush1.bf16.msra.mxu0 0
    %5024 = vmatprep.subr.bf16.mxu0 0
    %5025 = vmatpush1.bf16.msra.mxu0 0
    %5026 = vmatprep.subr.bf16.mxu0 0
    %5027 = vmatpush1.bf16.msra.mxu0 0
    %5028 = vmatprep.subr.bf16.mxu0 0
    %5029 = vmatpush1.bf16.msra.mxu0 0
    %5030 = vmatprep.subr.bf16.mxu0 0
    %5031 = vmatpush1.bf16.msra.mxu0 0
    %5032 = vmatprep.subr.bf16.mxu0 0
    %5033 = vmatpush1.bf16.msra.mxu0 0
    %5034 = vmatprep.subr.bf16.mxu0 0
    %5035 = vmatpush1.bf16.msra.mxu0 0
    %5036 = vmatprep.subr.bf16.mxu0 0
    %5037 = vmatpush1.bf16.msra.mxu0 0
    %5038 = vmatprep.mubr.bf16.mxu0 0
    %5039 = vmatmul.mubr.bf16.gmra.mrb[0].mxu0 %v4909
    %v5040 = vpop.f32.mrb[0].mxu0
    %v5041 = vadd.f32 0.0, %v5040
    %v5042 = vpop.f32.mrb[0].mxu0
    %v5043 = vadd.f32 0.0, %v5042
    %v5044 = vpop.f32.mrb[0].mxu0
    %v5045 = vadd.f32 0.0, %v5044
    %v5046 = vpop.f32.mrb[0].mxu0
    %v5047 = vadd.f32 0.0, %v5046
    %5048 = vdwg.mxu0
    %v5049 = vmax.f32 %v5041, 0.0
    %v5050 = vmax.f32 %v5043, 0.0
    %v5051 = vmax.f32 %v5045, 0.0
    %v5052 = vmax.f32 %v5047, 0.0
    %v5053 = vpack.c.bf16 %v5051, %v5049
    %v5054 = vpack.c.bf16 %v5052, %v5050
    %v5055 = vld [vmem:[%s19] sm:$0xf]
    %v5056 = vld [vmem:[%s19 + $0x4] sm:$0xf]
    %v5057 = vld [vmem:[%s19 + $0x8] sm:$0xf]
    %v5058 = vld [vmem:[%s19 + $0xc] sm:$0xf]
    %v5059 = vld [vmem:[%s19 + $0x10] sm:$0xf]
    %v5060 = vld [vmem:[%s19 + $0x14] sm:$0xf]
    %v5061 = vld [vmem:[%s19 + $0x18] sm:$0xf]
    %v5062 = vld [vmem:[%s19 + $0x1c] sm:$0xf]
    %v5063 = vld [vmem:[%s19 + $0x20] sm:$0xf]
    %v5064 = vld [vmem:[%s19 + $0x24] sm:$0xf]
    %v5065 = vld [vmem:[%s19 + $0x28] sm:$0xf]
    %v5066 = vld [vmem:[%s19 + $0x2c] sm:$0xf]
    %v5067 = vld [vmem:[%s19 + $0x30] sm:$0xf]
    %v5068 = vld [vmem:[%s19 + $0x34] sm:$0xf]
    %v5069 = vld [vmem:[%s19 + $0x38] sm:$0xf]
    %v5070 = vld [vmem:[%s19 + $0x3c] sm:$0xf]
    %v5071 = vld [vmem:[%s19 + $0x40] sm:$0xf]
    %v5072 = vld [vmem:[%s19 + $0x44] sm:$0xf]
    %v5073 = vld [vmem:[%s19 + $0x48] sm:$0xf]
    %v5074 = vld [vmem:[%s19 + $0x4c] sm:$0xf]
    %v5075 = vld [vmem:[%s19 + $0x50] sm:$0xf]
    %v5076 = vld [vmem:[%s19 + $0x54] sm:$0xf]
    %v5077 = vld [vmem:[%s19 + $0x58] sm:$0xf]
    %v5078 = vld [vmem:[%s19 + $0x5c] sm:$0xf]
    %v5079 = vld [vmem:[%s19 + $0x60] sm:$0xf]
    %v5080 = vld [vmem:[%s19 + $0x64] sm:$0xf]
    %v5081 = vld [vmem:[%s19 + $0x68] sm:$0xf]
    %v5082 = vld [vmem:[%s19 + $0x6c] sm:$0xf]
    %v5083 = vld [vmem:[%s19 + $0x70] sm:$0xf]
    %v5084 = vld [vmem:[%s19 + $0x74] sm:$0xf]
    %v5085 = vld [vmem:[%s19 + $0x78] sm:$0xf]
    %v5086 = vld [vmem:[%s19 + $0x7c] sm:$0xf]
    %v5119 = vunpack.c.l.b16 %v5055
    %v5120 = vunpack.c.l.b16 %v5056
    %v5121 = vunpack.c.l.b16 %v5057
    %v5122 = vunpack.c.l.b16 %v5058
    %v5123 = vunpack.c.l.b16 %v5059
    %v5124 = vunpack.c.l.b16 %v5060
    %v5125 = vunpack.c.l.b16 %v5061
    %v5126 = vunpack.c.l.b16 %v5062
    %v5127 = vunpack.c.l.b16 %v5063
    %v5128 = vunpack.c.l.b16 %v5064
    %v5129 = vunpack.c.l.b16 %v5065
    %v5130 = vunpack.c.l.b16 %v5066
    %v5131 = vunpack.c.l.b16 %v5067
    %v5132 = vunpack.c.l.b16 %v5068
    %v5133 = vunpack.c.l.b16 %v5069
    %v5134 = vunpack.c.l.b16 %v5070
    %v5135 = vunpack.c.l.b16 %v5071
    %v5136 = vunpack.c.l.b16 %v5072
    %v5137 = vunpack.c.l.b16 %v5073
    %v5138 = vunpack.c.l.b16 %v5074
    %v5139 = vunpack.c.l.b16 %v5075
    %v5140 = vunpack.c.l.b16 %v5076
    %v5141 = vunpack.c.l.b16 %v5077
    %v5142 = vunpack.c.l.b16 %v5078
    %v5143 = vunpack.c.l.b16 %v5079
    %v5144 = vunpack.c.l.b16 %v5080
    %v5145 = vunpack.c.l.b16 %v5081
    %v5146 = vunpack.c.l.b16 %v5082
    %v5147 = vunpack.c.l.b16 %v5083
    %v5148 = vunpack.c.l.b16 %v5084
    %v5149 = vunpack.c.l.b16 %v5085
    %v5150 = vunpack.c.l.b16 %v5086
    %v5151 = vpack.c.b16 %v5120, %v5119
    %v5152 = vpack.c.b16 %v5122, %v5121
    %v5153 = vpack.c.b16 %v5124, %v5123
    %v5154 = vpack.c.b16 %v5126, %v5125
    %v5155 = vpack.c.b16 %v5128, %v5127
    %v5156 = vpack.c.b16 %v5130, %v5129
    %v5157 = vpack.c.b16 %v5132, %v5131
    %v5158 = vpack.c.b16 %v5134, %v5133
    %v5159 = vpack.c.b16 %v5136, %v5135
    %v5160 = vpack.c.b16 %v5138, %v5137
    %v5161 = vpack.c.b16 %v5140, %v5139
    %v5162 = vpack.c.b16 %v5142, %v5141
    %v5163 = vpack.c.b16 %v5144, %v5143
    %v5164 = vpack.c.b16 %v5146, %v5145
    %v5165 = vpack.c.b16 %v5148, %v5147
    %v5166 = vpack.c.b16 %v5150, %v5149
    %5183 = vmatprep.subr.bf16.mxu0 0
    %5184 = vmatpush1.bf16.msra.mxu0 %v5151
    %5185 = vmatprep.subr.bf16.mxu0 0
    %5186 = vmatpush1.bf16.msra.mxu0 %v5152
    %5187 = vmatprep.subr.bf16.mxu0 0
    %5188 = vmatpush1.bf16.msra.mxu0 %v5153
    %5189 = vmatprep.subr.bf16.mxu0 0
    %5190 = vmatpush1.bf16.msra.mxu0 %v5154
    %5191 = vmatprep.subr.bf16.mxu0 0
    %5192 = vmatpush1.bf16.msra.mxu0 %v5155
    %5193 = vmatprep.subr.bf16.mxu0 0
    %5194 = vmatpush1.bf16.msra.mxu0 %v5156
    %5195 = vmatprep.subr.bf16.mxu0 0
    %5196 = vmatpush1.bf16.msra.mxu0 %v5157
    %5197 = vmatprep.subr.bf16.mxu0 0
    %5198 = vmatpush1.bf16.msra.mxu0 %v5158
    %5199 = vmatprep.subr.bf16.mxu0 0
    %5200 = vmatpush1.bf16.msra.mxu0 %v5159
    %5201 = vmatprep.subr.bf16.mxu0 0
    %5202 = vmatpush1.bf16.msra.mxu0 %v5160
    %5203 = vmatprep.subr.bf16.mxu0 0
    %5204 = vmatpush1.bf16.msra.mxu0 %v5161
    %5205 = vmatprep.subr.bf16.mxu0 0
    %5206 = vmatpush1.bf16.msra.mxu0 %v5162
    %5207 = vmatprep.subr.bf16.mxu0 0
    %5208 = vmatpush1.bf16.msra.mxu0 %v5163
    %5209 = vmatprep.subr.bf16.mxu0 0
    %5210 = vmatpush1.bf16.msra.mxu0 %v5164
    %5211 = vmatprep.subr.bf16.mxu0 0
    %5212 = vmatpush1.bf16.msra.mxu0 %v5165
    %5213 = vmatprep.subr.bf16.mxu0 0
    %5214 = vmatpush1.bf16.msra.mxu0 %v5166
    %5215 = vmatprep.mubr.bf16.mxu0 %v5054
    %5216 = vmatmul.mubr.bf16.gmra.mrb[0].mxu0 %v5053
    %v5217 = vpop.f32.mrb[0].mxu0
    %v5218 = vadd.f32 0.0, %v5217
    %v5219 = vpop.f32.mrb[0].mxu0
    %v5220 = vpop.f32.mrb[0].mxu0
    %v5221 = vadd.f32 0.0, %v5220
    %v5222 = vpop.f32.mrb[0].mxu0
    %5223 = vdwg.mxu0
    %v5224 = vadd.f32 %v4886, %v5218
    %v5225 = vadd.f32 %v4887, %v5221
    %v5226 = vld [vmem:[%s8 + $0x6] sm:$0x1]
    %v5227 = vmul.f32 %v5224, %v5224
    %v5228 = vmul.f32 %v5225, %v5225
    %5229 = vadd.xlane.f32.xlu0 %v5227
    %v5230 = vpop.xlane.xlu0 %5229
    %5231 = vadd.xlane.f32.xlu0 %v5228
    %v5232 = vpop.xlane.xlu0 %5231
    %v5233 = vmul.f32 %v5230, %v494
    %v5234 = vmul.f32 %v5232, %v494
    %v5235 = vadd.f32 %v5233, 1e-06
    %v5236 = vadd.f32 %v5234, 1e-06
    %v5237 = vrsqrt.pop %v5235
    %v5238 = vrsqrt.pop %v5236
    %v5239 = vmul.f32 %v5224, %v5237
    %v5240 = vmul.f32 %v5225, %v5238
    %v5241 = vlaneseq
    %v5242 = vshrl.u32 %v5241, 7
    %v5243 = vsub.s32 0, %v5242
    %v5244 = vrot.slane %v5226, %v5243
    %v5245 = vmul.f32 %v5239, %v5244
    %v5246 = vmul.f32 %v5240, %v5244
    %v5247 = vpack.c.bf16 %v5246, %v5245
    %v5248 = vld [vmem:[%s7] sm:$0xff]
    %v5249 = vld [vmem:[%s7 + $0x8] sm:$0xff]
    %v5250 = vld [vmem:[%s7 + $0x10] sm:$0xff]
    %v5251 = vld [vmem:[%s7 + $0x18] sm:$0xff]
    %v5252 = vld [vmem:[%s7 + $0x20] sm:$0xff]
    %v5253 = vld [vmem:[%s7 + $0x28] sm:$0xff]
    %v5254 = vld [vmem:[%s7 + $0x30] sm:$0xff]
    %v5255 = vld [vmem:[%s7 + $0x38] sm:$0xff]
    %v5256 = vld [vmem:[%s7 + $0x40] sm:$0xff]
    %v5257 = vld [vmem:[%s7 + $0x48] sm:$0xff]
    %v5258 = vld [vmem:[%s7 + $0x50] sm:$0xff]
    %v5259 = vld [vmem:[%s7 + $0x58] sm:$0xff]
    %v5260 = vld [vmem:[%s7 + $0x60] sm:$0xff]
    %v5261 = vld [vmem:[%s7 + $0x68] sm:$0xff]
    %v5262 = vld [vmem:[%s7 + $0x70] sm:$0xff]
    %v5263 = vld [vmem:[%s7 + $0x78] sm:$0xff]
    %v5264 = vld [vmem:[%s7 + $0x80] sm:$0xff]
    %v5265 = vld [vmem:[%s7 + $0x88] sm:$0xff]
    %v5266 = vld [vmem:[%s7 + $0x90] sm:$0xff]
    %v5267 = vld [vmem:[%s7 + $0x98] sm:$0xff]
    %v5268 = vld [vmem:[%s7 + $0xa0] sm:$0xff]
    %v5269 = vld [vmem:[%s7 + $0xa8] sm:$0xff]
    %v5270 = vld [vmem:[%s7 + $0xb0] sm:$0xff]
    %v5271 = vld [vmem:[%s7 + $0xb8] sm:$0xff]
    %v5272 = vld [vmem:[%s7 + $0xc0] sm:$0xff]
    %v5273 = vld [vmem:[%s7 + $0xc8] sm:$0xff]
    %v5274 = vld [vmem:[%s7 + $0xd0] sm:$0xff]
    %v5275 = vld [vmem:[%s7 + $0xd8] sm:$0xff]
    %v5276 = vld [vmem:[%s7 + $0xe0] sm:$0xff]
    %v5277 = vld [vmem:[%s7 + $0xe8] sm:$0xff]
    %v5278 = vld [vmem:[%s7 + $0xf0] sm:$0xff]
    %v5279 = vld [vmem:[%s7 + $0xf8] sm:$0xff]
    %v5312 = vunpack.c.l.b16 %v5248
    %v5313 = vunpack.c.h.b16 %v5248
    %v5314 = vunpack.c.l.b16 %v5249
    %v5315 = vunpack.c.h.b16 %v5249
    %v5316 = vunpack.c.l.b16 %v5250
    %v5317 = vunpack.c.h.b16 %v5250
    %v5318 = vunpack.c.l.b16 %v5251
    %v5319 = vunpack.c.h.b16 %v5251
    %v5320 = vunpack.c.l.b16 %v5252
    %v5321 = vunpack.c.h.b16 %v5252
    %v5322 = vunpack.c.l.b16 %v5253
    %v5323 = vunpack.c.h.b16 %v5253
    %v5324 = vunpack.c.l.b16 %v5254
    %v5325 = vunpack.c.h.b16 %v5254
    %v5326 = vunpack.c.l.b16 %v5255
    %v5327 = vunpack.c.h.b16 %v5255
    %v5328 = vunpack.c.l.b16 %v5256
    %v5329 = vunpack.c.h.b16 %v5256
    %v5330 = vunpack.c.l.b16 %v5257
    %v5331 = vunpack.c.h.b16 %v5257
    %v5332 = vunpack.c.l.b16 %v5258
    %v5333 = vunpack.c.h.b16 %v5258
    %v5334 = vunpack.c.l.b16 %v5259
    %v5335 = vunpack.c.h.b16 %v5259
    %v5336 = vunpack.c.l.b16 %v5260
    %v5337 = vunpack.c.h.b16 %v5260
    %v5338 = vunpack.c.l.b16 %v5261
    %v5339 = vunpack.c.h.b16 %v5261
    %v5340 = vunpack.c.l.b16 %v5262
    %v5341 = vunpack.c.h.b16 %v5262
    %v5342 = vunpack.c.l.b16 %v5263
    %v5343 = vunpack.c.h.b16 %v5263
    %v5344 = vunpack.c.l.b16 %v5264
    %v5345 = vunpack.c.h.b16 %v5264
    %v5346 = vunpack.c.l.b16 %v5265
    %v5347 = vunpack.c.h.b16 %v5265
    %v5348 = vunpack.c.l.b16 %v5266
    %v5349 = vunpack.c.h.b16 %v5266
    %v5350 = vunpack.c.l.b16 %v5267
    %v5351 = vunpack.c.h.b16 %v5267
    %v5352 = vunpack.c.l.b16 %v5268
    %v5353 = vunpack.c.h.b16 %v5268
    %v5354 = vunpack.c.l.b16 %v5269
    %v5355 = vunpack.c.h.b16 %v5269
    %v5356 = vunpack.c.l.b16 %v5270
    %v5357 = vunpack.c.h.b16 %v5270
    %v5358 = vunpack.c.l.b16 %v5271
    %v5359 = vunpack.c.h.b16 %v5271
    %v5360 = vunpack.c.l.b16 %v5272
    %v5361 = vunpack.c.h.b16 %v5272
    %v5362 = vunpack.c.l.b16 %v5273
    %v5363 = vunpack.c.h.b16 %v5273
    %v5364 = vunpack.c.l.b16 %v5274
    %v5365 = vunpack.c.h.b16 %v5274
    %v5366 = vunpack.c.l.b16 %v5275
    %v5367 = vunpack.c.h.b16 %v5275
    %v5368 = vunpack.c.l.b16 %v5276
    %v5369 = vunpack.c.h.b16 %v5276
    %v5370 = vunpack.c.l.b16 %v5277
    %v5371 = vunpack.c.h.b16 %v5277
    %v5372 = vunpack.c.l.b16 %v5278
    %v5373 = vunpack.c.h.b16 %v5278
    %v5374 = vunpack.c.l.b16 %v5279
    %v5375 = vunpack.c.h.b16 %v5279
    %v5376 = vpack.c.b16 %v5316, %v5312
    %v5377 = vpack.c.b16 %v5317, %v5313
    %v5378 = vpack.c.b16 %v5318, %v5314
    %v5379 = vpack.c.b16 %v5319, %v5315
    %v5380 = vpack.c.b16 %v5324, %v5320
    %v5381 = vpack.c.b16 %v5325, %v5321
    %v5382 = vpack.c.b16 %v5326, %v5322
    %v5383 = vpack.c.b16 %v5327, %v5323
    %v5384 = vpack.c.b16 %v5332, %v5328
    %v5385 = vpack.c.b16 %v5333, %v5329
    %v5386 = vpack.c.b16 %v5334, %v5330
    %v5387 = vpack.c.b16 %v5335, %v5331
    %v5388 = vpack.c.b16 %v5340, %v5336
    %v5389 = vpack.c.b16 %v5341, %v5337
    %v5390 = vpack.c.b16 %v5342, %v5338
    %v5391 = vpack.c.b16 %v5343, %v5339
    %v5392 = vpack.c.b16 %v5348, %v5344
    %v5393 = vpack.c.b16 %v5349, %v5345
    %v5394 = vpack.c.b16 %v5350, %v5346
    %v5395 = vpack.c.b16 %v5351, %v5347
    %v5396 = vpack.c.b16 %v5356, %v5352
    %v5397 = vpack.c.b16 %v5357, %v5353
    %v5398 = vpack.c.b16 %v5358, %v5354
    %v5399 = vpack.c.b16 %v5359, %v5355
    %v5400 = vpack.c.b16 %v5364, %v5360
    %v5401 = vpack.c.b16 %v5365, %v5361
    %v5402 = vpack.c.b16 %v5366, %v5362
    %v5403 = vpack.c.b16 %v5367, %v5363
    %v5404 = vpack.c.b16 %v5372, %v5368
    %v5405 = vpack.c.b16 %v5373, %v5369
    %v5406 = vpack.c.b16 %v5374, %v5370
    %v5407 = vpack.c.b16 %v5375, %v5371
    %5440 = vmatprep.subr.bf16.mxu0 %v5377
    %5441 = vmatpush1.bf16.msra.mxu0 %v5376
    %5442 = vmatprep.subr.bf16.mxu0 %v5381
    %5443 = vmatpush1.bf16.msra.mxu0 %v5380
    %5444 = vmatprep.subr.bf16.mxu0 %v5385
    %5445 = vmatpush1.bf16.msra.mxu0 %v5384
    %5446 = vmatprep.subr.bf16.mxu0 %v5389
    %5447 = vmatpush1.bf16.msra.mxu0 %v5388
    %5448 = vmatprep.subr.bf16.mxu0 %v5393
    %5449 = vmatpush1.bf16.msra.mxu0 %v5392
    %5450 = vmatprep.subr.bf16.mxu0 %v5397
    %5451 = vmatpush1.bf16.msra.mxu0 %v5396
    %5452 = vmatprep.subr.bf16.mxu0 %v5401
    %5453 = vmatpush1.bf16.msra.mxu0 %v5400
    %5454 = vmatprep.subr.bf16.mxu0 %v5405
    %5455 = vmatpush1.bf16.msra.mxu0 %v5404
    %5456 = vmatprep.subr.bf16.mxu0 0
    %5457 = vmatpush1.bf16.msra.mxu0 0
    %5458 = vmatprep.subr.bf16.mxu0 0
    %5459 = vmatpush1.bf16.msra.mxu0 0
    %5460 = vmatprep.subr.bf16.mxu0 0
    %5461 = vmatpush1.bf16.msra.mxu0 0
    %5462 = vmatprep.subr.bf16.mxu0 0
    %5463 = vmatpush1.bf16.msra.mxu0 0
    %5464 = vmatprep.subr.bf16.mxu0 0
    %5465 = vmatpush1.bf16.msra.mxu0 0
    %5466 = vmatprep.subr.bf16.mxu0 0
    %5467 = vmatpush1.bf16.msra.mxu0 0
    %5468 = vmatprep.subr.bf16.mxu0 0
    %5469 = vmatpush1.bf16.msra.mxu0 0
    %5470 = vmatprep.subr.bf16.mxu0 0
    %5471 = vmatpush1.bf16.msra.mxu0 0
    %5472 = vmatprep.mubr.bf16.mxu0 0
    %5473 = vmatmul.mubr.bf16.gmra.mrb[0].mxu0 %v5247
    %v5474 = vpop.f32.mrb[0].mxu0
    %v5475 = vadd.f32 0.0, %v5474
    %v5476 = vpop.f32.mrb[0].mxu0
    %v5477 = vadd.f32 0.0, %v5476
    %v5478 = vpop.f32.mrb[0].mxu0
    %v5479 = vadd.f32 0.0, %v5478
    %v5480 = vpop.f32.mrb[0].mxu0
    %v5481 = vadd.f32 0.0, %v5480
    %5482 = vdwg.mxu0
    %5483 = vmatprep.subr.bf16.mxu0 %v5379
    %5484 = vmatpush1.bf16.msra.mxu0 %v5378
    %5485 = vmatprep.subr.bf16.mxu0 %v5383
    %5486 = vmatpush1.bf16.msra.mxu0 %v5382
    %5487 = vmatprep.subr.bf16.mxu0 %v5387
    %5488 = vmatpush1.bf16.msra.mxu0 %v5386
    %5489 = vmatprep.subr.bf16.mxu0 %v5391
    %5490 = vmatpush1.bf16.msra.mxu0 %v5390
    %5491 = vmatprep.subr.bf16.mxu0 %v5395
    %5492 = vmatpush1.bf16.msra.mxu0 %v5394
    %5493 = vmatprep.subr.bf16.mxu0 %v5399
    %5494 = vmatpush1.bf16.msra.mxu0 %v5398
    %5495 = vmatprep.subr.bf16.mxu0 %v5403
    %5496 = vmatpush1.bf16.msra.mxu0 %v5402
    %5497 = vmatprep.subr.bf16.mxu0 %v5407
    %5498 = vmatpush1.bf16.msra.mxu0 %v5406
    %5499 = vmatprep.subr.bf16.mxu0 0
    %5500 = vmatpush1.bf16.msra.mxu0 0
    %5501 = vmatprep.subr.bf16.mxu0 0
    %5502 = vmatpush1.bf16.msra.mxu0 0
    %5503 = vmatprep.subr.bf16.mxu0 0
    %5504 = vmatpush1.bf16.msra.mxu0 0
    %5505 = vmatprep.subr.bf16.mxu0 0
    %5506 = vmatpush1.bf16.msra.mxu0 0
    %5507 = vmatprep.subr.bf16.mxu0 0
    %5508 = vmatpush1.bf16.msra.mxu0 0
    %5509 = vmatprep.subr.bf16.mxu0 0
    %5510 = vmatpush1.bf16.msra.mxu0 0
    %5511 = vmatprep.subr.bf16.mxu0 0
    %5512 = vmatpush1.bf16.msra.mxu0 0
    %5513 = vmatprep.subr.bf16.mxu0 0
    %5514 = vmatpush1.bf16.msra.mxu0 0
    %5515 = vmatprep.mubr.bf16.mxu0 0
    %5516 = vmatmul.mubr.bf16.gmra.mrb[0].mxu0 %v5247
    %v5517 = vpop.f32.mrb[0].mxu0
    %v5518 = vadd.f32 0.0, %v5517
    %v5519 = vpop.f32.mrb[0].mxu0
    %v5520 = vadd.f32 0.0, %v5519
    %v5521 = vpop.f32.mrb[0].mxu0
    %v5522 = vadd.f32 0.0, %v5521
    %v5523 = vpop.f32.mrb[0].mxu0
    %v5524 = vadd.f32 0.0, %v5523
    %5525 = vdwg.mxu0
    %v5526 = vmax.f32 %v5475, %v5518
    %v5527 = vmax.f32 %v5477, %v5520
    %v5528 = vmax.f32 %v5526, %v5527
    %5529 = vmax.xlane.f32.xlu0 %v5528
    %v5530 = vpop.xlane.xlu0 %5529
    %v5531 = vmax.f32 %v5479, %v5522
    %v5532 = vmax.f32 %v5481, %v5524
    %v5533 = vmax.f32 %v5531, %v5532
    %5534 = vmax.xlane.f32.xlu0 %v5533
    %v5535 = vpop.xlane.xlu0 %5534
    %v5536 = vsub.f32 %v5475, %v5530
    %v5537 = vsub.f32 %v5477, %v5530
    %v5538 = vsub.f32 %v5518, %v5530
    %v5539 = vsub.f32 %v5520, %v5530
    %v5540 = vsub.f32 %v5479, %v5535
    %v5541 = vsub.f32 %v5481, %v5535
    %v5542 = vsub.f32 %v5522, %v5535
    %v5543 = vsub.f32 %v5524, %v5535
    %v5544 = vmul.f32 %v5536, 1.442695
    %v5545 = vpow.pop %v5544
    %v5546 = vmul.f32 %v5537, 1.442695
    %v5547 = vpow.pop %v5546
    %v5548 = vmul.f32 %v5538, 1.442695
    %v5549 = vpow.pop %v5548
    %v5550 = vmul.f32 %v5539, 1.442695
    %v5551 = vpow.pop %v5550
    %v5552 = vmul.f32 %v5540, 1.442695
    %v5553 = vpow.pop %v5552
    %v5554 = vmul.f32 %v5541, 1.442695
    %v5555 = vpow.pop %v5554
    %v5556 = vmul.f32 %v5542, 1.442695
    %v5557 = vpow.pop %v5556
    %v5558 = vmul.f32 %v5543, 1.442695
    %v5559 = vpow.pop %v5558
    %v5560 = vadd.f32 %v5545, %v5547
    %v5561 = vadd.f32 %v5560, %v5549
    %v5562 = vadd.f32 %v5561, %v5551
    %5563 = vadd.xlane.f32.xlu0 %v5562
    %v5564 = vpop.xlane.xlu0 %5563
    %v5565 = vadd.f32 %v5553, %v5555
    %v5566 = vadd.f32 %v5565, %v5557
    %v5567 = vadd.f32 %v5566, %v5559
    %5568 = vadd.xlane.f32.xlu0 %v5567
    %v5569 = vpop.xlane.xlu0 %5568
    %v5570 = vlog2.pop %v5564
    %v5571 = vmul.f32 %v5570, 0.6931472
    %v5572 = vlog2.pop %v5569
    %v5573 = vmul.f32 %v5572, 0.6931472
    %v5574 = vadd.f32 %v5571, %v5530
    %v5575 = vadd.f32 %v5573, %v5535
    %v5576 = vld [vmem:[%s2] sm:$0xff]
    %v5577 = vld [vmem:[%s2 + $0x8] sm:$0xff]
    %5578 = vset.pattern.permute.xlu0 0
    %5579 = vperm.xlu0 %5578, %v5576
    %v5580 = vpop.permute.xlu0 %5579
    %5581 = vset.pattern.permute.xlu0 0
    %5582 = vperm.xlu0 %5581, %v5577
    %v5583 = vpop.permute.xlu0 %5582
    %vm5584 = vcmp.eq.s32.totalorder %v175, %v5580
    %vm5585 = vcmp.eq.s32.totalorder %v176, %v5580
    %vm5586 = vcmp.eq.s32.totalorder %v177, %v5580
    %vm5587 = vcmp.eq.s32.totalorder %v178, %v5580
    %vm5588 = vcmp.eq.s32.totalorder %v175, %v5583
    %vm5589 = vcmp.eq.s32.totalorder %v176, %v5583
    %vm5590 = vcmp.eq.s32.totalorder %v177, %v5583
    %vm5591 = vcmp.eq.s32.totalorder %v178, %v5583
    %v5592 = vsel %vm5584, %v5475, 0.0
    %v5593 = vsel %vm5585, %v5477, 0.0
    %v5594 = vsel %vm5586, %v5518, 0.0
    %v5595 = vsel %vm5587, %v5520, 0.0
    %v5596 = vsel %vm5588, %v5479, 0.0
    %v5597 = vsel %vm5589, %v5481, 0.0
    %v5598 = vsel %vm5590, %v5522, 0.0
    %v5599 = vsel %vm5591, %v5524, 0.0
    %v5600 = vadd.f32 %v5592, %v5593
    %v5601 = vadd.f32 %v5600, %v5594
    %v5602 = vadd.f32 %v5601, %v5595
    %5603 = vadd.xlane.f32.xlu0 %v5602
    %v5604 = vpop.xlane.xlu0 %5603
    %v5605 = vadd.f32 %v5596, %v5597
    %v5606 = vadd.f32 %v5605, %v5598
    %v5607 = vadd.f32 %v5606, %v5599
    %5608 = vadd.xlane.f32.xlu0 %v5607
    %v5609 = vpop.xlane.xlu0 %5608
    %v5610 = vld [vmem:[%s5] sm:$0xff]
    %v5611 = vld [vmem:[%s5 + $0x8] sm:$0xff]
    %v5612 = vsub.f32 %v5574, %v5604
    %v5613 = vsub.f32 %v5575, %v5609
    %v5614 = vmul.f32 %v5612, %v5610
    %v5615 = vmul.f32 %v5613, %v5611
    %vm5616 = vcmask 7168
    %v5617 = vsel %vm5616, %v5614, 0.0
    %v5618 = vsel %vm5616, %v5615, 0.0
    %v5619 = vadd.f32 %v5617, %v5618
    %5620 = vadd.xlane.f32.xlu0 %v5619
    %v5621 = vpop.xlane.xlu0 %5620
    %v5622 = vrot.slane %v5621, 4
    %v5623 = vadd.f32 %v5621, %v5622
    %v5624 = vrot.slane %v5623, 2
    %v5625 = vadd.f32 %v5623, %v5624
    %v5626 = vrot.slane %v5625, 1
    %v5627 = vadd.f32 %v5625, %v5626
    %s5628 = vtos %v5627
    %v5629 = vsel %vm5616, %v5610, 0.0
    %v5630 = vsel %vm5616, %v5611, 0.0
    %v5631 = vadd.f32 %v5629, %v5630
    %5632 = vadd.xlane.f32.xlu0 %v5631
    %v5633 = vpop.xlane.xlu0 %5632
    %v5634 = vrot.slane %v5633, 4
    %v5635 = vadd.f32 %v5633, %v5634
    %v5636 = vrot.slane %v5635, 2
    %v5637 = vadd.f32 %v5635, %v5636
    %v5638 = vrot.slane %v5637, 1
    %v5639 = vadd.f32 %v5637, %v5638
    %s5640 = vtos %v5639
    %s5641 = smax.f32 %s5640, 1.0
    %v5642 = vstv %s5641
    %v5643 = vrcp.pop %v5642
    %s5644 = vtos %v5643
    %s5645 = smul.f32 %s5628, %s5644
    %s5646 = scalar_lea.smem [#allocation2], 0
    %5647 = sst [smem:[%s5646]] %s5645
    // Predicated region
    $region82: #{seq_supervised_arg_forward.1} parent=1 // pred_check
      _
    $region83: #{seq_supervised_arg_forward.1} parent=1 // pred_check_branch
      %5649 = sbr.rel (0) target = $region85
    $region84: #{seq_supervised_arg_forward.1} parent=1 // pred_region
      %s5651 = ssub.s32 16, 16
      %5652 = vsyncadd [#allocation3], %s5651
      %5655 = dma.smem_to_hbm [#allocation2], 16, %s20, [#allocation3]
    $region85: #{seq_supervised_arg_forward.1} parent=1 // pred_fallthru
      _
    // Predicated region
    $region86: #{seq_supervised_arg_forward.1} parent=1 // pred_check
      _
    $region87: #{seq_supervised_arg_forward.1} parent=1 // pred_check_branch
      %5657 = sbr.rel (0) target = $region89
    $region88: #{seq_supervised_arg_forward.1} parent=1 // pred_region
      %5658 = dma.done [#allocation3], 16
    $region89: #{seq_supervised_arg_forward.1} parent=1 // pred_fallthru
      _
    %5659 = sfence
    %5660 = vsyncpa [#allocation3], 1

</llo_original>
